<compile_context>
chip_gen: v7x
topology: tpu7x:2x2x1
jax: 0.10.0
libtpu: 0.0.40
codegen_flags: <defaults>
</compile_context>

<pallas_src>
import jax
import jax.numpy as jnp
from jax.experimental import pallas as pl
from jax.experimental.pallas import tpu as pltpu


def rbmf_mlp_kernel(e1_ref, e2_ref, w1a_ref, w1b_ref, b1_ref,
                    w2_ref, b2_ref, w3_ref, b3_ref, wp_ref, bp_ref, o_ref):
    """MLP (3 x Linear+ReLU) + predict head + sigmoid on one (TN, ·) row tile."""
    # Layer 1: concat([e1, e2]) @ W1  ==  e1 @ W1[:E] + e2 @ W1[E:]
    h = (jnp.dot(e1_ref[...], w1a_ref[...], preferred_element_type=jnp.float32)
         + jnp.dot(e2_ref[...], w1b_ref[...], preferred_element_type=jnp.float32)
         + b1_ref[...])
    h = jnp.maximum(h, 0.0)

    h = jnp.dot(h.astype(jnp.bfloat16), w2_ref[...],
                preferred_element_type=jnp.float32) + b2_ref[...]
    h = jnp.maximum(h, 0.0)

    h = jnp.dot(h.astype(jnp.bfloat16), w3_ref[...],
                preferred_element_type=jnp.float32) + b3_ref[...]
    h = jnp.maximum(h, 0.0)

    # Predict head: degenerate (TN, D) @ (D, 1) matmul moved off the MXU onto
    # a VPU multiply + XLU cross-lane reduce.
    logits = jnp.sum(h * wp_ref[...], axis=-1, keepdims=True) + bp_ref[...]
    o_ref[...] = jax.nn.sigmoid(logits)


def rbmf_forward(x1, x2, params, tile_n=2048):
    """x1, x2: int32 (B, S). Returns float32 (B, S)."""
    B, S = x1.shape
    E = params["emb1"].shape[1]
    D = 2 * E
    N = B * S

    num_tiles = pl.cdiv(N, tile_n)
    n_pad = num_tiles * tile_n

    # --- glue: pad indices, then embedding gather (plain JAX). Padding the
    # indices (not the gathered arrays) avoids an extra HBM copy.
    idx1 = x1.reshape(N)
    idx2 = x2.reshape(N)
    if n_pad != N:
        idx1 = jnp.pad(idx1, (0, n_pad - N))
        idx2 = jnp.pad(idx2, (0, n_pad - N))

    e1 = params["emb1"][idx1].astype(jnp.bfloat16)   # (n_pad, E)
    e2 = params["emb2"][idx2].astype(jnp.bfloat16)   # (n_pad, E)

    # Weights stored as (in, out); split W1 so the concat is never materialized.
    w1 = params["w1"].astype(jnp.bfloat16)
    w1a, w1b = w1[:E], w1[E:]
    w2 = params["w2"].astype(jnp.bfloat16)
    w3 = params["w3"].astype(jnp.bfloat16)
    wp_row = params["wp"].reshape(1, D)               # f32, used on the VPU
    bp = params["bp"]                                 # (1, 1) f32
    b1, b2, b3 = params["b1"], params["b2"], params["b3"]

    def const_spec(shape):
        return pl.BlockSpec(shape, lambda i: tuple(0 for _ in shape))

    cost = pl.CostEstimate(
        flops=n_pad * (3 * 2 * D * D + 2 * D),
        transcendentals=n_pad,
        bytes_accessed=(2 * n_pad * E * 2          # bf16 activation stream in
                        + n_pad * 4                # f32 output
                        + 3 * D * D * 2 + 4 * D * 4),  # weights + biases
    )

    out = pl.pallas_call(
        rbmf_mlp_kernel,
        out_shape=jax.ShapeDtypeStruct((n_pad, 1), jnp.float32),
        grid=(num_tiles,),
        in_specs=[
            pl.BlockSpec((tile_n, E), lambda i: (i, 0)),   # e1 tile
            pl.BlockSpec((tile_n, E), lambda i: (i, 0)),   # e2 tile
            const_spec((E, D)),  # w1a
            const_spec((E, D)),  # w1b
            const_spec((1, D)),  # b1
            const_spec((D, D)),  # w2
            const_spec((1, D)),  # b2
            const_spec((D, D)),  # w3
            const_spec((1, D)),  # b3
            const_spec((1, D)),  # wp (row)
            const_spec((1, 1)),  # bp
        ],
        out_specs=pl.BlockSpec((tile_n, 1), lambda i: (i, 0)),
        compiler_params=pltpu.CompilerParams(
            dimension_semantics=("parallel",),
            vmem_limit_bytes=32 * 1024 * 1024),
        cost_estimate=cost,
    )(e1, e2, w1a, w1b, b1, w2, b2, w3, b3, wp_row, bp)

    return out[:N, 0].reshape(B, S)


def init_params(key, user_num, item_num, embed_dim):
    """Deterministic init mirroring PyTorch defaults (N(0,1) emb, U(+-1/sqrt(in)) linear)."""
    D = 2 * embed_dim
    n_emb = user_num + item_num
    ks = jax.random.split(key, 10)
    lim = 1.0 / jnp.sqrt(jnp.float32(D))

    def lin(kw, kb, out_dim):
        w = jax.random.uniform(kw, (D, out_dim), jnp.float32, -lim, lim)  # (in, out)
        b = jax.random.uniform(kb, (1, out_dim), jnp.float32, -lim, lim)
        return w, b

    emb1 = jax.random.normal(ks[0], (n_emb, embed_dim), jnp.float32)
    emb2 = jax.random.normal(ks[1], (n_emb, embed_dim), jnp.float32)
    w1, b1 = lin(ks[2], ks[3], D)
    w2, b2 = lin(ks[4], ks[5], D)
    w3, b3 = lin(ks[6], ks[7], D)
    wp, bp = lin(ks[8], ks[9], 1)
    return dict(emb1=emb1, emb2=emb2, w1=w1, b1=b1, w2=w2, b2=b2,
                w3=w3, b3=b3, wp=wp, bp=bp)


def rbmf_reference(x1, x2, p):
    """Pure-JAX reference with matching bf16 activation/weight precision."""
    E = p["emb1"].shape[1]
    e1 = p["emb1"][x1].astype(jnp.bfloat16)
    e2 = p["emb2"][x2].astype(jnp.bfloat16)
    w1 = p["w1"].astype(jnp.bfloat16)
    h = (jnp.dot(e1, w1[:E], preferred_element_type=jnp.float32)
         + jnp.dot(e2, w1[E:], preferred_element_type=jnp.float32)
         + p["b1"])
    h = jnp.maximum(h, 0.0)
    for w, b in ((p["w2"], p["b2"]), (p["w3"], p["b3"])):
        h = jnp.dot(h.astype(jnp.bfloat16), w.astype(jnp.bfloat16),
                    preferred_element_type=jnp.float32) + b
        h = jnp.maximum(h, 0.0)
    logits = h @ p["wp"] + p["bp"]
    return jax.nn.sigmoid(logits.squeeze(-1))


if __name__ == "__main__":
    user_num, item_num = 6, 10
    embed_dim = 32
    B, S = 2, 8

    key = jax.random.PRNGKey(0)
    k_param, k_x1, k_x2 = jax.random.split(key, 3)
    params = init_params(k_param, user_num, item_num, embed_dim)

    n_ids = user_num + item_num
    x1 = jax.random.randint(k_x1, (B, S), 0, n_ids, dtype=jnp.int32)
    x2 = jax.random.randint(k_x2, (B, S), 0, n_ids, dtype=jnp.int32)

    out = rbmf_forward(x1, x2, params)
    out = jax.block_until_ready(out)

    ref = rbmf_reference(x1, x2, params)
    assert out.shape == (B, S)
    assert jnp.allclose(out, ref, atol=2e-3, rtol=2e-3), "mismatch vs reference"

    print("KERNEL_OK")
</pallas_src>

<mosaic_0001>
module attributes {stable_mosaic.version = 11 : i64} {
  func.func @rbmf_mlp_kernel(%arg0: i32, %arg1: memref<2048x32xbf16, #tpu.memory_space<vmem>>, %arg2: memref<2048x32xbf16, #tpu.memory_space<vmem>>, %arg3: memref<32x64xbf16, #tpu.memory_space<vmem>>, %arg4: memref<32x64xbf16, #tpu.memory_space<vmem>>, %arg5: memref<1x64xf32, #tpu.memory_space<vmem>>, %arg6: memref<64x64xbf16, #tpu.memory_space<vmem>>, %arg7: memref<1x64xf32, #tpu.memory_space<vmem>>, %arg8: memref<64x64xbf16, #tpu.memory_space<vmem>>, %arg9: memref<1x64xf32, #tpu.memory_space<vmem>>, %arg10: memref<1x64xf32, #tpu.memory_space<vmem>>, %arg11: memref<1x1xf32, #tpu.memory_space<vmem>>, %arg12: memref<2048x1xf32, #tpu.memory_space<vmem>>) attributes {dimension_semantics = [#tpu.dimension_semantics<parallel>], iteration_bounds = array<i64: 1>, scalar_prefetch = 0 : i64, scratch_operands = 0 : i64, tpu.core_type = #tpu.core_type<tc>, window_params = [{transform_indices = @transform_0, window_bounds = array<i64: 2048, 32>}, {transform_indices = @transform_1, window_bounds = array<i64: 2048, 32>}, {pipeline_mode = #tpu.pipeline_mode<synchronous>, transform_indices = @transform_2, window_bounds = array<i64: 32, 64>}, {pipeline_mode = #tpu.pipeline_mode<synchronous>, transform_indices = @transform_3, window_bounds = array<i64: 32, 64>}, {pipeline_mode = #tpu.pipeline_mode<synchronous>, transform_indices = @transform_4, window_bounds = array<i64: 1, 64>}, {pipeline_mode = #tpu.pipeline_mode<synchronous>, transform_indices = @transform_5, window_bounds = array<i64: 64, 64>}, {pipeline_mode = #tpu.pipeline_mode<synchronous>, transform_indices = @transform_6, window_bounds = array<i64: 1, 64>}, {pipeline_mode = #tpu.pipeline_mode<synchronous>, transform_indices = @transform_7, window_bounds = array<i64: 64, 64>}, {pipeline_mode = #tpu.pipeline_mode<synchronous>, transform_indices = @transform_8, window_bounds = array<i64: 1, 64>}, {pipeline_mode = #tpu.pipeline_mode<synchronous>, transform_indices = @transform_9, window_bounds = array<i64: 1, 64>}, {pipeline_mode = #tpu.pipeline_mode<synchronous>, transform_indices = @transform_10, window_bounds = array<i64: 1, 1>}, {transform_indices = @transform_11, window_bounds = array<i64: 2048, 1>}]} {
    %c0 = arith.constant 0 : index
    %c0_0 = arith.constant 0 : index
    %0 = vector.load %arg1[%c0, %c0_0] : memref<2048x32xbf16, #tpu.memory_space<vmem>>, vector<2048x32xbf16>
    %c0_1 = arith.constant 0 : index
    %c0_2 = arith.constant 0 : index
    %1 = vector.load %arg3[%c0_1, %c0_2] : memref<32x64xbf16, #tpu.memory_space<vmem>>, vector<32x64xbf16>
    %cst = arith.constant dense<0.000000e+00> : vector<2048x64xf32>
    %2 = tpu.matmul %0, %1, %cst {dimension_numbers = #tpu.dot_dimension_numbers<[1], [0], [0], [1], [0, 0, 1, 1], [], []>} : vector<2048x32xbf16>, vector<32x64xbf16>, vector<2048x64xf32> -> vector<2048x64xf32>
    %c0_3 = arith.constant 0 : index
    %c0_4 = arith.constant 0 : index
    %3 = vector.load %arg2[%c0_3, %c0_4] : memref<2048x32xbf16, #tpu.memory_space<vmem>>, vector<2048x32xbf16>
    %c0_5 = arith.constant 0 : index
    %c0_6 = arith.constant 0 : index
    %4 = vector.load %arg4[%c0_5, %c0_6] : memref<32x64xbf16, #tpu.memory_space<vmem>>, vector<32x64xbf16>
    %cst_7 = arith.constant dense<0.000000e+00> : vector<2048x64xf32>
    %5 = tpu.matmul %3, %4, %cst_7 {dimension_numbers = #tpu.dot_dimension_numbers<[1], [0], [0], [1], [0, 0, 1, 1], [], []>} : vector<2048x32xbf16>, vector<32x64xbf16>, vector<2048x64xf32> -> vector<2048x64xf32>
    %6 = arith.addf %2, %5 : vector<2048x64xf32>
    %c0_8 = arith.constant 0 : index
    %c0_9 = arith.constant 0 : index
    %7 = vector.load %arg5[%c0_8, %c0_9] : memref<1x64xf32, #tpu.memory_space<vmem>>, vector<1x64xf32>
    %8 = vector.broadcast %7 : vector<1x64xf32> to vector<2048x64xf32>
    %9 = arith.addf %6, %8 : vector<2048x64xf32>
    %cst_10 = arith.constant 0.000000e+00 : f32
    %10 = vector.broadcast %cst_10 : f32 to vector<2048x64xf32>
    %11 = arith.maximumf %9, %10 : vector<2048x64xf32>
    %12 = arith.truncf %11 : vector<2048x64xf32> to vector<2048x64xbf16>
    %c0_11 = arith.constant 0 : index
    %c0_12 = arith.constant 0 : index
    %13 = vector.load %arg6[%c0_11, %c0_12] : memref<64x64xbf16, #tpu.memory_space<vmem>>, vector<64x64xbf16>
    %cst_13 = arith.constant dense<0.000000e+00> : vector<2048x64xf32>
    %14 = tpu.matmul %12, %13, %cst_13 {dimension_numbers = #tpu.dot_dimension_numbers<[1], [0], [0], [1], [0, 0, 1, 1], [], []>} : vector<2048x64xbf16>, vector<64x64xbf16>, vector<2048x64xf32> -> vector<2048x64xf32>
    %c0_14 = arith.constant 0 : index
    %c0_15 = arith.constant 0 : index
    %15 = vector.load %arg7[%c0_14, %c0_15] : memref<1x64xf32, #tpu.memory_space<vmem>>, vector<1x64xf32>
    %16 = vector.broadcast %15 : vector<1x64xf32> to vector<2048x64xf32>
    %17 = arith.addf %14, %16 : vector<2048x64xf32>
    %cst_16 = arith.constant 0.000000e+00 : f32
    %18 = vector.broadcast %cst_16 : f32 to vector<2048x64xf32>
    %19 = arith.maximumf %17, %18 : vector<2048x64xf32>
    %20 = arith.truncf %19 : vector<2048x64xf32> to vector<2048x64xbf16>
    %c0_17 = arith.constant 0 : index
    %c0_18 = arith.constant 0 : index
    %21 = vector.load %arg8[%c0_17, %c0_18] : memref<64x64xbf16, #tpu.memory_space<vmem>>, vector<64x64xbf16>
    %cst_19 = arith.constant dense<0.000000e+00> : vector<2048x64xf32>
    %22 = tpu.matmul %20, %21, %cst_19 {dimension_numbers = #tpu.dot_dimension_numbers<[1], [0], [0], [1], [0, 0, 1, 1], [], []>} : vector<2048x64xbf16>, vector<64x64xbf16>, vector<2048x64xf32> -> vector<2048x64xf32>
    %c0_20 = arith.constant 0 : index
    %c0_21 = arith.constant 0 : index
    %23 = vector.load %arg9[%c0_20, %c0_21] : memref<1x64xf32, #tpu.memory_space<vmem>>, vector<1x64xf32>
    %24 = vector.broadcast %23 : vector<1x64xf32> to vector<2048x64xf32>
    %25 = arith.addf %22, %24 : vector<2048x64xf32>
    %cst_22 = arith.constant 0.000000e+00 : f32
    %26 = vector.broadcast %cst_22 : f32 to vector<2048x64xf32>
    %27 = arith.maximumf %25, %26 : vector<2048x64xf32>
    %c0_23 = arith.constant 0 : index
    %c0_24 = arith.constant 0 : index
    %28 = vector.load %arg10[%c0_23, %c0_24] : memref<1x64xf32, #tpu.memory_space<vmem>>, vector<1x64xf32>
    %29 = vector.broadcast %28 : vector<1x64xf32> to vector<2048x64xf32>
    %30 = arith.mulf %27, %29 : vector<2048x64xf32>
    %cst_25 = arith.constant dense<0.000000e+00> : vector<2048xf32>
    %31 = vector.multi_reduction <add>, %30, %cst_25 [1] : vector<2048x64xf32> to vector<2048xf32>
    %32 = vector.shape_cast %31 : vector<2048xf32> to vector<2048x1xf32>
    %c0_26 = arith.constant 0 : index
    %c0_27 = arith.constant 0 : index
    %33 = vector.load %arg11[%c0_26, %c0_27] : memref<1x1xf32, #tpu.memory_space<vmem>>, vector<1x1xf32>
    %34 = vector.broadcast %33 : vector<1x1xf32> to vector<2048x1xf32>
    %35 = arith.addf %32, %34 : vector<2048x1xf32>
    %36 = arith.negf %35 : vector<2048x1xf32>
    %37 = math.exp %36 : vector<2048x1xf32>
    %cst_28 = arith.constant 1.000000e+00 : f32
    %38 = vector.broadcast %cst_28 : f32 to vector<2048x1xf32>
    %39 = arith.addf %38, %37 : vector<2048x1xf32>
    %40 = arith.divf %38, %39 : vector<2048x1xf32>
    %c0_29 = arith.constant 0 : index
    %c0_30 = arith.constant 0 : index
    %41 = vector.load %arg12[%c0_29, %c0_30] : memref<2048x1xf32, #tpu.memory_space<vmem>>, vector<2048x1xf32>
    tpu.vector_store %arg12[%c0_29, %c0_30], %40 {strides = array<i32>} : memref<2048x1xf32, #tpu.memory_space<vmem>>, vector<2048x1xf32>,
    return
  }
  func.func @transform_0(%arg0: i32) -> (i32, i32) {
    %c0_i32 = arith.constant 0 : i32
    %c0_i32_0 = arith.constant 0 : i32
    return %arg0, %c0_i32 : i32, i32
  }
  func.func @transform_1(%arg0: i32) -> (i32, i32) {
    %c0_i32 = arith.constant 0 : i32
    %c0_i32_0 = arith.constant 0 : i32
    return %arg0, %c0_i32 : i32, i32
  }
  func.func @transform_2(%arg0: i32) -> (i32, i32) {
    %c0_i32 = arith.constant 0 : i32
    %c0_i32_0 = arith.constant 0 : i32
    %c0_i32_1 = arith.constant 0 : i32
    return %c0_i32, %c0_i32_0 : i32, i32
  }
  func.func @transform_3(%arg0: i32) -> (i32, i32) {
    %c0_i32 = arith.constant 0 : i32
    %c0_i32_0 = arith.constant 0 : i32
    %c0_i32_1 = arith.constant 0 : i32
    return %c0_i32, %c0_i32_0 : i32, i32
  }
  func.func @transform_4(%arg0: i32) -> (i32, i32) {
    %c0_i32 = arith.constant 0 : i32
    %c0_i32_0 = arith.constant 0 : i32
    %c0_i32_1 = arith.constant 0 : i32
    return %c0_i32, %c0_i32_0 : i32, i32
  }
  func.func @transform_5(%arg0: i32) -> (i32, i32) {
    %c0_i32 = arith.constant 0 : i32
    %c0_i32_0 = arith.constant 0 : i32
    %c0_i32_1 = arith.constant 0 : i32
    return %c0_i32, %c0_i32_0 : i32, i32
  }
  func.func @transform_6(%arg0: i32) -> (i32, i32) {
    %c0_i32 = arith.constant 0 : i32
    %c0_i32_0 = arith.constant 0 : i32
    %c0_i32_1 = arith.constant 0 : i32
    return %c0_i32, %c0_i32_0 : i32, i32
  }
  func.func @transform_7(%arg0: i32) -> (i32, i32) {
    %c0_i32 = arith.constant 0 : i32
    %c0_i32_0 = arith.constant 0 : i32
    %c0_i32_1 = arith.constant 0 : i32
    return %c0_i32, %c0_i32_0 : i32, i32
  }
  func.func @transform_8(%arg0: i32) -> (i32, i32) {
    %c0_i32 = arith.constant 0 : i32
    %c0_i32_0 = arith.constant 0 : i32
    %c0_i32_1 = arith.constant 0 : i32
    return %c0_i32, %c0_i32_0 : i32, i32
  }
  func.func @transform_9(%arg0: i32) -> (i32, i32) {
    %c0_i32 = arith.constant 0 : i32
    %c0_i32_0 = arith.constant 0 : i32
    %c0_i32_1 = arith.constant 0 : i32
    return %c0_i32, %c0_i32_0 : i32, i32
  }
  func.func @transform_10(%arg0: i32) -> (i32, i32) {
    %c0_i32 = arith.constant 0 : i32
    %c0_i32_0 = arith.constant 0 : i32
    %c0_i32_1 = arith.constant 0 : i32
    return %c0_i32, %c0_i32_0 : i32, i32
  }
  func.func @transform_11(%arg0: i32) -> (i32, i32) {
    %c0_i32 = arith.constant 0 : i32
    %c0_i32_0 = arith.constant 0 : i32
    return %arg0, %c0_i32 : i32, i32
  }
}

</mosaic_0001>

<llo_original>
// kernel: tpu_custom_call.1
$region0: #{tpu_custom_call.1}
  #allocation0 [shape = 'u32[]', space=smem, size = 0x4, offset = 0x4, fixed_abs, tag = 'smem constant byte address 0x4 - core index']
  #allocation1 [shape = 'u32[144,128]{1,0:T(1,128)}', space=vmem, size = 0x12000, scoped, tag = 'internal scratch']
  #allocation2 [shape = 'f32[1,1]{1,0:T(1,128)S(1)}', space=vmem, size = 0x200, scoped, tag = 'scoped memory for tpu_custom_call.1']
  %s0 = inlined_call_operand.vmem [shape: bf16[2048,32], index: 0, kind: input, shape index: {}]
  %s1 = inlined_call_operand.vmem [shape: bf16[2048,32], index: 1, kind: input, shape index: {}]
  %s2 = inlined_call_operand.vmem [shape: bf16[32,64], index: 2, kind: input, shape index: {}]
  %s3 = inlined_call_operand.vmem [shape: bf16[32,64], index: 3, kind: input, shape index: {}]
  %s4 = inlined_call_operand.vmem [shape: f32[1,64], index: 4, kind: input, shape index: {}]
  %s5 = inlined_call_operand.vmem [shape: bf16[64,64], index: 5, kind: input, shape index: {}]
  %s6 = inlined_call_operand.vmem [shape: f32[1,64], index: 6, kind: input, shape index: {}]
  %s7 = inlined_call_operand.vmem [shape: bf16[64,64], index: 7, kind: input, shape index: {}]
  %s8 = inlined_call_operand.vmem [shape: f32[1,64], index: 8, kind: input, shape index: {}]
  %s9 = inlined_call_operand.vmem [shape: f32[1,64], index: 9, kind: input, shape index: {}]
  %s10 = inlined_call_operand.<no memory space> [shape: f32[1,1], index: 10, kind: input, shape index: {}]
  %s11 = inlined_call_operand.vmem [shape: f32[2048,1], index: 11, kind: output, shape index: {}]
  %s12 = sld [smem:[#allocation0]]
  $region54: #{tpu_custom_call.1} parent=0
    _
  %s14 = ssub.s32 1, %s12
  %s15 = scalar_select 0, %s14, %s12
  %v16 = vstv %s10
  %17 = vst [vmem:[#allocation2] sm:$0x1] %v16
  // Predicated region
  $region2: #{tpu_custom_call.1} parent=0 // pred_check
    _
  $region3: #{tpu_custom_call.1} parent=0 // pred_check_branch
    %19 = sbr.rel (0) target = $region5
  $region4: #{tpu_custom_call.1} parent=0 // pred_region
    _
  $region5: #{tpu_custom_call.1} parent=0 // pred_fallthru
    _
  // Predicated region
  $region6: #{tpu_custom_call.1} parent=0 // pred_check
    _
  $region7: #{tpu_custom_call.1} parent=0 // pred_check_branch
    %21 = sbr.rel (0) target = $region9
  $region8: #{tpu_custom_call.1} parent=0 // pred_region
    _
  $region9: #{tpu_custom_call.1} parent=0 // pred_fallthru
    _
  // Predicated region
  $region10: #{tpu_custom_call.1} parent=0 // pred_check
    _
  $region11: #{tpu_custom_call.1} parent=0 // pred_check_branch
    %23 = sbr.rel (0) target = $region13
  $region12: #{tpu_custom_call.1} parent=0 // pred_region
    _
  $region13: #{tpu_custom_call.1} parent=0 // pred_fallthru
    _
  // Predicated region
  $region14: #{tpu_custom_call.1} parent=0 // pred_check
    _
  $region15: #{tpu_custom_call.1} parent=0 // pred_check_branch
    %25 = sbr.rel (0) target = $region17
  $region16: #{tpu_custom_call.1} parent=0 // pred_region
    _
  $region17: #{tpu_custom_call.1} parent=0 // pred_fallthru
    _
  // Predicated region
  $region18: #{tpu_custom_call.1} parent=0 // pred_check
    _
  $region19: #{tpu_custom_call.1} parent=0 // pred_check_branch
    %27 = sbr.rel (0) target = $region21
  $region20: #{tpu_custom_call.1} parent=0 // pred_region
    _
  $region21: #{tpu_custom_call.1} parent=0 // pred_fallthru
    _
  // Predicated region
  $region22: #{tpu_custom_call.1} parent=0 // pred_check
    _
  $region23: #{tpu_custom_call.1} parent=0 // pred_check_branch
    %29 = sbr.rel (0) target = $region25
  $region24: #{tpu_custom_call.1} parent=0 // pred_region
    _
  $region25: #{tpu_custom_call.1} parent=0 // pred_fallthru
    _
  // Predicated region
  $region26: #{tpu_custom_call.1} parent=0 // pred_check
    _
  $region27: #{tpu_custom_call.1} parent=0 // pred_check_branch
    %31 = sbr.rel (0) target = $region29
  $region28: #{tpu_custom_call.1} parent=0 // pred_region
    _
  $region29: #{tpu_custom_call.1} parent=0 // pred_fallthru
    _
  // Predicated region
  $region30: #{tpu_custom_call.1} parent=0 // pred_check
    _
  $region31: #{tpu_custom_call.1} parent=0 // pred_check_branch
    %33 = sbr.rel (0) target = $region33
  $region32: #{tpu_custom_call.1} parent=0 // pred_region
    _
  $region33: #{tpu_custom_call.1} parent=0 // pred_fallthru
    _
  // Predicated region
  $region34: #{tpu_custom_call.1} parent=0 // pred_check
    _
  $region35: #{tpu_custom_call.1} parent=0 // pred_check_branch
    %35 = sbr.rel (0) target = $region37
  $region36: #{tpu_custom_call.1} parent=0 // pred_region
    _
  $region37: #{tpu_custom_call.1} parent=0 // pred_fallthru
    _
  // Predicated region
  $region38: #{tpu_custom_call.1} parent=0 // pred_check
    _
  $region39: #{tpu_custom_call.1} parent=0 // pred_check_branch
    %37 = sbr.rel (0) target = $region41
  $region40: #{tpu_custom_call.1} parent=0 // pred_region
    _
  $region41: #{tpu_custom_call.1} parent=0 // pred_fallthru
    _
  // Predicated region
  $region42: #{tpu_custom_call.1} parent=0 // pred_check
    _
  $region43: #{tpu_custom_call.1} parent=0 // pred_check_branch
    %39 = sbr.rel (0) target = $region45
  $region44: #{tpu_custom_call.1} parent=0 // pred_region
    _
  $region45: #{tpu_custom_call.1} parent=0 // pred_fallthru
    _
  %v41 = vld [vmem:[%s0] sm:$0xf]
  %v42 = vld [vmem:[%s0 + $0x4] sm:$0xf]
  %v43 = vld [vmem:[%s0 + $0x8] sm:$0xf]
  %v44 = vld [vmem:[%s0 + $0xc] sm:$0xf]
  %v45 = vld [vmem:[%s0 + $0x10] sm:$0xf]
  %v46 = vld [vmem:[%s0 + $0x14] sm:$0xf]
  %v47 = vld [vmem:[%s0 + $0x18] sm:$0xf]
  %v48 = vld [vmem:[%s0 + $0x1c] sm:$0xf]
  %v49 = vld [vmem:[%s0 + $0x20] sm:$0xf]
  %v50 = vld [vmem:[%s0 + $0x24] sm:$0xf]
  %v51 = vld [vmem:[%s0 + $0x28] sm:$0xf]
  %v52 = vld [vmem:[%s0 + $0x2c] sm:$0xf]
  %v53 = vld [vmem:[%s0 + $0x30] sm:$0xf]
  %v54 = vld [vmem:[%s0 + $0x34] sm:$0xf]
  %v55 = vld [vmem:[%s0 + $0x38] sm:$0xf]
  %v56 = vld [vmem:[%s0 + $0x3c] sm:$0xf]
  %v57 = vld [vmem:[%s0 + $0x40] sm:$0xf]
  %v58 = vld [vmem:[%s0 + $0x44] sm:$0xf]
  %v59 = vld [vmem:[%s0 + $0x48] sm:$0xf]
  %v60 = vld [vmem:[%s0 + $0x4c] sm:$0xf]
  %v61 = vld [vmem:[%s0 + $0x50] sm:$0xf]
  %v62 = vld [vmem:[%s0 + $0x54] sm:$0xf]
  %v63 = vld [vmem:[%s0 + $0x58] sm:$0xf]
  %v64 = vld [vmem:[%s0 + $0x5c] sm:$0xf]
  %v65 = vld [vmem:[%s0 + $0x60] sm:$0xf]
  %v66 = vld [vmem:[%s0 + $0x64] sm:$0xf]
  %v67 = vld [vmem:[%s0 + $0x68] sm:$0xf]
  %v68 = vld [vmem:[%s0 + $0x6c] sm:$0xf]
  %v69 = vld [vmem:[%s0 + $0x70] sm:$0xf]
  %v70 = vld [vmem:[%s0 + $0x74] sm:$0xf]
  %v71 = vld [vmem:[%s0 + $0x78] sm:$0xf]
  %v72 = vld [vmem:[%s0 + $0x7c] sm:$0xf]
  %v73 = vld [vmem:[%s0 + $0x80] sm:$0xf]
  %v74 = vld [vmem:[%s0 + $0x84] sm:$0xf]
  %v75 = vld [vmem:[%s0 + $0x88] sm:$0xf]
  %v76 = vld [vmem:[%s0 + $0x8c] sm:$0xf]
  %v77 = vld [vmem:[%s0 + $0x90] sm:$0xf]
  %v78 = vld [vmem:[%s0 + $0x94] sm:$0xf]
  %v79 = vld [vmem:[%s0 + $0x98] sm:$0xf]
  %v80 = vld [vmem:[%s0 + $0x9c] sm:$0xf]
  %v81 = vld [vmem:[%s0 + $0xa0] sm:$0xf]
  %v82 = vld [vmem:[%s0 + $0xa4] sm:$0xf]
  %v83 = vld [vmem:[%s0 + $0xa8] sm:$0xf]
  %v84 = vld [vmem:[%s0 + $0xac] sm:$0xf]
  %v85 = vld [vmem:[%s0 + $0xb0] sm:$0xf]
  %v86 = vld [vmem:[%s0 + $0xb4] sm:$0xf]
  %v87 = vld [vmem:[%s0 + $0xb8] sm:$0xf]
  %v88 = vld [vmem:[%s0 + $0xbc] sm:$0xf]
  %v89 = vld [vmem:[%s0 + $0xc0] sm:$0xf]
  %v90 = vld [vmem:[%s0 + $0xc4] sm:$0xf]
  %v91 = vld [vmem:[%s0 + $0xc8] sm:$0xf]
  %v92 = vld [vmem:[%s0 + $0xcc] sm:$0xf]
  %v93 = vld [vmem:[%s0 + $0xd0] sm:$0xf]
  %v94 = vld [vmem:[%s0 + $0xd4] sm:$0xf]
  %v95 = vld [vmem:[%s0 + $0xd8] sm:$0xf]
  %v96 = vld [vmem:[%s0 + $0xdc] sm:$0xf]
  %v97 = vld [vmem:[%s0 + $0xe0] sm:$0xf]
  %v98 = vld [vmem:[%s0 + $0xe4] sm:$0xf]
  %v99 = vld [vmem:[%s0 + $0xe8] sm:$0xf]
  %v100 = vld [vmem:[%s0 + $0xec] sm:$0xf]
  %v101 = vld [vmem:[%s0 + $0xf0] sm:$0xf]
  %v102 = vld [vmem:[%s0 + $0xf4] sm:$0xf]
  %v103 = vld [vmem:[%s0 + $0xf8] sm:$0xf]
  %v104 = vld [vmem:[%s0 + $0xfc] sm:$0xf]
  %v105 = vld [vmem:[%s0 + $0x100] sm:$0xf]
  %v106 = vld [vmem:[%s0 + $0x104] sm:$0xf]
  %v107 = vld [vmem:[%s0 + $0x108] sm:$0xf]
  %v108 = vld [vmem:[%s0 + $0x10c] sm:$0xf]
  %v109 = vld [vmem:[%s0 + $0x110] sm:$0xf]
  %v110 = vld [vmem:[%s0 + $0x114] sm:$0xf]
  %v111 = vld [vmem:[%s0 + $0x118] sm:$0xf]
  %v112 = vld [vmem:[%s0 + $0x11c] sm:$0xf]
  %v113 = vld [vmem:[%s0 + $0x120] sm:$0xf]
  %v114 = vld [vmem:[%s0 + $0x124] sm:$0xf]
  %v115 = vld [vmem:[%s0 + $0x128] sm:$0xf]
  %v116 = vld [vmem:[%s0 + $0x12c] sm:$0xf]
  %v117 = vld [vmem:[%s0 + $0x130] sm:$0xf]
  %v118 = vld [vmem:[%s0 + $0x134] sm:$0xf]
  %v119 = vld [vmem:[%s0 + $0x138] sm:$0xf]
  %v120 = vld [vmem:[%s0 + $0x13c] sm:$0xf]
  %v121 = vld [vmem:[%s0 + $0x140] sm:$0xf]
  %v122 = vld [vmem:[%s0 + $0x144] sm:$0xf]
  %v123 = vld [vmem:[%s0 + $0x148] sm:$0xf]
  %v124 = vld [vmem:[%s0 + $0x14c] sm:$0xf]
  %v125 = vld [vmem:[%s0 + $0x150] sm:$0xf]
  %v126 = vld [vmem:[%s0 + $0x154] sm:$0xf]
  %v127 = vld [vmem:[%s0 + $0x158] sm:$0xf]
  %v128 = vld [vmem:[%s0 + $0x15c] sm:$0xf]
  %v129 = vld [vmem:[%s0 + $0x160] sm:$0xf]
  %v130 = vld [vmem:[%s0 + $0x164] sm:$0xf]
  %v131 = vld [vmem:[%s0 + $0x168] sm:$0xf]
  %v132 = vld [vmem:[%s0 + $0x16c] sm:$0xf]
  %v133 = vld [vmem:[%s0 + $0x170] sm:$0xf]
  %v134 = vld [vmem:[%s0 + $0x174] sm:$0xf]
  %v135 = vld [vmem:[%s0 + $0x178] sm:$0xf]
  %v136 = vld [vmem:[%s0 + $0x17c] sm:$0xf]
  %v137 = vld [vmem:[%s0 + $0x180] sm:$0xf]
  %v138 = vld [vmem:[%s0 + $0x184] sm:$0xf]
  %v139 = vld [vmem:[%s0 + $0x188] sm:$0xf]
  %v140 = vld [vmem:[%s0 + $0x18c] sm:$0xf]
  %v141 = vld [vmem:[%s0 + $0x190] sm:$0xf]
  %v142 = vld [vmem:[%s0 + $0x194] sm:$0xf]
  %v143 = vld [vmem:[%s0 + $0x198] sm:$0xf]
  %v144 = vld [vmem:[%s0 + $0x19c] sm:$0xf]
  %v145 = vld [vmem:[%s0 + $0x1a0] sm:$0xf]
  %v146 = vld [vmem:[%s0 + $0x1a4] sm:$0xf]
  %v147 = vld [vmem:[%s0 + $0x1a8] sm:$0xf]
  %v148 = vld [vmem:[%s0 + $0x1ac] sm:$0xf]
  %v149 = vld [vmem:[%s0 + $0x1b0] sm:$0xf]
  %v150 = vld [vmem:[%s0 + $0x1b4] sm:$0xf]
  %v151 = vld [vmem:[%s0 + $0x1b8] sm:$0xf]
  %v152 = vld [vmem:[%s0 + $0x1bc] sm:$0xf]
  %v153 = vld [vmem:[%s0 + $0x1c0] sm:$0xf]
  %v154 = vld [vmem:[%s0 + $0x1c4] sm:$0xf]
  %v155 = vld [vmem:[%s0 + $0x1c8] sm:$0xf]
  %v156 = vld [vmem:[%s0 + $0x1cc] sm:$0xf]
  %v157 = vld [vmem:[%s0 + $0x1d0] sm:$0xf]
  %v158 = vld [vmem:[%s0 + $0x1d4] sm:$0xf]
  %v159 = vld [vmem:[%s0 + $0x1d8] sm:$0xf]
  %v160 = vld [vmem:[%s0 + $0x1dc] sm:$0xf]
  %v161 = vld [vmem:[%s0 + $0x1e0] sm:$0xf]
  %v162 = vld [vmem:[%s0 + $0x1e4] sm:$0xf]
  %v163 = vld [vmem:[%s0 + $0x1e8] sm:$0xf]
  %v164 = vld [vmem:[%s0 + $0x1ec] sm:$0xf]
  %v165 = vld [vmem:[%s0 + $0x1f0] sm:$0xf]
  %v166 = vld [vmem:[%s0 + $0x1f4] sm:$0xf]
  %v167 = vld [vmem:[%s0 + $0x1f8] sm:$0xf]
  %v168 = vld [vmem:[%s0 + $0x1fc] sm:$0xf]
  %v169 = vld [vmem:[%s0 + $0x200] sm:$0xf]
  %v170 = vld [vmem:[%s0 + $0x204] sm:$0xf]
  %v171 = vld [vmem:[%s0 + $0x208] sm:$0xf]
  %v172 = vld [vmem:[%s0 + $0x20c] sm:$0xf]
  %v173 = vld [vmem:[%s0 + $0x210] sm:$0xf]
  %v174 = vld [vmem:[%s0 + $0x214] sm:$0xf]
  %v175 = vld [vmem:[%s0 + $0x218] sm:$0xf]
  %v176 = vld [vmem:[%s0 + $0x21c] sm:$0xf]
  %v177 = vld [vmem:[%s0 + $0x220] sm:$0xf]
  %v178 = vld [vmem:[%s0 + $0x224] sm:$0xf]
  %v179 = vld [vmem:[%s0 + $0x228] sm:$0xf]
  %v180 = vld [vmem:[%s0 + $0x22c] sm:$0xf]
  %v181 = vld [vmem:[%s0 + $0x230] sm:$0xf]
  %v182 = vld [vmem:[%s0 + $0x234] sm:$0xf]
  %v183 = vld [vmem:[%s0 + $0x238] sm:$0xf]
  %v184 = vld [vmem:[%s0 + $0x23c] sm:$0xf]
  %v185 = vld [vmem:[%s0 + $0x240] sm:$0xf]
  %v186 = vld [vmem:[%s0 + $0x244] sm:$0xf]
  %v187 = vld [vmem:[%s0 + $0x248] sm:$0xf]
  %v188 = vld [vmem:[%s0 + $0x24c] sm:$0xf]
  %v189 = vld [vmem:[%s0 + $0x250] sm:$0xf]
  %v190 = vld [vmem:[%s0 + $0x254] sm:$0xf]
  %v191 = vld [vmem:[%s0 + $0x258] sm:$0xf]
  %v192 = vld [vmem:[%s0 + $0x25c] sm:$0xf]
  %v193 = vld [vmem:[%s0 + $0x260] sm:$0xf]
  %v194 = vld [vmem:[%s0 + $0x264] sm:$0xf]
  %v195 = vld [vmem:[%s0 + $0x268] sm:$0xf]
  %v196 = vld [vmem:[%s0 + $0x26c] sm:$0xf]
  %v197 = vld [vmem:[%s0 + $0x270] sm:$0xf]
  %v198 = vld [vmem:[%s0 + $0x274] sm:$0xf]
  %v199 = vld [vmem:[%s0 + $0x278] sm:$0xf]
  %v200 = vld [vmem:[%s0 + $0x27c] sm:$0xf]
  %v201 = vld [vmem:[%s0 + $0x280] sm:$0xf]
  %v202 = vld [vmem:[%s0 + $0x284] sm:$0xf]
  %v203 = vld [vmem:[%s0 + $0x288] sm:$0xf]
  %v204 = vld [vmem:[%s0 + $0x28c] sm:$0xf]
  %v205 = vld [vmem:[%s0 + $0x290] sm:$0xf]
  %v206 = vld [vmem:[%s0 + $0x294] sm:$0xf]
  %v207 = vld [vmem:[%s0 + $0x298] sm:$0xf]
  %v208 = vld [vmem:[%s0 + $0x29c] sm:$0xf]
  %v209 = vld [vmem:[%s0 + $0x2a0] sm:$0xf]
  %v210 = vld [vmem:[%s0 + $0x2a4] sm:$0xf]
  %v211 = vld [vmem:[%s0 + $0x2a8] sm:$0xf]
  %v212 = vld [vmem:[%s0 + $0x2ac] sm:$0xf]
  %v213 = vld [vmem:[%s0 + $0x2b0] sm:$0xf]
  %v214 = vld [vmem:[%s0 + $0x2b4] sm:$0xf]
  %v215 = vld [vmem:[%s0 + $0x2b8] sm:$0xf]
  %v216 = vld [vmem:[%s0 + $0x2bc] sm:$0xf]
  %v217 = vld [vmem:[%s0 + $0x2c0] sm:$0xf]
  %v218 = vld [vmem:[%s0 + $0x2c4] sm:$0xf]
  %v219 = vld [vmem:[%s0 + $0x2c8] sm:$0xf]
  %v220 = vld [vmem:[%s0 + $0x2cc] sm:$0xf]
  %v221 = vld [vmem:[%s0 + $0x2d0] sm:$0xf]
  %v222 = vld [vmem:[%s0 + $0x2d4] sm:$0xf]
  %v223 = vld [vmem:[%s0 + $0x2d8] sm:$0xf]
  %v224 = vld [vmem:[%s0 + $0x2dc] sm:$0xf]
  %v225 = vld [vmem:[%s0 + $0x2e0] sm:$0xf]
  %v226 = vld [vmem:[%s0 + $0x2e4] sm:$0xf]
  %v227 = vld [vmem:[%s0 + $0x2e8] sm:$0xf]
  %v228 = vld [vmem:[%s0 + $0x2ec] sm:$0xf]
  %v229 = vld [vmem:[%s0 + $0x2f0] sm:$0xf]
  %v230 = vld [vmem:[%s0 + $0x2f4] sm:$0xf]
  %v231 = vld [vmem:[%s0 + $0x2f8] sm:$0xf]
  %v232 = vld [vmem:[%s0 + $0x2fc] sm:$0xf]
  %v233 = vld [vmem:[%s0 + $0x300] sm:$0xf]
  %v234 = vld [vmem:[%s0 + $0x304] sm:$0xf]
  %v235 = vld [vmem:[%s0 + $0x308] sm:$0xf]
  %v236 = vld [vmem:[%s0 + $0x30c] sm:$0xf]
  %v237 = vld [vmem:[%s0 + $0x310] sm:$0xf]
  %v238 = vld [vmem:[%s0 + $0x314] sm:$0xf]
  %v239 = vld [vmem:[%s0 + $0x318] sm:$0xf]
  %v240 = vld [vmem:[%s0 + $0x31c] sm:$0xf]
  %v241 = vld [vmem:[%s0 + $0x320] sm:$0xf]
  %v242 = vld [vmem:[%s0 + $0x324] sm:$0xf]
  %v243 = vld [vmem:[%s0 + $0x328] sm:$0xf]
  %v244 = vld [vmem:[%s0 + $0x32c] sm:$0xf]
  %v245 = vld [vmem:[%s0 + $0x330] sm:$0xf]
  %v246 = vld [vmem:[%s0 + $0x334] sm:$0xf]
  %v247 = vld [vmem:[%s0 + $0x338] sm:$0xf]
  %v248 = vld [vmem:[%s0 + $0x33c] sm:$0xf]
  %v249 = vld [vmem:[%s0 + $0x340] sm:$0xf]
  %v250 = vld [vmem:[%s0 + $0x344] sm:$0xf]
  %v251 = vld [vmem:[%s0 + $0x348] sm:$0xf]
  %v252 = vld [vmem:[%s0 + $0x34c] sm:$0xf]
  %v253 = vld [vmem:[%s0 + $0x350] sm:$0xf]
  %v254 = vld [vmem:[%s0 + $0x354] sm:$0xf]
  %v255 = vld [vmem:[%s0 + $0x358] sm:$0xf]
  %v256 = vld [vmem:[%s0 + $0x35c] sm:$0xf]
  %v257 = vld [vmem:[%s0 + $0x360] sm:$0xf]
  %v258 = vld [vmem:[%s0 + $0x364] sm:$0xf]
  %v259 = vld [vmem:[%s0 + $0x368] sm:$0xf]
  %v260 = vld [vmem:[%s0 + $0x36c] sm:$0xf]
  %v261 = vld [vmem:[%s0 + $0x370] sm:$0xf]
  %v262 = vld [vmem:[%s0 + $0x374] sm:$0xf]
  %v263 = vld [vmem:[%s0 + $0x378] sm:$0xf]
  %v264 = vld [vmem:[%s0 + $0x37c] sm:$0xf]
  %v265 = vld [vmem:[%s0 + $0x380] sm:$0xf]
  %v266 = vld [vmem:[%s0 + $0x384] sm:$0xf]
  %v267 = vld [vmem:[%s0 + $0x388] sm:$0xf]
  %v268 = vld [vmem:[%s0 + $0x38c] sm:$0xf]
  %v269 = vld [vmem:[%s0 + $0x390] sm:$0xf]
  %v270 = vld [vmem:[%s0 + $0x394] sm:$0xf]
  %v271 = vld [vmem:[%s0 + $0x398] sm:$0xf]
  %v272 = vld [vmem:[%s0 + $0x39c] sm:$0xf]
  %v273 = vld [vmem:[%s0 + $0x3a0] sm:$0xf]
  %v274 = vld [vmem:[%s0 + $0x3a4] sm:$0xf]
  %v275 = vld [vmem:[%s0 + $0x3a8] sm:$0xf]
  %v276 = vld [vmem:[%s0 + $0x3ac] sm:$0xf]
  %v277 = vld [vmem:[%s0 + $0x3b0] sm:$0xf]
  %v278 = vld [vmem:[%s0 + $0x3b4] sm:$0xf]
  %v279 = vld [vmem:[%s0 + $0x3b8] sm:$0xf]
  %v280 = vld [vmem:[%s0 + $0x3bc] sm:$0xf]
  %v281 = vld [vmem:[%s0 + $0x3c0] sm:$0xf]
  %v282 = vld [vmem:[%s0 + $0x3c4] sm:$0xf]
  %v283 = vld [vmem:[%s0 + $0x3c8] sm:$0xf]
  %v284 = vld [vmem:[%s0 + $0x3cc] sm:$0xf]
  %v285 = vld [vmem:[%s0 + $0x3d0] sm:$0xf]
  %v286 = vld [vmem:[%s0 + $0x3d4] sm:$0xf]
  %v287 = vld [vmem:[%s0 + $0x3d8] sm:$0xf]
  %v288 = vld [vmem:[%s0 + $0x3dc] sm:$0xf]
  %v289 = vld [vmem:[%s0 + $0x3e0] sm:$0xf]
  %v290 = vld [vmem:[%s0 + $0x3e4] sm:$0xf]
  %v291 = vld [vmem:[%s0 + $0x3e8] sm:$0xf]
  %v292 = vld [vmem:[%s0 + $0x3ec] sm:$0xf]
  %v293 = vld [vmem:[%s0 + $0x3f0] sm:$0xf]
  %v294 = vld [vmem:[%s0 + $0x3f4] sm:$0xf]
  %v295 = vld [vmem:[%s0 + $0x3f8] sm:$0xf]
  %v296 = vld [vmem:[%s0 + $0x3fc] sm:$0xf]
  %v297 = vld [vmem:[%s2] sm:$0xf]
  %v298 = vld [vmem:[%s2 + $0x4] sm:$0xf]
  %v299 = vld [vmem:[%s2 + $0x8] sm:$0xf]
  %v300 = vld [vmem:[%s2 + $0xc] sm:$0xf]
  %v301 = vld [vmem:[%s1] sm:$0xf]
  %v302 = vld [vmem:[%s1 + $0x4] sm:$0xf]
  %v303 = vld [vmem:[%s1 + $0x8] sm:$0xf]
  %v304 = vld [vmem:[%s1 + $0xc] sm:$0xf]
  %v305 = vld [vmem:[%s1 + $0x10] sm:$0xf]
  %v306 = vld [vmem:[%s1 + $0x14] sm:$0xf]
  %v307 = vld [vmem:[%s1 + $0x18] sm:$0xf]
  %v308 = vld [vmem:[%s1 + $0x1c] sm:$0xf]
  %v309 = vld [vmem:[%s1 + $0x20] sm:$0xf]
  %v310 = vld [vmem:[%s1 + $0x24] sm:$0xf]
  %v311 = vld [vmem:[%s1 + $0x28] sm:$0xf]
  %v312 = vld [vmem:[%s1 + $0x2c] sm:$0xf]
  %v313 = vld [vmem:[%s1 + $0x30] sm:$0xf]
  %v314 = vld [vmem:[%s1 + $0x34] sm:$0xf]
  %v315 = vld [vmem:[%s1 + $0x38] sm:$0xf]
  %v316 = vld [vmem:[%s1 + $0x3c] sm:$0xf]
  %v317 = vld [vmem:[%s1 + $0x40] sm:$0xf]
  %v318 = vld [vmem:[%s1 + $0x44] sm:$0xf]
  %v319 = vld [vmem:[%s1 + $0x48] sm:$0xf]
  %v320 = vld [vmem:[%s1 + $0x4c] sm:$0xf]
  %v321 = vld [vmem:[%s1 + $0x50] sm:$0xf]
  %v322 = vld [vmem:[%s1 + $0x54] sm:$0xf]
  %v323 = vld [vmem:[%s1 + $0x58] sm:$0xf]
  %v324 = vld [vmem:[%s1 + $0x5c] sm:$0xf]
  %v325 = vld [vmem:[%s1 + $0x60] sm:$0xf]
  %v326 = vld [vmem:[%s1 + $0x64] sm:$0xf]
  %v327 = vld [vmem:[%s1 + $0x68] sm:$0xf]
  %v328 = vld [vmem:[%s1 + $0x6c] sm:$0xf]
  %v329 = vld [vmem:[%s1 + $0x70] sm:$0xf]
  %v330 = vld [vmem:[%s1 + $0x74] sm:$0xf]
  %v331 = vld [vmem:[%s1 + $0x78] sm:$0xf]
  %v332 = vld [vmem:[%s1 + $0x7c] sm:$0xf]
  %v333 = vld [vmem:[%s1 + $0x80] sm:$0xf]
  %v334 = vld [vmem:[%s1 + $0x84] sm:$0xf]
  %v335 = vld [vmem:[%s1 + $0x88] sm:$0xf]
  %v336 = vld [vmem:[%s1 + $0x8c] sm:$0xf]
  %v337 = vld [vmem:[%s1 + $0x90] sm:$0xf]
  %v338 = vld [vmem:[%s1 + $0x94] sm:$0xf]
  %v339 = vld [vmem:[%s1 + $0x98] sm:$0xf]
  %v340 = vld [vmem:[%s1 + $0x9c] sm:$0xf]
  %v341 = vld [vmem:[%s1 + $0xa0] sm:$0xf]
  %v342 = vld [vmem:[%s1 + $0xa4] sm:$0xf]
  %v343 = vld [vmem:[%s1 + $0xa8] sm:$0xf]
  %v344 = vld [vmem:[%s1 + $0xac] sm:$0xf]
  %v345 = vld [vmem:[%s1 + $0xb0] sm:$0xf]
  %v346 = vld [vmem:[%s1 + $0xb4] sm:$0xf]
  %v347 = vld [vmem:[%s1 + $0xb8] sm:$0xf]
  %v348 = vld [vmem:[%s1 + $0xbc] sm:$0xf]
  %v349 = vld [vmem:[%s1 + $0xc0] sm:$0xf]
  %v350 = vld [vmem:[%s1 + $0xc4] sm:$0xf]
  %v351 = vld [vmem:[%s1 + $0xc8] sm:$0xf]
  %v352 = vld [vmem:[%s1 + $0xcc] sm:$0xf]
  %v353 = vld [vmem:[%s1 + $0xd0] sm:$0xf]
  %v354 = vld [vmem:[%s1 + $0xd4] sm:$0xf]
  %v355 = vld [vmem:[%s1 + $0xd8] sm:$0xf]
  %v356 = vld [vmem:[%s1 + $0xdc] sm:$0xf]
  %v357 = vld [vmem:[%s1 + $0xe0] sm:$0xf]
  %v358 = vld [vmem:[%s1 + $0xe4] sm:$0xf]
  %v359 = vld [vmem:[%s1 + $0xe8] sm:$0xf]
  %v360 = vld [vmem:[%s1 + $0xec] sm:$0xf]
  %v361 = vld [vmem:[%s1 + $0xf0] sm:$0xf]
  %v362 = vld [vmem:[%s1 + $0xf4] sm:$0xf]
  %v363 = vld [vmem:[%s1 + $0xf8] sm:$0xf]
  %v364 = vld [vmem:[%s1 + $0xfc] sm:$0xf]
  %v365 = vld [vmem:[%s1 + $0x100] sm:$0xf]
  %v366 = vld [vmem:[%s1 + $0x104] sm:$0xf]
  %v367 = vld [vmem:[%s1 + $0x108] sm:$0xf]
  %v368 = vld [vmem:[%s1 + $0x10c] sm:$0xf]
  %v369 = vld [vmem:[%s1 + $0x110] sm:$0xf]
  %v370 = vld [vmem:[%s1 + $0x114] sm:$0xf]
  %v371 = vld [vmem:[%s1 + $0x118] sm:$0xf]
  %v372 = vld [vmem:[%s1 + $0x11c] sm:$0xf]
  %v373 = vld [vmem:[%s1 + $0x120] sm:$0xf]
  %v374 = vld [vmem:[%s1 + $0x124] sm:$0xf]
  %v375 = vld [vmem:[%s1 + $0x128] sm:$0xf]
  %v376 = vld [vmem:[%s1 + $0x12c] sm:$0xf]
  %v377 = vld [vmem:[%s1 + $0x130] sm:$0xf]
  %v378 = vld [vmem:[%s1 + $0x134] sm:$0xf]
  %v379 = vld [vmem:[%s1 + $0x138] sm:$0xf]
  %v380 = vld [vmem:[%s1 + $0x13c] sm:$0xf]
  %v381 = vld [vmem:[%s1 + $0x140] sm:$0xf]
  %v382 = vld [vmem:[%s1 + $0x144] sm:$0xf]
  %v383 = vld [vmem:[%s1 + $0x148] sm:$0xf]
  %v384 = vld [vmem:[%s1 + $0x14c] sm:$0xf]
  %v385 = vld [vmem:[%s1 + $0x150] sm:$0xf]
  %v386 = vld [vmem:[%s1 + $0x154] sm:$0xf]
  %v387 = vld [vmem:[%s1 + $0x158] sm:$0xf]
  %v388 = vld [vmem:[%s1 + $0x15c] sm:$0xf]
  %v389 = vld [vmem:[%s1 + $0x160] sm:$0xf]
  %v390 = vld [vmem:[%s1 + $0x164] sm:$0xf]
  %v391 = vld [vmem:[%s1 + $0x168] sm:$0xf]
  %v392 = vld [vmem:[%s1 + $0x16c] sm:$0xf]
  %v393 = vld [vmem:[%s1 + $0x170] sm:$0xf]
  %v394 = vld [vmem:[%s1 + $0x174] sm:$0xf]
  %v395 = vld [vmem:[%s1 + $0x178] sm:$0xf]
  %v396 = vld [vmem:[%s1 + $0x17c] sm:$0xf]
  %v397 = vld [vmem:[%s1 + $0x180] sm:$0xf]
  %v398 = vld [vmem:[%s1 + $0x184] sm:$0xf]
  %v399 = vld [vmem:[%s1 + $0x188] sm:$0xf]
  %v400 = vld [vmem:[%s1 + $0x18c] sm:$0xf]
  %v401 = vld [vmem:[%s1 + $0x190] sm:$0xf]
  %v402 = vld [vmem:[%s1 + $0x194] sm:$0xf]
  %v403 = vld [vmem:[%s1 + $0x198] sm:$0xf]
  %v404 = vld [vmem:[%s1 + $0x19c] sm:$0xf]
  %v405 = vld [vmem:[%s1 + $0x1a0] sm:$0xf]
  %v406 = vld [vmem:[%s1 + $0x1a4] sm:$0xf]
  %v407 = vld [vmem:[%s1 + $0x1a8] sm:$0xf]
  %v408 = vld [vmem:[%s1 + $0x1ac] sm:$0xf]
  %v409 = vld [vmem:[%s1 + $0x1b0] sm:$0xf]
  %v410 = vld [vmem:[%s1 + $0x1b4] sm:$0xf]
  %v411 = vld [vmem:[%s1 + $0x1b8] sm:$0xf]
  %v412 = vld [vmem:[%s1 + $0x1bc] sm:$0xf]
  %v413 = vld [vmem:[%s1 + $0x1c0] sm:$0xf]
  %v414 = vld [vmem:[%s1 + $0x1c4] sm:$0xf]
  %v415 = vld [vmem:[%s1 + $0x1c8] sm:$0xf]
  %v416 = vld [vmem:[%s1 + $0x1cc] sm:$0xf]
  %v417 = vld [vmem:[%s1 + $0x1d0] sm:$0xf]
  %v418 = vld [vmem:[%s1 + $0x1d4] sm:$0xf]
  %v419 = vld [vmem:[%s1 + $0x1d8] sm:$0xf]
  %v420 = vld [vmem:[%s1 + $0x1dc] sm:$0xf]
  %v421 = vld [vmem:[%s1 + $0x1e0] sm:$0xf]
  %v422 = vld [vmem:[%s1 + $0x1e4] sm:$0xf]
  %v423 = vld [vmem:[%s1 + $0x1e8] sm:$0xf]
  %v424 = vld [vmem:[%s1 + $0x1ec] sm:$0xf]
  %v425 = vld [vmem:[%s1 + $0x1f0] sm:$0xf]
  %v426 = vld [vmem:[%s1 + $0x1f4] sm:$0xf]
  %v427 = vld [vmem:[%s1 + $0x1f8] sm:$0xf]
  %v428 = vld [vmem:[%s1 + $0x1fc] sm:$0xf]
  %v429 = vld [vmem:[%s1 + $0x200] sm:$0xf]
  %v430 = vld [vmem:[%s1 + $0x204] sm:$0xf]
  %v431 = vld [vmem:[%s1 + $0x208] sm:$0xf]
  %v432 = vld [vmem:[%s1 + $0x20c] sm:$0xf]
  %v433 = vld [vmem:[%s1 + $0x210] sm:$0xf]
  %v434 = vld [vmem:[%s1 + $0x214] sm:$0xf]
  %v435 = vld [vmem:[%s1 + $0x218] sm:$0xf]
  %v436 = vld [vmem:[%s1 + $0x21c] sm:$0xf]
  %v437 = vld [vmem:[%s1 + $0x220] sm:$0xf]
  %v438 = vld [vmem:[%s1 + $0x224] sm:$0xf]
  %v439 = vld [vmem:[%s1 + $0x228] sm:$0xf]
  %v440 = vld [vmem:[%s1 + $0x22c] sm:$0xf]
  %v441 = vld [vmem:[%s1 + $0x230] sm:$0xf]
  %v442 = vld [vmem:[%s1 + $0x234] sm:$0xf]
  %v443 = vld [vmem:[%s1 + $0x238] sm:$0xf]
  %v444 = vld [vmem:[%s1 + $0x23c] sm:$0xf]
  %v445 = vld [vmem:[%s1 + $0x240] sm:$0xf]
  %v446 = vld [vmem:[%s1 + $0x244] sm:$0xf]
  %v447 = vld [vmem:[%s1 + $0x248] sm:$0xf]
  %v448 = vld [vmem:[%s1 + $0x24c] sm:$0xf]
  %v449 = vld [vmem:[%s1 + $0x250] sm:$0xf]
  %v450 = vld [vmem:[%s1 + $0x254] sm:$0xf]
  %v451 = vld [vmem:[%s1 + $0x258] sm:$0xf]
  %v452 = vld [vmem:[%s1 + $0x25c] sm:$0xf]
  %v453 = vld [vmem:[%s1 + $0x260] sm:$0xf]
  %v454 = vld [vmem:[%s1 + $0x264] sm:$0xf]
  %v455 = vld [vmem:[%s1 + $0x268] sm:$0xf]
  %v456 = vld [vmem:[%s1 + $0x26c] sm:$0xf]
  %v457 = vld [vmem:[%s1 + $0x270] sm:$0xf]
  %v458 = vld [vmem:[%s1 + $0x274] sm:$0xf]
  %v459 = vld [vmem:[%s1 + $0x278] sm:$0xf]
  %v460 = vld [vmem:[%s1 + $0x27c] sm:$0xf]
  %v461 = vld [vmem:[%s1 + $0x280] sm:$0xf]
  %v462 = vld [vmem:[%s1 + $0x284] sm:$0xf]
  %v463 = vld [vmem:[%s1 + $0x288] sm:$0xf]
  %v464 = vld [vmem:[%s1 + $0x28c] sm:$0xf]
  %v465 = vld [vmem:[%s1 + $0x290] sm:$0xf]
  %v466 = vld [vmem:[%s1 + $0x294] sm:$0xf]
  %v467 = vld [vmem:[%s1 + $0x298] sm:$0xf]
  %v468 = vld [vmem:[%s1 + $0x29c] sm:$0xf]
  %v469 = vld [vmem:[%s1 + $0x2a0] sm:$0xf]
  %v470 = vld [vmem:[%s1 + $0x2a4] sm:$0xf]
  %v471 = vld [vmem:[%s1 + $0x2a8] sm:$0xf]
  %v472 = vld [vmem:[%s1 + $0x2ac] sm:$0xf]
  %v473 = vld [vmem:[%s1 + $0x2b0] sm:$0xf]
  %v474 = vld [vmem:[%s1 + $0x2b4] sm:$0xf]
  %v475 = vld [vmem:[%s1 + $0x2b8] sm:$0xf]
  %v476 = vld [vmem:[%s1 + $0x2bc] sm:$0xf]
  %v477 = vld [vmem:[%s1 + $0x2c0] sm:$0xf]
  %v478 = vld [vmem:[%s1 + $0x2c4] sm:$0xf]
  %v479 = vld [vmem:[%s1 + $0x2c8] sm:$0xf]
  %v480 = vld [vmem:[%s1 + $0x2cc] sm:$0xf]
  %v481 = vld [vmem:[%s1 + $0x2d0] sm:$0xf]
  %v482 = vld [vmem:[%s1 + $0x2d4] sm:$0xf]
  %v483 = vld [vmem:[%s1 + $0x2d8] sm:$0xf]
  %v484 = vld [vmem:[%s1 + $0x2dc] sm:$0xf]
  %v485 = vld [vmem:[%s1 + $0x2e0] sm:$0xf]
  %v486 = vld [vmem:[%s1 + $0x2e4] sm:$0xf]
  %v487 = vld [vmem:[%s1 + $0x2e8] sm:$0xf]
  %v488 = vld [vmem:[%s1 + $0x2ec] sm:$0xf]
  %v489 = vld [vmem:[%s1 + $0x2f0] sm:$0xf]
  %v490 = vld [vmem:[%s1 + $0x2f4] sm:$0xf]
  %v491 = vld [vmem:[%s1 + $0x2f8] sm:$0xf]
  %v492 = vld [vmem:[%s1 + $0x2fc] sm:$0xf]
  %v493 = vld [vmem:[%s1 + $0x300] sm:$0xf]
  %v494 = vld [vmem:[%s1 + $0x304] sm:$0xf]
  %v495 = vld [vmem:[%s1 + $0x308] sm:$0xf]
  %v496 = vld [vmem:[%s1 + $0x30c] sm:$0xf]
  %v497 = vld [vmem:[%s1 + $0x310] sm:$0xf]
  %v498 = vld [vmem:[%s1 + $0x314] sm:$0xf]
  %v499 = vld [vmem:[%s1 + $0x318] sm:$0xf]
  %v500 = vld [vmem:[%s1 + $0x31c] sm:$0xf]
  %v501 = vld [vmem:[%s1 + $0x320] sm:$0xf]
  %v502 = vld [vmem:[%s1 + $0x324] sm:$0xf]
  %v503 = vld [vmem:[%s1 + $0x328] sm:$0xf]
  %v504 = vld [vmem:[%s1 + $0x32c] sm:$0xf]
  %v505 = vld [vmem:[%s1 + $0x330] sm:$0xf]
  %v506 = vld [vmem:[%s1 + $0x334] sm:$0xf]
  %v507 = vld [vmem:[%s1 + $0x338] sm:$0xf]
  %v508 = vld [vmem:[%s1 + $0x33c] sm:$0xf]
  %v509 = vld [vmem:[%s1 + $0x340] sm:$0xf]
  %v510 = vld [vmem:[%s1 + $0x344] sm:$0xf]
  %v511 = vld [vmem:[%s1 + $0x348] sm:$0xf]
  %v512 = vld [vmem:[%s1 + $0x34c] sm:$0xf]
  %v513 = vld [vmem:[%s1 + $0x350] sm:$0xf]
  %v514 = vld [vmem:[%s1 + $0x354] sm:$0xf]
  %v515 = vld [vmem:[%s1 + $0x358] sm:$0xf]
  %v516 = vld [vmem:[%s1 + $0x35c] sm:$0xf]
  %v517 = vld [vmem:[%s1 + $0x360] sm:$0xf]
  %v518 = vld [vmem:[%s1 + $0x364] sm:$0xf]
  %v519 = vld [vmem:[%s1 + $0x368] sm:$0xf]
  %v520 = vld [vmem:[%s1 + $0x36c] sm:$0xf]
  %v521 = vld [vmem:[%s1 + $0x370] sm:$0xf]
  %v522 = vld [vmem:[%s1 + $0x374] sm:$0xf]
  %v523 = vld [vmem:[%s1 + $0x378] sm:$0xf]
  %v524 = vld [vmem:[%s1 + $0x37c] sm:$0xf]
  %v525 = vld [vmem:[%s1 + $0x380] sm:$0xf]
  %v526 = vld [vmem:[%s1 + $0x384] sm:$0xf]
  %v527 = vld [vmem:[%s1 + $0x388] sm:$0xf]
  %v528 = vld [vmem:[%s1 + $0x38c] sm:$0xf]
  %v529 = vld [vmem:[%s1 + $0x390] sm:$0xf]
  %v530 = vld [vmem:[%s1 + $0x394] sm:$0xf]
  %v531 = vld [vmem:[%s1 + $0x398] sm:$0xf]
  %v532 = vld [vmem:[%s1 + $0x39c] sm:$0xf]
  %v533 = vld [vmem:[%s1 + $0x3a0] sm:$0xf]
  %v534 = vld [vmem:[%s1 + $0x3a4] sm:$0xf]
  %v535 = vld [vmem:[%s1 + $0x3a8] sm:$0xf]
  %v536 = vld [vmem:[%s1 + $0x3ac] sm:$0xf]
  %v537 = vld [vmem:[%s1 + $0x3b0] sm:$0xf]
  %v538 = vld [vmem:[%s1 + $0x3b4] sm:$0xf]
  %v539 = vld [vmem:[%s1 + $0x3b8] sm:$0xf]
  %v540 = vld [vmem:[%s1 + $0x3bc] sm:$0xf]
  %v541 = vld [vmem:[%s1 + $0x3c0] sm:$0xf]
  %v542 = vld [vmem:[%s1 + $0x3c4] sm:$0xf]
  %v543 = vld [vmem:[%s1 + $0x3c8] sm:$0xf]
  %v544 = vld [vmem:[%s1 + $0x3cc] sm:$0xf]
  %v545 = vld [vmem:[%s1 + $0x3d0] sm:$0xf]
  %v546 = vld [vmem:[%s1 + $0x3d4] sm:$0xf]
  %v547 = vld [vmem:[%s1 + $0x3d8] sm:$0xf]
  %v548 = vld [vmem:[%s1 + $0x3dc] sm:$0xf]
  %v549 = vld [vmem:[%s1 + $0x3e0] sm:$0xf]
  %v550 = vld [vmem:[%s1 + $0x3e4] sm:$0xf]
  %v551 = vld [vmem:[%s1 + $0x3e8] sm:$0xf]
  %v552 = vld [vmem:[%s1 + $0x3ec] sm:$0xf]
  %v553 = vld [vmem:[%s1 + $0x3f0] sm:$0xf]
  %v554 = vld [vmem:[%s1 + $0x3f4] sm:$0xf]
  %v555 = vld [vmem:[%s1 + $0x3f8] sm:$0xf]
  %v556 = vld [vmem:[%s1 + $0x3fc] sm:$0xf]
  %v557 = vld [vmem:[%s3] sm:$0xf]
  %v558 = vld [vmem:[%s3 + $0x4] sm:$0xf]
  %v559 = vld [vmem:[%s3 + $0x8] sm:$0xf]
  %v560 = vld [vmem:[%s3 + $0xc] sm:$0xf]
  %v817 = vunpack.c.l.b16 %v301
  %v818 = vunpack.c.l.b16 %v302
  %v819 = vunpack.c.l.b16 %v303
  %v820 = vunpack.c.l.b16 %v304
  %v821 = vunpack.c.l.b16 %v305
  %v822 = vunpack.c.l.b16 %v306
  %v823 = vunpack.c.l.b16 %v307
  %v824 = vunpack.c.l.b16 %v308
  %v825 = vunpack.c.l.b16 %v309
  %v826 = vunpack.c.l.b16 %v310
  %v827 = vunpack.c.l.b16 %v311
  %v828 = vunpack.c.l.b16 %v312
  %v829 = vunpack.c.l.b16 %v313
  %v830 = vunpack.c.l.b16 %v314
  %v831 = vunpack.c.l.b16 %v315
  %v832 = vunpack.c.l.b16 %v316
  %v833 = vunpack.c.l.b16 %v317
  %v834 = vunpack.c.l.b16 %v318
  %v835 = vunpack.c.l.b16 %v319
  %v836 = vunpack.c.l.b16 %v320
  %v837 = vunpack.c.l.b16 %v321
  %v838 = vunpack.c.l.b16 %v322
  %v839 = vunpack.c.l.b16 %v323
  %v840 = vunpack.c.l.b16 %v324
  %v841 = vunpack.c.l.b16 %v325
  %v842 = vunpack.c.l.b16 %v326
  %v843 = vunpack.c.l.b16 %v327
  %v844 = vunpack.c.l.b16 %v328
  %v845 = vunpack.c.l.b16 %v329
  %v846 = vunpack.c.l.b16 %v330
  %v847 = vunpack.c.l.b16 %v331
  %v848 = vunpack.c.l.b16 %v332
  %v849 = vunpack.c.l.b16 %v333
  %v850 = vunpack.c.l.b16 %v334
  %v851 = vunpack.c.l.b16 %v335
  %v852 = vunpack.c.l.b16 %v336
  %v853 = vunpack.c.l.b16 %v337
  %v854 = vunpack.c.l.b16 %v338
  %v855 = vunpack.c.l.b16 %v339
  %v856 = vunpack.c.l.b16 %v340
  %v857 = vunpack.c.l.b16 %v341
  %v858 = vunpack.c.l.b16 %v342
  %v859 = vunpack.c.l.b16 %v343
  %v860 = vunpack.c.l.b16 %v344
  %v861 = vunpack.c.l.b16 %v345
  %v862 = vunpack.c.l.b16 %v346
  %v863 = vunpack.c.l.b16 %v347
  %v864 = vunpack.c.l.b16 %v348
  %v865 = vunpack.c.l.b16 %v349
  %v866 = vunpack.c.l.b16 %v350
  %v867 = vunpack.c.l.b16 %v351
  %v868 = vunpack.c.l.b16 %v352
  %v869 = vunpack.c.l.b16 %v353
  %v870 = vunpack.c.l.b16 %v354
  %v871 = vunpack.c.l.b16 %v355
  %v872 = vunpack.c.l.b16 %v356
  %v873 = vunpack.c.l.b16 %v357
  %v874 = vunpack.c.l.b16 %v358
  %v875 = vunpack.c.l.b16 %v359
  %v876 = vunpack.c.l.b16 %v360
  %v877 = vunpack.c.l.b16 %v361
  %v878 = vunpack.c.l.b16 %v362
  %v879 = vunpack.c.l.b16 %v363
  %v880 = vunpack.c.l.b16 %v364
  %v881 = vunpack.c.l.b16 %v365
  %v882 = vunpack.c.l.b16 %v366
  %v883 = vunpack.c.l.b16 %v367
  %v884 = vunpack.c.l.b16 %v368
  %v885 = vunpack.c.l.b16 %v369
  %v886 = vunpack.c.l.b16 %v370
  %v887 = vunpack.c.l.b16 %v371
  %v888 = vunpack.c.l.b16 %v372
  %v889 = vunpack.c.l.b16 %v373
  %v890 = vunpack.c.l.b16 %v374
  %v891 = vunpack.c.l.b16 %v375
  %v892 = vunpack.c.l.b16 %v376
  %v893 = vunpack.c.l.b16 %v377
  %v894 = vunpack.c.l.b16 %v378
  %v895 = vunpack.c.l.b16 %v379
  %v896 = vunpack.c.l.b16 %v380
  %v897 = vunpack.c.l.b16 %v381
  %v898 = vunpack.c.l.b16 %v382
  %v899 = vunpack.c.l.b16 %v383
  %v900 = vunpack.c.l.b16 %v384
  %v901 = vunpack.c.l.b16 %v385
  %v902 = vunpack.c.l.b16 %v386
  %v903 = vunpack.c.l.b16 %v387
  %v904 = vunpack.c.l.b16 %v388
  %v905 = vunpack.c.l.b16 %v389
  %v906 = vunpack.c.l.b16 %v390
  %v907 = vunpack.c.l.b16 %v391
  %v908 = vunpack.c.l.b16 %v392
  %v909 = vunpack.c.l.b16 %v393
  %v910 = vunpack.c.l.b16 %v394
  %v911 = vunpack.c.l.b16 %v395
  %v912 = vunpack.c.l.b16 %v396
  %v913 = vunpack.c.l.b16 %v397
  %v914 = vunpack.c.l.b16 %v398
  %v915 = vunpack.c.l.b16 %v399
  %v916 = vunpack.c.l.b16 %v400
  %v917 = vunpack.c.l.b16 %v401
  %v918 = vunpack.c.l.b16 %v402
  %v919 = vunpack.c.l.b16 %v403
  %v920 = vunpack.c.l.b16 %v404
  %v921 = vunpack.c.l.b16 %v405
  %v922 = vunpack.c.l.b16 %v406
  %v923 = vunpack.c.l.b16 %v407
  %v924 = vunpack.c.l.b16 %v408
  %v925 = vunpack.c.l.b16 %v409
  %v926 = vunpack.c.l.b16 %v410
  %v927 = vunpack.c.l.b16 %v411
  %v928 = vunpack.c.l.b16 %v412
  %v929 = vunpack.c.l.b16 %v413
  %v930 = vunpack.c.l.b16 %v414
  %v931 = vunpack.c.l.b16 %v415
  %v932 = vunpack.c.l.b16 %v416
  %v933 = vunpack.c.l.b16 %v417
  %v934 = vunpack.c.l.b16 %v418
  %v935 = vunpack.c.l.b16 %v419
  %v936 = vunpack.c.l.b16 %v420
  %v937 = vunpack.c.l.b16 %v421
  %v938 = vunpack.c.l.b16 %v422
  %v939 = vunpack.c.l.b16 %v423
  %v940 = vunpack.c.l.b16 %v424
  %v941 = vunpack.c.l.b16 %v425
  %v942 = vunpack.c.l.b16 %v426
  %v943 = vunpack.c.l.b16 %v427
  %v944 = vunpack.c.l.b16 %v428
  %v945 = vunpack.c.l.b16 %v429
  %v946 = vunpack.c.l.b16 %v430
  %v947 = vunpack.c.l.b16 %v431
  %v948 = vunpack.c.l.b16 %v432
  %v949 = vunpack.c.l.b16 %v433
  %v950 = vunpack.c.l.b16 %v434
  %v951 = vunpack.c.l.b16 %v435
  %v952 = vunpack.c.l.b16 %v436
  %v953 = vunpack.c.l.b16 %v437
  %v954 = vunpack.c.l.b16 %v438
  %v955 = vunpack.c.l.b16 %v439
  %v956 = vunpack.c.l.b16 %v440
  %v957 = vunpack.c.l.b16 %v441
  %v958 = vunpack.c.l.b16 %v442
  %v959 = vunpack.c.l.b16 %v443
  %v960 = vunpack.c.l.b16 %v444
  %v961 = vunpack.c.l.b16 %v445
  %v962 = vunpack.c.l.b16 %v446
  %v963 = vunpack.c.l.b16 %v447
  %v964 = vunpack.c.l.b16 %v448
  %v965 = vunpack.c.l.b16 %v449
  %v966 = vunpack.c.l.b16 %v450
  %v967 = vunpack.c.l.b16 %v451
  %v968 = vunpack.c.l.b16 %v452
  %v969 = vunpack.c.l.b16 %v453
  %v970 = vunpack.c.l.b16 %v454
  %v971 = vunpack.c.l.b16 %v455
  %v972 = vunpack.c.l.b16 %v456
  %v973 = vunpack.c.l.b16 %v457
  %v974 = vunpack.c.l.b16 %v458
  %v975 = vunpack.c.l.b16 %v459
  %v976 = vunpack.c.l.b16 %v460
  %v977 = vunpack.c.l.b16 %v461
  %v978 = vunpack.c.l.b16 %v462
  %v979 = vunpack.c.l.b16 %v463
  %v980 = vunpack.c.l.b16 %v464
  %v981 = vunpack.c.l.b16 %v465
  %v982 = vunpack.c.l.b16 %v466
  %v983 = vunpack.c.l.b16 %v467
  %v984 = vunpack.c.l.b16 %v468
  %v985 = vunpack.c.l.b16 %v469
  %v986 = vunpack.c.l.b16 %v470
  %v987 = vunpack.c.l.b16 %v471
  %v988 = vunpack.c.l.b16 %v472
  %v989 = vunpack.c.l.b16 %v473
  %v990 = vunpack.c.l.b16 %v474
  %v991 = vunpack.c.l.b16 %v475
  %v992 = vunpack.c.l.b16 %v476
  %v993 = vunpack.c.l.b16 %v477
  %v994 = vunpack.c.l.b16 %v478
  %v995 = vunpack.c.l.b16 %v479
  %v996 = vunpack.c.l.b16 %v480
  %v997 = vunpack.c.l.b16 %v481
  %v998 = vunpack.c.l.b16 %v482
  %v999 = vunpack.c.l.b16 %v483
  %v1000 = vunpack.c.l.b16 %v484
  %v1001 = vunpack.c.l.b16 %v485
  %v1002 = vunpack.c.l.b16 %v486
  %v1003 = vunpack.c.l.b16 %v487
  %v1004 = vunpack.c.l.b16 %v488
  %v1005 = vunpack.c.l.b16 %v489
  %v1006 = vunpack.c.l.b16 %v490
  %v1007 = vunpack.c.l.b16 %v491
  %v1008 = vunpack.c.l.b16 %v492
  %v1009 = vunpack.c.l.b16 %v493
  %v1010 = vunpack.c.l.b16 %v494
  %v1011 = vunpack.c.l.b16 %v495
  %v1012 = vunpack.c.l.b16 %v496
  %v1013 = vunpack.c.l.b16 %v497
  %v1014 = vunpack.c.l.b16 %v498
  %v1015 = vunpack.c.l.b16 %v499
  %v1016 = vunpack.c.l.b16 %v500
  %v1017 = vunpack.c.l.b16 %v501
  %v1018 = vunpack.c.l.b16 %v502
  %v1019 = vunpack.c.l.b16 %v503
  %v1020 = vunpack.c.l.b16 %v504
  %v1021 = vunpack.c.l.b16 %v505
  %v1022 = vunpack.c.l.b16 %v506
  %v1023 = vunpack.c.l.b16 %v507
  %v1024 = vunpack.c.l.b16 %v508
  %v1025 = vunpack.c.l.b16 %v509
  %v1026 = vunpack.c.l.b16 %v510
  %v1027 = vunpack.c.l.b16 %v511
  %v1028 = vunpack.c.l.b16 %v512
  %v1029 = vunpack.c.l.b16 %v513
  %v1030 = vunpack.c.l.b16 %v514
  %v1031 = vunpack.c.l.b16 %v515
  %v1032 = vunpack.c.l.b16 %v516
  %v1033 = vunpack.c.l.b16 %v517
  %v1034 = vunpack.c.l.b16 %v518
  %v1035 = vunpack.c.l.b16 %v519
  %v1036 = vunpack.c.l.b16 %v520
  %v1037 = vunpack.c.l.b16 %v521
  %v1038 = vunpack.c.l.b16 %v522
  %v1039 = vunpack.c.l.b16 %v523
  %v1040 = vunpack.c.l.b16 %v524
  %v1041 = vunpack.c.l.b16 %v525
  %v1042 = vunpack.c.l.b16 %v526
  %v1043 = vunpack.c.l.b16 %v527
  %v1044 = vunpack.c.l.b16 %v528
  %v1045 = vunpack.c.l.b16 %v529
  %v1046 = vunpack.c.l.b16 %v530
  %v1047 = vunpack.c.l.b16 %v531
  %v1048 = vunpack.c.l.b16 %v532
  %v1049 = vunpack.c.l.b16 %v533
  %v1050 = vunpack.c.l.b16 %v534
  %v1051 = vunpack.c.l.b16 %v535
  %v1052 = vunpack.c.l.b16 %v536
  %v1053 = vunpack.c.l.b16 %v537
  %v1054 = vunpack.c.l.b16 %v538
  %v1055 = vunpack.c.l.b16 %v539
  %v1056 = vunpack.c.l.b16 %v540
  %v1057 = vunpack.c.l.b16 %v541
  %v1058 = vunpack.c.l.b16 %v542
  %v1059 = vunpack.c.l.b16 %v543
  %v1060 = vunpack.c.l.b16 %v544
  %v1061 = vunpack.c.l.b16 %v545
  %v1062 = vunpack.c.l.b16 %v546
  %v1063 = vunpack.c.l.b16 %v547
  %v1064 = vunpack.c.l.b16 %v548
  %v1065 = vunpack.c.l.b16 %v549
  %v1066 = vunpack.c.l.b16 %v550
  %v1067 = vunpack.c.l.b16 %v551
  %v1068 = vunpack.c.l.b16 %v552
  %v1069 = vunpack.c.l.b16 %v553
  %v1070 = vunpack.c.l.b16 %v554
  %v1071 = vunpack.c.l.b16 %v555
  %v1072 = vunpack.c.l.b16 %v556
  %v1073 = vpack.c.b16 %v818, %v817
  %v1074 = vpack.c.b16 %v820, %v819
  %v1075 = vpack.c.b16 %v822, %v821
  %v1076 = vpack.c.b16 %v824, %v823
  %v1077 = vpack.c.b16 %v826, %v825
  %v1078 = vpack.c.b16 %v828, %v827
  %v1079 = vpack.c.b16 %v830, %v829
  %v1080 = vpack.c.b16 %v832, %v831
  %v1081 = vpack.c.b16 %v834, %v833
  %v1082 = vpack.c.b16 %v836, %v835
  %v1083 = vpack.c.b16 %v838, %v837
  %v1084 = vpack.c.b16 %v840, %v839
  %v1085 = vpack.c.b16 %v842, %v841
  %v1086 = vpack.c.b16 %v844, %v843
  %v1087 = vpack.c.b16 %v846, %v845
  %v1088 = vpack.c.b16 %v848, %v847
  %v1089 = vpack.c.b16 %v850, %v849
  %v1090 = vpack.c.b16 %v852, %v851
  %v1091 = vpack.c.b16 %v854, %v853
  %v1092 = vpack.c.b16 %v856, %v855
  %v1093 = vpack.c.b16 %v858, %v857
  %v1094 = vpack.c.b16 %v860, %v859
  %v1095 = vpack.c.b16 %v862, %v861
  %v1096 = vpack.c.b16 %v864, %v863
  %v1097 = vpack.c.b16 %v866, %v865
  %v1098 = vpack.c.b16 %v868, %v867
  %v1099 = vpack.c.b16 %v870, %v869
  %v1100 = vpack.c.b16 %v872, %v871
  %v1101 = vpack.c.b16 %v874, %v873
  %v1102 = vpack.c.b16 %v876, %v875
  %v1103 = vpack.c.b16 %v878, %v877
  %v1104 = vpack.c.b16 %v880, %v879
  %v1105 = vpack.c.b16 %v882, %v881
  %v1106 = vpack.c.b16 %v884, %v883
  %v1107 = vpack.c.b16 %v886, %v885
  %v1108 = vpack.c.b16 %v888, %v887
  %v1109 = vpack.c.b16 %v890, %v889
  %v1110 = vpack.c.b16 %v892, %v891
  %v1111 = vpack.c.b16 %v894, %v893
  %v1112 = vpack.c.b16 %v896, %v895
  %v1113 = vpack.c.b16 %v898, %v897
  %v1114 = vpack.c.b16 %v900, %v899
  %v1115 = vpack.c.b16 %v902, %v901
  %v1116 = vpack.c.b16 %v904, %v903
  %v1117 = vpack.c.b16 %v906, %v905
  %v1118 = vpack.c.b16 %v908, %v907
  %v1119 = vpack.c.b16 %v910, %v909
  %v1120 = vpack.c.b16 %v912, %v911
  %v1121 = vpack.c.b16 %v914, %v913
  %v1122 = vpack.c.b16 %v916, %v915
  %v1123 = vpack.c.b16 %v918, %v917
  %v1124 = vpack.c.b16 %v920, %v919
  %v1125 = vpack.c.b16 %v922, %v921
  %v1126 = vpack.c.b16 %v924, %v923
  %v1127 = vpack.c.b16 %v926, %v925
  %v1128 = vpack.c.b16 %v928, %v927
  %v1129 = vpack.c.b16 %v930, %v929
  %v1130 = vpack.c.b16 %v932, %v931
  %v1131 = vpack.c.b16 %v934, %v933
  %v1132 = vpack.c.b16 %v936, %v935
  %v1133 = vpack.c.b16 %v938, %v937
  %v1134 = vpack.c.b16 %v940, %v939
  %v1135 = vpack.c.b16 %v942, %v941
  %v1136 = vpack.c.b16 %v944, %v943
  %v1137 = vpack.c.b16 %v946, %v945
  %v1138 = vpack.c.b16 %v948, %v947
  %v1139 = vpack.c.b16 %v950, %v949
  %v1140 = vpack.c.b16 %v952, %v951
  %v1141 = vpack.c.b16 %v954, %v953
  %v1142 = vpack.c.b16 %v956, %v955
  %v1143 = vpack.c.b16 %v958, %v957
  %v1144 = vpack.c.b16 %v960, %v959
  %v1145 = vpack.c.b16 %v962, %v961
  %v1146 = vpack.c.b16 %v964, %v963
  %v1147 = vpack.c.b16 %v966, %v965
  %v1148 = vpack.c.b16 %v968, %v967
  %v1149 = vpack.c.b16 %v970, %v969
  %v1150 = vpack.c.b16 %v972, %v971
  %v1151 = vpack.c.b16 %v974, %v973
  %v1152 = vpack.c.b16 %v976, %v975
  %v1153 = vpack.c.b16 %v978, %v977
  %v1154 = vpack.c.b16 %v980, %v979
  %v1155 = vpack.c.b16 %v982, %v981
  %v1156 = vpack.c.b16 %v984, %v983
  %v1157 = vpack.c.b16 %v986, %v985
  %v1158 = vpack.c.b16 %v988, %v987
  %v1159 = vpack.c.b16 %v990, %v989
  %v1160 = vpack.c.b16 %v992, %v991
  %v1161 = vpack.c.b16 %v994, %v993
  %v1162 = vpack.c.b16 %v996, %v995
  %v1163 = vpack.c.b16 %v998, %v997
  %v1164 = vpack.c.b16 %v1000, %v999
  %v1165 = vpack.c.b16 %v1002, %v1001
  %v1166 = vpack.c.b16 %v1004, %v1003
  %v1167 = vpack.c.b16 %v1006, %v1005
  %v1168 = vpack.c.b16 %v1008, %v1007
  %v1169 = vpack.c.b16 %v1010, %v1009
  %v1170 = vpack.c.b16 %v1012, %v1011
  %v1171 = vpack.c.b16 %v1014, %v1013
  %v1172 = vpack.c.b16 %v1016, %v1015
  %v1173 = vpack.c.b16 %v1018, %v1017
  %v1174 = vpack.c.b16 %v1020, %v1019
  %v1175 = vpack.c.b16 %v1022, %v1021
  %v1176 = vpack.c.b16 %v1024, %v1023
  %v1177 = vpack.c.b16 %v1026, %v1025
  %v1178 = vpack.c.b16 %v1028, %v1027
  %v1179 = vpack.c.b16 %v1030, %v1029
  %v1180 = vpack.c.b16 %v1032, %v1031
  %v1181 = vpack.c.b16 %v1034, %v1033
  %v1182 = vpack.c.b16 %v1036, %v1035
  %v1183 = vpack.c.b16 %v1038, %v1037
  %v1184 = vpack.c.b16 %v1040, %v1039
  %v1185 = vpack.c.b16 %v1042, %v1041
  %v1186 = vpack.c.b16 %v1044, %v1043
  %v1187 = vpack.c.b16 %v1046, %v1045
  %v1188 = vpack.c.b16 %v1048, %v1047
  %v1189 = vpack.c.b16 %v1050, %v1049
  %v1190 = vpack.c.b16 %v1052, %v1051
  %v1191 = vpack.c.b16 %v1054, %v1053
  %v1192 = vpack.c.b16 %v1056, %v1055
  %v1193 = vpack.c.b16 %v1058, %v1057
  %v1194 = vpack.c.b16 %v1060, %v1059
  %v1195 = vpack.c.b16 %v1062, %v1061
  %v1196 = vpack.c.b16 %v1064, %v1063
  %v1197 = vpack.c.b16 %v1066, %v1065
  %v1198 = vpack.c.b16 %v1068, %v1067
  %v1199 = vpack.c.b16 %v1070, %v1069
  %v1200 = vpack.c.b16 %v1072, %v1071
  %v1205 = vunpack.c.l.b16 %v557
  %v1206 = vunpack.c.l.b16 %v558
  %v1207 = vunpack.c.l.b16 %v559
  %v1208 = vunpack.c.l.b16 %v560
  %v1209 = vpack.c.b16 %v1206, %v1205
  %v1210 = vpack.c.b16 %v1208, %v1207
  %vm1213 = vcmask 261120
  %v1215 = vsel %vm1213, %v1073, 0
  %v1218 = vsel %vm1213, %v1074, 0
  %v1221 = vsel %vm1213, %v1075, 0
  %v1224 = vsel %vm1213, %v1076, 0
  %v1227 = vsel %vm1213, %v1077, 0
  %v1230 = vsel %vm1213, %v1078, 0
  %v1233 = vsel %vm1213, %v1079, 0
  %v1236 = vsel %vm1213, %v1080, 0
  %v1239 = vsel %vm1213, %v1081, 0
  %v1242 = vsel %vm1213, %v1082, 0
  %v1245 = vsel %vm1213, %v1083, 0
  %v1248 = vsel %vm1213, %v1084, 0
  %v1251 = vsel %vm1213, %v1085, 0
  %v1254 = vsel %vm1213, %v1086, 0
  %v1257 = vsel %vm1213, %v1087, 0
  %v1260 = vsel %vm1213, %v1088, 0
  %v1263 = vsel %vm1213, %v1089, 0
  %v1266 = vsel %vm1213, %v1090, 0
  %v1269 = vsel %vm1213, %v1091, 0
  %v1272 = vsel %vm1213, %v1092, 0
  %v1275 = vsel %vm1213, %v1093, 0
  %v1278 = vsel %vm1213, %v1094, 0
  %v1281 = vsel %vm1213, %v1095, 0
  %v1284 = vsel %vm1213, %v1096, 0
  %v1287 = vsel %vm1213, %v1097, 0
  %v1290 = vsel %vm1213, %v1098, 0
  %v1293 = vsel %vm1213, %v1099, 0
  %v1296 = vsel %vm1213, %v1100, 0
  %v1299 = vsel %vm1213, %v1101, 0
  %v1302 = vsel %vm1213, %v1102, 0
  %v1305 = vsel %vm1213, %v1103, 0
  %v1308 = vsel %vm1213, %v1104, 0
  %v1311 = vsel %vm1213, %v1105, 0
  %v1314 = vsel %vm1213, %v1106, 0
  %v1317 = vsel %vm1213, %v1107, 0
  %v1320 = vsel %vm1213, %v1108, 0
  %v1323 = vsel %vm1213, %v1109, 0
  %v1326 = vsel %vm1213, %v1110, 0
  %v1329 = vsel %vm1213, %v1111, 0
  %v1332 = vsel %vm1213, %v1112, 0
  %v1335 = vsel %vm1213, %v1113, 0
  %v1338 = vsel %vm1213, %v1114, 0
  %v1341 = vsel %vm1213, %v1115, 0
  %v1344 = vsel %vm1213, %v1116, 0
  %v1347 = vsel %vm1213, %v1117, 0
  %v1350 = vsel %vm1213, %v1118, 0
  %v1353 = vsel %vm1213, %v1119, 0
  %v1356 = vsel %vm1213, %v1120, 0
  %v1359 = vsel %vm1213, %v1121, 0
  %v1362 = vsel %vm1213, %v1122, 0
  %v1365 = vsel %vm1213, %v1123, 0
  %v1368 = vsel %vm1213, %v1124, 0
  %v1371 = vsel %vm1213, %v1125, 0
  %v1374 = vsel %vm1213, %v1126, 0
  %v1377 = vsel %vm1213, %v1127, 0
  %v1380 = vsel %vm1213, %v1128, 0
  %v1383 = vsel %vm1213, %v1129, 0
  %v1386 = vsel %vm1213, %v1130, 0
  %v1389 = vsel %vm1213, %v1131, 0
  %v1392 = vsel %vm1213, %v1132, 0
  %v1395 = vsel %vm1213, %v1133, 0
  %v1398 = vsel %vm1213, %v1134, 0
  %v1401 = vsel %vm1213, %v1135, 0
  %v1404 = vsel %vm1213, %v1136, 0
  %v1407 = vsel %vm1213, %v1137, 0
  %v1410 = vsel %vm1213, %v1138, 0
  %v1413 = vsel %vm1213, %v1139, 0
  %v1416 = vsel %vm1213, %v1140, 0
  %v1419 = vsel %vm1213, %v1141, 0
  %v1422 = vsel %vm1213, %v1142, 0
  %v1425 = vsel %vm1213, %v1143, 0
  %v1428 = vsel %vm1213, %v1144, 0
  %v1431 = vsel %vm1213, %v1145, 0
  %v1434 = vsel %vm1213, %v1146, 0
  %v1437 = vsel %vm1213, %v1147, 0
  %v1440 = vsel %vm1213, %v1148, 0
  %v1443 = vsel %vm1213, %v1149, 0
  %v1446 = vsel %vm1213, %v1150, 0
  %v1449 = vsel %vm1213, %v1151, 0
  %v1452 = vsel %vm1213, %v1152, 0
  %v1455 = vsel %vm1213, %v1153, 0
  %v1458 = vsel %vm1213, %v1154, 0
  %v1461 = vsel %vm1213, %v1155, 0
  %v1464 = vsel %vm1213, %v1156, 0
  %v1467 = vsel %vm1213, %v1157, 0
  %v1470 = vsel %vm1213, %v1158, 0
  %v1473 = vsel %vm1213, %v1159, 0
  %v1476 = vsel %vm1213, %v1160, 0
  %v1479 = vsel %vm1213, %v1161, 0
  %v1482 = vsel %vm1213, %v1162, 0
  %v1485 = vsel %vm1213, %v1163, 0
  %v1488 = vsel %vm1213, %v1164, 0
  %v1491 = vsel %vm1213, %v1165, 0
  %v1494 = vsel %vm1213, %v1166, 0
  %v1497 = vsel %vm1213, %v1167, 0
  %v1500 = vsel %vm1213, %v1168, 0
  %v1503 = vsel %vm1213, %v1169, 0
  %v1506 = vsel %vm1213, %v1170, 0
  %v1509 = vsel %vm1213, %v1171, 0
  %v1512 = vsel %vm1213, %v1172, 0
  %v1515 = vsel %vm1213, %v1173, 0
  %v1518 = vsel %vm1213, %v1174, 0
  %v1521 = vsel %vm1213, %v1175, 0
  %v1524 = vsel %vm1213, %v1176, 0
  %v1527 = vsel %vm1213, %v1177, 0
  %v1530 = vsel %vm1213, %v1178, 0
  %v1533 = vsel %vm1213, %v1179, 0
  %v1536 = vsel %vm1213, %v1180, 0
  %v1539 = vsel %vm1213, %v1181, 0
  %v1542 = vsel %vm1213, %v1182, 0
  %v1545 = vsel %vm1213, %v1183, 0
  %v1548 = vsel %vm1213, %v1184, 0
  %v1551 = vsel %vm1213, %v1185, 0
  %v1554 = vsel %vm1213, %v1186, 0
  %v1557 = vsel %vm1213, %v1187, 0
  %v1560 = vsel %vm1213, %v1188, 0
  %v1563 = vsel %vm1213, %v1189, 0
  %v1566 = vsel %vm1213, %v1190, 0
  %v1569 = vsel %vm1213, %v1191, 0
  %v1572 = vsel %vm1213, %v1192, 0
  %v1575 = vsel %vm1213, %v1193, 0
  %v1578 = vsel %vm1213, %v1194, 0
  %v1581 = vsel %vm1213, %v1195, 0
  %v1584 = vsel %vm1213, %v1196, 0
  %v1587 = vsel %vm1213, %v1197, 0
  %v1590 = vsel %vm1213, %v1198, 0
  %v1593 = vsel %vm1213, %v1199, 0
  %v1596 = vsel %vm1213, %v1200, 0
  %1598 = vmatprep.subr.bf16.mxu0 0
  %1599 = vmatpush1.bf16.msra.mxu0 %v1209
  %1600 = vmatprep.subr.bf16.mxu0 0
  %1601 = vmatpush1.bf16.msra.mxu0 %v1210
  %1602 = vmatprep.subr.bf16.mxu0 0
  %1603 = vmatpush1.bf16.msra.mxu0 0
  %1604 = vmatprep.subr.bf16.mxu0 0
  %1605 = vmatpush1.bf16.msra.mxu0 0
  %1606 = vmatprep.subr.bf16.mxu0 0
  %1607 = vmatpush1.bf16.msra.mxu0 0
  %1608 = vmatprep.subr.bf16.mxu0 0
  %1609 = vmatpush1.bf16.msra.mxu0 0
  %1610 = vmatprep.subr.bf16.mxu0 0
  %1611 = vmatpush1.bf16.msra.mxu0 0
  %1612 = vmatprep.subr.bf16.mxu0 0
  %1613 = vmatpush1.bf16.msra.mxu0 0
  %1614 = vmatprep.subr.bf16.mxu0 0
  %1615 = vmatpush1.bf16.msra.mxu0 0
  %1616 = vmatprep.subr.bf16.mxu0 0
  %1617 = vmatpush1.bf16.msra.mxu0 0
  %1618 = vmatprep.subr.bf16.mxu0 0
  %1619 = vmatpush1.bf16.msra.mxu0 0
  %1620 = vmatprep.subr.bf16.mxu0 0
  %1621 = vmatpush1.bf16.msra.mxu0 0
  %1622 = vmatprep.subr.bf16.mxu0 0
  %1623 = vmatpush1.bf16.msra.mxu0 0
  %1624 = vmatprep.subr.bf16.mxu0 0
  %1625 = vmatpush1.bf16.msra.mxu0 0
  %1626 = vmatprep.subr.bf16.mxu0 0
  %1627 = vmatpush1.bf16.msra.mxu0 0
  %1628 = vmatprep.subr.bf16.mxu0 0
  %1629 = vmatpush1.bf16.msra.mxu0 0
  %1630 = vmatprep.mubr.bf16.mxu0 0
  %1631 = vmatmul.mubr.bf16.gmra.mrb[0].mxu0 %v1215
  %v1632 = vpop.f32.mrb[0].mxu0
  %v1633 = vadd.f32 0.0, %v1632
  %v1634 = vpop.f32.mrb[0].mxu0
  %v1635 = vpop.f32.mrb[0].mxu0
  %v1636 = vadd.f32 0.0, %v1635
  %v1637 = vpop.f32.mrb[0].mxu0
  %1638 = vmatprep.mubr.bf16.mxu0 0
  %1639 = vmatmul.mubr.bf16.gmra.mrb[0].mxu0 %v1218
  %v1640 = vpop.f32.mrb[0].mxu0
  %v1641 = vadd.f32 0.0, %v1640
  %v1642 = vpop.f32.mrb[0].mxu0
  %v1643 = vpop.f32.mrb[0].mxu0
  %v1644 = vadd.f32 0.0, %v1643
  %v1645 = vpop.f32.mrb[0].mxu0
  %1646 = vmatprep.mubr.bf16.mxu0 0
  %1647 = vmatmul.mubr.bf16.gmra.mrb[0].mxu0 %v1221
  %v1648 = vpop.f32.mrb[0].mxu0
  %v1649 = vadd.f32 0.0, %v1648
  %v1650 = vpop.f32.mrb[0].mxu0
  %v1651 = vpop.f32.mrb[0].mxu0
  %v1652 = vadd.f32 0.0, %v1651
  %v1653 = vpop.f32.mrb[0].mxu0
  %1654 = vmatprep.mubr.bf16.mxu0 0
  %1655 = vmatmul.mubr.bf16.gmra.mrb[0].mxu0 %v1224
  %v1656 = vpop.f32.mrb[0].mxu0
  %v1657 = vadd.f32 0.0, %v1656
  %v1658 = vpop.f32.mrb[0].mxu0
  %v1659 = vpop.f32.mrb[0].mxu0
  %v1660 = vadd.f32 0.0, %v1659
  %v1661 = vpop.f32.mrb[0].mxu0
  %1662 = vmatprep.mubr.bf16.mxu0 0
  %1663 = vmatmul.mubr.bf16.gmra.mrb[0].mxu0 %v1227
  %v1664 = vpop.f32.mrb[0].mxu0
  %v1665 = vadd.f32 0.0, %v1664
  %v1666 = vpop.f32.mrb[0].mxu0
  %v1667 = vpop.f32.mrb[0].mxu0
  %v1668 = vadd.f32 0.0, %v1667
  %v1669 = vpop.f32.mrb[0].mxu0
  %1670 = vmatprep.mubr.bf16.mxu0 0
  %1671 = vmatmul.mubr.bf16.gmra.mrb[0].mxu0 %v1230
  %v1672 = vpop.f32.mrb[0].mxu0
  %v1673 = vadd.f32 0.0, %v1672
  %v1674 = vpop.f32.mrb[0].mxu0
  %v1675 = vpop.f32.mrb[0].mxu0
  %v1676 = vadd.f32 0.0, %v1675
  %v1677 = vpop.f32.mrb[0].mxu0
  %1678 = vmatprep.mubr.bf16.mxu0 0
  %1679 = vmatmul.mubr.bf16.gmra.mrb[0].mxu0 %v1233
  %v1680 = vpop.f32.mrb[0].mxu0
  %v1681 = vadd.f32 0.0, %v1680
  %v1682 = vpop.f32.mrb[0].mxu0
  %v1683 = vpop.f32.mrb[0].mxu0
  %v1684 = vadd.f32 0.0, %v1683
  %v1685 = vpop.f32.mrb[0].mxu0
  %1686 = vmatprep.mubr.bf16.mxu0 0
  %1687 = vmatmul.mubr.bf16.gmra.mrb[0].mxu0 %v1236
  %v1688 = vpop.f32.mrb[0].mxu0
  %v1689 = vadd.f32 0.0, %v1688
  %v1690 = vpop.f32.mrb[0].mxu0
  %v1691 = vpop.f32.mrb[0].mxu0
  %v1692 = vadd.f32 0.0, %v1691
  %v1693 = vpop.f32.mrb[0].mxu0
  %1694 = vmatprep.mubr.bf16.mxu0 0
  %1695 = vmatmul.mubr.bf16.gmra.mrb[0].mxu0 %v1239
  %v1696 = vpop.f32.mrb[0].mxu0
  %v1697 = vadd.f32 0.0, %v1696
  %v1698 = vpop.f32.mrb[0].mxu0
  %v1699 = vpop.f32.mrb[0].mxu0
  %v1700 = vadd.f32 0.0, %v1699
  %v1701 = vpop.f32.mrb[0].mxu0
  %1702 = vmatprep.mubr.bf16.mxu0 0
  %1703 = vmatmul.mubr.bf16.gmra.mrb[0].mxu0 %v1242
  %v1704 = vpop.f32.mrb[0].mxu0
  %v1705 = vadd.f32 0.0, %v1704
  %v1706 = vpop.f32.mrb[0].mxu0
  %v1707 = vpop.f32.mrb[0].mxu0
  %v1708 = vadd.f32 0.0, %v1707
  %v1709 = vpop.f32.mrb[0].mxu0
  %1710 = vmatprep.mubr.bf16.mxu0 0
  %1711 = vmatmul.mubr.bf16.gmra.mrb[0].mxu0 %v1245
  %v1712 = vpop.f32.mrb[0].mxu0
  %v1713 = vadd.f32 0.0, %v1712
  %v1714 = vpop.f32.mrb[0].mxu0
  %v1715 = vpop.f32.mrb[0].mxu0
  %v1716 = vadd.f32 0.0, %v1715
  %v1717 = vpop.f32.mrb[0].mxu0
  %1718 = vmatprep.mubr.bf16.mxu0 0
  %1719 = vmatmul.mubr.bf16.gmra.mrb[0].mxu0 %v1248
  %v1720 = vpop.f32.mrb[0].mxu0
  %v1721 = vadd.f32 0.0, %v1720
  %v1722 = vpop.f32.mrb[0].mxu0
  %v1723 = vpop.f32.mrb[0].mxu0
  %v1724 = vadd.f32 0.0, %v1723
  %v1725 = vpop.f32.mrb[0].mxu0
  %1726 = vmatprep.mubr.bf16.mxu0 0
  %1727 = vmatmul.mubr.bf16.gmra.mrb[0].mxu0 %v1251
  %v1728 = vpop.f32.mrb[0].mxu0
  %v1729 = vadd.f32 0.0, %v1728
  %v1730 = vpop.f32.mrb[0].mxu0
  %v1731 = vpop.f32.mrb[0].mxu0
  %v1732 = vadd.f32 0.0, %v1731
  %v1733 = vpop.f32.mrb[0].mxu0
  %1734 = vmatprep.mubr.bf16.mxu0 0
  %1735 = vmatmul.mubr.bf16.gmra.mrb[0].mxu0 %v1254
  %v1736 = vpop.f32.mrb[0].mxu0
  %v1737 = vadd.f32 0.0, %v1736
  %v1738 = vpop.f32.mrb[0].mxu0
  %v1739 = vpop.f32.mrb[0].mxu0
  %v1740 = vadd.f32 0.0, %v1739
  %v1741 = vpop.f32.mrb[0].mxu0
  %1742 = vmatprep.mubr.bf16.mxu0 0
  %1743 = vmatmul.mubr.bf16.gmra.mrb[0].mxu0 %v1257
  %v1744 = vpop.f32.mrb[0].mxu0
  %v1745 = vadd.f32 0.0, %v1744
  %v1746 = vpop.f32.mrb[0].mxu0
  %v1747 = vpop.f32.mrb[0].mxu0
  %v1748 = vadd.f32 0.0, %v1747
  %v1749 = vpop.f32.mrb[0].mxu0
  %1750 = vmatprep.mubr.bf16.mxu0 0
  %1751 = vmatmul.mubr.bf16.gmra.mrb[0].mxu0 %v1260
  %v1752 = vpop.f32.mrb[0].mxu0
  %v1753 = vadd.f32 0.0, %v1752
  %v1754 = vpop.f32.mrb[0].mxu0
  %v1755 = vpop.f32.mrb[0].mxu0
  %v1756 = vadd.f32 0.0, %v1755
  %v1757 = vpop.f32.mrb[0].mxu0
  %1758 = vmatprep.mubr.bf16.mxu0 0
  %1759 = vmatmul.mubr.bf16.gmra.mrb[0].mxu0 %v1263
  %v1760 = vpop.f32.mrb[0].mxu0
  %v1761 = vadd.f32 0.0, %v1760
  %v1762 = vpop.f32.mrb[0].mxu0
  %v1763 = vpop.f32.mrb[0].mxu0
  %v1764 = vadd.f32 0.0, %v1763
  %v1765 = vpop.f32.mrb[0].mxu0
  %1766 = vmatprep.mubr.bf16.mxu0 0
  %1767 = vmatmul.mubr.bf16.gmra.mrb[0].mxu0 %v1266
  %v1768 = vpop.f32.mrb[0].mxu0
  %v1769 = vadd.f32 0.0, %v1768
  %v1770 = vpop.f32.mrb[0].mxu0
  %v1771 = vpop.f32.mrb[0].mxu0
  %v1772 = vadd.f32 0.0, %v1771
  %v1773 = vpop.f32.mrb[0].mxu0
  %1774 = vmatprep.mubr.bf16.mxu0 0
  %1775 = vmatmul.mubr.bf16.gmra.mrb[0].mxu0 %v1269
  %v1776 = vpop.f32.mrb[0].mxu0
  %v1777 = vadd.f32 0.0, %v1776
  %v1778 = vpop.f32.mrb[0].mxu0
  %v1779 = vpop.f32.mrb[0].mxu0
  %v1780 = vadd.f32 0.0, %v1779
  %v1781 = vpop.f32.mrb[0].mxu0
  %1782 = vmatprep.mubr.bf16.mxu0 0
  %1783 = vmatmul.mubr.bf16.gmra.mrb[0].mxu0 %v1272
  %v1784 = vpop.f32.mrb[0].mxu0
  %v1785 = vadd.f32 0.0, %v1784
  %v1786 = vpop.f32.mrb[0].mxu0
  %v1787 = vpop.f32.mrb[0].mxu0
  %v1788 = vadd.f32 0.0, %v1787
  %v1789 = vpop.f32.mrb[0].mxu0
  %1790 = vmatprep.mubr.bf16.mxu0 0
  %1791 = vmatmul.mubr.bf16.gmra.mrb[0].mxu0 %v1275
  %v1792 = vpop.f32.mrb[0].mxu0
  %v1793 = vadd.f32 0.0, %v1792
  %v1794 = vpop.f32.mrb[0].mxu0
  %v1795 = vpop.f32.mrb[0].mxu0
  %v1796 = vadd.f32 0.0, %v1795
  %v1797 = vpop.f32.mrb[0].mxu0
  %1798 = vmatprep.mubr.bf16.mxu0 0
  %1799 = vmatmul.mubr.bf16.gmra.mrb[0].mxu0 %v1278
  %v1800 = vpop.f32.mrb[0].mxu0
  %v1801 = vadd.f32 0.0, %v1800
  %v1802 = vpop.f32.mrb[0].mxu0
  %v1803 = vpop.f32.mrb[0].mxu0
  %v1804 = vadd.f32 0.0, %v1803
  %v1805 = vpop.f32.mrb[0].mxu0
  %1806 = vmatprep.mubr.bf16.mxu0 0
  %1807 = vmatmul.mubr.bf16.gmra.mrb[0].mxu0 %v1281
  %v1808 = vpop.f32.mrb[0].mxu0
  %v1809 = vadd.f32 0.0, %v1808
  %v1810 = vpop.f32.mrb[0].mxu0
  %v1811 = vpop.f32.mrb[0].mxu0
  %v1812 = vadd.f32 0.0, %v1811
  %v1813 = vpop.f32.mrb[0].mxu0
  %1814 = vmatprep.mubr.bf16.mxu0 0
  %1815 = vmatmul.mubr.bf16.gmra.mrb[0].mxu0 %v1284
  %v1816 = vpop.f32.mrb[0].mxu0
  %v1817 = vadd.f32 0.0, %v1816
  %v1818 = vpop.f32.mrb[0].mxu0
  %v1819 = vpop.f32.mrb[0].mxu0
  %v1820 = vadd.f32 0.0, %v1819
  %v1821 = vpop.f32.mrb[0].mxu0
  %1822 = vmatprep.mubr.bf16.mxu0 0
  %1823 = vmatmul.mubr.bf16.gmra.mrb[0].mxu0 %v1287
  %v1824 = vpop.f32.mrb[0].mxu0
  %v1825 = vadd.f32 0.0, %v1824
  %v1826 = vpop.f32.mrb[0].mxu0
  %v1827 = vpop.f32.mrb[0].mxu0
  %v1828 = vadd.f32 0.0, %v1827
  %v1829 = vpop.f32.mrb[0].mxu0
  %1830 = vmatprep.mubr.bf16.mxu0 0
  %1831 = vmatmul.mubr.bf16.gmra.mrb[0].mxu0 %v1290
  %v1832 = vpop.f32.mrb[0].mxu0
  %v1833 = vadd.f32 0.0, %v1832
  %v1834 = vpop.f32.mrb[0].mxu0
  %v1835 = vpop.f32.mrb[0].mxu0
  %v1836 = vadd.f32 0.0, %v1835
  %v1837 = vpop.f32.mrb[0].mxu0
  %1838 = vmatprep.mubr.bf16.mxu0 0
  %1839 = vmatmul.mubr.bf16.gmra.mrb[0].mxu0 %v1293
  %v1840 = vpop.f32.mrb[0].mxu0
  %v1841 = vadd.f32 0.0, %v1840
  %v1842 = vpop.f32.mrb[0].mxu0
  %v1843 = vpop.f32.mrb[0].mxu0
  %v1844 = vadd.f32 0.0, %v1843
  %v1845 = vpop.f32.mrb[0].mxu0
  %1846 = vmatprep.mubr.bf16.mxu0 0
  %1847 = vmatmul.mubr.bf16.gmra.mrb[0].mxu0 %v1296
  %v1848 = vpop.f32.mrb[0].mxu0
  %v1849 = vadd.f32 0.0, %v1848
  %v1850 = vpop.f32.mrb[0].mxu0
  %v1851 = vpop.f32.mrb[0].mxu0
  %v1852 = vadd.f32 0.0, %v1851
  %v1853 = vpop.f32.mrb[0].mxu0
  %1854 = vmatprep.mubr.bf16.mxu0 0
  %1855 = vmatmul.mubr.bf16.gmra.mrb[0].mxu0 %v1299
  %v1856 = vpop.f32.mrb[0].mxu0
  %v1857 = vadd.f32 0.0, %v1856
  %v1858 = vpop.f32.mrb[0].mxu0
  %v1859 = vpop.f32.mrb[0].mxu0
  %v1860 = vadd.f32 0.0, %v1859
  %v1861 = vpop.f32.mrb[0].mxu0
  %1862 = vmatprep.mubr.bf16.mxu0 0
  %1863 = vmatmul.mubr.bf16.gmra.mrb[0].mxu0 %v1302
  %v1864 = vpop.f32.mrb[0].mxu0
  %v1865 = vadd.f32 0.0, %v1864
  %v1866 = vpop.f32.mrb[0].mxu0
  %v1867 = vpop.f32.mrb[0].mxu0
  %v1868 = vadd.f32 0.0, %v1867
  %v1869 = vpop.f32.mrb[0].mxu0
  %1870 = vmatprep.mubr.bf16.mxu0 0
  %1871 = vmatmul.mubr.bf16.gmra.mrb[0].mxu0 %v1305
  %v1872 = vpop.f32.mrb[0].mxu0
  %v1873 = vadd.f32 0.0, %v1872
  %v1874 = vpop.f32.mrb[0].mxu0
  %v1875 = vpop.f32.mrb[0].mxu0
  %v1876 = vadd.f32 0.0, %v1875
  %v1877 = vpop.f32.mrb[0].mxu0
  %1878 = vmatprep.mubr.bf16.mxu0 0
  %1879 = vmatmul.mubr.bf16.gmra.mrb[0].mxu0 %v1308
  %v1880 = vpop.f32.mrb[0].mxu0
  %v1881 = vadd.f32 0.0, %v1880
  %v1882 = vpop.f32.mrb[0].mxu0
  %v1883 = vpop.f32.mrb[0].mxu0
  %v1884 = vadd.f32 0.0, %v1883
  %v1885 = vpop.f32.mrb[0].mxu0
  %1886 = vmatprep.mubr.bf16.mxu0 0
  %1887 = vmatmul.mubr.bf16.gmra.mrb[0].mxu0 %v1311
  %v1888 = vpop.f32.mrb[0].mxu0
  %v1889 = vadd.f32 0.0, %v1888
  %v1890 = vpop.f32.mrb[0].mxu0
  %v1891 = vpop.f32.mrb[0].mxu0
  %v1892 = vadd.f32 0.0, %v1891
  %v1893 = vpop.f32.mrb[0].mxu0
  %1894 = vmatprep.mubr.bf16.mxu0 0
  %1895 = vmatmul.mubr.bf16.gmra.mrb[0].mxu0 %v1314
  %v1896 = vpop.f32.mrb[0].mxu0
  %v1897 = vadd.f32 0.0, %v1896
  %v1898 = vpop.f32.mrb[0].mxu0
  %v1899 = vpop.f32.mrb[0].mxu0
  %v1900 = vadd.f32 0.0, %v1899
  %v1901 = vpop.f32.mrb[0].mxu0
  %1902 = vmatprep.mubr.bf16.mxu0 0
  %1903 = vmatmul.mubr.bf16.gmra.mrb[0].mxu0 %v1317
  %v1904 = vpop.f32.mrb[0].mxu0
  %v1905 = vadd.f32 0.0, %v1904
  %v1906 = vpop.f32.mrb[0].mxu0
  %v1907 = vpop.f32.mrb[0].mxu0
  %v1908 = vadd.f32 0.0, %v1907
  %v1909 = vpop.f32.mrb[0].mxu0
  %1910 = vmatprep.mubr.bf16.mxu0 0
  %1911 = vmatmul.mubr.bf16.gmra.mrb[0].mxu0 %v1320
  %v1912 = vpop.f32.mrb[0].mxu0
  %v1913 = vadd.f32 0.0, %v1912
  %v1914 = vpop.f32.mrb[0].mxu0
  %v1915 = vpop.f32.mrb[0].mxu0
  %v1916 = vadd.f32 0.0, %v1915
  %v1917 = vpop.f32.mrb[0].mxu0
  %1918 = vmatprep.mubr.bf16.mxu0 0
  %1919 = vmatmul.mubr.bf16.gmra.mrb[0].mxu0 %v1323
  %v1920 = vpop.f32.mrb[0].mxu0
  %v1921 = vadd.f32 0.0, %v1920
  %v1922 = vpop.f32.mrb[0].mxu0
  %v1923 = vpop.f32.mrb[0].mxu0
  %v1924 = vadd.f32 0.0, %v1923
  %v1925 = vpop.f32.mrb[0].mxu0
  %1926 = vmatprep.mubr.bf16.mxu0 0
  %1927 = vmatmul.mubr.bf16.gmra.mrb[0].mxu0 %v1326
  %v1928 = vpop.f32.mrb[0].mxu0
  %v1929 = vadd.f32 0.0, %v1928
  %v1930 = vpop.f32.mrb[0].mxu0
  %v1931 = vpop.f32.mrb[0].mxu0
  %v1932 = vadd.f32 0.0, %v1931
  %v1933 = vpop.f32.mrb[0].mxu0
  %1934 = vmatprep.mubr.bf16.mxu0 0
  %1935 = vmatmul.mubr.bf16.gmra.mrb[0].mxu0 %v1329
  %v1936 = vpop.f32.mrb[0].mxu0
  %v1937 = vadd.f32 0.0, %v1936
  %v1938 = vpop.f32.mrb[0].mxu0
  %v1939 = vpop.f32.mrb[0].mxu0
  %v1940 = vadd.f32 0.0, %v1939
  %v1941 = vpop.f32.mrb[0].mxu0
  %1942 = vmatprep.mubr.bf16.mxu0 0
  %1943 = vmatmul.mubr.bf16.gmra.mrb[0].mxu0 %v1332
  %v1944 = vpop.f32.mrb[0].mxu0
  %v1945 = vadd.f32 0.0, %v1944
  %v1946 = vpop.f32.mrb[0].mxu0
  %v1947 = vpop.f32.mrb[0].mxu0
  %v1948 = vadd.f32 0.0, %v1947
  %v1949 = vpop.f32.mrb[0].mxu0
  %1950 = vmatprep.mubr.bf16.mxu0 0
  %1951 = vmatmul.mubr.bf16.gmra.mrb[0].mxu0 %v1335
  %v1952 = vpop.f32.mrb[0].mxu0
  %v1953 = vadd.f32 0.0, %v1952
  %v1954 = vpop.f32.mrb[0].mxu0
  %v1955 = vpop.f32.mrb[0].mxu0
  %v1956 = vadd.f32 0.0, %v1955
  %v1957 = vpop.f32.mrb[0].mxu0
  %1958 = vmatprep.mubr.bf16.mxu0 0
  %1959 = vmatmul.mubr.bf16.gmra.mrb[0].mxu0 %v1338
  %v1960 = vpop.f32.mrb[0].mxu0
  %v1961 = vadd.f32 0.0, %v1960
  %v1962 = vpop.f32.mrb[0].mxu0
  %v1963 = vpop.f32.mrb[0].mxu0
  %v1964 = vadd.f32 0.0, %v1963
  %v1965 = vpop.f32.mrb[0].mxu0
  %1966 = vmatprep.mubr.bf16.mxu0 0
  %1967 = vmatmul.mubr.bf16.gmra.mrb[0].mxu0 %v1341
  %v1968 = vpop.f32.mrb[0].mxu0
  %v1969 = vadd.f32 0.0, %v1968
  %v1970 = vpop.f32.mrb[0].mxu0
  %v1971 = vpop.f32.mrb[0].mxu0
  %v1972 = vadd.f32 0.0, %v1971
  %v1973 = vpop.f32.mrb[0].mxu0
  %1974 = vmatprep.mubr.bf16.mxu0 0
  %1975 = vmatmul.mubr.bf16.gmra.mrb[0].mxu0 %v1344
  %v1976 = vpop.f32.mrb[0].mxu0
  %v1977 = vadd.f32 0.0, %v1976
  %v1978 = vpop.f32.mrb[0].mxu0
  %v1979 = vpop.f32.mrb[0].mxu0
  %v1980 = vadd.f32 0.0, %v1979
  %v1981 = vpop.f32.mrb[0].mxu0
  %1982 = vmatprep.mubr.bf16.mxu0 0
  %1983 = vmatmul.mubr.bf16.gmra.mrb[0].mxu0 %v1347
  %v1984 = vpop.f32.mrb[0].mxu0
  %v1985 = vadd.f32 0.0, %v1984
  %v1986 = vpop.f32.mrb[0].mxu0
  %v1987 = vpop.f32.mrb[0].mxu0
  %v1988 = vadd.f32 0.0, %v1987
  %v1989 = vpop.f32.mrb[0].mxu0
  %1990 = vmatprep.mubr.bf16.mxu0 0
  %1991 = vmatmul.mubr.bf16.gmra.mrb[0].mxu0 %v1350
  %v1992 = vpop.f32.mrb[0].mxu0
  %v1993 = vadd.f32 0.0, %v1992
  %v1994 = vpop.f32.mrb[0].mxu0
  %v1995 = vpop.f32.mrb[0].mxu0
  %v1996 = vadd.f32 0.0, %v1995
  %v1997 = vpop.f32.mrb[0].mxu0
  %1998 = vmatprep.mubr.bf16.mxu0 0
  %1999 = vmatmul.mubr.bf16.gmra.mrb[0].mxu0 %v1353
  %v2000 = vpop.f32.mrb[0].mxu0
  %v2001 = vadd.f32 0.0, %v2000
  %v2002 = vpop.f32.mrb[0].mxu0
  %v2003 = vpop.f32.mrb[0].mxu0
  %v2004 = vadd.f32 0.0, %v2003
  %v2005 = vpop.f32.mrb[0].mxu0
  %2006 = vmatprep.mubr.bf16.mxu0 0
  %2007 = vmatmul.mubr.bf16.gmra.mrb[0].mxu0 %v1356
  %v2008 = vpop.f32.mrb[0].mxu0
  %v2009 = vadd.f32 0.0, %v2008
  %v2010 = vpop.f32.mrb[0].mxu0
  %v2011 = vpop.f32.mrb[0].mxu0
  %v2012 = vadd.f32 0.0, %v2011
  %v2013 = vpop.f32.mrb[0].mxu0
  %2014 = vmatprep.mubr.bf16.mxu0 0
  %2015 = vmatmul.mubr.bf16.gmra.mrb[0].mxu0 %v1359
  %v2016 = vpop.f32.mrb[0].mxu0
  %v2017 = vadd.f32 0.0, %v2016
  %v2018 = vpop.f32.mrb[0].mxu0
  %v2019 = vpop.f32.mrb[0].mxu0
  %v2020 = vadd.f32 0.0, %v2019
  %v2021 = vpop.f32.mrb[0].mxu0
  %2022 = vmatprep.mubr.bf16.mxu0 0
  %2023 = vmatmul.mubr.bf16.gmra.mrb[0].mxu0 %v1362
  %v2024 = vpop.f32.mrb[0].mxu0
  %v2025 = vadd.f32 0.0, %v2024
  %v2026 = vpop.f32.mrb[0].mxu0
  %v2027 = vpop.f32.mrb[0].mxu0
  %v2028 = vadd.f32 0.0, %v2027
  %v2029 = vpop.f32.mrb[0].mxu0
  %2030 = vmatprep.mubr.bf16.mxu0 0
  %2031 = vmatmul.mubr.bf16.gmra.mrb[0].mxu0 %v1365
  %v2032 = vpop.f32.mrb[0].mxu0
  %v2033 = vadd.f32 0.0, %v2032
  %v2034 = vpop.f32.mrb[0].mxu0
  %v2035 = vpop.f32.mrb[0].mxu0
  %v2036 = vadd.f32 0.0, %v2035
  %v2037 = vpop.f32.mrb[0].mxu0
  %2038 = vmatprep.mubr.bf16.mxu0 0
  %2039 = vmatmul.mubr.bf16.gmra.mrb[0].mxu0 %v1368
  %v2040 = vpop.f32.mrb[0].mxu0
  %v2041 = vadd.f32 0.0, %v2040
  %v2042 = vpop.f32.mrb[0].mxu0
  %v2043 = vpop.f32.mrb[0].mxu0
  %v2044 = vadd.f32 0.0, %v2043
  %v2045 = vpop.f32.mrb[0].mxu0
  %2046 = vmatprep.mubr.bf16.mxu0 0
  %2047 = vmatmul.mubr.bf16.gmra.mrb[0].mxu0 %v1371
  %v2048 = vpop.f32.mrb[0].mxu0
  %v2049 = vadd.f32 0.0, %v2048
  %v2050 = vpop.f32.mrb[0].mxu0
  %v2051 = vpop.f32.mrb[0].mxu0
  %v2052 = vadd.f32 0.0, %v2051
  %v2053 = vpop.f32.mrb[0].mxu0
  %2054 = vmatprep.mubr.bf16.mxu0 0
  %2055 = vmatmul.mubr.bf16.gmra.mrb[0].mxu0 %v1374
  %v2056 = vpop.f32.mrb[0].mxu0
  %v2057 = vadd.f32 0.0, %v2056
  %v2058 = vpop.f32.mrb[0].mxu0
  %v2059 = vpop.f32.mrb[0].mxu0
  %v2060 = vadd.f32 0.0, %v2059
  %v2061 = vpop.f32.mrb[0].mxu0
  %2062 = vmatprep.mubr.bf16.mxu0 0
  %2063 = vmatmul.mubr.bf16.gmra.mrb[0].mxu0 %v1377
  %v2064 = vpop.f32.mrb[0].mxu0
  %v2065 = vadd.f32 0.0, %v2064
  %v2066 = vpop.f32.mrb[0].mxu0
  %v2067 = vpop.f32.mrb[0].mxu0
  %v2068 = vadd.f32 0.0, %v2067
  %v2069 = vpop.f32.mrb[0].mxu0
  %2070 = vmatprep.mubr.bf16.mxu0 0
  %2071 = vmatmul.mubr.bf16.gmra.mrb[0].mxu0 %v1380
  %v2072 = vpop.f32.mrb[0].mxu0
  %v2073 = vadd.f32 0.0, %v2072
  %v2074 = vpop.f32.mrb[0].mxu0
  %v2075 = vpop.f32.mrb[0].mxu0
  %v2076 = vadd.f32 0.0, %v2075
  %v2077 = vpop.f32.mrb[0].mxu0
  %2078 = vmatprep.mubr.bf16.mxu0 0
  %2079 = vmatmul.mubr.bf16.gmra.mrb[0].mxu0 %v1383
  %v2080 = vpop.f32.mrb[0].mxu0
  %v2081 = vadd.f32 0.0, %v2080
  %v2082 = vpop.f32.mrb[0].mxu0
  %v2083 = vpop.f32.mrb[0].mxu0
  %v2084 = vadd.f32 0.0, %v2083
  %v2085 = vpop.f32.mrb[0].mxu0
  %2086 = vmatprep.mubr.bf16.mxu0 0
  %2087 = vmatmul.mubr.bf16.gmra.mrb[0].mxu0 %v1386
  %v2088 = vpop.f32.mrb[0].mxu0
  %v2089 = vadd.f32 0.0, %v2088
  %v2090 = vpop.f32.mrb[0].mxu0
  %v2091 = vpop.f32.mrb[0].mxu0
  %v2092 = vadd.f32 0.0, %v2091
  %v2093 = vpop.f32.mrb[0].mxu0
  %2094 = vmatprep.mubr.bf16.mxu0 0
  %2095 = vmatmul.mubr.bf16.gmra.mrb[0].mxu0 %v1389
  %v2096 = vpop.f32.mrb[0].mxu0
  %v2097 = vadd.f32 0.0, %v2096
  %v2098 = vpop.f32.mrb[0].mxu0
  %v2099 = vpop.f32.mrb[0].mxu0
  %v2100 = vadd.f32 0.0, %v2099
  %v2101 = vpop.f32.mrb[0].mxu0
  %2102 = vmatprep.mubr.bf16.mxu0 0
  %2103 = vmatmul.mubr.bf16.gmra.mrb[0].mxu0 %v1392
  %v2104 = vpop.f32.mrb[0].mxu0
  %v2105 = vadd.f32 0.0, %v2104
  %v2106 = vpop.f32.mrb[0].mxu0
  %v2107 = vpop.f32.mrb[0].mxu0
  %v2108 = vadd.f32 0.0, %v2107
  %v2109 = vpop.f32.mrb[0].mxu0
  %2110 = vmatprep.mubr.bf16.mxu0 0
  %2111 = vmatmul.mubr.bf16.gmra.mrb[0].mxu0 %v1395
  %v2112 = vpop.f32.mrb[0].mxu0
  %v2113 = vadd.f32 0.0, %v2112
  %v2114 = vpop.f32.mrb[0].mxu0
  %v2115 = vpop.f32.mrb[0].mxu0
  %v2116 = vadd.f32 0.0, %v2115
  %v2117 = vpop.f32.mrb[0].mxu0
  %2118 = vmatprep.mubr.bf16.mxu0 0
  %2119 = vmatmul.mubr.bf16.gmra.mrb[0].mxu0 %v1398
  %v2120 = vpop.f32.mrb[0].mxu0
  %v2121 = vadd.f32 0.0, %v2120
  %v2122 = vpop.f32.mrb[0].mxu0
  %v2123 = vpop.f32.mrb[0].mxu0
  %v2124 = vadd.f32 0.0, %v2123
  %v2125 = vpop.f32.mrb[0].mxu0
  %2126 = vmatprep.mubr.bf16.mxu0 0
  %2127 = vmatmul.mubr.bf16.gmra.mrb[0].mxu0 %v1401
  %v2128 = vpop.f32.mrb[0].mxu0
  %v2129 = vadd.f32 0.0, %v2128
  %v2130 = vpop.f32.mrb[0].mxu0
  %v2131 = vpop.f32.mrb[0].mxu0
  %v2132 = vadd.f32 0.0, %v2131
  %v2133 = vpop.f32.mrb[0].mxu0
  %2134 = vmatprep.mubr.bf16.mxu0 0
  %2135 = vmatmul.mubr.bf16.gmra.mrb[0].mxu0 %v1404
  %v2136 = vpop.f32.mrb[0].mxu0
  %v2137 = vadd.f32 0.0, %v2136
  %v2138 = vpop.f32.mrb[0].mxu0
  %v2139 = vpop.f32.mrb[0].mxu0
  %v2140 = vadd.f32 0.0, %v2139
  %v2141 = vpop.f32.mrb[0].mxu0
  %2142 = vmatprep.mubr.bf16.mxu0 0
  %2143 = vmatmul.mubr.bf16.gmra.mrb[0].mxu0 %v1407
  %v2144 = vpop.f32.mrb[0].mxu0
  %v2145 = vadd.f32 0.0, %v2144
  %v2146 = vpop.f32.mrb[0].mxu0
  %v2147 = vpop.f32.mrb[0].mxu0
  %v2148 = vadd.f32 0.0, %v2147
  %v2149 = vpop.f32.mrb[0].mxu0
  %2150 = vmatprep.mubr.bf16.mxu0 0
  %2151 = vmatmul.mubr.bf16.gmra.mrb[0].mxu0 %v1410
  %v2152 = vpop.f32.mrb[0].mxu0
  %v2153 = vadd.f32 0.0, %v2152
  %v2154 = vpop.f32.mrb[0].mxu0
  %v2155 = vpop.f32.mrb[0].mxu0
  %v2156 = vadd.f32 0.0, %v2155
  %v2157 = vpop.f32.mrb[0].mxu0
  %2158 = vmatprep.mubr.bf16.mxu0 0
  %2159 = vmatmul.mubr.bf16.gmra.mrb[0].mxu0 %v1413
  %v2160 = vpop.f32.mrb[0].mxu0
  %v2161 = vadd.f32 0.0, %v2160
  %v2162 = vpop.f32.mrb[0].mxu0
  %v2163 = vpop.f32.mrb[0].mxu0
  %v2164 = vadd.f32 0.0, %v2163
  %v2165 = vpop.f32.mrb[0].mxu0
  %2166 = vmatprep.mubr.bf16.mxu0 0
  %2167 = vmatmul.mubr.bf16.gmra.mrb[0].mxu0 %v1416
  %v2168 = vpop.f32.mrb[0].mxu0
  %v2169 = vadd.f32 0.0, %v2168
  %v2170 = vpop.f32.mrb[0].mxu0
  %v2171 = vpop.f32.mrb[0].mxu0
  %v2172 = vadd.f32 0.0, %v2171
  %v2173 = vpop.f32.mrb[0].mxu0
  %2174 = vmatprep.mubr.bf16.mxu0 0
  %2175 = vmatmul.mubr.bf16.gmra.mrb[0].mxu0 %v1419
  %v2176 = vpop.f32.mrb[0].mxu0
  %v2177 = vadd.f32 0.0, %v2176
  %v2178 = vpop.f32.mrb[0].mxu0
  %v2179 = vpop.f32.mrb[0].mxu0
  %v2180 = vadd.f32 0.0, %v2179
  %v2181 = vpop.f32.mrb[0].mxu0
  %2182 = vmatprep.mubr.bf16.mxu0 0
  %2183 = vmatmul.mubr.bf16.gmra.mrb[0].mxu0 %v1422
  %v2184 = vpop.f32.mrb[0].mxu0
  %v2185 = vadd.f32 0.0, %v2184
  %v2186 = vpop.f32.mrb[0].mxu0
  %v2187 = vpop.f32.mrb[0].mxu0
  %v2188 = vadd.f32 0.0, %v2187
  %v2189 = vpop.f32.mrb[0].mxu0
  %2190 = vmatprep.mubr.bf16.mxu0 0
  %2191 = vmatmul.mubr.bf16.gmra.mrb[0].mxu0 %v1425
  %v2192 = vpop.f32.mrb[0].mxu0
  %v2193 = vadd.f32 0.0, %v2192
  %v2194 = vpop.f32.mrb[0].mxu0
  %v2195 = vpop.f32.mrb[0].mxu0
  %v2196 = vadd.f32 0.0, %v2195
  %v2197 = vpop.f32.mrb[0].mxu0
  %2198 = vmatprep.mubr.bf16.mxu0 0
  %2199 = vmatmul.mubr.bf16.gmra.mrb[0].mxu0 %v1428
  %v2200 = vpop.f32.mrb[0].mxu0
  %v2201 = vadd.f32 0.0, %v2200
  %v2202 = vpop.f32.mrb[0].mxu0
  %v2203 = vpop.f32.mrb[0].mxu0
  %v2204 = vadd.f32 0.0, %v2203
  %v2205 = vpop.f32.mrb[0].mxu0
  %2206 = vmatprep.mubr.bf16.mxu0 0
  %2207 = vmatmul.mubr.bf16.gmra.mrb[0].mxu0 %v1431
  %v2208 = vpop.f32.mrb[0].mxu0
  %v2209 = vadd.f32 0.0, %v2208
  %v2210 = vpop.f32.mrb[0].mxu0
  %v2211 = vpop.f32.mrb[0].mxu0
  %v2212 = vadd.f32 0.0, %v2211
  %v2213 = vpop.f32.mrb[0].mxu0
  %2214 = vmatprep.mubr.bf16.mxu0 0
  %2215 = vmatmul.mubr.bf16.gmra.mrb[0].mxu0 %v1434
  %v2216 = vpop.f32.mrb[0].mxu0
  %v2217 = vadd.f32 0.0, %v2216
  %v2218 = vpop.f32.mrb[0].mxu0
  %v2219 = vpop.f32.mrb[0].mxu0
  %v2220 = vadd.f32 0.0, %v2219
  %v2221 = vpop.f32.mrb[0].mxu0
  %2222 = vmatprep.mubr.bf16.mxu0 0
  %2223 = vmatmul.mubr.bf16.gmra.mrb[0].mxu0 %v1437
  %v2224 = vpop.f32.mrb[0].mxu0
  %v2225 = vadd.f32 0.0, %v2224
  %v2226 = vpop.f32.mrb[0].mxu0
  %v2227 = vpop.f32.mrb[0].mxu0
  %v2228 = vadd.f32 0.0, %v2227
  %v2229 = vpop.f32.mrb[0].mxu0
  %2230 = vmatprep.mubr.bf16.mxu0 0
  %2231 = vmatmul.mubr.bf16.gmra.mrb[0].mxu0 %v1440
  %v2232 = vpop.f32.mrb[0].mxu0
  %v2233 = vadd.f32 0.0, %v2232
  %v2234 = vpop.f32.mrb[0].mxu0
  %v2235 = vpop.f32.mrb[0].mxu0
  %v2236 = vadd.f32 0.0, %v2235
  %v2237 = vpop.f32.mrb[0].mxu0
  %2238 = vmatprep.mubr.bf16.mxu0 0
  %2239 = vmatmul.mubr.bf16.gmra.mrb[0].mxu0 %v1443
  %v2240 = vpop.f32.mrb[0].mxu0
  %v2241 = vadd.f32 0.0, %v2240
  %v2242 = vpop.f32.mrb[0].mxu0
  %v2243 = vpop.f32.mrb[0].mxu0
  %v2244 = vadd.f32 0.0, %v2243
  %v2245 = vpop.f32.mrb[0].mxu0
  %2246 = vmatprep.mubr.bf16.mxu0 0
  %2247 = vmatmul.mubr.bf16.gmra.mrb[0].mxu0 %v1446
  %v2248 = vpop.f32.mrb[0].mxu0
  %v2249 = vadd.f32 0.0, %v2248
  %v2250 = vpop.f32.mrb[0].mxu0
  %v2251 = vpop.f32.mrb[0].mxu0
  %v2252 = vadd.f32 0.0, %v2251
  %v2253 = vpop.f32.mrb[0].mxu0
  %2254 = vmatprep.mubr.bf16.mxu0 0
  %2255 = vmatmul.mubr.bf16.gmra.mrb[0].mxu0 %v1449
  %v2256 = vpop.f32.mrb[0].mxu0
  %v2257 = vadd.f32 0.0, %v2256
  %v2258 = vpop.f32.mrb[0].mxu0
  %v2259 = vpop.f32.mrb[0].mxu0
  %v2260 = vadd.f32 0.0, %v2259
  %v2261 = vpop.f32.mrb[0].mxu0
  %2262 = vmatprep.mubr.bf16.mxu0 0
  %2263 = vmatmul.mubr.bf16.gmra.mrb[0].mxu0 %v1452
  %v2264 = vpop.f32.mrb[0].mxu0
  %v2265 = vadd.f32 0.0, %v2264
  %v2266 = vpop.f32.mrb[0].mxu0
  %v2267 = vpop.f32.mrb[0].mxu0
  %v2268 = vadd.f32 0.0, %v2267
  %v2269 = vpop.f32.mrb[0].mxu0
  %2270 = vmatprep.mubr.bf16.mxu0 0
  %2271 = vmatmul.mubr.bf16.gmra.mrb[0].mxu0 %v1455
  %v2272 = vpop.f32.mrb[0].mxu0
  %v2273 = vadd.f32 0.0, %v2272
  %v2274 = vpop.f32.mrb[0].mxu0
  %v2275 = vpop.f32.mrb[0].mxu0
  %v2276 = vadd.f32 0.0, %v2275
  %v2277 = vpop.f32.mrb[0].mxu0
  %2278 = vmatprep.mubr.bf16.mxu0 0
  %2279 = vmatmul.mubr.bf16.gmra.mrb[0].mxu0 %v1458
  %v2280 = vpop.f32.mrb[0].mxu0
  %v2281 = vadd.f32 0.0, %v2280
  %v2282 = vpop.f32.mrb[0].mxu0
  %v2283 = vpop.f32.mrb[0].mxu0
  %v2284 = vadd.f32 0.0, %v2283
  %v2285 = vpop.f32.mrb[0].mxu0
  %2286 = vmatprep.mubr.bf16.mxu0 0
  %2287 = vmatmul.mubr.bf16.gmra.mrb[0].mxu0 %v1461
  %v2288 = vpop.f32.mrb[0].mxu0
  %v2289 = vadd.f32 0.0, %v2288
  %v2290 = vpop.f32.mrb[0].mxu0
  %v2291 = vpop.f32.mrb[0].mxu0
  %v2292 = vadd.f32 0.0, %v2291
  %v2293 = vpop.f32.mrb[0].mxu0
  %2294 = vmatprep.mubr.bf16.mxu0 0
  %2295 = vmatmul.mubr.bf16.gmra.mrb[0].mxu0 %v1464
  %v2296 = vpop.f32.mrb[0].mxu0
  %v2297 = vadd.f32 0.0, %v2296
  %v2298 = vpop.f32.mrb[0].mxu0
  %v2299 = vpop.f32.mrb[0].mxu0
  %v2300 = vadd.f32 0.0, %v2299
  %v2301 = vpop.f32.mrb[0].mxu0
  %2302 = vmatprep.mubr.bf16.mxu0 0
  %2303 = vmatmul.mubr.bf16.gmra.mrb[0].mxu0 %v1467
  %v2304 = vpop.f32.mrb[0].mxu0
  %v2305 = vadd.f32 0.0, %v2304
  %v2306 = vpop.f32.mrb[0].mxu0
  %v2307 = vpop.f32.mrb[0].mxu0
  %v2308 = vadd.f32 0.0, %v2307
  %v2309 = vpop.f32.mrb[0].mxu0
  %2310 = vmatprep.mubr.bf16.mxu0 0
  %2311 = vmatmul.mubr.bf16.gmra.mrb[0].mxu0 %v1470
  %v2312 = vpop.f32.mrb[0].mxu0
  %v2313 = vadd.f32 0.0, %v2312
  %v2314 = vpop.f32.mrb[0].mxu0
  %v2315 = vpop.f32.mrb[0].mxu0
  %v2316 = vadd.f32 0.0, %v2315
  %v2317 = vpop.f32.mrb[0].mxu0
  %2318 = vmatprep.mubr.bf16.mxu0 0
  %2319 = vmatmul.mubr.bf16.gmra.mrb[0].mxu0 %v1473
  %v2320 = vpop.f32.mrb[0].mxu0
  %v2321 = vadd.f32 0.0, %v2320
  %v2322 = vpop.f32.mrb[0].mxu0
  %v2323 = vpop.f32.mrb[0].mxu0
  %v2324 = vadd.f32 0.0, %v2323
  %v2325 = vpop.f32.mrb[0].mxu0
  %2326 = vmatprep.mubr.bf16.mxu0 0
  %2327 = vmatmul.mubr.bf16.gmra.mrb[0].mxu0 %v1476
  %v2328 = vpop.f32.mrb[0].mxu0
  %v2329 = vadd.f32 0.0, %v2328
  %v2330 = vpop.f32.mrb[0].mxu0
  %v2331 = vpop.f32.mrb[0].mxu0
  %v2332 = vadd.f32 0.0, %v2331
  %v2333 = vpop.f32.mrb[0].mxu0
  %2334 = vmatprep.mubr.bf16.mxu0 0
  %2335 = vmatmul.mubr.bf16.gmra.mrb[0].mxu0 %v1479
  %v2336 = vpop.f32.mrb[0].mxu0
  %v2337 = vadd.f32 0.0, %v2336
  %v2338 = vpop.f32.mrb[0].mxu0
  %v2339 = vpop.f32.mrb[0].mxu0
  %v2340 = vadd.f32 0.0, %v2339
  %v2341 = vpop.f32.mrb[0].mxu0
  %2342 = vmatprep.mubr.bf16.mxu0 0
  %2343 = vmatmul.mubr.bf16.gmra.mrb[0].mxu0 %v1482
  %v2344 = vpop.f32.mrb[0].mxu0
  %v2345 = vadd.f32 0.0, %v2344
  %v2346 = vpop.f32.mrb[0].mxu0
  %v2347 = vpop.f32.mrb[0].mxu0
  %v2348 = vadd.f32 0.0, %v2347
  %v2349 = vpop.f32.mrb[0].mxu0
  %2350 = vmatprep.mubr.bf16.mxu0 0
  %2351 = vmatmul.mubr.bf16.gmra.mrb[0].mxu0 %v1485
  %v2352 = vpop.f32.mrb[0].mxu0
  %v2353 = vadd.f32 0.0, %v2352
  %v2354 = vpop.f32.mrb[0].mxu0
  %v2355 = vpop.f32.mrb[0].mxu0
  %v2356 = vadd.f32 0.0, %v2355
  %v2357 = vpop.f32.mrb[0].mxu0
  %2358 = vmatprep.mubr.bf16.mxu0 0
  %2359 = vmatmul.mubr.bf16.gmra.mrb[0].mxu0 %v1488
  %v2360 = vpop.f32.mrb[0].mxu0
  %v2361 = vadd.f32 0.0, %v2360
  %v2362 = vpop.f32.mrb[0].mxu0
  %v2363 = vpop.f32.mrb[0].mxu0
  %v2364 = vadd.f32 0.0, %v2363
  %v2365 = vpop.f32.mrb[0].mxu0
  %2366 = vmatprep.mubr.bf16.mxu0 0
  %2367 = vmatmul.mubr.bf16.gmra.mrb[0].mxu0 %v1491
  %v2368 = vpop.f32.mrb[0].mxu0
  %v2369 = vadd.f32 0.0, %v2368
  %v2370 = vpop.f32.mrb[0].mxu0
  %v2371 = vpop.f32.mrb[0].mxu0
  %v2372 = vadd.f32 0.0, %v2371
  %v2373 = vpop.f32.mrb[0].mxu0
  %2374 = vmatprep.mubr.bf16.mxu0 0
  %2375 = vmatmul.mubr.bf16.gmra.mrb[0].mxu0 %v1494
  %v2376 = vpop.f32.mrb[0].mxu0
  %v2377 = vadd.f32 0.0, %v2376
  %v2378 = vpop.f32.mrb[0].mxu0
  %v2379 = vpop.f32.mrb[0].mxu0
  %v2380 = vadd.f32 0.0, %v2379
  %v2381 = vpop.f32.mrb[0].mxu0
  %2382 = vmatprep.mubr.bf16.mxu0 0
  %2383 = vmatmul.mubr.bf16.gmra.mrb[0].mxu0 %v1497
  %v2384 = vpop.f32.mrb[0].mxu0
  %v2385 = vadd.f32 0.0, %v2384
  %v2386 = vpop.f32.mrb[0].mxu0
  %v2387 = vpop.f32.mrb[0].mxu0
  %v2388 = vadd.f32 0.0, %v2387
  %v2389 = vpop.f32.mrb[0].mxu0
  %2390 = vmatprep.mubr.bf16.mxu0 0
  %2391 = vmatmul.mubr.bf16.gmra.mrb[0].mxu0 %v1500
  %v2392 = vpop.f32.mrb[0].mxu0
  %v2393 = vadd.f32 0.0, %v2392
  %v2394 = vpop.f32.mrb[0].mxu0
  %v2395 = vpop.f32.mrb[0].mxu0
  %v2396 = vadd.f32 0.0, %v2395
  %v2397 = vpop.f32.mrb[0].mxu0
  %2398 = vmatprep.mubr.bf16.mxu0 0
  %2399 = vmatmul.mubr.bf16.gmra.mrb[0].mxu0 %v1503
  %v2400 = vpop.f32.mrb[0].mxu0
  %v2401 = vadd.f32 0.0, %v2400
  %v2402 = vpop.f32.mrb[0].mxu0
  %v2403 = vpop.f32.mrb[0].mxu0
  %v2404 = vadd.f32 0.0, %v2403
  %v2405 = vpop.f32.mrb[0].mxu0
  %2406 = vmatprep.mubr.bf16.mxu0 0
  %2407 = vmatmul.mubr.bf16.gmra.mrb[0].mxu0 %v1506
  %v2408 = vpop.f32.mrb[0].mxu0
  %v2409 = vadd.f32 0.0, %v2408
  %v2410 = vpop.f32.mrb[0].mxu0
  %v2411 = vpop.f32.mrb[0].mxu0
  %v2412 = vadd.f32 0.0, %v2411
  %v2413 = vpop.f32.mrb[0].mxu0
  %2414 = vmatprep.mubr.bf16.mxu0 0
  %2415 = vmatmul.mubr.bf16.gmra.mrb[0].mxu0 %v1509
  %v2416 = vpop.f32.mrb[0].mxu0
  %v2417 = vadd.f32 0.0, %v2416
  %v2418 = vpop.f32.mrb[0].mxu0
  %v2419 = vpop.f32.mrb[0].mxu0
  %v2420 = vadd.f32 0.0, %v2419
  %v2421 = vpop.f32.mrb[0].mxu0
  %2422 = vmatprep.mubr.bf16.mxu0 0
  %2423 = vmatmul.mubr.bf16.gmra.mrb[0].mxu0 %v1512
  %v2424 = vpop.f32.mrb[0].mxu0
  %v2425 = vadd.f32 0.0, %v2424
  %v2426 = vpop.f32.mrb[0].mxu0
  %v2427 = vpop.f32.mrb[0].mxu0
  %v2428 = vadd.f32 0.0, %v2427
  %v2429 = vpop.f32.mrb[0].mxu0
  %2430 = vmatprep.mubr.bf16.mxu0 0
  %2431 = vmatmul.mubr.bf16.gmra.mrb[0].mxu0 %v1515
  %v2432 = vpop.f32.mrb[0].mxu0
  %v2433 = vadd.f32 0.0, %v2432
  %v2434 = vpop.f32.mrb[0].mxu0
  %v2435 = vpop.f32.mrb[0].mxu0
  %v2436 = vadd.f32 0.0, %v2435
  %v2437 = vpop.f32.mrb[0].mxu0
  %2438 = vmatprep.mubr.bf16.mxu0 0
  %2439 = vmatmul.mubr.bf16.gmra.mrb[0].mxu0 %v1518
  %v2440 = vpop.f32.mrb[0].mxu0
  %v2441 = vadd.f32 0.0, %v2440
  %v2442 = vpop.f32.mrb[0].mxu0
  %v2443 = vpop.f32.mrb[0].mxu0
  %v2444 = vadd.f32 0.0, %v2443
  %v2445 = vpop.f32.mrb[0].mxu0
  %2446 = vmatprep.mubr.bf16.mxu0 0
  %2447 = vmatmul.mubr.bf16.gmra.mrb[0].mxu0 %v1521
  %v2448 = vpop.f32.mrb[0].mxu0
  %v2449 = vadd.f32 0.0, %v2448
  %v2450 = vpop.f32.mrb[0].mxu0
  %v2451 = vpop.f32.mrb[0].mxu0
  %v2452 = vadd.f32 0.0, %v2451
  %v2453 = vpop.f32.mrb[0].mxu0
  %2454 = vmatprep.mubr.bf16.mxu0 0
  %2455 = vmatmul.mubr.bf16.gmra.mrb[0].mxu0 %v1524
  %v2456 = vpop.f32.mrb[0].mxu0
  %v2457 = vadd.f32 0.0, %v2456
  %v2458 = vpop.f32.mrb[0].mxu0
  %v2459 = vpop.f32.mrb[0].mxu0
  %v2460 = vadd.f32 0.0, %v2459
  %v2461 = vpop.f32.mrb[0].mxu0
  %2462 = vmatprep.mubr.bf16.mxu0 0
  %2463 = vmatmul.mubr.bf16.gmra.mrb[0].mxu0 %v1527
  %v2464 = vpop.f32.mrb[0].mxu0
  %v2465 = vadd.f32 0.0, %v2464
  %v2466 = vpop.f32.mrb[0].mxu0
  %v2467 = vpop.f32.mrb[0].mxu0
  %v2468 = vadd.f32 0.0, %v2467
  %v2469 = vpop.f32.mrb[0].mxu0
  %2470 = vmatprep.mubr.bf16.mxu0 0
  %2471 = vmatmul.mubr.bf16.gmra.mrb[0].mxu0 %v1530
  %v2472 = vpop.f32.mrb[0].mxu0
  %v2473 = vadd.f32 0.0, %v2472
  %v2474 = vpop.f32.mrb[0].mxu0
  %v2475 = vpop.f32.mrb[0].mxu0
  %v2476 = vadd.f32 0.0, %v2475
  %v2477 = vpop.f32.mrb[0].mxu0
  %2478 = vmatprep.mubr.bf16.mxu0 0
  %2479 = vmatmul.mubr.bf16.gmra.mrb[0].mxu0 %v1533
  %v2480 = vpop.f32.mrb[0].mxu0
  %v2481 = vadd.f32 0.0, %v2480
  %v2482 = vpop.f32.mrb[0].mxu0
  %v2483 = vpop.f32.mrb[0].mxu0
  %v2484 = vadd.f32 0.0, %v2483
  %v2485 = vpop.f32.mrb[0].mxu0
  %2486 = vmatprep.mubr.bf16.mxu0 0
  %2487 = vmatmul.mubr.bf16.gmra.mrb[0].mxu0 %v1536
  %v2488 = vpop.f32.mrb[0].mxu0
  %v2489 = vadd.f32 0.0, %v2488
  %v2490 = vpop.f32.mrb[0].mxu0
  %v2491 = vpop.f32.mrb[0].mxu0
  %v2492 = vadd.f32 0.0, %v2491
  %v2493 = vpop.f32.mrb[0].mxu0
  %2494 = vmatprep.mubr.bf16.mxu0 0
  %2495 = vmatmul.mubr.bf16.gmra.mrb[0].mxu0 %v1539
  %v2496 = vpop.f32.mrb[0].mxu0
  %v2497 = vadd.f32 0.0, %v2496
  %v2498 = vpop.f32.mrb[0].mxu0
  %v2499 = vpop.f32.mrb[0].mxu0
  %v2500 = vadd.f32 0.0, %v2499
  %v2501 = vpop.f32.mrb[0].mxu0
  %2502 = vmatprep.mubr.bf16.mxu0 0
  %2503 = vmatmul.mubr.bf16.gmra.mrb[0].mxu0 %v1542
  %v2504 = vpop.f32.mrb[0].mxu0
  %v2505 = vadd.f32 0.0, %v2504
  %v2506 = vpop.f32.mrb[0].mxu0
  %v2507 = vpop.f32.mrb[0].mxu0
  %v2508 = vadd.f32 0.0, %v2507
  %v2509 = vpop.f32.mrb[0].mxu0
  %2510 = vmatprep.mubr.bf16.mxu0 0
  %2511 = vmatmul.mubr.bf16.gmra.mrb[0].mxu0 %v1545
  %v2512 = vpop.f32.mrb[0].mxu0
  %v2513 = vadd.f32 0.0, %v2512
  %v2514 = vpop.f32.mrb[0].mxu0
  %v2515 = vpop.f32.mrb[0].mxu0
  %v2516 = vadd.f32 0.0, %v2515
  %v2517 = vpop.f32.mrb[0].mxu0
  %2518 = vmatprep.mubr.bf16.mxu0 0
  %2519 = vmatmul.mubr.bf16.gmra.mrb[0].mxu0 %v1548
  %v2520 = vpop.f32.mrb[0].mxu0
  %v2521 = vadd.f32 0.0, %v2520
  %v2522 = vpop.f32.mrb[0].mxu0
  %v2523 = vpop.f32.mrb[0].mxu0
  %v2524 = vadd.f32 0.0, %v2523
  %v2525 = vpop.f32.mrb[0].mxu0
  %2526 = vmatprep.mubr.bf16.mxu0 0
  %2527 = vmatmul.mubr.bf16.gmra.mrb[0].mxu0 %v1551
  %v2528 = vpop.f32.mrb[0].mxu0
  %v2529 = vadd.f32 0.0, %v2528
  %v2530 = vpop.f32.mrb[0].mxu0
  %v2531 = vpop.f32.mrb[0].mxu0
  %v2532 = vadd.f32 0.0, %v2531
  %v2533 = vpop.f32.mrb[0].mxu0
  %2534 = vmatprep.mubr.bf16.mxu0 0
  %2535 = vmatmul.mubr.bf16.gmra.mrb[0].mxu0 %v1554
  %v2536 = vpop.f32.mrb[0].mxu0
  %v2537 = vadd.f32 0.0, %v2536
  %v2538 = vpop.f32.mrb[0].mxu0
  %v2539 = vpop.f32.mrb[0].mxu0
  %v2540 = vadd.f32 0.0, %v2539
  %v2541 = vpop.f32.mrb[0].mxu0
  %2542 = vmatprep.mubr.bf16.mxu0 0
  %2543 = vmatmul.mubr.bf16.gmra.mrb[0].mxu0 %v1557
  %v2544 = vpop.f32.mrb[0].mxu0
  %v2545 = vadd.f32 0.0, %v2544
  %v2546 = vpop.f32.mrb[0].mxu0
  %v2547 = vpop.f32.mrb[0].mxu0
  %v2548 = vadd.f32 0.0, %v2547
  %v2549 = vpop.f32.mrb[0].mxu0
  %2550 = vmatprep.mubr.bf16.mxu0 0
  %2551 = vmatmul.mubr.bf16.gmra.mrb[0].mxu0 %v1560
  %v2552 = vpop.f32.mrb[0].mxu0
  %v2553 = vadd.f32 0.0, %v2552
  %v2554 = vpop.f32.mrb[0].mxu0
  %v2555 = vpop.f32.mrb[0].mxu0
  %v2556 = vadd.f32 0.0, %v2555
  %v2557 = vpop.f32.mrb[0].mxu0
  %2558 = vmatprep.mubr.bf16.mxu0 0
  %2559 = vmatmul.mubr.bf16.gmra.mrb[0].mxu0 %v1563
  %v2560 = vpop.f32.mrb[0].mxu0
  %v2561 = vadd.f32 0.0, %v2560
  %v2562 = vpop.f32.mrb[0].mxu0
  %v2563 = vpop.f32.mrb[0].mxu0
  %v2564 = vadd.f32 0.0, %v2563
  %v2565 = vpop.f32.mrb[0].mxu0
  %2566 = vmatprep.mubr.bf16.mxu0 0
  %2567 = vmatmul.mubr.bf16.gmra.mrb[0].mxu0 %v1566
  %v2568 = vpop.f32.mrb[0].mxu0
  %v2569 = vadd.f32 0.0, %v2568
  %v2570 = vpop.f32.mrb[0].mxu0
  %v2571 = vpop.f32.mrb[0].mxu0
  %v2572 = vadd.f32 0.0, %v2571
  %v2573 = vpop.f32.mrb[0].mxu0
  %2574 = vmatprep.mubr.bf16.mxu0 0
  %2575 = vmatmul.mubr.bf16.gmra.mrb[0].mxu0 %v1569
  %v2576 = vpop.f32.mrb[0].mxu0
  %v2577 = vadd.f32 0.0, %v2576
  %v2578 = vpop.f32.mrb[0].mxu0
  %v2579 = vpop.f32.mrb[0].mxu0
  %v2580 = vadd.f32 0.0, %v2579
  %v2581 = vpop.f32.mrb[0].mxu0
  %2582 = vmatprep.mubr.bf16.mxu0 0
  %2583 = vmatmul.mubr.bf16.gmra.mrb[0].mxu0 %v1572
  %v2584 = vpop.f32.mrb[0].mxu0
  %v2585 = vadd.f32 0.0, %v2584
  %v2586 = vpop.f32.mrb[0].mxu0
  %v2587 = vpop.f32.mrb[0].mxu0
  %v2588 = vadd.f32 0.0, %v2587
  %v2589 = vpop.f32.mrb[0].mxu0
  %2590 = vmatprep.mubr.bf16.mxu0 0
  %2591 = vmatmul.mubr.bf16.gmra.mrb[0].mxu0 %v1575
  %v2592 = vpop.f32.mrb[0].mxu0
  %v2593 = vadd.f32 0.0, %v2592
  %v2594 = vpop.f32.mrb[0].mxu0
  %v2595 = vpop.f32.mrb[0].mxu0
  %v2596 = vadd.f32 0.0, %v2595
  %v2597 = vpop.f32.mrb[0].mxu0
  %2598 = vmatprep.mubr.bf16.mxu0 0
  %2599 = vmatmul.mubr.bf16.gmra.mrb[0].mxu0 %v1578
  %v2600 = vpop.f32.mrb[0].mxu0
  %v2601 = vadd.f32 0.0, %v2600
  %v2602 = vpop.f32.mrb[0].mxu0
  %v2603 = vpop.f32.mrb[0].mxu0
  %v2604 = vadd.f32 0.0, %v2603
  %v2605 = vpop.f32.mrb[0].mxu0
  %2606 = vmatprep.mubr.bf16.mxu0 0
  %2607 = vmatmul.mubr.bf16.gmra.mrb[0].mxu0 %v1581
  %v2608 = vpop.f32.mrb[0].mxu0
  %v2609 = vadd.f32 0.0, %v2608
  %v2610 = vpop.f32.mrb[0].mxu0
  %v2611 = vpop.f32.mrb[0].mxu0
  %v2612 = vadd.f32 0.0, %v2611
  %v2613 = vpop.f32.mrb[0].mxu0
  %2614 = vmatprep.mubr.bf16.mxu0 0
  %2615 = vmatmul.mubr.bf16.gmra.mrb[0].mxu0 %v1584
  %v2616 = vpop.f32.mrb[0].mxu0
  %v2617 = vadd.f32 0.0, %v2616
  %v2618 = vpop.f32.mrb[0].mxu0
  %v2619 = vpop.f32.mrb[0].mxu0
  %v2620 = vadd.f32 0.0, %v2619
  %v2621 = vpop.f32.mrb[0].mxu0
  %2622 = vmatprep.mubr.bf16.mxu0 0
  %2623 = vmatmul.mubr.bf16.gmra.mrb[0].mxu0 %v1587
  %v2624 = vpop.f32.mrb[0].mxu0
  %v2625 = vadd.f32 0.0, %v2624
  %v2626 = vpop.f32.mrb[0].mxu0
  %v2627 = vpop.f32.mrb[0].mxu0
  %v2628 = vadd.f32 0.0, %v2627
  %v2629 = vpop.f32.mrb[0].mxu0
  %2630 = vmatprep.mubr.bf16.mxu0 0
  %2631 = vmatmul.mubr.bf16.gmra.mrb[0].mxu0 %v1590
  %v2632 = vpop.f32.mrb[0].mxu0
  %v2633 = vadd.f32 0.0, %v2632
  %v2634 = vpop.f32.mrb[0].mxu0
  %v2635 = vpop.f32.mrb[0].mxu0
  %v2636 = vadd.f32 0.0, %v2635
  %v2637 = vpop.f32.mrb[0].mxu0
  %2638 = vmatprep.mubr.bf16.mxu0 0
  %2639 = vmatmul.mubr.bf16.gmra.mrb[0].mxu0 %v1593
  %v2640 = vpop.f32.mrb[0].mxu0
  %v2641 = vadd.f32 0.0, %v2640
  %v2642 = vpop.f32.mrb[0].mxu0
  %v2643 = vpop.f32.mrb[0].mxu0
  %v2644 = vadd.f32 0.0, %v2643
  %v2645 = vpop.f32.mrb[0].mxu0
  %2646 = vmatprep.mubr.bf16.mxu0 0
  %2647 = vmatmul.mubr.bf16.gmra.mrb[0].mxu0 %v1596
  %v2648 = vpop.f32.mrb[0].mxu0
  %v2649 = vadd.f32 0.0, %v2648
  %v2650 = vpop.f32.mrb[0].mxu0
  %v2651 = vpop.f32.mrb[0].mxu0
  %v2652 = vadd.f32 0.0, %v2651
  %v2653 = vpop.f32.mrb[0].mxu0
  %2654 = vdwg.mxu0
  %v2911 = vunpack.c.l.b16 %v41
  %v2912 = vunpack.c.l.b16 %v42
  %v2913 = vunpack.c.l.b16 %v43
  %v2914 = vunpack.c.l.b16 %v44
  %v2915 = vunpack.c.l.b16 %v45
  %v2916 = vunpack.c.l.b16 %v46
  %v2917 = vunpack.c.l.b16 %v47
  %v2918 = vunpack.c.l.b16 %v48
  %v2919 = vunpack.c.l.b16 %v49
  %v2920 = vunpack.c.l.b16 %v50
  %v2921 = vunpack.c.l.b16 %v51
  %v2922 = vunpack.c.l.b16 %v52
  %v2923 = vunpack.c.l.b16 %v53
  %v2924 = vunpack.c.l.b16 %v54
  %v2925 = vunpack.c.l.b16 %v55
  %v2926 = vunpack.c.l.b16 %v56
  %v2927 = vunpack.c.l.b16 %v57
  %v2928 = vunpack.c.l.b16 %v58
  %v2929 = vunpack.c.l.b16 %v59
  %v2930 = vunpack.c.l.b16 %v60
  %v2931 = vunpack.c.l.b16 %v61
  %v2932 = vunpack.c.l.b16 %v62
  %v2933 = vunpack.c.l.b16 %v63
  %v2934 = vunpack.c.l.b16 %v64
  %v2935 = vunpack.c.l.b16 %v65
  %v2936 = vunpack.c.l.b16 %v66
  %v2937 = vunpack.c.l.b16 %v67
  %v2938 = vunpack.c.l.b16 %v68
  %v2939 = vunpack.c.l.b16 %v69
  %v2940 = vunpack.c.l.b16 %v70
  %v2941 = vunpack.c.l.b16 %v71
  %v2942 = vunpack.c.l.b16 %v72
  %v2943 = vunpack.c.l.b16 %v73
  %v2944 = vunpack.c.l.b16 %v74
  %v2945 = vunpack.c.l.b16 %v75
  %v2946 = vunpack.c.l.b16 %v76
  %v2947 = vunpack.c.l.b16 %v77
  %v2948 = vunpack.c.l.b16 %v78
  %v2949 = vunpack.c.l.b16 %v79
  %v2950 = vunpack.c.l.b16 %v80
  %v2951 = vunpack.c.l.b16 %v81
  %v2952 = vunpack.c.l.b16 %v82
  %v2953 = vunpack.c.l.b16 %v83
  %v2954 = vunpack.c.l.b16 %v84
  %v2955 = vunpack.c.l.b16 %v85
  %v2956 = vunpack.c.l.b16 %v86
  %v2957 = vunpack.c.l.b16 %v87
  %v2958 = vunpack.c.l.b16 %v88
  %v2959 = vunpack.c.l.b16 %v89
  %v2960 = vunpack.c.l.b16 %v90
  %v2961 = vunpack.c.l.b16 %v91
  %v2962 = vunpack.c.l.b16 %v92
  %v2963 = vunpack.c.l.b16 %v93
  %v2964 = vunpack.c.l.b16 %v94
  %v2965 = vunpack.c.l.b16 %v95
  %v2966 = vunpack.c.l.b16 %v96
  %v2967 = vunpack.c.l.b16 %v97
  %v2968 = vunpack.c.l.b16 %v98
  %v2969 = vunpack.c.l.b16 %v99
  %v2970 = vunpack.c.l.b16 %v100
  %v2971 = vunpack.c.l.b16 %v101
  %v2972 = vunpack.c.l.b16 %v102
  %v2973 = vunpack.c.l.b16 %v103
  %v2974 = vunpack.c.l.b16 %v104
  %v2975 = vunpack.c.l.b16 %v105
  %v2976 = vunpack.c.l.b16 %v106
  %v2977 = vunpack.c.l.b16 %v107
  %v2978 = vunpack.c.l.b16 %v108
  %v2979 = vunpack.c.l.b16 %v109
  %v2980 = vunpack.c.l.b16 %v110
  %v2981 = vunpack.c.l.b16 %v111
  %v2982 = vunpack.c.l.b16 %v112
  %v2983 = vunpack.c.l.b16 %v113
  %v2984 = vunpack.c.l.b16 %v114
  %v2985 = vunpack.c.l.b16 %v115
  %v2986 = vunpack.c.l.b16 %v116
  %v2987 = vunpack.c.l.b16 %v117
  %v2988 = vunpack.c.l.b16 %v118
  %v2989 = vunpack.c.l.b16 %v119
  %v2990 = vunpack.c.l.b16 %v120
  %v2991 = vunpack.c.l.b16 %v121
  %v2992 = vunpack.c.l.b16 %v122
  %v2993 = vunpack.c.l.b16 %v123
  %v2994 = vunpack.c.l.b16 %v124
  %v2995 = vunpack.c.l.b16 %v125
  %v2996 = vunpack.c.l.b16 %v126
  %v2997 = vunpack.c.l.b16 %v127
  %v2998 = vunpack.c.l.b16 %v128
  %v2999 = vunpack.c.l.b16 %v129
  %v3000 = vunpack.c.l.b16 %v130
  %v3001 = vunpack.c.l.b16 %v131
  %v3002 = vunpack.c.l.b16 %v132
  %v3003 = vunpack.c.l.b16 %v133
  %v3004 = vunpack.c.l.b16 %v134
  %v3005 = vunpack.c.l.b16 %v135
  %v3006 = vunpack.c.l.b16 %v136
  %v3007 = vunpack.c.l.b16 %v137
  %v3008 = vunpack.c.l.b16 %v138
  %v3009 = vunpack.c.l.b16 %v139
  %v3010 = vunpack.c.l.b16 %v140
  %v3011 = vunpack.c.l.b16 %v141
  %v3012 = vunpack.c.l.b16 %v142
  %v3013 = vunpack.c.l.b16 %v143
  %v3014 = vunpack.c.l.b16 %v144
  %v3015 = vunpack.c.l.b16 %v145
  %v3016 = vunpack.c.l.b16 %v146
  %v3017 = vunpack.c.l.b16 %v147
  %v3018 = vunpack.c.l.b16 %v148
  %v3019 = vunpack.c.l.b16 %v149
  %v3020 = vunpack.c.l.b16 %v150
  %v3021 = vunpack.c.l.b16 %v151
  %v3022 = vunpack.c.l.b16 %v152
  %v3023 = vunpack.c.l.b16 %v153
  %v3024 = vunpack.c.l.b16 %v154
  %v3025 = vunpack.c.l.b16 %v155
  %v3026 = vunpack.c.l.b16 %v156
  %v3027 = vunpack.c.l.b16 %v157
  %v3028 = vunpack.c.l.b16 %v158
  %v3029 = vunpack.c.l.b16 %v159
  %v3030 = vunpack.c.l.b16 %v160
  %v3031 = vunpack.c.l.b16 %v161
  %v3032 = vunpack.c.l.b16 %v162
  %v3033 = vunpack.c.l.b16 %v163
  %v3034 = vunpack.c.l.b16 %v164
  %v3035 = vunpack.c.l.b16 %v165
  %v3036 = vunpack.c.l.b16 %v166
  %v3037 = vunpack.c.l.b16 %v167
  %v3038 = vunpack.c.l.b16 %v168
  %v3039 = vunpack.c.l.b16 %v169
  %v3040 = vunpack.c.l.b16 %v170
  %v3041 = vunpack.c.l.b16 %v171
  %v3042 = vunpack.c.l.b16 %v172
  %v3043 = vunpack.c.l.b16 %v173
  %v3044 = vunpack.c.l.b16 %v174
  %v3045 = vunpack.c.l.b16 %v175
  %v3046 = vunpack.c.l.b16 %v176
  %v3047 = vunpack.c.l.b16 %v177
  %v3048 = vunpack.c.l.b16 %v178
  %v3049 = vunpack.c.l.b16 %v179
  %v3050 = vunpack.c.l.b16 %v180
  %v3051 = vunpack.c.l.b16 %v181
  %v3052 = vunpack.c.l.b16 %v182
  %v3053 = vunpack.c.l.b16 %v183
  %v3054 = vunpack.c.l.b16 %v184
  %v3055 = vunpack.c.l.b16 %v185
  %v3056 = vunpack.c.l.b16 %v186
  %v3057 = vunpack.c.l.b16 %v187
  %v3058 = vunpack.c.l.b16 %v188
  %v3059 = vunpack.c.l.b16 %v189
  %v3060 = vunpack.c.l.b16 %v190
  %v3061 = vunpack.c.l.b16 %v191
  %v3062 = vunpack.c.l.b16 %v192
  %v3063 = vunpack.c.l.b16 %v193
  %v3064 = vunpack.c.l.b16 %v194
  %v3065 = vunpack.c.l.b16 %v195
  %v3066 = vunpack.c.l.b16 %v196
  %v3067 = vunpack.c.l.b16 %v197
  %v3068 = vunpack.c.l.b16 %v198
  %v3069 = vunpack.c.l.b16 %v199
  %v3070 = vunpack.c.l.b16 %v200
  %v3071 = vunpack.c.l.b16 %v201
  %v3072 = vunpack.c.l.b16 %v202
  %v3073 = vunpack.c.l.b16 %v203
  %v3074 = vunpack.c.l.b16 %v204
  %v3075 = vunpack.c.l.b16 %v205
  %v3076 = vunpack.c.l.b16 %v206
  %v3077 = vunpack.c.l.b16 %v207
  %v3078 = vunpack.c.l.b16 %v208
  %v3079 = vunpack.c.l.b16 %v209
  %v3080 = vunpack.c.l.b16 %v210
  %v3081 = vunpack.c.l.b16 %v211
  %v3082 = vunpack.c.l.b16 %v212
  %v3083 = vunpack.c.l.b16 %v213
  %v3084 = vunpack.c.l.b16 %v214
  %v3085 = vunpack.c.l.b16 %v215
  %v3086 = vunpack.c.l.b16 %v216
  %v3087 = vunpack.c.l.b16 %v217
  %v3088 = vunpack.c.l.b16 %v218
  %v3089 = vunpack.c.l.b16 %v219
  %v3090 = vunpack.c.l.b16 %v220
  %v3091 = vunpack.c.l.b16 %v221
  %v3092 = vunpack.c.l.b16 %v222
  %v3093 = vunpack.c.l.b16 %v223
  %v3094 = vunpack.c.l.b16 %v224
  %v3095 = vunpack.c.l.b16 %v225
  %v3096 = vunpack.c.l.b16 %v226
  %v3097 = vunpack.c.l.b16 %v227
  %v3098 = vunpack.c.l.b16 %v228
  %v3099 = vunpack.c.l.b16 %v229
  %v3100 = vunpack.c.l.b16 %v230
  %v3101 = vunpack.c.l.b16 %v231
  %v3102 = vunpack.c.l.b16 %v232
  %v3103 = vunpack.c.l.b16 %v233
  %v3104 = vunpack.c.l.b16 %v234
  %v3105 = vunpack.c.l.b16 %v235
  %v3106 = vunpack.c.l.b16 %v236
  %v3107 = vunpack.c.l.b16 %v237
  %v3108 = vunpack.c.l.b16 %v238
  %v3109 = vunpack.c.l.b16 %v239
  %v3110 = vunpack.c.l.b16 %v240
  %v3111 = vunpack.c.l.b16 %v241
  %v3112 = vunpack.c.l.b16 %v242
  %v3113 = vunpack.c.l.b16 %v243
  %v3114 = vunpack.c.l.b16 %v244
  %v3115 = vunpack.c.l.b16 %v245
  %v3116 = vunpack.c.l.b16 %v246
  %v3117 = vunpack.c.l.b16 %v247
  %v3118 = vunpack.c.l.b16 %v248
  %v3119 = vunpack.c.l.b16 %v249
  %v3120 = vunpack.c.l.b16 %v250
  %v3121 = vunpack.c.l.b16 %v251
  %v3122 = vunpack.c.l.b16 %v252
  %v3123 = vunpack.c.l.b16 %v253
  %v3124 = vunpack.c.l.b16 %v254
  %v3125 = vunpack.c.l.b16 %v255
  %v3126 = vunpack.c.l.b16 %v256
  %v3127 = vunpack.c.l.b16 %v257
  %v3128 = vunpack.c.l.b16 %v258
  %v3129 = vunpack.c.l.b16 %v259
  %v3130 = vunpack.c.l.b16 %v260
  %v3131 = vunpack.c.l.b16 %v261
  %v3132 = vunpack.c.l.b16 %v262
  %v3133 = vunpack.c.l.b16 %v263
  %v3134 = vunpack.c.l.b16 %v264
  %v3135 = vunpack.c.l.b16 %v265
  %v3136 = vunpack.c.l.b16 %v266
  %v3137 = vunpack.c.l.b16 %v267
  %v3138 = vunpack.c.l.b16 %v268
  %v3139 = vunpack.c.l.b16 %v269
  %v3140 = vunpack.c.l.b16 %v270
  %v3141 = vunpack.c.l.b16 %v271
  %v3142 = vunpack.c.l.b16 %v272
  %v3143 = vunpack.c.l.b16 %v273
  %v3144 = vunpack.c.l.b16 %v274
  %v3145 = vunpack.c.l.b16 %v275
  %v3146 = vunpack.c.l.b16 %v276
  %v3147 = vunpack.c.l.b16 %v277
  %v3148 = vunpack.c.l.b16 %v278
  %v3149 = vunpack.c.l.b16 %v279
  %v3150 = vunpack.c.l.b16 %v280
  %v3151 = vunpack.c.l.b16 %v281
  %v3152 = vunpack.c.l.b16 %v282
  %v3153 = vunpack.c.l.b16 %v283
  %v3154 = vunpack.c.l.b16 %v284
  %v3155 = vunpack.c.l.b16 %v285
  %v3156 = vunpack.c.l.b16 %v286
  %v3157 = vunpack.c.l.b16 %v287
  %v3158 = vunpack.c.l.b16 %v288
  %v3159 = vunpack.c.l.b16 %v289
  %v3160 = vunpack.c.l.b16 %v290
  %v3161 = vunpack.c.l.b16 %v291
  %v3162 = vunpack.c.l.b16 %v292
  %v3163 = vunpack.c.l.b16 %v293
  %v3164 = vunpack.c.l.b16 %v294
  %v3165 = vunpack.c.l.b16 %v295
  %v3166 = vunpack.c.l.b16 %v296
  %v3167 = vpack.c.b16 %v2912, %v2911
  %v3168 = vpack.c.b16 %v2914, %v2913
  %v3169 = vpack.c.b16 %v2916, %v2915
  %v3170 = vpack.c.b16 %v2918, %v2917
  %v3171 = vpack.c.b16 %v2920, %v2919
  %v3172 = vpack.c.b16 %v2922, %v2921
  %v3173 = vpack.c.b16 %v2924, %v2923
  %v3174 = vpack.c.b16 %v2926, %v2925
  %v3175 = vpack.c.b16 %v2928, %v2927
  %v3176 = vpack.c.b16 %v2930, %v2929
  %v3177 = vpack.c.b16 %v2932, %v2931
  %v3178 = vpack.c.b16 %v2934, %v2933
  %v3179 = vpack.c.b16 %v2936, %v2935
  %v3180 = vpack.c.b16 %v2938, %v2937
  %v3181 = vpack.c.b16 %v2940, %v2939
  %v3182 = vpack.c.b16 %v2942, %v2941
  %v3183 = vpack.c.b16 %v2944, %v2943
  %v3184 = vpack.c.b16 %v2946, %v2945
  %v3185 = vpack.c.b16 %v2948, %v2947
  %v3186 = vpack.c.b16 %v2950, %v2949
  %v3187 = vpack.c.b16 %v2952, %v2951
  %v3188 = vpack.c.b16 %v2954, %v2953
  %v3189 = vpack.c.b16 %v2956, %v2955
  %v3190 = vpack.c.b16 %v2958, %v2957
  %v3191 = vpack.c.b16 %v2960, %v2959
  %v3192 = vpack.c.b16 %v2962, %v2961
  %v3193 = vpack.c.b16 %v2964, %v2963
  %v3194 = vpack.c.b16 %v2966, %v2965
  %v3195 = vpack.c.b16 %v2968, %v2967
  %v3196 = vpack.c.b16 %v2970, %v2969
  %v3197 = vpack.c.b16 %v2972, %v2971
  %v3198 = vpack.c.b16 %v2974, %v2973
  %v3199 = vpack.c.b16 %v2976, %v2975
  %v3200 = vpack.c.b16 %v2978, %v2977
  %v3201 = vpack.c.b16 %v2980, %v2979
  %v3202 = vpack.c.b16 %v2982, %v2981
  %v3203 = vpack.c.b16 %v2984, %v2983
  %v3204 = vpack.c.b16 %v2986, %v2985
  %v3205 = vpack.c.b16 %v2988, %v2987
  %v3206 = vpack.c.b16 %v2990, %v2989
  %v3207 = vpack.c.b16 %v2992, %v2991
  %v3208 = vpack.c.b16 %v2994, %v2993
  %v3209 = vpack.c.b16 %v2996, %v2995
  %v3210 = vpack.c.b16 %v2998, %v2997
  %v3211 = vpack.c.b16 %v3000, %v2999
  %v3212 = vpack.c.b16 %v3002, %v3001
  %v3213 = vpack.c.b16 %v3004, %v3003
  %v3214 = vpack.c.b16 %v3006, %v3005
  %v3215 = vpack.c.b16 %v3008, %v3007
  %v3216 = vpack.c.b16 %v3010, %v3009
  %v3217 = vpack.c.b16 %v3012, %v3011
  %v3218 = vpack.c.b16 %v3014, %v3013
  %v3219 = vpack.c.b16 %v3016, %v3015
  %v3220 = vpack.c.b16 %v3018, %v3017
  %v3221 = vpack.c.b16 %v3020, %v3019
  %v3222 = vpack.c.b16 %v3022, %v3021
  %v3223 = vpack.c.b16 %v3024, %v3023
  %v3224 = vpack.c.b16 %v3026, %v3025
  %v3225 = vpack.c.b16 %v3028, %v3027
  %v3226 = vpack.c.b16 %v3030, %v3029
  %v3227 = vpack.c.b16 %v3032, %v3031
  %v3228 = vpack.c.b16 %v3034, %v3033
  %v3229 = vpack.c.b16 %v3036, %v3035
  %v3230 = vpack.c.b16 %v3038, %v3037
  %v3231 = vpack.c.b16 %v3040, %v3039
  %v3232 = vpack.c.b16 %v3042, %v3041
  %v3233 = vpack.c.b16 %v3044, %v3043
  %v3234 = vpack.c.b16 %v3046, %v3045
  %v3235 = vpack.c.b16 %v3048, %v3047
  %v3236 = vpack.c.b16 %v3050, %v3049
  %v3237 = vpack.c.b16 %v3052, %v3051
  %v3238 = vpack.c.b16 %v3054, %v3053
  %v3239 = vpack.c.b16 %v3056, %v3055
  %v3240 = vpack.c.b16 %v3058, %v3057
  %v3241 = vpack.c.b16 %v3060, %v3059
  %v3242 = vpack.c.b16 %v3062, %v3061
  %v3243 = vpack.c.b16 %v3064, %v3063
  %v3244 = vpack.c.b16 %v3066, %v3065
  %v3245 = vpack.c.b16 %v3068, %v3067
  %v3246 = vpack.c.b16 %v3070, %v3069
  %v3247 = vpack.c.b16 %v3072, %v3071
  %v3248 = vpack.c.b16 %v3074, %v3073
  %v3249 = vpack.c.b16 %v3076, %v3075
  %v3250 = vpack.c.b16 %v3078, %v3077
  %v3251 = vpack.c.b16 %v3080, %v3079
  %v3252 = vpack.c.b16 %v3082, %v3081
  %v3253 = vpack.c.b16 %v3084, %v3083
  %v3254 = vpack.c.b16 %v3086, %v3085
  %v3255 = vpack.c.b16 %v3088, %v3087
  %v3256 = vpack.c.b16 %v3090, %v3089
  %v3257 = vpack.c.b16 %v3092, %v3091
  %v3258 = vpack.c.b16 %v3094, %v3093
  %v3259 = vpack.c.b16 %v3096, %v3095
  %v3260 = vpack.c.b16 %v3098, %v3097
  %v3261 = vpack.c.b16 %v3100, %v3099
  %v3262 = vpack.c.b16 %v3102, %v3101
  %v3263 = vpack.c.b16 %v3104, %v3103
  %v3264 = vpack.c.b16 %v3106, %v3105
  %v3265 = vpack.c.b16 %v3108, %v3107
  %v3266 = vpack.c.b16 %v3110, %v3109
  %v3267 = vpack.c.b16 %v3112, %v3111
  %v3268 = vpack.c.b16 %v3114, %v3113
  %v3269 = vpack.c.b16 %v3116, %v3115
  %v3270 = vpack.c.b16 %v3118, %v3117
  %v3271 = vpack.c.b16 %v3120, %v3119
  %v3272 = vpack.c.b16 %v3122, %v3121
  %v3273 = vpack.c.b16 %v3124, %v3123
  %v3274 = vpack.c.b16 %v3126, %v3125
  %v3275 = vpack.c.b16 %v3128, %v3127
  %v3276 = vpack.c.b16 %v3130, %v3129
  %v3277 = vpack.c.b16 %v3132, %v3131
  %v3278 = vpack.c.b16 %v3134, %v3133
  %v3279 = vpack.c.b16 %v3136, %v3135
  %v3280 = vpack.c.b16 %v3138, %v3137
  %v3281 = vpack.c.b16 %v3140, %v3139
  %v3282 = vpack.c.b16 %v3142, %v3141
  %v3283 = vpack.c.b16 %v3144, %v3143
  %v3284 = vpack.c.b16 %v3146, %v3145
  %v3285 = vpack.c.b16 %v3148, %v3147
  %v3286 = vpack.c.b16 %v3150, %v3149
  %v3287 = vpack.c.b16 %v3152, %v3151
  %v3288 = vpack.c.b16 %v3154, %v3153
  %v3289 = vpack.c.b16 %v3156, %v3155
  %v3290 = vpack.c.b16 %v3158, %v3157
  %v3291 = vpack.c.b16 %v3160, %v3159
  %v3292 = vpack.c.b16 %v3162, %v3161
  %v3293 = vpack.c.b16 %v3164, %v3163
  %v3294 = vpack.c.b16 %v3166, %v3165
  %v3299 = vunpack.c.l.b16 %v297
  %v3300 = vunpack.c.l.b16 %v298
  %v3301 = vunpack.c.l.b16 %v299
  %v3302 = vunpack.c.l.b16 %v300
  %v3303 = vpack.c.b16 %v3300, %v3299
  %v3304 = vpack.c.b16 %v3302, %v3301
  %v3308 = vsel %vm1213, %v3167, 0
  %v3311 = vsel %vm1213, %v3168, 0
  %v3314 = vsel %vm1213, %v3169, 0
  %v3317 = vsel %vm1213, %v3170, 0
  %v3320 = vsel %vm1213, %v3171, 0
  %v3323 = vsel %vm1213, %v3172, 0
  %v3326 = vsel %vm1213, %v3173, 0
  %v3329 = vsel %vm1213, %v3174, 0
  %v3332 = vsel %vm1213, %v3175, 0
  %v3335 = vsel %vm1213, %v3176, 0
  %v3338 = vsel %vm1213, %v3177, 0
  %v3341 = vsel %vm1213, %v3178, 0
  %v3344 = vsel %vm1213, %v3179, 0
  %v3347 = vsel %vm1213, %v3180, 0
  %v3350 = vsel %vm1213, %v3181, 0
  %v3353 = vsel %vm1213, %v3182, 0
  %v3356 = vsel %vm1213, %v3183, 0
  %v3359 = vsel %vm1213, %v3184, 0
  %v3362 = vsel %vm1213, %v3185, 0
  %v3365 = vsel %vm1213, %v3186, 0
  %v3368 = vsel %vm1213, %v3187, 0
  %v3371 = vsel %vm1213, %v3188, 0
  %v3374 = vsel %vm1213, %v3189, 0
  %v3377 = vsel %vm1213, %v3190, 0
  %v3380 = vsel %vm1213, %v3191, 0
  %v3383 = vsel %vm1213, %v3192, 0
  %v3386 = vsel %vm1213, %v3193, 0
  %v3389 = vsel %vm1213, %v3194, 0
  %v3392 = vsel %vm1213, %v3195, 0
  %v3395 = vsel %vm1213, %v3196, 0
  %v3398 = vsel %vm1213, %v3197, 0
  %v3401 = vsel %vm1213, %v3198, 0
  %v3404 = vsel %vm1213, %v3199, 0
  %v3407 = vsel %vm1213, %v3200, 0
  %v3410 = vsel %vm1213, %v3201, 0
  %v3413 = vsel %vm1213, %v3202, 0
  %v3416 = vsel %vm1213, %v3203, 0
  %v3419 = vsel %vm1213, %v3204, 0
  %v3422 = vsel %vm1213, %v3205, 0
  %v3425 = vsel %vm1213, %v3206, 0
  %v3428 = vsel %vm1213, %v3207, 0
  %v3431 = vsel %vm1213, %v3208, 0
  %v3434 = vsel %vm1213, %v3209, 0
  %v3437 = vsel %vm1213, %v3210, 0
  %v3440 = vsel %vm1213, %v3211, 0
  %v3443 = vsel %vm1213, %v3212, 0
  %v3446 = vsel %vm1213, %v3213, 0
  %v3449 = vsel %vm1213, %v3214, 0
  %v3452 = vsel %vm1213, %v3215, 0
  %v3455 = vsel %vm1213, %v3216, 0
  %v3458 = vsel %vm1213, %v3217, 0
  %v3461 = vsel %vm1213, %v3218, 0
  %v3464 = vsel %vm1213, %v3219, 0
  %v3467 = vsel %vm1213, %v3220, 0
  %v3470 = vsel %vm1213, %v3221, 0
  %v3473 = vsel %vm1213, %v3222, 0
  %v3476 = vsel %vm1213, %v3223, 0
  %v3479 = vsel %vm1213, %v3224, 0
  %v3482 = vsel %vm1213, %v3225, 0
  %v3485 = vsel %vm1213, %v3226, 0
  %v3488 = vsel %vm1213, %v3227, 0
  %v3491 = vsel %vm1213, %v3228, 0
  %v3494 = vsel %vm1213, %v3229, 0
  %v3497 = vsel %vm1213, %v3230, 0
  %v3500 = vsel %vm1213, %v3231, 0
  %v3503 = vsel %vm1213, %v3232, 0
  %v3506 = vsel %vm1213, %v3233, 0
  %v3509 = vsel %vm1213, %v3234, 0
  %v3512 = vsel %vm1213, %v3235, 0
  %v3515 = vsel %vm1213, %v3236, 0
  %v3518 = vsel %vm1213, %v3237, 0
  %v3521 = vsel %vm1213, %v3238, 0
  %v3524 = vsel %vm1213, %v3239, 0
  %v3527 = vsel %vm1213, %v3240, 0
  %v3530 = vsel %vm1213, %v3241, 0
  %v3533 = vsel %vm1213, %v3242, 0
  %v3536 = vsel %vm1213, %v3243, 0
  %v3539 = vsel %vm1213, %v3244, 0
  %v3542 = vsel %vm1213, %v3245, 0
  %v3545 = vsel %vm1213, %v3246, 0
  %v3548 = vsel %vm1213, %v3247, 0
  %v3551 = vsel %vm1213, %v3248, 0
  %v3554 = vsel %vm1213, %v3249, 0
  %v3557 = vsel %vm1213, %v3250, 0
  %v3560 = vsel %vm1213, %v3251, 0
  %v3563 = vsel %vm1213, %v3252, 0
  %v3566 = vsel %vm1213, %v3253, 0
  %v3569 = vsel %vm1213, %v3254, 0
  %v3572 = vsel %vm1213, %v3255, 0
  %v3575 = vsel %vm1213, %v3256, 0
  %v3578 = vsel %vm1213, %v3257, 0
  %v3581 = vsel %vm1213, %v3258, 0
  %v3584 = vsel %vm1213, %v3259, 0
  %v3587 = vsel %vm1213, %v3260, 0
  %v3590 = vsel %vm1213, %v3261, 0
  %v3593 = vsel %vm1213, %v3262, 0
  %v3596 = vsel %vm1213, %v3263, 0
  %v3599 = vsel %vm1213, %v3264, 0
  %v3602 = vsel %vm1213, %v3265, 0
  %v3605 = vsel %vm1213, %v3266, 0
  %v3608 = vsel %vm1213, %v3267, 0
  %v3611 = vsel %vm1213, %v3268, 0
  %v3614 = vsel %vm1213, %v3269, 0
  %v3617 = vsel %vm1213, %v3270, 0
  %v3620 = vsel %vm1213, %v3271, 0
  %v3623 = vsel %vm1213, %v3272, 0
  %v3626 = vsel %vm1213, %v3273, 0
  %v3629 = vsel %vm1213, %v3274, 0
  %v3632 = vsel %vm1213, %v3275, 0
  %v3635 = vsel %vm1213, %v3276, 0
  %v3638 = vsel %vm1213, %v3277, 0
  %v3641 = vsel %vm1213, %v3278, 0
  %v3644 = vsel %vm1213, %v3279, 0
  %v3647 = vsel %vm1213, %v3280, 0
  %v3650 = vsel %vm1213, %v3281, 0
  %v3653 = vsel %vm1213, %v3282, 0
  %v3656 = vsel %vm1213, %v3283, 0
  %v3659 = vsel %vm1213, %v3284, 0
  %v3662 = vsel %vm1213, %v3285, 0
  %v3665 = vsel %vm1213, %v3286, 0
  %v3668 = vsel %vm1213, %v3287, 0
  %v3671 = vsel %vm1213, %v3288, 0
  %v3674 = vsel %vm1213, %v3289, 0
  %v3677 = vsel %vm1213, %v3290, 0
  %v3680 = vsel %vm1213, %v3291, 0
  %v3683 = vsel %vm1213, %v3292, 0
  %v3686 = vsel %vm1213, %v3293, 0
  %v3689 = vsel %vm1213, %v3294, 0
  %3691 = vmatprep.subr.bf16.mxu0 0
  %3692 = vmatpush1.bf16.msra.mxu0 %v3303
  %3693 = vmatprep.subr.bf16.mxu0 0
  %3694 = vmatpush1.bf16.msra.mxu0 %v3304
  %3695 = vmatprep.subr.bf16.mxu0 0
  %3696 = vmatpush1.bf16.msra.mxu0 0
  %3697 = vmatprep.subr.bf16.mxu0 0
  %3698 = vmatpush1.bf16.msra.mxu0 0
  %3699 = vmatprep.subr.bf16.mxu0 0
  %3700 = vmatpush1.bf16.msra.mxu0 0
  %3701 = vmatprep.subr.bf16.mxu0 0
  %3702 = vmatpush1.bf16.msra.mxu0 0
  %3703 = vmatprep.subr.bf16.mxu0 0
  %3704 = vmatpush1.bf16.msra.mxu0 0
  %3705 = vmatprep.subr.bf16.mxu0 0
  %3706 = vmatpush1.bf16.msra.mxu0 0
  %3707 = vmatprep.subr.bf16.mxu0 0
  %3708 = vmatpush1.bf16.msra.mxu0 0
  %3709 = vmatprep.subr.bf16.mxu0 0
  %3710 = vmatpush1.bf16.msra.mxu0 0
  %3711 = vmatprep.subr.bf16.mxu0 0
  %3712 = vmatpush1.bf16.msra.mxu0 0
  %3713 = vmatprep.subr.bf16.mxu0 0
  %3714 = vmatpush1.bf16.msra.mxu0 0
  %3715 = vmatprep.subr.bf16.mxu0 0
  %3716 = vmatpush1.bf16.msra.mxu0 0
  %3717 = vmatprep.subr.bf16.mxu0 0
  %3718 = vmatpush1.bf16.msra.mxu0 0
  %3719 = vmatprep.subr.bf16.mxu0 0
  %3720 = vmatpush1.bf16.msra.mxu0 0
  %3721 = vmatprep.subr.bf16.mxu0 0
  %3722 = vmatpush1.bf16.msra.mxu0 0
  %3723 = vmatprep.mubr.bf16.mxu0 0
  %3724 = vmatmul.mubr.bf16.gmra.mrb[0].mxu0 %v3308
  %v3725 = vpop.f32.mrb[0].mxu0
  %v3726 = vadd.f32 %v1633, %v3725
  %v3727 = vpop.f32.mrb[0].mxu0
  %v3728 = vpop.f32.mrb[0].mxu0
  %v3729 = vadd.f32 %v1636, %v3728
  %v3730 = vpop.f32.mrb[0].mxu0
  %3731 = vmatprep.mubr.bf16.mxu0 0
  %3732 = vmatmul.mubr.bf16.gmra.mrb[0].mxu0 %v3311
  %v3733 = vpop.f32.mrb[0].mxu0
  %v3734 = vadd.f32 %v1641, %v3733
  %v3735 = vpop.f32.mrb[0].mxu0
  %v3736 = vpop.f32.mrb[0].mxu0
  %v3737 = vadd.f32 %v1644, %v3736
  %v3738 = vpop.f32.mrb[0].mxu0
  %3739 = vmatprep.mubr.bf16.mxu0 0
  %3740 = vmatmul.mubr.bf16.gmra.mrb[0].mxu0 %v3314
  %v3741 = vpop.f32.mrb[0].mxu0
  %v3742 = vadd.f32 %v1649, %v3741
  %v3743 = vpop.f32.mrb[0].mxu0
  %v3744 = vpop.f32.mrb[0].mxu0
  %v3745 = vadd.f32 %v1652, %v3744
  %v3746 = vpop.f32.mrb[0].mxu0
  %3747 = vmatprep.mubr.bf16.mxu0 0
  %3748 = vmatmul.mubr.bf16.gmra.mrb[0].mxu0 %v3317
  %v3749 = vpop.f32.mrb[0].mxu0
  %v3750 = vadd.f32 %v1657, %v3749
  %v3751 = vpop.f32.mrb[0].mxu0
  %v3752 = vpop.f32.mrb[0].mxu0
  %v3753 = vadd.f32 %v1660, %v3752
  %v3754 = vpop.f32.mrb[0].mxu0
  %3755 = vmatprep.mubr.bf16.mxu0 0
  %3756 = vmatmul.mubr.bf16.gmra.mrb[0].mxu0 %v3320
  %v3757 = vpop.f32.mrb[0].mxu0
  %v3758 = vadd.f32 %v1665, %v3757
  %v3759 = vpop.f32.mrb[0].mxu0
  %v3760 = vpop.f32.mrb[0].mxu0
  %v3761 = vadd.f32 %v1668, %v3760
  %v3762 = vpop.f32.mrb[0].mxu0
  %3763 = vmatprep.mubr.bf16.mxu0 0
  %3764 = vmatmul.mubr.bf16.gmra.mrb[0].mxu0 %v3323
  %v3765 = vpop.f32.mrb[0].mxu0
  %v3766 = vadd.f32 %v1673, %v3765
  %v3767 = vpop.f32.mrb[0].mxu0
  %v3768 = vpop.f32.mrb[0].mxu0
  %v3769 = vadd.f32 %v1676, %v3768
  %v3770 = vpop.f32.mrb[0].mxu0
  %3771 = vmatprep.mubr.bf16.mxu0 0
  %3772 = vmatmul.mubr.bf16.gmra.mrb[0].mxu0 %v3326
  %v3773 = vpop.f32.mrb[0].mxu0
  %v3774 = vadd.f32 %v1681, %v3773
  %v3775 = vpop.f32.mrb[0].mxu0
  %v3776 = vpop.f32.mrb[0].mxu0
  %v3777 = vadd.f32 %v1684, %v3776
  %v3778 = vpop.f32.mrb[0].mxu0
  %3779 = vmatprep.mubr.bf16.mxu0 0
  %3780 = vmatmul.mubr.bf16.gmra.mrb[0].mxu0 %v3329
  %v3781 = vpop.f32.mrb[0].mxu0
  %v3782 = vadd.f32 %v1689, %v3781
  %v3783 = vpop.f32.mrb[0].mxu0
  %v3784 = vpop.f32.mrb[0].mxu0
  %v3785 = vadd.f32 %v1692, %v3784
  %v3786 = vpop.f32.mrb[0].mxu0
  %3787 = vmatprep.mubr.bf16.mxu0 0
  %3788 = vmatmul.mubr.bf16.gmra.mrb[0].mxu0 %v3332
  %v3789 = vpop.f32.mrb[0].mxu0
  %v3790 = vadd.f32 %v1697, %v3789
  %v3791 = vpop.f32.mrb[0].mxu0
  %v3792 = vpop.f32.mrb[0].mxu0
  %v3793 = vadd.f32 %v1700, %v3792
  %v3794 = vpop.f32.mrb[0].mxu0
  %3795 = vmatprep.mubr.bf16.mxu0 0
  %3796 = vmatmul.mubr.bf16.gmra.mrb[0].mxu0 %v3335
  %v3797 = vpop.f32.mrb[0].mxu0
  %v3798 = vadd.f32 %v1705, %v3797
  %v3799 = vpop.f32.mrb[0].mxu0
  %v3800 = vpop.f32.mrb[0].mxu0
  %v3801 = vadd.f32 %v1708, %v3800
  %v3802 = vpop.f32.mrb[0].mxu0
  %3803 = vmatprep.mubr.bf16.mxu0 0
  %3804 = vmatmul.mubr.bf16.gmra.mrb[0].mxu0 %v3338
  %v3805 = vpop.f32.mrb[0].mxu0
  %v3806 = vadd.f32 %v1713, %v3805
  %v3807 = vpop.f32.mrb[0].mxu0
  %v3808 = vpop.f32.mrb[0].mxu0
  %v3809 = vadd.f32 %v1716, %v3808
  %v3810 = vpop.f32.mrb[0].mxu0
  %3811 = vmatprep.mubr.bf16.mxu0 0
  %3812 = vmatmul.mubr.bf16.gmra.mrb[0].mxu0 %v3341
  %v3813 = vpop.f32.mrb[0].mxu0
  %v3814 = vadd.f32 %v1721, %v3813
  %v3815 = vpop.f32.mrb[0].mxu0
  %v3816 = vpop.f32.mrb[0].mxu0
  %v3817 = vadd.f32 %v1724, %v3816
  %v3818 = vpop.f32.mrb[0].mxu0
  %3819 = vmatprep.mubr.bf16.mxu0 0
  %3820 = vmatmul.mubr.bf16.gmra.mrb[0].mxu0 %v3344
  %v3821 = vpop.f32.mrb[0].mxu0
  %v3822 = vadd.f32 %v1729, %v3821
  %v3823 = vpop.f32.mrb[0].mxu0
  %v3824 = vpop.f32.mrb[0].mxu0
  %v3825 = vadd.f32 %v1732, %v3824
  %v3826 = vpop.f32.mrb[0].mxu0
  %3827 = vmatprep.mubr.bf16.mxu0 0
  %3828 = vmatmul.mubr.bf16.gmra.mrb[0].mxu0 %v3347
  %v3829 = vpop.f32.mrb[0].mxu0
  %v3830 = vadd.f32 %v1737, %v3829
  %v3831 = vpop.f32.mrb[0].mxu0
  %v3832 = vpop.f32.mrb[0].mxu0
  %v3833 = vadd.f32 %v1740, %v3832
  %v3834 = vpop.f32.mrb[0].mxu0
  %3835 = vmatprep.mubr.bf16.mxu0 0
  %3836 = vmatmul.mubr.bf16.gmra.mrb[0].mxu0 %v3350
  %v3837 = vpop.f32.mrb[0].mxu0
  %v3838 = vadd.f32 %v1745, %v3837
  %v3839 = vpop.f32.mrb[0].mxu0
  %v3840 = vpop.f32.mrb[0].mxu0
  %v3841 = vadd.f32 %v1748, %v3840
  %v3842 = vpop.f32.mrb[0].mxu0
  %3843 = vmatprep.mubr.bf16.mxu0 0
  %3844 = vmatmul.mubr.bf16.gmra.mrb[0].mxu0 %v3353
  %v3845 = vpop.f32.mrb[0].mxu0
  %v3846 = vadd.f32 %v1753, %v3845
  %v3847 = vpop.f32.mrb[0].mxu0
  %v3848 = vpop.f32.mrb[0].mxu0
  %v3849 = vadd.f32 %v1756, %v3848
  %v3850 = vpop.f32.mrb[0].mxu0
  %3851 = vmatprep.mubr.bf16.mxu0 0
  %3852 = vmatmul.mubr.bf16.gmra.mrb[0].mxu0 %v3356
  %v3853 = vpop.f32.mrb[0].mxu0
  %v3854 = vadd.f32 %v1761, %v3853
  %v3855 = vpop.f32.mrb[0].mxu0
  %v3856 = vpop.f32.mrb[0].mxu0
  %v3857 = vadd.f32 %v1764, %v3856
  %v3858 = vpop.f32.mrb[0].mxu0
  %3859 = vmatprep.mubr.bf16.mxu0 0
  %3860 = vmatmul.mubr.bf16.gmra.mrb[0].mxu0 %v3359
  %v3861 = vpop.f32.mrb[0].mxu0
  %v3862 = vadd.f32 %v1769, %v3861
  %v3863 = vpop.f32.mrb[0].mxu0
  %v3864 = vpop.f32.mrb[0].mxu0
  %v3865 = vadd.f32 %v1772, %v3864
  %v3866 = vpop.f32.mrb[0].mxu0
  %3867 = vmatprep.mubr.bf16.mxu0 0
  %3868 = vmatmul.mubr.bf16.gmra.mrb[0].mxu0 %v3362
  %v3869 = vpop.f32.mrb[0].mxu0
  %v3870 = vadd.f32 %v1777, %v3869
  %v3871 = vpop.f32.mrb[0].mxu0
  %v3872 = vpop.f32.mrb[0].mxu0
  %v3873 = vadd.f32 %v1780, %v3872
  %v3874 = vpop.f32.mrb[0].mxu0
  %3875 = vmatprep.mubr.bf16.mxu0 0
  %3876 = vmatmul.mubr.bf16.gmra.mrb[0].mxu0 %v3365
  %v3877 = vpop.f32.mrb[0].mxu0
  %v3878 = vadd.f32 %v1785, %v3877
  %v3879 = vpop.f32.mrb[0].mxu0
  %v3880 = vpop.f32.mrb[0].mxu0
  %v3881 = vadd.f32 %v1788, %v3880
  %v3882 = vpop.f32.mrb[0].mxu0
  %3883 = vmatprep.mubr.bf16.mxu0 0
  %3884 = vmatmul.mubr.bf16.gmra.mrb[0].mxu0 %v3368
  %v3885 = vpop.f32.mrb[0].mxu0
  %v3886 = vadd.f32 %v1793, %v3885
  %v3887 = vpop.f32.mrb[0].mxu0
  %v3888 = vpop.f32.mrb[0].mxu0
  %v3889 = vadd.f32 %v1796, %v3888
  %v3890 = vpop.f32.mrb[0].mxu0
  %3891 = vmatprep.mubr.bf16.mxu0 0
  %3892 = vmatmul.mubr.bf16.gmra.mrb[0].mxu0 %v3371
  %v3893 = vpop.f32.mrb[0].mxu0
  %v3894 = vadd.f32 %v1801, %v3893
  %v3895 = vpop.f32.mrb[0].mxu0
  %v3896 = vpop.f32.mrb[0].mxu0
  %v3897 = vadd.f32 %v1804, %v3896
  %v3898 = vpop.f32.mrb[0].mxu0
  %3899 = vmatprep.mubr.bf16.mxu0 0
  %3900 = vmatmul.mubr.bf16.gmra.mrb[0].mxu0 %v3374
  %v3901 = vpop.f32.mrb[0].mxu0
  %v3902 = vadd.f32 %v1809, %v3901
  %v3903 = vpop.f32.mrb[0].mxu0
  %v3904 = vpop.f32.mrb[0].mxu0
  %v3905 = vadd.f32 %v1812, %v3904
  %v3906 = vpop.f32.mrb[0].mxu0
  %3907 = vmatprep.mubr.bf16.mxu0 0
  %3908 = vmatmul.mubr.bf16.gmra.mrb[0].mxu0 %v3377
  %v3909 = vpop.f32.mrb[0].mxu0
  %v3910 = vadd.f32 %v1817, %v3909
  %v3911 = vpop.f32.mrb[0].mxu0
  %v3912 = vpop.f32.mrb[0].mxu0
  %v3913 = vadd.f32 %v1820, %v3912
  %v3914 = vpop.f32.mrb[0].mxu0
  %3915 = vmatprep.mubr.bf16.mxu0 0
  %3916 = vmatmul.mubr.bf16.gmra.mrb[0].mxu0 %v3380
  %v3917 = vpop.f32.mrb[0].mxu0
  %v3918 = vadd.f32 %v1825, %v3917
  %v3919 = vpop.f32.mrb[0].mxu0
  %v3920 = vpop.f32.mrb[0].mxu0
  %v3921 = vadd.f32 %v1828, %v3920
  %v3922 = vpop.f32.mrb[0].mxu0
  %3923 = vmatprep.mubr.bf16.mxu0 0
  %3924 = vmatmul.mubr.bf16.gmra.mrb[0].mxu0 %v3383
  %v3925 = vpop.f32.mrb[0].mxu0
  %v3926 = vadd.f32 %v1833, %v3925
  %v3927 = vpop.f32.mrb[0].mxu0
  %v3928 = vpop.f32.mrb[0].mxu0
  %v3929 = vadd.f32 %v1836, %v3928
  %v3930 = vpop.f32.mrb[0].mxu0
  %3931 = vmatprep.mubr.bf16.mxu0 0
  %3932 = vmatmul.mubr.bf16.gmra.mrb[0].mxu0 %v3386
  %v3933 = vpop.f32.mrb[0].mxu0
  %v3934 = vadd.f32 %v1841, %v3933
  %v3935 = vpop.f32.mrb[0].mxu0
  %v3936 = vpop.f32.mrb[0].mxu0
  %v3937 = vadd.f32 %v1844, %v3936
  %v3938 = vpop.f32.mrb[0].mxu0
  %3939 = vmatprep.mubr.bf16.mxu0 0
  %3940 = vmatmul.mubr.bf16.gmra.mrb[0].mxu0 %v3389
  %v3941 = vpop.f32.mrb[0].mxu0
  %v3942 = vadd.f32 %v1849, %v3941
  %v3943 = vpop.f32.mrb[0].mxu0
  %v3944 = vpop.f32.mrb[0].mxu0
  %v3945 = vadd.f32 %v1852, %v3944
  %v3946 = vpop.f32.mrb[0].mxu0
  %3947 = vmatprep.mubr.bf16.mxu0 0
  %3948 = vmatmul.mubr.bf16.gmra.mrb[0].mxu0 %v3392
  %v3949 = vpop.f32.mrb[0].mxu0
  %v3950 = vadd.f32 %v1857, %v3949
  %v3951 = vpop.f32.mrb[0].mxu0
  %v3952 = vpop.f32.mrb[0].mxu0
  %v3953 = vadd.f32 %v1860, %v3952
  %v3954 = vpop.f32.mrb[0].mxu0
  %3955 = vmatprep.mubr.bf16.mxu0 0
  %3956 = vmatmul.mubr.bf16.gmra.mrb[0].mxu0 %v3395
  %v3957 = vpop.f32.mrb[0].mxu0
  %v3958 = vadd.f32 %v1865, %v3957
  %v3959 = vpop.f32.mrb[0].mxu0
  %v3960 = vpop.f32.mrb[0].mxu0
  %v3961 = vadd.f32 %v1868, %v3960
  %v3962 = vpop.f32.mrb[0].mxu0
  %3963 = vmatprep.mubr.bf16.mxu0 0
  %3964 = vmatmul.mubr.bf16.gmra.mrb[0].mxu0 %v3398
  %v3965 = vpop.f32.mrb[0].mxu0
  %v3966 = vadd.f32 %v1873, %v3965
  %v3967 = vpop.f32.mrb[0].mxu0
  %v3968 = vpop.f32.mrb[0].mxu0
  %v3969 = vadd.f32 %v1876, %v3968
  %v3970 = vpop.f32.mrb[0].mxu0
  %3971 = vmatprep.mubr.bf16.mxu0 0
  %3972 = vmatmul.mubr.bf16.gmra.mrb[0].mxu0 %v3401
  %v3973 = vpop.f32.mrb[0].mxu0
  %v3974 = vadd.f32 %v1881, %v3973
  %v3975 = vpop.f32.mrb[0].mxu0
  %v3976 = vpop.f32.mrb[0].mxu0
  %v3977 = vadd.f32 %v1884, %v3976
  %v3978 = vpop.f32.mrb[0].mxu0
  %3979 = vmatprep.mubr.bf16.mxu0 0
  %3980 = vmatmul.mubr.bf16.gmra.mrb[0].mxu0 %v3404
  %v3981 = vpop.f32.mrb[0].mxu0
  %v3982 = vadd.f32 %v1889, %v3981
  %v3983 = vpop.f32.mrb[0].mxu0
  %v3984 = vpop.f32.mrb[0].mxu0
  %v3985 = vadd.f32 %v1892, %v3984
  %v3986 = vpop.f32.mrb[0].mxu0
  %3987 = vmatprep.mubr.bf16.mxu0 0
  %3988 = vmatmul.mubr.bf16.gmra.mrb[0].mxu0 %v3407
  %v3989 = vpop.f32.mrb[0].mxu0
  %v3990 = vadd.f32 %v1897, %v3989
  %v3991 = vpop.f32.mrb[0].mxu0
  %v3992 = vpop.f32.mrb[0].mxu0
  %v3993 = vadd.f32 %v1900, %v3992
  %v3994 = vpop.f32.mrb[0].mxu0
  %3995 = vmatprep.mubr.bf16.mxu0 0
  %3996 = vmatmul.mubr.bf16.gmra.mrb[0].mxu0 %v3410
  %v3997 = vpop.f32.mrb[0].mxu0
  %v3998 = vadd.f32 %v1905, %v3997
  %v3999 = vpop.f32.mrb[0].mxu0
  %v4000 = vpop.f32.mrb[0].mxu0
  %v4001 = vadd.f32 %v1908, %v4000
  %v4002 = vpop.f32.mrb[0].mxu0
  %4003 = vmatprep.mubr.bf16.mxu0 0
  %4004 = vmatmul.mubr.bf16.gmra.mrb[0].mxu0 %v3413
  %v4005 = vpop.f32.mrb[0].mxu0
  %v4006 = vadd.f32 %v1913, %v4005
  %v4007 = vpop.f32.mrb[0].mxu0
  %v4008 = vpop.f32.mrb[0].mxu0
  %v4009 = vadd.f32 %v1916, %v4008
  %v4010 = vpop.f32.mrb[0].mxu0
  %4011 = vmatprep.mubr.bf16.mxu0 0
  %4012 = vmatmul.mubr.bf16.gmra.mrb[0].mxu0 %v3416
  %v4013 = vpop.f32.mrb[0].mxu0
  %v4014 = vadd.f32 %v1921, %v4013
  %v4015 = vpop.f32.mrb[0].mxu0
  %v4016 = vpop.f32.mrb[0].mxu0
  %v4017 = vadd.f32 %v1924, %v4016
  %v4018 = vpop.f32.mrb[0].mxu0
  %4019 = vmatprep.mubr.bf16.mxu0 0
  %4020 = vmatmul.mubr.bf16.gmra.mrb[0].mxu0 %v3419
  %v4021 = vpop.f32.mrb[0].mxu0
  %v4022 = vadd.f32 %v1929, %v4021
  %v4023 = vpop.f32.mrb[0].mxu0
  %v4024 = vpop.f32.mrb[0].mxu0
  %v4025 = vadd.f32 %v1932, %v4024
  %v4026 = vpop.f32.mrb[0].mxu0
  %4027 = vmatprep.mubr.bf16.mxu0 0
  %4028 = vmatmul.mubr.bf16.gmra.mrb[0].mxu0 %v3422
  %v4029 = vpop.f32.mrb[0].mxu0
  %v4030 = vadd.f32 %v1937, %v4029
  %v4031 = vpop.f32.mrb[0].mxu0
  %v4032 = vpop.f32.mrb[0].mxu0
  %v4033 = vadd.f32 %v1940, %v4032
  %v4034 = vpop.f32.mrb[0].mxu0
  %4035 = vmatprep.mubr.bf16.mxu0 0
  %4036 = vmatmul.mubr.bf16.gmra.mrb[0].mxu0 %v3425
  %v4037 = vpop.f32.mrb[0].mxu0
  %v4038 = vadd.f32 %v1945, %v4037
  %v4039 = vpop.f32.mrb[0].mxu0
  %v4040 = vpop.f32.mrb[0].mxu0
  %v4041 = vadd.f32 %v1948, %v4040
  %v4042 = vpop.f32.mrb[0].mxu0
  %4043 = vmatprep.mubr.bf16.mxu0 0
  %4044 = vmatmul.mubr.bf16.gmra.mrb[0].mxu0 %v3428
  %v4045 = vpop.f32.mrb[0].mxu0
  %v4046 = vadd.f32 %v1953, %v4045
  %v4047 = vpop.f32.mrb[0].mxu0
  %v4048 = vpop.f32.mrb[0].mxu0
  %v4049 = vadd.f32 %v1956, %v4048
  %v4050 = vpop.f32.mrb[0].mxu0
  %4051 = vmatprep.mubr.bf16.mxu0 0
  %4052 = vmatmul.mubr.bf16.gmra.mrb[0].mxu0 %v3431
  %v4053 = vpop.f32.mrb[0].mxu0
  %v4054 = vadd.f32 %v1961, %v4053
  %v4055 = vpop.f32.mrb[0].mxu0
  %v4056 = vpop.f32.mrb[0].mxu0
  %v4057 = vadd.f32 %v1964, %v4056
  %v4058 = vpop.f32.mrb[0].mxu0
  %4059 = vmatprep.mubr.bf16.mxu0 0
  %4060 = vmatmul.mubr.bf16.gmra.mrb[0].mxu0 %v3434
  %v4061 = vpop.f32.mrb[0].mxu0
  %v4062 = vadd.f32 %v1969, %v4061
  %v4063 = vpop.f32.mrb[0].mxu0
  %v4064 = vpop.f32.mrb[0].mxu0
  %v4065 = vadd.f32 %v1972, %v4064
  %v4066 = vpop.f32.mrb[0].mxu0
  %4067 = vmatprep.mubr.bf16.mxu0 0
  %4068 = vmatmul.mubr.bf16.gmra.mrb[0].mxu0 %v3437
  %v4069 = vpop.f32.mrb[0].mxu0
  %v4070 = vadd.f32 %v1977, %v4069
  %v4071 = vpop.f32.mrb[0].mxu0
  %v4072 = vpop.f32.mrb[0].mxu0
  %v4073 = vadd.f32 %v1980, %v4072
  %v4074 = vpop.f32.mrb[0].mxu0
  %4075 = vmatprep.mubr.bf16.mxu0 0
  %4076 = vmatmul.mubr.bf16.gmra.mrb[0].mxu0 %v3440
  %v4077 = vpop.f32.mrb[0].mxu0
  %v4078 = vadd.f32 %v1985, %v4077
  %v4079 = vpop.f32.mrb[0].mxu0
  %v4080 = vpop.f32.mrb[0].mxu0
  %v4081 = vadd.f32 %v1988, %v4080
  %v4082 = vpop.f32.mrb[0].mxu0
  %4083 = vmatprep.mubr.bf16.mxu0 0
  %4084 = vmatmul.mubr.bf16.gmra.mrb[0].mxu0 %v3443
  %v4085 = vpop.f32.mrb[0].mxu0
  %v4086 = vadd.f32 %v1993, %v4085
  %v4087 = vpop.f32.mrb[0].mxu0
  %v4088 = vpop.f32.mrb[0].mxu0
  %v4089 = vadd.f32 %v1996, %v4088
  %v4090 = vpop.f32.mrb[0].mxu0
  %4091 = vmatprep.mubr.bf16.mxu0 0
  %4092 = vmatmul.mubr.bf16.gmra.mrb[0].mxu0 %v3446
  %v4093 = vpop.f32.mrb[0].mxu0
  %v4094 = vadd.f32 %v2001, %v4093
  %v4095 = vpop.f32.mrb[0].mxu0
  %v4096 = vpop.f32.mrb[0].mxu0
  %v4097 = vadd.f32 %v2004, %v4096
  %v4098 = vpop.f32.mrb[0].mxu0
  %4099 = vmatprep.mubr.bf16.mxu0 0
  %4100 = vmatmul.mubr.bf16.gmra.mrb[0].mxu0 %v3449
  %v4101 = vpop.f32.mrb[0].mxu0
  %v4102 = vadd.f32 %v2009, %v4101
  %v4103 = vpop.f32.mrb[0].mxu0
  %v4104 = vpop.f32.mrb[0].mxu0
  %v4105 = vadd.f32 %v2012, %v4104
  %v4106 = vpop.f32.mrb[0].mxu0
  %4107 = vmatprep.mubr.bf16.mxu0 0
  %4108 = vmatmul.mubr.bf16.gmra.mrb[0].mxu0 %v3452
  %v4109 = vpop.f32.mrb[0].mxu0
  %v4110 = vadd.f32 %v2017, %v4109
  %v4111 = vpop.f32.mrb[0].mxu0
  %v4112 = vpop.f32.mrb[0].mxu0
  %v4113 = vadd.f32 %v2020, %v4112
  %v4114 = vpop.f32.mrb[0].mxu0
  %4115 = vmatprep.mubr.bf16.mxu0 0
  %4116 = vmatmul.mubr.bf16.gmra.mrb[0].mxu0 %v3455
  %v4117 = vpop.f32.mrb[0].mxu0
  %v4118 = vadd.f32 %v2025, %v4117
  %v4119 = vpop.f32.mrb[0].mxu0
  %v4120 = vpop.f32.mrb[0].mxu0
  %v4121 = vadd.f32 %v2028, %v4120
  %v4122 = vpop.f32.mrb[0].mxu0
  %4123 = vmatprep.mubr.bf16.mxu0 0
  %4124 = vmatmul.mubr.bf16.gmra.mrb[0].mxu0 %v3458
  %v4125 = vpop.f32.mrb[0].mxu0
  %v4126 = vadd.f32 %v2033, %v4125
  %v4127 = vpop.f32.mrb[0].mxu0
  %v4128 = vpop.f32.mrb[0].mxu0
  %v4129 = vadd.f32 %v2036, %v4128
  %v4130 = vpop.f32.mrb[0].mxu0
  %4131 = vmatprep.mubr.bf16.mxu0 0
  %4132 = vmatmul.mubr.bf16.gmra.mrb[0].mxu0 %v3461
  %v4133 = vpop.f32.mrb[0].mxu0
  %v4134 = vadd.f32 %v2041, %v4133
  %v4135 = vpop.f32.mrb[0].mxu0
  %v4136 = vpop.f32.mrb[0].mxu0
  %v4137 = vadd.f32 %v2044, %v4136
  %v4138 = vpop.f32.mrb[0].mxu0
  %4139 = vmatprep.mubr.bf16.mxu0 0
  %4140 = vmatmul.mubr.bf16.gmra.mrb[0].mxu0 %v3464
  %v4141 = vpop.f32.mrb[0].mxu0
  %v4142 = vadd.f32 %v2049, %v4141
  %v4143 = vpop.f32.mrb[0].mxu0
  %v4144 = vpop.f32.mrb[0].mxu0
  %v4145 = vadd.f32 %v2052, %v4144
  %v4146 = vpop.f32.mrb[0].mxu0
  %4147 = vmatprep.mubr.bf16.mxu0 0
  %4148 = vmatmul.mubr.bf16.gmra.mrb[0].mxu0 %v3467
  %v4149 = vpop.f32.mrb[0].mxu0
  %v4150 = vadd.f32 %v2057, %v4149
  %v4151 = vpop.f32.mrb[0].mxu0
  %v4152 = vpop.f32.mrb[0].mxu0
  %v4153 = vadd.f32 %v2060, %v4152
  %v4154 = vpop.f32.mrb[0].mxu0
  %4155 = vmatprep.mubr.bf16.mxu0 0
  %4156 = vmatmul.mubr.bf16.gmra.mrb[0].mxu0 %v3470
  %v4157 = vpop.f32.mrb[0].mxu0
  %v4158 = vadd.f32 %v2065, %v4157
  %v4159 = vpop.f32.mrb[0].mxu0
  %v4160 = vpop.f32.mrb[0].mxu0
  %v4161 = vadd.f32 %v2068, %v4160
  %v4162 = vpop.f32.mrb[0].mxu0
  %4163 = vmatprep.mubr.bf16.mxu0 0
  %4164 = vmatmul.mubr.bf16.gmra.mrb[0].mxu0 %v3473
  %v4165 = vpop.f32.mrb[0].mxu0
  %v4166 = vadd.f32 %v2073, %v4165
  %v4167 = vpop.f32.mrb[0].mxu0
  %v4168 = vpop.f32.mrb[0].mxu0
  %v4169 = vadd.f32 %v2076, %v4168
  %v4170 = vpop.f32.mrb[0].mxu0
  %4171 = vmatprep.mubr.bf16.mxu0 0
  %4172 = vmatmul.mubr.bf16.gmra.mrb[0].mxu0 %v3476
  %v4173 = vpop.f32.mrb[0].mxu0
  %v4174 = vadd.f32 %v2081, %v4173
  %v4175 = vpop.f32.mrb[0].mxu0
  %v4176 = vpop.f32.mrb[0].mxu0
  %v4177 = vadd.f32 %v2084, %v4176
  %v4178 = vpop.f32.mrb[0].mxu0
  %4179 = vmatprep.mubr.bf16.mxu0 0
  %4180 = vmatmul.mubr.bf16.gmra.mrb[0].mxu0 %v3479
  %v4181 = vpop.f32.mrb[0].mxu0
  %v4182 = vadd.f32 %v2089, %v4181
  %v4183 = vpop.f32.mrb[0].mxu0
  %v4184 = vpop.f32.mrb[0].mxu0
  %v4185 = vadd.f32 %v2092, %v4184
  %v4186 = vpop.f32.mrb[0].mxu0
  %4187 = vmatprep.mubr.bf16.mxu0 0
  %4188 = vmatmul.mubr.bf16.gmra.mrb[0].mxu0 %v3482
  %v4189 = vpop.f32.mrb[0].mxu0
  %v4190 = vadd.f32 %v2097, %v4189
  %v4191 = vpop.f32.mrb[0].mxu0
  %v4192 = vpop.f32.mrb[0].mxu0
  %v4193 = vadd.f32 %v2100, %v4192
  %v4194 = vpop.f32.mrb[0].mxu0
  %4195 = vmatprep.mubr.bf16.mxu0 0
  %4196 = vmatmul.mubr.bf16.gmra.mrb[0].mxu0 %v3485
  %v4197 = vpop.f32.mrb[0].mxu0
  %v4198 = vadd.f32 %v2105, %v4197
  %v4199 = vpop.f32.mrb[0].mxu0
  %v4200 = vpop.f32.mrb[0].mxu0
  %v4201 = vadd.f32 %v2108, %v4200
  %v4202 = vpop.f32.mrb[0].mxu0
  %4203 = vmatprep.mubr.bf16.mxu0 0
  %4204 = vmatmul.mubr.bf16.gmra.mrb[0].mxu0 %v3488
  %v4205 = vpop.f32.mrb[0].mxu0
  %v4206 = vadd.f32 %v2113, %v4205
  %v4207 = vpop.f32.mrb[0].mxu0
  %v4208 = vpop.f32.mrb[0].mxu0
  %v4209 = vadd.f32 %v2116, %v4208
  %v4210 = vpop.f32.mrb[0].mxu0
  %4211 = vmatprep.mubr.bf16.mxu0 0
  %4212 = vmatmul.mubr.bf16.gmra.mrb[0].mxu0 %v3491
  %v4213 = vpop.f32.mrb[0].mxu0
  %v4214 = vadd.f32 %v2121, %v4213
  %v4215 = vpop.f32.mrb[0].mxu0
  %v4216 = vpop.f32.mrb[0].mxu0
  %v4217 = vadd.f32 %v2124, %v4216
  %v4218 = vpop.f32.mrb[0].mxu0
  %4219 = vmatprep.mubr.bf16.mxu0 0
  %4220 = vmatmul.mubr.bf16.gmra.mrb[0].mxu0 %v3494
  %v4221 = vpop.f32.mrb[0].mxu0
  %v4222 = vadd.f32 %v2129, %v4221
  %v4223 = vpop.f32.mrb[0].mxu0
  %v4224 = vpop.f32.mrb[0].mxu0
  %v4225 = vadd.f32 %v2132, %v4224
  %v4226 = vpop.f32.mrb[0].mxu0
  %4227 = vmatprep.mubr.bf16.mxu0 0
  %4228 = vmatmul.mubr.bf16.gmra.mrb[0].mxu0 %v3497
  %v4229 = vpop.f32.mrb[0].mxu0
  %v4230 = vadd.f32 %v2137, %v4229
  %v4231 = vpop.f32.mrb[0].mxu0
  %v4232 = vpop.f32.mrb[0].mxu0
  %v4233 = vadd.f32 %v2140, %v4232
  %v4234 = vpop.f32.mrb[0].mxu0
  %4235 = vmatprep.mubr.bf16.mxu0 0
  %4236 = vmatmul.mubr.bf16.gmra.mrb[0].mxu0 %v3500
  %v4237 = vpop.f32.mrb[0].mxu0
  %v4238 = vadd.f32 %v2145, %v4237
  %v4239 = vpop.f32.mrb[0].mxu0
  %v4240 = vpop.f32.mrb[0].mxu0
  %v4241 = vadd.f32 %v2148, %v4240
  %v4242 = vpop.f32.mrb[0].mxu0
  %4243 = vmatprep.mubr.bf16.mxu0 0
  %4244 = vmatmul.mubr.bf16.gmra.mrb[0].mxu0 %v3503
  %v4245 = vpop.f32.mrb[0].mxu0
  %v4246 = vadd.f32 %v2153, %v4245
  %v4247 = vpop.f32.mrb[0].mxu0
  %v4248 = vpop.f32.mrb[0].mxu0
  %v4249 = vadd.f32 %v2156, %v4248
  %v4250 = vpop.f32.mrb[0].mxu0
  %4251 = vmatprep.mubr.bf16.mxu0 0
  %4252 = vmatmul.mubr.bf16.gmra.mrb[0].mxu0 %v3506
  %v4253 = vpop.f32.mrb[0].mxu0
  %v4254 = vadd.f32 %v2161, %v4253
  %v4255 = vpop.f32.mrb[0].mxu0
  %v4256 = vpop.f32.mrb[0].mxu0
  %v4257 = vadd.f32 %v2164, %v4256
  %v4258 = vpop.f32.mrb[0].mxu0
  %4259 = vmatprep.mubr.bf16.mxu0 0
  %4260 = vmatmul.mubr.bf16.gmra.mrb[0].mxu0 %v3509
  %v4261 = vpop.f32.mrb[0].mxu0
  %v4262 = vadd.f32 %v2169, %v4261
  %v4263 = vpop.f32.mrb[0].mxu0
  %v4264 = vpop.f32.mrb[0].mxu0
  %v4265 = vadd.f32 %v2172, %v4264
  %v4266 = vpop.f32.mrb[0].mxu0
  %4267 = vmatprep.mubr.bf16.mxu0 0
  %4268 = vmatmul.mubr.bf16.gmra.mrb[0].mxu0 %v3512
  %v4269 = vpop.f32.mrb[0].mxu0
  %v4270 = vadd.f32 %v2177, %v4269
  %v4271 = vpop.f32.mrb[0].mxu0
  %v4272 = vpop.f32.mrb[0].mxu0
  %v4273 = vadd.f32 %v2180, %v4272
  %v4274 = vpop.f32.mrb[0].mxu0
  %4275 = vmatprep.mubr.bf16.mxu0 0
  %4276 = vmatmul.mubr.bf16.gmra.mrb[0].mxu0 %v3515
  %v4277 = vpop.f32.mrb[0].mxu0
  %v4278 = vadd.f32 %v2185, %v4277
  %v4279 = vpop.f32.mrb[0].mxu0
  %v4280 = vpop.f32.mrb[0].mxu0
  %v4281 = vadd.f32 %v2188, %v4280
  %v4282 = vpop.f32.mrb[0].mxu0
  %4283 = vmatprep.mubr.bf16.mxu0 0
  %4284 = vmatmul.mubr.bf16.gmra.mrb[0].mxu0 %v3518
  %v4285 = vpop.f32.mrb[0].mxu0
  %v4286 = vadd.f32 %v2193, %v4285
  %v4287 = vpop.f32.mrb[0].mxu0
  %v4288 = vpop.f32.mrb[0].mxu0
  %v4289 = vadd.f32 %v2196, %v4288
  %v4290 = vpop.f32.mrb[0].mxu0
  %4291 = vmatprep.mubr.bf16.mxu0 0
  %4292 = vmatmul.mubr.bf16.gmra.mrb[0].mxu0 %v3521
  %v4293 = vpop.f32.mrb[0].mxu0
  %v4294 = vadd.f32 %v2201, %v4293
  %v4295 = vpop.f32.mrb[0].mxu0
  %v4296 = vpop.f32.mrb[0].mxu0
  %v4297 = vadd.f32 %v2204, %v4296
  %v4298 = vpop.f32.mrb[0].mxu0
  %4299 = vmatprep.mubr.bf16.mxu0 0
  %4300 = vmatmul.mubr.bf16.gmra.mrb[0].mxu0 %v3524
  %v4301 = vpop.f32.mrb[0].mxu0
  %v4302 = vadd.f32 %v2209, %v4301
  %v4303 = vpop.f32.mrb[0].mxu0
  %v4304 = vpop.f32.mrb[0].mxu0
  %v4305 = vadd.f32 %v2212, %v4304
  %v4306 = vpop.f32.mrb[0].mxu0
  %4307 = vmatprep.mubr.bf16.mxu0 0
  %4308 = vmatmul.mubr.bf16.gmra.mrb[0].mxu0 %v3527
  %v4309 = vpop.f32.mrb[0].mxu0
  %v4310 = vadd.f32 %v2217, %v4309
  %v4311 = vpop.f32.mrb[0].mxu0
  %v4312 = vpop.f32.mrb[0].mxu0
  %v4313 = vadd.f32 %v2220, %v4312
  %v4314 = vpop.f32.mrb[0].mxu0
  %4315 = vmatprep.mubr.bf16.mxu0 0
  %4316 = vmatmul.mubr.bf16.gmra.mrb[0].mxu0 %v3530
  %v4317 = vpop.f32.mrb[0].mxu0
  %v4318 = vadd.f32 %v2225, %v4317
  %v4319 = vpop.f32.mrb[0].mxu0
  %v4320 = vpop.f32.mrb[0].mxu0
  %v4321 = vadd.f32 %v2228, %v4320
  %v4322 = vpop.f32.mrb[0].mxu0
  %4323 = vmatprep.mubr.bf16.mxu0 0
  %4324 = vmatmul.mubr.bf16.gmra.mrb[0].mxu0 %v3533
  %v4325 = vpop.f32.mrb[0].mxu0
  %v4326 = vadd.f32 %v2233, %v4325
  %v4327 = vpop.f32.mrb[0].mxu0
  %v4328 = vpop.f32.mrb[0].mxu0
  %v4329 = vadd.f32 %v2236, %v4328
  %v4330 = vpop.f32.mrb[0].mxu0
  %4331 = vmatprep.mubr.bf16.mxu0 0
  %4332 = vmatmul.mubr.bf16.gmra.mrb[0].mxu0 %v3536
  %v4333 = vpop.f32.mrb[0].mxu0
  %v4334 = vadd.f32 %v2241, %v4333
  %v4335 = vpop.f32.mrb[0].mxu0
  %v4336 = vpop.f32.mrb[0].mxu0
  %v4337 = vadd.f32 %v2244, %v4336
  %v4338 = vpop.f32.mrb[0].mxu0
  %4339 = vmatprep.mubr.bf16.mxu0 0
  %4340 = vmatmul.mubr.bf16.gmra.mrb[0].mxu0 %v3539
  %v4341 = vpop.f32.mrb[0].mxu0
  %v4342 = vadd.f32 %v2249, %v4341
  %v4343 = vpop.f32.mrb[0].mxu0
  %v4344 = vpop.f32.mrb[0].mxu0
  %v4345 = vadd.f32 %v2252, %v4344
  %v4346 = vpop.f32.mrb[0].mxu0
  %4347 = vmatprep.mubr.bf16.mxu0 0
  %4348 = vmatmul.mubr.bf16.gmra.mrb[0].mxu0 %v3542
  %v4349 = vpop.f32.mrb[0].mxu0
  %v4350 = vadd.f32 %v2257, %v4349
  %v4351 = vpop.f32.mrb[0].mxu0
  %v4352 = vpop.f32.mrb[0].mxu0
  %v4353 = vadd.f32 %v2260, %v4352
  %v4354 = vpop.f32.mrb[0].mxu0
  %4355 = vmatprep.mubr.bf16.mxu0 0
  %4356 = vmatmul.mubr.bf16.gmra.mrb[0].mxu0 %v3545
  %v4357 = vpop.f32.mrb[0].mxu0
  %v4358 = vadd.f32 %v2265, %v4357
  %v4359 = vpop.f32.mrb[0].mxu0
  %v4360 = vpop.f32.mrb[0].mxu0
  %v4361 = vadd.f32 %v2268, %v4360
  %v4362 = vpop.f32.mrb[0].mxu0
  %4363 = vmatprep.mubr.bf16.mxu0 0
  %4364 = vmatmul.mubr.bf16.gmra.mrb[0].mxu0 %v3548
  %v4365 = vpop.f32.mrb[0].mxu0
  %v4366 = vadd.f32 %v2273, %v4365
  %v4367 = vpop.f32.mrb[0].mxu0
  %v4368 = vpop.f32.mrb[0].mxu0
  %v4369 = vadd.f32 %v2276, %v4368
  %v4370 = vpop.f32.mrb[0].mxu0
  %4371 = vmatprep.mubr.bf16.mxu0 0
  %4372 = vmatmul.mubr.bf16.gmra.mrb[0].mxu0 %v3551
  %v4373 = vpop.f32.mrb[0].mxu0
  %v4374 = vadd.f32 %v2281, %v4373
  %v4375 = vpop.f32.mrb[0].mxu0
  %v4376 = vpop.f32.mrb[0].mxu0
  %v4377 = vadd.f32 %v2284, %v4376
  %v4378 = vpop.f32.mrb[0].mxu0
  %4379 = vmatprep.mubr.bf16.mxu0 0
  %4380 = vmatmul.mubr.bf16.gmra.mrb[0].mxu0 %v3554
  %v4381 = vpop.f32.mrb[0].mxu0
  %v4382 = vadd.f32 %v2289, %v4381
  %v4383 = vpop.f32.mrb[0].mxu0
  %v4384 = vpop.f32.mrb[0].mxu0
  %v4385 = vadd.f32 %v2292, %v4384
  %v4386 = vpop.f32.mrb[0].mxu0
  %4387 = vmatprep.mubr.bf16.mxu0 0
  %4388 = vmatmul.mubr.bf16.gmra.mrb[0].mxu0 %v3557
  %v4389 = vpop.f32.mrb[0].mxu0
  %v4390 = vadd.f32 %v2297, %v4389
  %v4391 = vpop.f32.mrb[0].mxu0
  %v4392 = vpop.f32.mrb[0].mxu0
  %v4393 = vadd.f32 %v2300, %v4392
  %v4394 = vpop.f32.mrb[0].mxu0
  %4395 = vmatprep.mubr.bf16.mxu0 0
  %4396 = vmatmul.mubr.bf16.gmra.mrb[0].mxu0 %v3560
  %v4397 = vpop.f32.mrb[0].mxu0
  %v4398 = vadd.f32 %v2305, %v4397
  %v4399 = vpop.f32.mrb[0].mxu0
  %v4400 = vpop.f32.mrb[0].mxu0
  %v4401 = vadd.f32 %v2308, %v4400
  %v4402 = vpop.f32.mrb[0].mxu0
  %4403 = vmatprep.mubr.bf16.mxu0 0
  %4404 = vmatmul.mubr.bf16.gmra.mrb[0].mxu0 %v3563
  %v4405 = vpop.f32.mrb[0].mxu0
  %v4406 = vadd.f32 %v2313, %v4405
  %v4407 = vpop.f32.mrb[0].mxu0
  %v4408 = vpop.f32.mrb[0].mxu0
  %v4409 = vadd.f32 %v2316, %v4408
  %v4410 = vpop.f32.mrb[0].mxu0
  %4411 = vmatprep.mubr.bf16.mxu0 0
  %4412 = vmatmul.mubr.bf16.gmra.mrb[0].mxu0 %v3566
  %v4413 = vpop.f32.mrb[0].mxu0
  %v4414 = vadd.f32 %v2321, %v4413
  %v4415 = vpop.f32.mrb[0].mxu0
  %v4416 = vpop.f32.mrb[0].mxu0
  %v4417 = vadd.f32 %v2324, %v4416
  %v4418 = vpop.f32.mrb[0].mxu0
  %4419 = vmatprep.mubr.bf16.mxu0 0
  %4420 = vmatmul.mubr.bf16.gmra.mrb[0].mxu0 %v3569
  %v4421 = vpop.f32.mrb[0].mxu0
  %v4422 = vadd.f32 %v2329, %v4421
  %v4423 = vpop.f32.mrb[0].mxu0
  %v4424 = vpop.f32.mrb[0].mxu0
  %v4425 = vadd.f32 %v2332, %v4424
  %v4426 = vpop.f32.mrb[0].mxu0
  %4427 = vmatprep.mubr.bf16.mxu0 0
  %4428 = vmatmul.mubr.bf16.gmra.mrb[0].mxu0 %v3572
  %v4429 = vpop.f32.mrb[0].mxu0
  %v4430 = vadd.f32 %v2337, %v4429
  %v4431 = vpop.f32.mrb[0].mxu0
  %v4432 = vpop.f32.mrb[0].mxu0
  %v4433 = vadd.f32 %v2340, %v4432
  %v4434 = vpop.f32.mrb[0].mxu0
  %4435 = vmatprep.mubr.bf16.mxu0 0
  %4436 = vmatmul.mubr.bf16.gmra.mrb[0].mxu0 %v3575
  %v4437 = vpop.f32.mrb[0].mxu0
  %v4438 = vadd.f32 %v2345, %v4437
  %v4439 = vpop.f32.mrb[0].mxu0
  %v4440 = vpop.f32.mrb[0].mxu0
  %v4441 = vadd.f32 %v2348, %v4440
  %v4442 = vpop.f32.mrb[0].mxu0
  %4443 = vmatprep.mubr.bf16.mxu0 0
  %4444 = vmatmul.mubr.bf16.gmra.mrb[0].mxu0 %v3578
  %v4445 = vpop.f32.mrb[0].mxu0
  %v4446 = vadd.f32 %v2353, %v4445
  %v4447 = vpop.f32.mrb[0].mxu0
  %v4448 = vpop.f32.mrb[0].mxu0
  %v4449 = vadd.f32 %v2356, %v4448
  %v4450 = vpop.f32.mrb[0].mxu0
  %4451 = vmatprep.mubr.bf16.mxu0 0
  %4452 = vmatmul.mubr.bf16.gmra.mrb[0].mxu0 %v3581
  %v4453 = vpop.f32.mrb[0].mxu0
  %v4454 = vadd.f32 %v2361, %v4453
  %v4455 = vpop.f32.mrb[0].mxu0
  %v4456 = vpop.f32.mrb[0].mxu0
  %v4457 = vadd.f32 %v2364, %v4456
  %v4458 = vpop.f32.mrb[0].mxu0
  %4459 = vmatprep.mubr.bf16.mxu0 0
  %4460 = vmatmul.mubr.bf16.gmra.mrb[0].mxu0 %v3584
  %v4461 = vpop.f32.mrb[0].mxu0
  %v4462 = vadd.f32 %v2369, %v4461
  %v4463 = vpop.f32.mrb[0].mxu0
  %v4464 = vpop.f32.mrb[0].mxu0
  %v4465 = vadd.f32 %v2372, %v4464
  %v4466 = vpop.f32.mrb[0].mxu0
  %4467 = vmatprep.mubr.bf16.mxu0 0
  %4468 = vmatmul.mubr.bf16.gmra.mrb[0].mxu0 %v3587
  %v4469 = vpop.f32.mrb[0].mxu0
  %v4470 = vadd.f32 %v2377, %v4469
  %v4471 = vpop.f32.mrb[0].mxu0
  %v4472 = vpop.f32.mrb[0].mxu0
  %v4473 = vadd.f32 %v2380, %v4472
  %v4474 = vpop.f32.mrb[0].mxu0
  %4475 = vmatprep.mubr.bf16.mxu0 0
  %4476 = vmatmul.mubr.bf16.gmra.mrb[0].mxu0 %v3590
  %v4477 = vpop.f32.mrb[0].mxu0
  %v4478 = vadd.f32 %v2385, %v4477
  %v4479 = vpop.f32.mrb[0].mxu0
  %v4480 = vpop.f32.mrb[0].mxu0
  %v4481 = vadd.f32 %v2388, %v4480
  %v4482 = vpop.f32.mrb[0].mxu0
  %4483 = vmatprep.mubr.bf16.mxu0 0
  %4484 = vmatmul.mubr.bf16.gmra.mrb[0].mxu0 %v3593
  %v4485 = vpop.f32.mrb[0].mxu0
  %v4486 = vadd.f32 %v2393, %v4485
  %v4487 = vpop.f32.mrb[0].mxu0
  %v4488 = vpop.f32.mrb[0].mxu0
  %v4489 = vadd.f32 %v2396, %v4488
  %v4490 = vpop.f32.mrb[0].mxu0
  %4491 = vmatprep.mubr.bf16.mxu0 0
  %4492 = vmatmul.mubr.bf16.gmra.mrb[0].mxu0 %v3596
  %v4493 = vpop.f32.mrb[0].mxu0
  %v4494 = vadd.f32 %v2401, %v4493
  %v4495 = vpop.f32.mrb[0].mxu0
  %v4496 = vpop.f32.mrb[0].mxu0
  %v4497 = vadd.f32 %v2404, %v4496
  %v4498 = vpop.f32.mrb[0].mxu0
  %4499 = vmatprep.mubr.bf16.mxu0 0
  %4500 = vmatmul.mubr.bf16.gmra.mrb[0].mxu0 %v3599
  %v4501 = vpop.f32.mrb[0].mxu0
  %v4502 = vadd.f32 %v2409, %v4501
  %v4503 = vpop.f32.mrb[0].mxu0
  %v4504 = vpop.f32.mrb[0].mxu0
  %v4505 = vadd.f32 %v2412, %v4504
  %v4506 = vpop.f32.mrb[0].mxu0
  %4507 = vmatprep.mubr.bf16.mxu0 0
  %4508 = vmatmul.mubr.bf16.gmra.mrb[0].mxu0 %v3602
  %v4509 = vpop.f32.mrb[0].mxu0
  %v4510 = vadd.f32 %v2417, %v4509
  %v4511 = vpop.f32.mrb[0].mxu0
  %v4512 = vpop.f32.mrb[0].mxu0
  %v4513 = vadd.f32 %v2420, %v4512
  %v4514 = vpop.f32.mrb[0].mxu0
  %4515 = vmatprep.mubr.bf16.mxu0 0
  %4516 = vmatmul.mubr.bf16.gmra.mrb[0].mxu0 %v3605
  %v4517 = vpop.f32.mrb[0].mxu0
  %v4518 = vadd.f32 %v2425, %v4517
  %v4519 = vpop.f32.mrb[0].mxu0
  %v4520 = vpop.f32.mrb[0].mxu0
  %v4521 = vadd.f32 %v2428, %v4520
  %v4522 = vpop.f32.mrb[0].mxu0
  %4523 = vmatprep.mubr.bf16.mxu0 0
  %4524 = vmatmul.mubr.bf16.gmra.mrb[0].mxu0 %v3608
  %v4525 = vpop.f32.mrb[0].mxu0
  %v4526 = vadd.f32 %v2433, %v4525
  %v4527 = vpop.f32.mrb[0].mxu0
  %v4528 = vpop.f32.mrb[0].mxu0
  %v4529 = vadd.f32 %v2436, %v4528
  %v4530 = vpop.f32.mrb[0].mxu0
  %4531 = vmatprep.mubr.bf16.mxu0 0
  %4532 = vmatmul.mubr.bf16.gmra.mrb[0].mxu0 %v3611
  %v4533 = vpop.f32.mrb[0].mxu0
  %v4534 = vadd.f32 %v2441, %v4533
  %v4535 = vpop.f32.mrb[0].mxu0
  %v4536 = vpop.f32.mrb[0].mxu0
  %v4537 = vadd.f32 %v2444, %v4536
  %v4538 = vpop.f32.mrb[0].mxu0
  %4539 = vmatprep.mubr.bf16.mxu0 0
  %4540 = vmatmul.mubr.bf16.gmra.mrb[0].mxu0 %v3614
  %v4541 = vpop.f32.mrb[0].mxu0
  %v4542 = vadd.f32 %v2449, %v4541
  %v4543 = vpop.f32.mrb[0].mxu0
  %v4544 = vpop.f32.mrb[0].mxu0
  %v4545 = vadd.f32 %v2452, %v4544
  %v4546 = vpop.f32.mrb[0].mxu0
  %4547 = vmatprep.mubr.bf16.mxu0 0
  %4548 = vmatmul.mubr.bf16.gmra.mrb[0].mxu0 %v3617
  %v4549 = vpop.f32.mrb[0].mxu0
  %v4550 = vadd.f32 %v2457, %v4549
  %v4551 = vpop.f32.mrb[0].mxu0
  %v4552 = vpop.f32.mrb[0].mxu0
  %v4553 = vadd.f32 %v2460, %v4552
  %v4554 = vpop.f32.mrb[0].mxu0
  %4555 = vmatprep.mubr.bf16.mxu0 0
  %4556 = vmatmul.mubr.bf16.gmra.mrb[0].mxu0 %v3620
  %v4557 = vpop.f32.mrb[0].mxu0
  %v4558 = vadd.f32 %v2465, %v4557
  %v4559 = vpop.f32.mrb[0].mxu0
  %v4560 = vpop.f32.mrb[0].mxu0
  %v4561 = vadd.f32 %v2468, %v4560
  %v4562 = vpop.f32.mrb[0].mxu0
  %4563 = vmatprep.mubr.bf16.mxu0 0
  %4564 = vmatmul.mubr.bf16.gmra.mrb[0].mxu0 %v3623
  %v4565 = vpop.f32.mrb[0].mxu0
  %v4566 = vadd.f32 %v2473, %v4565
  %v4567 = vpop.f32.mrb[0].mxu0
  %v4568 = vpop.f32.mrb[0].mxu0
  %v4569 = vadd.f32 %v2476, %v4568
  %v4570 = vpop.f32.mrb[0].mxu0
  %4571 = vmatprep.mubr.bf16.mxu0 0
  %4572 = vmatmul.mubr.bf16.gmra.mrb[0].mxu0 %v3626
  %v4573 = vpop.f32.mrb[0].mxu0
  %v4574 = vadd.f32 %v2481, %v4573
  %v4575 = vpop.f32.mrb[0].mxu0
  %v4576 = vpop.f32.mrb[0].mxu0
  %v4577 = vadd.f32 %v2484, %v4576
  %v4578 = vpop.f32.mrb[0].mxu0
  %4579 = vmatprep.mubr.bf16.mxu0 0
  %4580 = vmatmul.mubr.bf16.gmra.mrb[0].mxu0 %v3629
  %v4581 = vpop.f32.mrb[0].mxu0
  %v4582 = vadd.f32 %v2489, %v4581
  %v4583 = vpop.f32.mrb[0].mxu0
  %v4584 = vpop.f32.mrb[0].mxu0
  %v4585 = vadd.f32 %v2492, %v4584
  %v4586 = vpop.f32.mrb[0].mxu0
  %4587 = vmatprep.mubr.bf16.mxu0 0
  %4588 = vmatmul.mubr.bf16.gmra.mrb[0].mxu0 %v3632
  %v4589 = vpop.f32.mrb[0].mxu0
  %v4590 = vadd.f32 %v2497, %v4589
  %v4591 = vpop.f32.mrb[0].mxu0
  %v4592 = vpop.f32.mrb[0].mxu0
  %v4593 = vadd.f32 %v2500, %v4592
  %v4594 = vpop.f32.mrb[0].mxu0
  %4595 = vmatprep.mubr.bf16.mxu0 0
  %4596 = vmatmul.mubr.bf16.gmra.mrb[0].mxu0 %v3635
  %v4597 = vpop.f32.mrb[0].mxu0
  %v4598 = vadd.f32 %v2505, %v4597
  %v4599 = vpop.f32.mrb[0].mxu0
  %v4600 = vpop.f32.mrb[0].mxu0
  %v4601 = vadd.f32 %v2508, %v4600
  %v4602 = vpop.f32.mrb[0].mxu0
  %4603 = vmatprep.mubr.bf16.mxu0 0
  %4604 = vmatmul.mubr.bf16.gmra.mrb[0].mxu0 %v3638
  %v4605 = vpop.f32.mrb[0].mxu0
  %v4606 = vadd.f32 %v2513, %v4605
  %v4607 = vpop.f32.mrb[0].mxu0
  %v4608 = vpop.f32.mrb[0].mxu0
  %v4609 = vadd.f32 %v2516, %v4608
  %v4610 = vpop.f32.mrb[0].mxu0
  %4611 = vmatprep.mubr.bf16.mxu0 0
  %4612 = vmatmul.mubr.bf16.gmra.mrb[0].mxu0 %v3641
  %v4613 = vpop.f32.mrb[0].mxu0
  %v4614 = vadd.f32 %v2521, %v4613
  %v4615 = vpop.f32.mrb[0].mxu0
  %v4616 = vpop.f32.mrb[0].mxu0
  %v4617 = vadd.f32 %v2524, %v4616
  %v4618 = vpop.f32.mrb[0].mxu0
  %4619 = vmatprep.mubr.bf16.mxu0 0
  %4620 = vmatmul.mubr.bf16.gmra.mrb[0].mxu0 %v3644
  %v4621 = vpop.f32.mrb[0].mxu0
  %v4622 = vadd.f32 %v2529, %v4621
  %v4623 = vpop.f32.mrb[0].mxu0
  %v4624 = vpop.f32.mrb[0].mxu0
  %v4625 = vadd.f32 %v2532, %v4624
  %v4626 = vpop.f32.mrb[0].mxu0
  %4627 = vmatprep.mubr.bf16.mxu0 0
  %4628 = vmatmul.mubr.bf16.gmra.mrb[0].mxu0 %v3647
  %v4629 = vpop.f32.mrb[0].mxu0
  %v4630 = vadd.f32 %v2537, %v4629
  %v4631 = vpop.f32.mrb[0].mxu0
  %v4632 = vpop.f32.mrb[0].mxu0
  %v4633 = vadd.f32 %v2540, %v4632
  %v4634 = vpop.f32.mrb[0].mxu0
  %4635 = vmatprep.mubr.bf16.mxu0 0
  %4636 = vmatmul.mubr.bf16.gmra.mrb[0].mxu0 %v3650
  %v4637 = vpop.f32.mrb[0].mxu0
  %v4638 = vadd.f32 %v2545, %v4637
  %v4639 = vpop.f32.mrb[0].mxu0
  %v4640 = vpop.f32.mrb[0].mxu0
  %v4641 = vadd.f32 %v2548, %v4640
  %v4642 = vpop.f32.mrb[0].mxu0
  %4643 = vmatprep.mubr.bf16.mxu0 0
  %4644 = vmatmul.mubr.bf16.gmra.mrb[0].mxu0 %v3653
  %v4645 = vpop.f32.mrb[0].mxu0
  %v4646 = vadd.f32 %v2553, %v4645
  %v4647 = vpop.f32.mrb[0].mxu0
  %v4648 = vpop.f32.mrb[0].mxu0
  %v4649 = vadd.f32 %v2556, %v4648
  %v4650 = vpop.f32.mrb[0].mxu0
  %4651 = vmatprep.mubr.bf16.mxu0 0
  %4652 = vmatmul.mubr.bf16.gmra.mrb[0].mxu0 %v3656
  %v4653 = vpop.f32.mrb[0].mxu0
  %v4654 = vadd.f32 %v2561, %v4653
  %v4655 = vpop.f32.mrb[0].mxu0
  %v4656 = vpop.f32.mrb[0].mxu0
  %v4657 = vadd.f32 %v2564, %v4656
  %v4658 = vpop.f32.mrb[0].mxu0
  %4659 = vmatprep.mubr.bf16.mxu0 0
  %4660 = vmatmul.mubr.bf16.gmra.mrb[0].mxu0 %v3659
  %v4661 = vpop.f32.mrb[0].mxu0
  %v4662 = vadd.f32 %v2569, %v4661
  %v4663 = vpop.f32.mrb[0].mxu0
  %v4664 = vpop.f32.mrb[0].mxu0
  %v4665 = vadd.f32 %v2572, %v4664
  %v4666 = vpop.f32.mrb[0].mxu0
  %4667 = vmatprep.mubr.bf16.mxu0 0
  %4668 = vmatmul.mubr.bf16.gmra.mrb[0].mxu0 %v3662
  %v4669 = vpop.f32.mrb[0].mxu0
  %v4670 = vadd.f32 %v2577, %v4669
  %v4671 = vpop.f32.mrb[0].mxu0
  %v4672 = vpop.f32.mrb[0].mxu0
  %v4673 = vadd.f32 %v2580, %v4672
  %v4674 = vpop.f32.mrb[0].mxu0
  %4675 = vmatprep.mubr.bf16.mxu0 0
  %4676 = vmatmul.mubr.bf16.gmra.mrb[0].mxu0 %v3665
  %v4677 = vpop.f32.mrb[0].mxu0
  %v4678 = vadd.f32 %v2585, %v4677
  %v4679 = vpop.f32.mrb[0].mxu0
  %v4680 = vpop.f32.mrb[0].mxu0
  %v4681 = vadd.f32 %v2588, %v4680
  %v4682 = vpop.f32.mrb[0].mxu0
  %4683 = vmatprep.mubr.bf16.mxu0 0
  %4684 = vmatmul.mubr.bf16.gmra.mrb[0].mxu0 %v3668
  %v4685 = vpop.f32.mrb[0].mxu0
  %v4686 = vadd.f32 %v2593, %v4685
  %v4687 = vpop.f32.mrb[0].mxu0
  %v4688 = vpop.f32.mrb[0].mxu0
  %v4689 = vadd.f32 %v2596, %v4688
  %v4690 = vpop.f32.mrb[0].mxu0
  %4691 = vmatprep.mubr.bf16.mxu0 0
  %4692 = vmatmul.mubr.bf16.gmra.mrb[0].mxu0 %v3671
  %v4693 = vpop.f32.mrb[0].mxu0
  %v4694 = vadd.f32 %v2601, %v4693
  %v4695 = vpop.f32.mrb[0].mxu0
  %v4696 = vpop.f32.mrb[0].mxu0
  %v4697 = vadd.f32 %v2604, %v4696
  %v4698 = vpop.f32.mrb[0].mxu0
  %4699 = vmatprep.mubr.bf16.mxu0 0
  %4700 = vmatmul.mubr.bf16.gmra.mrb[0].mxu0 %v3674
  %v4701 = vpop.f32.mrb[0].mxu0
  %v4702 = vadd.f32 %v2609, %v4701
  %v4703 = vpop.f32.mrb[0].mxu0
  %v4704 = vpop.f32.mrb[0].mxu0
  %v4705 = vadd.f32 %v2612, %v4704
  %v4706 = vpop.f32.mrb[0].mxu0
  %4707 = vmatprep.mubr.bf16.mxu0 0
  %4708 = vmatmul.mubr.bf16.gmra.mrb[0].mxu0 %v3677
  %v4709 = vpop.f32.mrb[0].mxu0
  %v4710 = vadd.f32 %v2617, %v4709
  %v4711 = vpop.f32.mrb[0].mxu0
  %v4712 = vpop.f32.mrb[0].mxu0
  %v4713 = vadd.f32 %v2620, %v4712
  %v4714 = vpop.f32.mrb[0].mxu0
  %4715 = vmatprep.mubr.bf16.mxu0 0
  %4716 = vmatmul.mubr.bf16.gmra.mrb[0].mxu0 %v3680
  %v4717 = vpop.f32.mrb[0].mxu0
  %v4718 = vadd.f32 %v2625, %v4717
  %v4719 = vpop.f32.mrb[0].mxu0
  %v4720 = vpop.f32.mrb[0].mxu0
  %v4721 = vadd.f32 %v2628, %v4720
  %v4722 = vpop.f32.mrb[0].mxu0
  %4723 = vmatprep.mubr.bf16.mxu0 0
  %4724 = vmatmul.mubr.bf16.gmra.mrb[0].mxu0 %v3683
  %v4725 = vpop.f32.mrb[0].mxu0
  %v4726 = vadd.f32 %v2633, %v4725
  %v4727 = vpop.f32.mrb[0].mxu0
  %v4728 = vpop.f32.mrb[0].mxu0
  %v4729 = vadd.f32 %v2636, %v4728
  %v4730 = vpop.f32.mrb[0].mxu0
  %4731 = vmatprep.mubr.bf16.mxu0 0
  %4732 = vmatmul.mubr.bf16.gmra.mrb[0].mxu0 %v3686
  %v4733 = vpop.f32.mrb[0].mxu0
  %v4734 = vadd.f32 %v2641, %v4733
  %v4735 = vpop.f32.mrb[0].mxu0
  %v4736 = vpop.f32.mrb[0].mxu0
  %v4737 = vadd.f32 %v2644, %v4736
  %v4738 = vpop.f32.mrb[0].mxu0
  %4739 = vmatprep.mubr.bf16.mxu0 0
  %4740 = vmatmul.mubr.bf16.gmra.mrb[0].mxu0 %v3689
  %v4741 = vpop.f32.mrb[0].mxu0
  %v4742 = vadd.f32 %v2649, %v4741
  %v4743 = vpop.f32.mrb[0].mxu0
  %v4744 = vpop.f32.mrb[0].mxu0
  %v4745 = vadd.f32 %v2652, %v4744
  %v4746 = vpop.f32.mrb[0].mxu0
  %4747 = vdwg.mxu0
  %v4748 = vld [vmem:[%s4] sm:$0x1]
  %v4750 = vlaneseq
  %v4751 = vshrl.u32 %v4750, 7
  %v4752 = vsub.s32 0, %v4751
  %v4753 = vrot.slane %v4748, %v4752
  %v4755 = vadd.f32 %v3726, %v4753
  %v4756 = vadd.f32 %v3729, %v4753
  %v4757 = vadd.f32 %v3734, %v4753
  %v4758 = vadd.f32 %v3737, %v4753
  %v4759 = vadd.f32 %v3742, %v4753
  %v4760 = vadd.f32 %v3745, %v4753
  %v4761 = vadd.f32 %v3750, %v4753
  %v4762 = vadd.f32 %v3753, %v4753
  %v4763 = vadd.f32 %v3758, %v4753
  %v4764 = vadd.f32 %v3761, %v4753
  %v4765 = vadd.f32 %v3766, %v4753
  %v4766 = vadd.f32 %v3769, %v4753
  %v4767 = vadd.f32 %v3774, %v4753
  %v4768 = vadd.f32 %v3777, %v4753
  %v4769 = vadd.f32 %v3782, %v4753
  %v4770 = vadd.f32 %v3785, %v4753
  %v4771 = vadd.f32 %v3790, %v4753
  %v4772 = vadd.f32 %v3793, %v4753
  %v4773 = vadd.f32 %v3798, %v4753
  %v4774 = vadd.f32 %v3801, %v4753
  %v4775 = vadd.f32 %v3806, %v4753
  %v4776 = vadd.f32 %v3809, %v4753
  %v4777 = vadd.f32 %v3814, %v4753
  %v4778 = vadd.f32 %v3817, %v4753
  %v4779 = vadd.f32 %v3822, %v4753
  %v4780 = vadd.f32 %v3825, %v4753
  %v4781 = vadd.f32 %v3830, %v4753
  %v4782 = vadd.f32 %v3833, %v4753
  %v4783 = vadd.f32 %v3838, %v4753
  %v4784 = vadd.f32 %v3841, %v4753
  %v4785 = vadd.f32 %v3846, %v4753
  %v4786 = vadd.f32 %v3849, %v4753
  %v4787 = vadd.f32 %v3854, %v4753
  %v4788 = vadd.f32 %v3857, %v4753
  %v4789 = vadd.f32 %v3862, %v4753
  %v4790 = vadd.f32 %v3865, %v4753
  %v4791 = vadd.f32 %v3870, %v4753
  %v4792 = vadd.f32 %v3873, %v4753
  %v4793 = vadd.f32 %v3878, %v4753
  %v4794 = vadd.f32 %v3881, %v4753
  %v4795 = vadd.f32 %v3886, %v4753
  %v4796 = vadd.f32 %v3889, %v4753
  %v4797 = vadd.f32 %v3894, %v4753
  %v4798 = vadd.f32 %v3897, %v4753
  %v4799 = vadd.f32 %v3902, %v4753
  %v4800 = vadd.f32 %v3905, %v4753
  %v4801 = vadd.f32 %v3910, %v4753
  %v4802 = vadd.f32 %v3913, %v4753
  %v4803 = vadd.f32 %v3918, %v4753
  %v4804 = vadd.f32 %v3921, %v4753
  %v4805 = vadd.f32 %v3926, %v4753
  %v4806 = vadd.f32 %v3929, %v4753
  %v4807 = vadd.f32 %v3934, %v4753
  %v4808 = vadd.f32 %v3937, %v4753
  %v4809 = vadd.f32 %v3942, %v4753
  %v4810 = vadd.f32 %v3945, %v4753
  %v4811 = vadd.f32 %v3950, %v4753
  %v4812 = vadd.f32 %v3953, %v4753
  %v4813 = vadd.f32 %v3958, %v4753
  %v4814 = vadd.f32 %v3961, %v4753
  %v4815 = vadd.f32 %v3966, %v4753
  %v4816 = vadd.f32 %v3969, %v4753
  %v4817 = vadd.f32 %v3974, %v4753
  %v4818 = vadd.f32 %v3977, %v4753
  %v4819 = vadd.f32 %v3982, %v4753
  %v4820 = vadd.f32 %v3985, %v4753
  %v4821 = vadd.f32 %v3990, %v4753
  %v4822 = vadd.f32 %v3993, %v4753
  %v4823 = vadd.f32 %v3998, %v4753
  %v4824 = vadd.f32 %v4001, %v4753
  %v4825 = vadd.f32 %v4006, %v4753
  %v4826 = vadd.f32 %v4009, %v4753
  %v4827 = vadd.f32 %v4014, %v4753
  %v4828 = vadd.f32 %v4017, %v4753
  %v4829 = vadd.f32 %v4022, %v4753
  %v4830 = vadd.f32 %v4025, %v4753
  %v4831 = vadd.f32 %v4030, %v4753
  %v4832 = vadd.f32 %v4033, %v4753
  %v4833 = vadd.f32 %v4038, %v4753
  %v4834 = vadd.f32 %v4041, %v4753
  %v4835 = vadd.f32 %v4046, %v4753
  %v4836 = vadd.f32 %v4049, %v4753
  %v4837 = vadd.f32 %v4054, %v4753
  %v4838 = vadd.f32 %v4057, %v4753
  %v4839 = vadd.f32 %v4062, %v4753
  %v4840 = vadd.f32 %v4065, %v4753
  %v4841 = vadd.f32 %v4070, %v4753
  %v4842 = vadd.f32 %v4073, %v4753
  %v4843 = vadd.f32 %v4078, %v4753
  %v4844 = vadd.f32 %v4081, %v4753
  %v4845 = vadd.f32 %v4086, %v4753
  %v4846 = vadd.f32 %v4089, %v4753
  %v4847 = vadd.f32 %v4094, %v4753
  %v4848 = vadd.f32 %v4097, %v4753
  %v4849 = vadd.f32 %v4102, %v4753
  %v4850 = vadd.f32 %v4105, %v4753
  %v4851 = vadd.f32 %v4110, %v4753
  %v4852 = vadd.f32 %v4113, %v4753
  %v4853 = vadd.f32 %v4118, %v4753
  %v4854 = vadd.f32 %v4121, %v4753
  %v4855 = vadd.f32 %v4126, %v4753
  %v4856 = vadd.f32 %v4129, %v4753
  %v4857 = vadd.f32 %v4134, %v4753
  %v4858 = vadd.f32 %v4137, %v4753
  %v4859 = vadd.f32 %v4142, %v4753
  %v4860 = vadd.f32 %v4145, %v4753
  %v4861 = vadd.f32 %v4150, %v4753
  %v4862 = vadd.f32 %v4153, %v4753
  %v4863 = vadd.f32 %v4158, %v4753
  %v4864 = vadd.f32 %v4161, %v4753
  %v4865 = vadd.f32 %v4166, %v4753
  %v4866 = vadd.f32 %v4169, %v4753
  %v4867 = vadd.f32 %v4174, %v4753
  %v4868 = vadd.f32 %v4177, %v4753
  %v4869 = vadd.f32 %v4182, %v4753
  %v4870 = vadd.f32 %v4185, %v4753
  %v4871 = vadd.f32 %v4190, %v4753
  %v4872 = vadd.f32 %v4193, %v4753
  %v4873 = vadd.f32 %v4198, %v4753
  %v4874 = vadd.f32 %v4201, %v4753
  %v4875 = vadd.f32 %v4206, %v4753
  %v4876 = vadd.f32 %v4209, %v4753
  %v4877 = vadd.f32 %v4214, %v4753
  %v4878 = vadd.f32 %v4217, %v4753
  %v4879 = vadd.f32 %v4222, %v4753
  %v4880 = vadd.f32 %v4225, %v4753
  %v4881 = vadd.f32 %v4230, %v4753
  %v4882 = vadd.f32 %v4233, %v4753
  %v4883 = vadd.f32 %v4238, %v4753
  %v4884 = vadd.f32 %v4241, %v4753
  %v4885 = vadd.f32 %v4246, %v4753
  %v4886 = vadd.f32 %v4249, %v4753
  %v4887 = vadd.f32 %v4254, %v4753
  %v4888 = vadd.f32 %v4257, %v4753
  %v4889 = vadd.f32 %v4262, %v4753
  %v4890 = vadd.f32 %v4265, %v4753
  %v4891 = vadd.f32 %v4270, %v4753
  %v4892 = vadd.f32 %v4273, %v4753
  %v4893 = vadd.f32 %v4278, %v4753
  %v4894 = vadd.f32 %v4281, %v4753
  %v4895 = vadd.f32 %v4286, %v4753
  %v4896 = vadd.f32 %v4289, %v4753
  %v4897 = vadd.f32 %v4294, %v4753
  %v4898 = vadd.f32 %v4297, %v4753
  %v4899 = vadd.f32 %v4302, %v4753
  %v4900 = vadd.f32 %v4305, %v4753
  %v4901 = vadd.f32 %v4310, %v4753
  %v4902 = vadd.f32 %v4313, %v4753
  %v4903 = vadd.f32 %v4318, %v4753
  %v4904 = vadd.f32 %v4321, %v4753
  %v4905 = vadd.f32 %v4326, %v4753
  %v4906 = vadd.f32 %v4329, %v4753
  %v4907 = vadd.f32 %v4334, %v4753
  %v4908 = vadd.f32 %v4337, %v4753
  %v4909 = vadd.f32 %v4342, %v4753
  %v4910 = vadd.f32 %v4345, %v4753
  %v4911 = vadd.f32 %v4350, %v4753
  %v4912 = vadd.f32 %v4353, %v4753
  %v4913 = vadd.f32 %v4358, %v4753
  %v4914 = vadd.f32 %v4361, %v4753
  %v4915 = vadd.f32 %v4366, %v4753
  %v4916 = vadd.f32 %v4369, %v4753
  %v4917 = vadd.f32 %v4374, %v4753
  %v4918 = vadd.f32 %v4377, %v4753
  %v4919 = vadd.f32 %v4382, %v4753
  %v4920 = vadd.f32 %v4385, %v4753
  %v4921 = vadd.f32 %v4390, %v4753
  %v4922 = vadd.f32 %v4393, %v4753
  %v4923 = vadd.f32 %v4398, %v4753
  %v4924 = vadd.f32 %v4401, %v4753
  %v4925 = vadd.f32 %v4406, %v4753
  %v4926 = vadd.f32 %v4409, %v4753
  %v4927 = vadd.f32 %v4414, %v4753
  %v4928 = vadd.f32 %v4417, %v4753
  %v4929 = vadd.f32 %v4422, %v4753
  %v4930 = vadd.f32 %v4425, %v4753
  %v4931 = vadd.f32 %v4430, %v4753
  %v4932 = vadd.f32 %v4433, %v4753
  %v4933 = vadd.f32 %v4438, %v4753
  %v4934 = vadd.f32 %v4441, %v4753
  %v4935 = vadd.f32 %v4446, %v4753
  %v4936 = vadd.f32 %v4449, %v4753
  %v4937 = vadd.f32 %v4454, %v4753
  %v4938 = vadd.f32 %v4457, %v4753
  %v4939 = vadd.f32 %v4462, %v4753
  %v4940 = vadd.f32 %v4465, %v4753
  %v4941 = vadd.f32 %v4470, %v4753
  %v4942 = vadd.f32 %v4473, %v4753
  %v4943 = vadd.f32 %v4478, %v4753
  %v4944 = vadd.f32 %v4481, %v4753
  %v4945 = vadd.f32 %v4486, %v4753
  %v4946 = vadd.f32 %v4489, %v4753
  %v4947 = vadd.f32 %v4494, %v4753
  %v4948 = vadd.f32 %v4497, %v4753
  %v4949 = vadd.f32 %v4502, %v4753
  %v4950 = vadd.f32 %v4505, %v4753
  %v4951 = vadd.f32 %v4510, %v4753
  %v4952 = vadd.f32 %v4513, %v4753
  %v4953 = vadd.f32 %v4518, %v4753
  %v4954 = vadd.f32 %v4521, %v4753
  %v4955 = vadd.f32 %v4526, %v4753
  %v4956 = vadd.f32 %v4529, %v4753
  %v4957 = vadd.f32 %v4534, %v4753
  %v4958 = vadd.f32 %v4537, %v4753
  %v4959 = vadd.f32 %v4542, %v4753
  %v4960 = vadd.f32 %v4545, %v4753
  %v4961 = vadd.f32 %v4550, %v4753
  %v4962 = vadd.f32 %v4553, %v4753
  %v4963 = vadd.f32 %v4558, %v4753
  %v4964 = vadd.f32 %v4561, %v4753
  %v4965 = vadd.f32 %v4566, %v4753
  %v4966 = vadd.f32 %v4569, %v4753
  %v4967 = vadd.f32 %v4574, %v4753
  %v4968 = vadd.f32 %v4577, %v4753
  %v4969 = vadd.f32 %v4582, %v4753
  %v4970 = vadd.f32 %v4585, %v4753
  %v4971 = vadd.f32 %v4590, %v4753
  %v4972 = vadd.f32 %v4593, %v4753
  %v4973 = vadd.f32 %v4598, %v4753
  %v4974 = vadd.f32 %v4601, %v4753
  %v4975 = vadd.f32 %v4606, %v4753
  %v4976 = vadd.f32 %v4609, %v4753
  %v4977 = vadd.f32 %v4614, %v4753
  %v4978 = vadd.f32 %v4617, %v4753
  %v4979 = vadd.f32 %v4622, %v4753
  %v4980 = vadd.f32 %v4625, %v4753
  %v4981 = vadd.f32 %v4630, %v4753
  %v4982 = vadd.f32 %v4633, %v4753
  %v4983 = vadd.f32 %v4638, %v4753
  %v4984 = vadd.f32 %v4641, %v4753
  %v4985 = vadd.f32 %v4646, %v4753
  %v4986 = vadd.f32 %v4649, %v4753
  %v4987 = vadd.f32 %v4654, %v4753
  %v4988 = vadd.f32 %v4657, %v4753
  %v4989 = vadd.f32 %v4662, %v4753
  %v4990 = vadd.f32 %v4665, %v4753
  %v4991 = vadd.f32 %v4670, %v4753
  %v4992 = vadd.f32 %v4673, %v4753
  %v4993 = vadd.f32 %v4678, %v4753
  %v4994 = vadd.f32 %v4681, %v4753
  %v4995 = vadd.f32 %v4686, %v4753
  %v4996 = vadd.f32 %v4689, %v4753
  %v4997 = vadd.f32 %v4694, %v4753
  %v4998 = vadd.f32 %v4697, %v4753
  %v4999 = vadd.f32 %v4702, %v4753
  %v5000 = vadd.f32 %v4705, %v4753
  %v5001 = vadd.f32 %v4710, %v4753
  %v5002 = vadd.f32 %v4713, %v4753
  %v5003 = vadd.f32 %v4718, %v4753
  %v5004 = vadd.f32 %v4721, %v4753
  %v5005 = vadd.f32 %v4726, %v4753
  %v5006 = vadd.f32 %v4729, %v4753
  %v5007 = vadd.f32 %v4734, %v4753
  %v5008 = vadd.f32 %v4737, %v4753
  %v5009 = vadd.f32 %v4742, %v4753
  %v5010 = vadd.f32 %v4745, %v4753
  %v5011 = vmax.f32 %v4755, 0.0
  %v5012 = vmax.f32 %v4756, 0.0
  %v5013 = vmax.f32 %v4757, 0.0
  %v5014 = vmax.f32 %v4758, 0.0
  %v5015 = vmax.f32 %v4759, 0.0
  %v5016 = vmax.f32 %v4760, 0.0
  %v5017 = vmax.f32 %v4761, 0.0
  %v5018 = vmax.f32 %v4762, 0.0
  %v5019 = vmax.f32 %v4763, 0.0
  %v5020 = vmax.f32 %v4764, 0.0
  %v5021 = vmax.f32 %v4765, 0.0
  %v5022 = vmax.f32 %v4766, 0.0
  %v5023 = vmax.f32 %v4767, 0.0
  %v5024 = vmax.f32 %v4768, 0.0
  %v5025 = vmax.f32 %v4769, 0.0
  %v5026 = vmax.f32 %v4770, 0.0
  %v5027 = vmax.f32 %v4771, 0.0
  %v5028 = vmax.f32 %v4772, 0.0
  %v5029 = vmax.f32 %v4773, 0.0
  %v5030 = vmax.f32 %v4774, 0.0
  %v5031 = vmax.f32 %v4775, 0.0
  %v5032 = vmax.f32 %v4776, 0.0
  %v5033 = vmax.f32 %v4777, 0.0
  %v5034 = vmax.f32 %v4778, 0.0
  %v5035 = vmax.f32 %v4779, 0.0
  %v5036 = vmax.f32 %v4780, 0.0
  %v5037 = vmax.f32 %v4781, 0.0
  %v5038 = vmax.f32 %v4782, 0.0
  %v5039 = vmax.f32 %v4783, 0.0
  %v5040 = vmax.f32 %v4784, 0.0
  %v5041 = vmax.f32 %v4785, 0.0
  %v5042 = vmax.f32 %v4786, 0.0
  %v5043 = vmax.f32 %v4787, 0.0
  %v5044 = vmax.f32 %v4788, 0.0
  %v5045 = vmax.f32 %v4789, 0.0
  %v5046 = vmax.f32 %v4790, 0.0
  %v5047 = vmax.f32 %v4791, 0.0
  %v5048 = vmax.f32 %v4792, 0.0
  %v5049 = vmax.f32 %v4793, 0.0
  %v5050 = vmax.f32 %v4794, 0.0
  %v5051 = vmax.f32 %v4795, 0.0
  %v5052 = vmax.f32 %v4796, 0.0
  %v5053 = vmax.f32 %v4797, 0.0
  %v5054 = vmax.f32 %v4798, 0.0
  %v5055 = vmax.f32 %v4799, 0.0
  %v5056 = vmax.f32 %v4800, 0.0
  %v5057 = vmax.f32 %v4801, 0.0
  %v5058 = vmax.f32 %v4802, 0.0
  %v5059 = vmax.f32 %v4803, 0.0
  %v5060 = vmax.f32 %v4804, 0.0
  %v5061 = vmax.f32 %v4805, 0.0
  %v5062 = vmax.f32 %v4806, 0.0
  %v5063 = vmax.f32 %v4807, 0.0
  %v5064 = vmax.f32 %v4808, 0.0
  %v5065 = vmax.f32 %v4809, 0.0
  %v5066 = vmax.f32 %v4810, 0.0
  %v5067 = vmax.f32 %v4811, 0.0
  %v5068 = vmax.f32 %v4812, 0.0
  %v5069 = vmax.f32 %v4813, 0.0
  %v5070 = vmax.f32 %v4814, 0.0
  %v5071 = vmax.f32 %v4815, 0.0
  %v5072 = vmax.f32 %v4816, 0.0
  %v5073 = vmax.f32 %v4817, 0.0
  %v5074 = vmax.f32 %v4818, 0.0
  %v5075 = vmax.f32 %v4819, 0.0
  %v5076 = vmax.f32 %v4820, 0.0
  %v5077 = vmax.f32 %v4821, 0.0
  %v5078 = vmax.f32 %v4822, 0.0
  %v5079 = vmax.f32 %v4823, 0.0
  %v5080 = vmax.f32 %v4824, 0.0
  %v5081 = vmax.f32 %v4825, 0.0
  %v5082 = vmax.f32 %v4826, 0.0
  %v5083 = vmax.f32 %v4827, 0.0
  %v5084 = vmax.f32 %v4828, 0.0
  %v5085 = vmax.f32 %v4829, 0.0
  %v5086 = vmax.f32 %v4830, 0.0
  %v5087 = vmax.f32 %v4831, 0.0
  %v5088 = vmax.f32 %v4832, 0.0
  %v5089 = vmax.f32 %v4833, 0.0
  %v5090 = vmax.f32 %v4834, 0.0
  %v5091 = vmax.f32 %v4835, 0.0
  %v5092 = vmax.f32 %v4836, 0.0
  %v5093 = vmax.f32 %v4837, 0.0
  %v5094 = vmax.f32 %v4838, 0.0
  %v5095 = vmax.f32 %v4839, 0.0
  %v5096 = vmax.f32 %v4840, 0.0
  %v5097 = vmax.f32 %v4841, 0.0
  %v5098 = vmax.f32 %v4842, 0.0
  %v5099 = vmax.f32 %v4843, 0.0
  %v5100 = vmax.f32 %v4844, 0.0
  %v5101 = vmax.f32 %v4845, 0.0
  %v5102 = vmax.f32 %v4846, 0.0
  %v5103 = vmax.f32 %v4847, 0.0
  %v5104 = vmax.f32 %v4848, 0.0
  %v5105 = vmax.f32 %v4849, 0.0
  %v5106 = vmax.f32 %v4850, 0.0
  %v5107 = vmax.f32 %v4851, 0.0
  %v5108 = vmax.f32 %v4852, 0.0
  %v5109 = vmax.f32 %v4853, 0.0
  %v5110 = vmax.f32 %v4854, 0.0
  %v5111 = vmax.f32 %v4855, 0.0
  %v5112 = vmax.f32 %v4856, 0.0
  %v5113 = vmax.f32 %v4857, 0.0
  %v5114 = vmax.f32 %v4858, 0.0
  %v5115 = vmax.f32 %v4859, 0.0
  %v5116 = vmax.f32 %v4860, 0.0
  %v5117 = vmax.f32 %v4861, 0.0
  %v5118 = vmax.f32 %v4862, 0.0
  %v5119 = vmax.f32 %v4863, 0.0
  %v5120 = vmax.f32 %v4864, 0.0
  %v5121 = vmax.f32 %v4865, 0.0
  %v5122 = vmax.f32 %v4866, 0.0
  %v5123 = vmax.f32 %v4867, 0.0
  %v5124 = vmax.f32 %v4868, 0.0
  %v5125 = vmax.f32 %v4869, 0.0
  %v5126 = vmax.f32 %v4870, 0.0
  %v5127 = vmax.f32 %v4871, 0.0
  %v5128 = vmax.f32 %v4872, 0.0
  %v5129 = vmax.f32 %v4873, 0.0
  %v5130 = vmax.f32 %v4874, 0.0
  %v5131 = vmax.f32 %v4875, 0.0
  %v5132 = vmax.f32 %v4876, 0.0
  %v5133 = vmax.f32 %v4877, 0.0
  %v5134 = vmax.f32 %v4878, 0.0
  %v5135 = vmax.f32 %v4879, 0.0
  %v5136 = vmax.f32 %v4880, 0.0
  %v5137 = vmax.f32 %v4881, 0.0
  %v5138 = vmax.f32 %v4882, 0.0
  %v5139 = vmax.f32 %v4883, 0.0
  %v5140 = vmax.f32 %v4884, 0.0
  %v5141 = vmax.f32 %v4885, 0.0
  %v5142 = vmax.f32 %v4886, 0.0
  %v5143 = vmax.f32 %v4887, 0.0
  %v5144 = vmax.f32 %v4888, 0.0
  %v5145 = vmax.f32 %v4889, 0.0
  %v5146 = vmax.f32 %v4890, 0.0
  %v5147 = vmax.f32 %v4891, 0.0
  %v5148 = vmax.f32 %v4892, 0.0
  %v5149 = vmax.f32 %v4893, 0.0
  %v5150 = vmax.f32 %v4894, 0.0
  %v5151 = vmax.f32 %v4895, 0.0
  %v5152 = vmax.f32 %v4896, 0.0
  %v5153 = vmax.f32 %v4897, 0.0
  %v5154 = vmax.f32 %v4898, 0.0
  %v5155 = vmax.f32 %v4899, 0.0
  %v5156 = vmax.f32 %v4900, 0.0
  %v5157 = vmax.f32 %v4901, 0.0
  %v5158 = vmax.f32 %v4902, 0.0
  %v5159 = vmax.f32 %v4903, 0.0
  %v5160 = vmax.f32 %v4904, 0.0
  %v5161 = vmax.f32 %v4905, 0.0
  %v5162 = vmax.f32 %v4906, 0.0
  %v5163 = vmax.f32 %v4907, 0.0
  %v5164 = vmax.f32 %v4908, 0.0
  %v5165 = vmax.f32 %v4909, 0.0
  %v5166 = vmax.f32 %v4910, 0.0
  %v5167 = vmax.f32 %v4911, 0.0
  %v5168 = vmax.f32 %v4912, 0.0
  %v5169 = vmax.f32 %v4913, 0.0
  %v5170 = vmax.f32 %v4914, 0.0
  %v5171 = vmax.f32 %v4915, 0.0
  %v5172 = vmax.f32 %v4916, 0.0
  %v5173 = vmax.f32 %v4917, 0.0
  %v5174 = vmax.f32 %v4918, 0.0
  %v5175 = vmax.f32 %v4919, 0.0
  %v5176 = vmax.f32 %v4920, 0.0
  %v5177 = vmax.f32 %v4921, 0.0
  %v5178 = vmax.f32 %v4922, 0.0
  %v5179 = vmax.f32 %v4923, 0.0
  %v5180 = vmax.f32 %v4924, 0.0
  %v5181 = vmax.f32 %v4925, 0.0
  %v5182 = vmax.f32 %v4926, 0.0
  %v5183 = vmax.f32 %v4927, 0.0
  %v5184 = vmax.f32 %v4928, 0.0
  %v5185 = vmax.f32 %v4929, 0.0
  %v5186 = vmax.f32 %v4930, 0.0
  %v5187 = vmax.f32 %v4931, 0.0
  %v5188 = vmax.f32 %v4932, 0.0
  %v5189 = vmax.f32 %v4933, 0.0
  %v5190 = vmax.f32 %v4934, 0.0
  %v5191 = vmax.f32 %v4935, 0.0
  %v5192 = vmax.f32 %v4936, 0.0
  %v5193 = vmax.f32 %v4937, 0.0
  %v5194 = vmax.f32 %v4938, 0.0
  %v5195 = vmax.f32 %v4939, 0.0
  %v5196 = vmax.f32 %v4940, 0.0
  %v5197 = vmax.f32 %v4941, 0.0
  %v5198 = vmax.f32 %v4942, 0.0
  %v5199 = vmax.f32 %v4943, 0.0
  %v5200 = vmax.f32 %v4944, 0.0
  %v5201 = vmax.f32 %v4945, 0.0
  %v5202 = vmax.f32 %v4946, 0.0
  %v5203 = vmax.f32 %v4947, 0.0
  %v5204 = vmax.f32 %v4948, 0.0
  %v5205 = vmax.f32 %v4949, 0.0
  %v5206 = vmax.f32 %v4950, 0.0
  %v5207 = vmax.f32 %v4951, 0.0
  %v5208 = vmax.f32 %v4952, 0.0
  %v5209 = vmax.f32 %v4953, 0.0
  %v5210 = vmax.f32 %v4954, 0.0
  %v5211 = vmax.f32 %v4955, 0.0
  %v5212 = vmax.f32 %v4956, 0.0
  %v5213 = vmax.f32 %v4957, 0.0
  %v5214 = vmax.f32 %v4958, 0.0
  %v5215 = vmax.f32 %v4959, 0.0
  %v5216 = vmax.f32 %v4960, 0.0
  %v5217 = vmax.f32 %v4961, 0.0
  %v5218 = vmax.f32 %v4962, 0.0
  %v5219 = vmax.f32 %v4963, 0.0
  %v5220 = vmax.f32 %v4964, 0.0
  %v5221 = vmax.f32 %v4965, 0.0
  %v5222 = vmax.f32 %v4966, 0.0
  %v5223 = vmax.f32 %v4967, 0.0
  %v5224 = vmax.f32 %v4968, 0.0
  %v5225 = vmax.f32 %v4969, 0.0
  %v5226 = vmax.f32 %v4970, 0.0
  %v5227 = vmax.f32 %v4971, 0.0
  %v5228 = vmax.f32 %v4972, 0.0
  %v5229 = vmax.f32 %v4973, 0.0
  %v5230 = vmax.f32 %v4974, 0.0
  %v5231 = vmax.f32 %v4975, 0.0
  %v5232 = vmax.f32 %v4976, 0.0
  %v5233 = vmax.f32 %v4977, 0.0
  %v5234 = vmax.f32 %v4978, 0.0
  %v5235 = vmax.f32 %v4979, 0.0
  %v5236 = vmax.f32 %v4980, 0.0
  %v5237 = vmax.f32 %v4981, 0.0
  %v5238 = vmax.f32 %v4982, 0.0
  %v5239 = vmax.f32 %v4983, 0.0
  %v5240 = vmax.f32 %v4984, 0.0
  %v5241 = vmax.f32 %v4985, 0.0
  %v5242 = vmax.f32 %v4986, 0.0
  %v5243 = vmax.f32 %v4987, 0.0
  %v5244 = vmax.f32 %v4988, 0.0
  %v5245 = vmax.f32 %v4989, 0.0
  %v5246 = vmax.f32 %v4990, 0.0
  %v5247 = vmax.f32 %v4991, 0.0
  %v5248 = vmax.f32 %v4992, 0.0
  %v5249 = vmax.f32 %v4993, 0.0
  %v5250 = vmax.f32 %v4994, 0.0
  %v5251 = vmax.f32 %v4995, 0.0
  %v5252 = vmax.f32 %v4996, 0.0
  %v5253 = vmax.f32 %v4997, 0.0
  %v5254 = vmax.f32 %v4998, 0.0
  %v5255 = vmax.f32 %v4999, 0.0
  %v5256 = vmax.f32 %v5000, 0.0
  %v5257 = vmax.f32 %v5001, 0.0
  %v5258 = vmax.f32 %v5002, 0.0
  %v5259 = vmax.f32 %v5003, 0.0
  %v5260 = vmax.f32 %v5004, 0.0
  %v5261 = vmax.f32 %v5005, 0.0
  %v5262 = vmax.f32 %v5006, 0.0
  %v5263 = vmax.f32 %v5007, 0.0
  %v5264 = vmax.f32 %v5008, 0.0
  %v5265 = vmax.f32 %v5009, 0.0
  %v5266 = vmax.f32 %v5010, 0.0
  %v5267 = vpack.c.bf16 %v5012, %v5011
  %v5268 = vpack.c.bf16 %v5014, %v5013
  %v5269 = vpack.c.bf16 %v5016, %v5015
  %v5270 = vpack.c.bf16 %v5018, %v5017
  %v5271 = vpack.c.bf16 %v5020, %v5019
  %v5272 = vpack.c.bf16 %v5022, %v5021
  %v5273 = vpack.c.bf16 %v5024, %v5023
  %v5274 = vpack.c.bf16 %v5026, %v5025
  %v5275 = vpack.c.bf16 %v5028, %v5027
  %v5276 = vpack.c.bf16 %v5030, %v5029
  %v5277 = vpack.c.bf16 %v5032, %v5031
  %v5278 = vpack.c.bf16 %v5034, %v5033
  %v5279 = vpack.c.bf16 %v5036, %v5035
  %v5280 = vpack.c.bf16 %v5038, %v5037
  %v5281 = vpack.c.bf16 %v5040, %v5039
  %v5282 = vpack.c.bf16 %v5042, %v5041
  %v5283 = vpack.c.bf16 %v5044, %v5043
  %v5284 = vpack.c.bf16 %v5046, %v5045
  %v5285 = vpack.c.bf16 %v5048, %v5047
  %v5286 = vpack.c.bf16 %v5050, %v5049
  %v5287 = vpack.c.bf16 %v5052, %v5051
  %v5288 = vpack.c.bf16 %v5054, %v5053
  %v5289 = vpack.c.bf16 %v5056, %v5055
  %v5290 = vpack.c.bf16 %v5058, %v5057
  %v5291 = vpack.c.bf16 %v5060, %v5059
  %v5292 = vpack.c.bf16 %v5062, %v5061
  %v5293 = vpack.c.bf16 %v5064, %v5063
  %v5294 = vpack.c.bf16 %v5066, %v5065
  %v5295 = vpack.c.bf16 %v5068, %v5067
  %v5296 = vpack.c.bf16 %v5070, %v5069
  %v5297 = vpack.c.bf16 %v5072, %v5071
  %v5298 = vpack.c.bf16 %v5074, %v5073
  %v5299 = vpack.c.bf16 %v5076, %v5075
  %v5300 = vpack.c.bf16 %v5078, %v5077
  %v5301 = vpack.c.bf16 %v5080, %v5079
  %v5302 = vpack.c.bf16 %v5082, %v5081
  %v5303 = vpack.c.bf16 %v5084, %v5083
  %v5304 = vpack.c.bf16 %v5086, %v5085
  %v5305 = vpack.c.bf16 %v5088, %v5087
  %v5306 = vpack.c.bf16 %v5090, %v5089
  %v5307 = vpack.c.bf16 %v5092, %v5091
  %v5308 = vpack.c.bf16 %v5094, %v5093
  %v5309 = vpack.c.bf16 %v5096, %v5095
  %v5310 = vpack.c.bf16 %v5098, %v5097
  %v5311 = vpack.c.bf16 %v5100, %v5099
  %v5312 = vpack.c.bf16 %v5102, %v5101
  %v5313 = vpack.c.bf16 %v5104, %v5103
  %v5314 = vpack.c.bf16 %v5106, %v5105
  %v5315 = vpack.c.bf16 %v5108, %v5107
  %v5316 = vpack.c.bf16 %v5110, %v5109
  %v5317 = vpack.c.bf16 %v5112, %v5111
  %v5318 = vpack.c.bf16 %v5114, %v5113
  %v5319 = vpack.c.bf16 %v5116, %v5115
  %v5320 = vpack.c.bf16 %v5118, %v5117
  %v5321 = vpack.c.bf16 %v5120, %v5119
  %v5322 = vpack.c.bf16 %v5122, %v5121
  %v5323 = vpack.c.bf16 %v5124, %v5123
  %v5324 = vpack.c.bf16 %v5126, %v5125
  %v5325 = vpack.c.bf16 %v5128, %v5127
  %v5326 = vpack.c.bf16 %v5130, %v5129
  %v5327 = vpack.c.bf16 %v5132, %v5131
  %v5328 = vpack.c.bf16 %v5134, %v5133
  %v5329 = vpack.c.bf16 %v5136, %v5135
  %v5330 = vpack.c.bf16 %v5138, %v5137
  %v5331 = vpack.c.bf16 %v5140, %v5139
  %v5332 = vpack.c.bf16 %v5142, %v5141
  %v5333 = vpack.c.bf16 %v5144, %v5143
  %v5334 = vpack.c.bf16 %v5146, %v5145
  %v5335 = vpack.c.bf16 %v5148, %v5147
  %v5336 = vpack.c.bf16 %v5150, %v5149
  %v5337 = vpack.c.bf16 %v5152, %v5151
  %v5338 = vpack.c.bf16 %v5154, %v5153
  %v5339 = vpack.c.bf16 %v5156, %v5155
  %v5340 = vpack.c.bf16 %v5158, %v5157
  %v5341 = vpack.c.bf16 %v5160, %v5159
  %v5342 = vpack.c.bf16 %v5162, %v5161
  %v5343 = vpack.c.bf16 %v5164, %v5163
  %v5344 = vpack.c.bf16 %v5166, %v5165
  %v5345 = vpack.c.bf16 %v5168, %v5167
  %v5346 = vpack.c.bf16 %v5170, %v5169
  %v5347 = vpack.c.bf16 %v5172, %v5171
  %v5348 = vpack.c.bf16 %v5174, %v5173
  %v5349 = vpack.c.bf16 %v5176, %v5175
  %v5350 = vpack.c.bf16 %v5178, %v5177
  %v5351 = vpack.c.bf16 %v5180, %v5179
  %v5352 = vpack.c.bf16 %v5182, %v5181
  %v5353 = vpack.c.bf16 %v5184, %v5183
  %v5354 = vpack.c.bf16 %v5186, %v5185
  %v5355 = vpack.c.bf16 %v5188, %v5187
  %v5356 = vpack.c.bf16 %v5190, %v5189
  %v5357 = vpack.c.bf16 %v5192, %v5191
  %v5358 = vpack.c.bf16 %v5194, %v5193
  %v5359 = vpack.c.bf16 %v5196, %v5195
  %v5360 = vpack.c.bf16 %v5198, %v5197
  %v5361 = vpack.c.bf16 %v5200, %v5199
  %v5362 = vpack.c.bf16 %v5202, %v5201
  %v5363 = vpack.c.bf16 %v5204, %v5203
  %v5364 = vpack.c.bf16 %v5206, %v5205
  %v5365 = vpack.c.bf16 %v5208, %v5207
  %v5366 = vpack.c.bf16 %v5210, %v5209
  %v5367 = vpack.c.bf16 %v5212, %v5211
  %v5368 = vpack.c.bf16 %v5214, %v5213
  %v5369 = vpack.c.bf16 %v5216, %v5215
  %v5370 = vpack.c.bf16 %v5218, %v5217
  %v5371 = vpack.c.bf16 %v5220, %v5219
  %v5372 = vpack.c.bf16 %v5222, %v5221
  %v5373 = vpack.c.bf16 %v5224, %v5223
  %v5374 = vpack.c.bf16 %v5226, %v5225
  %v5375 = vpack.c.bf16 %v5228, %v5227
  %v5376 = vpack.c.bf16 %v5230, %v5229
  %v5377 = vpack.c.bf16 %v5232, %v5231
  %v5378 = vpack.c.bf16 %v5234, %v5233
  %v5379 = vpack.c.bf16 %v5236, %v5235
  %v5380 = vpack.c.bf16 %v5238, %v5237
  %v5381 = vpack.c.bf16 %v5240, %v5239
  %v5382 = vpack.c.bf16 %v5242, %v5241
  %v5383 = vpack.c.bf16 %v5244, %v5243
  %v5384 = vpack.c.bf16 %v5246, %v5245
  %v5385 = vpack.c.bf16 %v5248, %v5247
  %v5386 = vpack.c.bf16 %v5250, %v5249
  %v5387 = vpack.c.bf16 %v5252, %v5251
  %v5388 = vpack.c.bf16 %v5254, %v5253
  %v5389 = vpack.c.bf16 %v5256, %v5255
  %v5390 = vpack.c.bf16 %v5258, %v5257
  %v5391 = vpack.c.bf16 %v5260, %v5259
  %v5392 = vpack.c.bf16 %v5262, %v5261
  %v5393 = vpack.c.bf16 %v5264, %v5263
  %v5394 = vpack.c.bf16 %v5266, %v5265
  %v5395 = vld [vmem:[%s5] sm:$0xf]
  %v5396 = vld [vmem:[%s5 + $0x4] sm:$0xf]
  %v5397 = vld [vmem:[%s5 + $0x8] sm:$0xf]
  %v5398 = vld [vmem:[%s5 + $0xc] sm:$0xf]
  %v5399 = vld [vmem:[%s5 + $0x10] sm:$0xf]
  %v5400 = vld [vmem:[%s5 + $0x14] sm:$0xf]
  %v5401 = vld [vmem:[%s5 + $0x18] sm:$0xf]
  %v5402 = vld [vmem:[%s5 + $0x1c] sm:$0xf]
  %v5403 = vld [vmem:[%s6] sm:$0x1]
  %v5405 = vlaneseq
  %v5406 = vshrl.u32 %v5405, 7
  %v5407 = vsub.s32 0, %v5406
  %v5408 = vrot.slane %v5403, %v5407
  %v5418 = vunpack.c.l.b16 %v5395
  %v5419 = vunpack.c.l.b16 %v5396
  %v5420 = vunpack.c.l.b16 %v5397
  %v5421 = vunpack.c.l.b16 %v5398
  %v5422 = vunpack.c.l.b16 %v5399
  %v5423 = vunpack.c.l.b16 %v5400
  %v5424 = vunpack.c.l.b16 %v5401
  %v5425 = vunpack.c.l.b16 %v5402
  %v5426 = vpack.c.b16 %v5419, %v5418
  %v5427 = vpack.c.b16 %v5421, %v5420
  %v5428 = vpack.c.b16 %v5423, %v5422
  %v5429 = vpack.c.b16 %v5425, %v5424
  %vm5434 = vcmask 523264
  %v5436 = vsel %vm5434, %v5267, 0
  %v5439 = vsel %vm5434, %v5268, 0
  %v5442 = vsel %vm5434, %v5269, 0
  %v5445 = vsel %vm5434, %v5270, 0
  %v5448 = vsel %vm5434, %v5271, 0
  %v5451 = vsel %vm5434, %v5272, 0
  %v5454 = vsel %vm5434, %v5273, 0
  %v5457 = vsel %vm5434, %v5274, 0
  %v5460 = vsel %vm5434, %v5275, 0
  %v5463 = vsel %vm5434, %v5276, 0
  %v5466 = vsel %vm5434, %v5277, 0
  %v5469 = vsel %vm5434, %v5278, 0
  %v5472 = vsel %vm5434, %v5279, 0
  %v5475 = vsel %vm5434, %v5280, 0
  %v5478 = vsel %vm5434, %v5281, 0
  %v5481 = vsel %vm5434, %v5282, 0
  %v5484 = vsel %vm5434, %v5283, 0
  %v5487 = vsel %vm5434, %v5284, 0
  %v5490 = vsel %vm5434, %v5285, 0
  %v5493 = vsel %vm5434, %v5286, 0
  %v5496 = vsel %vm5434, %v5287, 0
  %v5499 = vsel %vm5434, %v5288, 0
  %v5502 = vsel %vm5434, %v5289, 0
  %v5505 = vsel %vm5434, %v5290, 0
  %v5508 = vsel %vm5434, %v5291, 0
  %v5511 = vsel %vm5434, %v5292, 0
  %v5514 = vsel %vm5434, %v5293, 0
  %v5517 = vsel %vm5434, %v5294, 0
  %v5520 = vsel %vm5434, %v5295, 0
  %v5523 = vsel %vm5434, %v5296, 0
  %v5526 = vsel %vm5434, %v5297, 0
  %v5529 = vsel %vm5434, %v5298, 0
  %v5532 = vsel %vm5434, %v5299, 0
  %v5535 = vsel %vm5434, %v5300, 0
  %v5538 = vsel %vm5434, %v5301, 0
  %v5541 = vsel %vm5434, %v5302, 0
  %v5544 = vsel %vm5434, %v5303, 0
  %v5547 = vsel %vm5434, %v5304, 0
  %v5550 = vsel %vm5434, %v5305, 0
  %v5553 = vsel %vm5434, %v5306, 0
  %v5556 = vsel %vm5434, %v5307, 0
  %v5559 = vsel %vm5434, %v5308, 0
  %v5562 = vsel %vm5434, %v5309, 0
  %v5565 = vsel %vm5434, %v5310, 0
  %v5568 = vsel %vm5434, %v5311, 0
  %v5571 = vsel %vm5434, %v5312, 0
  %v5574 = vsel %vm5434, %v5313, 0
  %v5577 = vsel %vm5434, %v5314, 0
  %v5580 = vsel %vm5434, %v5315, 0
  %v5583 = vsel %vm5434, %v5316, 0
  %v5586 = vsel %vm5434, %v5317, 0
  %v5589 = vsel %vm5434, %v5318, 0
  %v5592 = vsel %vm5434, %v5319, 0
  %v5595 = vsel %vm5434, %v5320, 0
  %v5598 = vsel %vm5434, %v5321, 0
  %v5601 = vsel %vm5434, %v5322, 0
  %v5604 = vsel %vm5434, %v5323, 0
  %v5607 = vsel %vm5434, %v5324, 0
  %v5610 = vsel %vm5434, %v5325, 0
  %v5613 = vsel %vm5434, %v5326, 0
  %v5616 = vsel %vm5434, %v5327, 0
  %v5619 = vsel %vm5434, %v5328, 0
  %v5622 = vsel %vm5434, %v5329, 0
  %v5625 = vsel %vm5434, %v5330, 0
  %v5628 = vsel %vm5434, %v5331, 0
  %v5631 = vsel %vm5434, %v5332, 0
  %v5634 = vsel %vm5434, %v5333, 0
  %v5637 = vsel %vm5434, %v5334, 0
  %v5640 = vsel %vm5434, %v5335, 0
  %v5643 = vsel %vm5434, %v5336, 0
  %v5646 = vsel %vm5434, %v5337, 0
  %v5649 = vsel %vm5434, %v5338, 0
  %v5652 = vsel %vm5434, %v5339, 0
  %v5655 = vsel %vm5434, %v5340, 0
  %v5658 = vsel %vm5434, %v5341, 0
  %v5661 = vsel %vm5434, %v5342, 0
  %v5664 = vsel %vm5434, %v5343, 0
  %v5667 = vsel %vm5434, %v5344, 0
  %v5670 = vsel %vm5434, %v5345, 0
  %v5673 = vsel %vm5434, %v5346, 0
  %v5676 = vsel %vm5434, %v5347, 0
  %v5679 = vsel %vm5434, %v5348, 0
  %v5682 = vsel %vm5434, %v5349, 0
  %v5685 = vsel %vm5434, %v5350, 0
  %v5688 = vsel %vm5434, %v5351, 0
  %v5691 = vsel %vm5434, %v5352, 0
  %v5694 = vsel %vm5434, %v5353, 0
  %v5697 = vsel %vm5434, %v5354, 0
  %v5700 = vsel %vm5434, %v5355, 0
  %v5703 = vsel %vm5434, %v5356, 0
  %v5706 = vsel %vm5434, %v5357, 0
  %v5709 = vsel %vm5434, %v5358, 0
  %v5712 = vsel %vm5434, %v5359, 0
  %v5715 = vsel %vm5434, %v5360, 0
  %v5718 = vsel %vm5434, %v5361, 0
  %v5721 = vsel %vm5434, %v5362, 0
  %v5724 = vsel %vm5434, %v5363, 0
  %v5727 = vsel %vm5434, %v5364, 0
  %v5730 = vsel %vm5434, %v5365, 0
  %v5733 = vsel %vm5434, %v5366, 0
  %v5736 = vsel %vm5434, %v5367, 0
  %v5739 = vsel %vm5434, %v5368, 0
  %v5742 = vsel %vm5434, %v5369, 0
  %v5745 = vsel %vm5434, %v5370, 0
  %v5748 = vsel %vm5434, %v5371, 0
  %v5751 = vsel %vm5434, %v5372, 0
  %v5754 = vsel %vm5434, %v5373, 0
  %v5757 = vsel %vm5434, %v5374, 0
  %v5760 = vsel %vm5434, %v5375, 0
  %v5763 = vsel %vm5434, %v5376, 0
  %v5766 = vsel %vm5434, %v5377, 0
  %v5769 = vsel %vm5434, %v5378, 0
  %v5772 = vsel %vm5434, %v5379, 0
  %v5775 = vsel %vm5434, %v5380, 0
  %v5778 = vsel %vm5434, %v5381, 0
  %v5781 = vsel %vm5434, %v5382, 0
  %v5784 = vsel %vm5434, %v5383, 0
  %v5787 = vsel %vm5434, %v5384, 0
  %v5790 = vsel %vm5434, %v5385, 0
  %v5793 = vsel %vm5434, %v5386, 0
  %v5796 = vsel %vm5434, %v5387, 0
  %v5799 = vsel %vm5434, %v5388, 0
  %v5802 = vsel %vm5434, %v5389, 0
  %v5805 = vsel %vm5434, %v5390, 0
  %v5808 = vsel %vm5434, %v5391, 0
  %v5811 = vsel %vm5434, %v5392, 0
  %v5814 = vsel %vm5434, %v5393, 0
  %v5817 = vsel %vm5434, %v5394, 0
  %5819 = vmatprep.subr.bf16.mxu0 0
  %5820 = vmatpush1.bf16.msra.mxu0 %v5426
  %5821 = vmatprep.subr.bf16.mxu0 0
  %5822 = vmatpush1.bf16.msra.mxu0 %v5427
  %5823 = vmatprep.subr.bf16.mxu0 0
  %5824 = vmatpush1.bf16.msra.mxu0 %v5428
  %5825 = vmatprep.subr.bf16.mxu0 0
  %5826 = vmatpush1.bf16.msra.mxu0 %v5429
  %5827 = vmatprep.subr.bf16.mxu0 0
  %5828 = vmatpush1.bf16.msra.mxu0 0
  %5829 = vmatprep.subr.bf16.mxu0 0
  %5830 = vmatpush1.bf16.msra.mxu0 0
  %5831 = vmatprep.subr.bf16.mxu0 0
  %5832 = vmatpush1.bf16.msra.mxu0 0
  %5833 = vmatprep.subr.bf16.mxu0 0
  %5834 = vmatpush1.bf16.msra.mxu0 0
  %5835 = vmatprep.subr.bf16.mxu0 0
  %5836 = vmatpush1.bf16.msra.mxu0 0
  %5837 = vmatprep.subr.bf16.mxu0 0
  %5838 = vmatpush1.bf16.msra.mxu0 0
  %5839 = vmatprep.subr.bf16.mxu0 0
  %5840 = vmatpush1.bf16.msra.mxu0 0
  %5841 = vmatprep.subr.bf16.mxu0 0
  %5842 = vmatpush1.bf16.msra.mxu0 0
  %5843 = vmatprep.subr.bf16.mxu0 0
  %5844 = vmatpush1.bf16.msra.mxu0 0
  %5845 = vmatprep.subr.bf16.mxu0 0
  %5846 = vmatpush1.bf16.msra.mxu0 0
  %5847 = vmatprep.subr.bf16.mxu0 0
  %5848 = vmatpush1.bf16.msra.mxu0 0
  %5849 = vmatprep.subr.bf16.mxu0 0
  %5850 = vmatpush1.bf16.msra.mxu0 0
  %5851 = vmatprep.mubr.bf16.mxu0 0
  %5852 = vmatmul.mubr.bf16.gmra.mrb[0].mxu0 %v5436
  %v5853 = vpop.f32.mrb[0].mxu0
  %v5854 = vadd.f32 %v5408, %v5853
  %v5855 = vpop.f32.mrb[0].mxu0
  %v5856 = vpop.f32.mrb[0].mxu0
  %v5857 = vadd.f32 %v5408, %v5856
  %v5858 = vpop.f32.mrb[0].mxu0
  %5859 = vmatprep.mubr.bf16.mxu0 0
  %5860 = vmatmul.mubr.bf16.gmra.mrb[0].mxu0 %v5439
  %v5861 = vpop.f32.mrb[0].mxu0
  %v5862 = vadd.f32 %v5408, %v5861
  %v5863 = vpop.f32.mrb[0].mxu0
  %v5864 = vpop.f32.mrb[0].mxu0
  %v5865 = vadd.f32 %v5408, %v5864
  %v5866 = vpop.f32.mrb[0].mxu0
  %5867 = vmatprep.mubr.bf16.mxu0 0
  %5868 = vmatmul.mubr.bf16.gmra.mrb[0].mxu0 %v5442
  %v5869 = vpop.f32.mrb[0].mxu0
  %v5870 = vadd.f32 %v5408, %v5869
  %v5871 = vpop.f32.mrb[0].mxu0
  %v5872 = vpop.f32.mrb[0].mxu0
  %v5873 = vadd.f32 %v5408, %v5872
  %v5874 = vpop.f32.mrb[0].mxu0
  %5875 = vmatprep.mubr.bf16.mxu0 0
  %5876 = vmatmul.mubr.bf16.gmra.mrb[0].mxu0 %v5445
  %v5877 = vpop.f32.mrb[0].mxu0
  %v5878 = vadd.f32 %v5408, %v5877
  %v5879 = vpop.f32.mrb[0].mxu0
  %v5880 = vpop.f32.mrb[0].mxu0
  %v5881 = vadd.f32 %v5408, %v5880
  %v5882 = vpop.f32.mrb[0].mxu0
  %5883 = vmatprep.mubr.bf16.mxu0 0
  %5884 = vmatmul.mubr.bf16.gmra.mrb[0].mxu0 %v5448
  %v5885 = vpop.f32.mrb[0].mxu0
  %v5886 = vadd.f32 %v5408, %v5885
  %v5887 = vpop.f32.mrb[0].mxu0
  %v5888 = vpop.f32.mrb[0].mxu0
  %v5889 = vadd.f32 %v5408, %v5888
  %v5890 = vpop.f32.mrb[0].mxu0
  %5891 = vmatprep.mubr.bf16.mxu0 0
  %5892 = vmatmul.mubr.bf16.gmra.mrb[0].mxu0 %v5451
  %v5893 = vpop.f32.mrb[0].mxu0
  %v5894 = vadd.f32 %v5408, %v5893
  %v5895 = vpop.f32.mrb[0].mxu0
  %v5896 = vpop.f32.mrb[0].mxu0
  %v5897 = vadd.f32 %v5408, %v5896
  %v5898 = vpop.f32.mrb[0].mxu0
  %5899 = vmatprep.mubr.bf16.mxu0 0
  %5900 = vmatmul.mubr.bf16.gmra.mrb[0].mxu0 %v5454
  %v5901 = vpop.f32.mrb[0].mxu0
  %v5902 = vadd.f32 %v5408, %v5901
  %v5903 = vpop.f32.mrb[0].mxu0
  %v5904 = vpop.f32.mrb[0].mxu0
  %v5905 = vadd.f32 %v5408, %v5904
  %v5906 = vpop.f32.mrb[0].mxu0
  %5907 = vmatprep.mubr.bf16.mxu0 0
  %5908 = vmatmul.mubr.bf16.gmra.mrb[0].mxu0 %v5457
  %v5909 = vpop.f32.mrb[0].mxu0
  %v5910 = vadd.f32 %v5408, %v5909
  %v5911 = vpop.f32.mrb[0].mxu0
  %v5912 = vpop.f32.mrb[0].mxu0
  %v5913 = vadd.f32 %v5408, %v5912
  %v5914 = vpop.f32.mrb[0].mxu0
  %5915 = vmatprep.mubr.bf16.mxu0 0
  %5916 = vmatmul.mubr.bf16.gmra.mrb[0].mxu0 %v5460
  %v5917 = vpop.f32.mrb[0].mxu0
  %v5918 = vadd.f32 %v5408, %v5917
  %v5919 = vpop.f32.mrb[0].mxu0
  %v5920 = vpop.f32.mrb[0].mxu0
  %v5921 = vadd.f32 %v5408, %v5920
  %v5922 = vpop.f32.mrb[0].mxu0
  %5923 = vmatprep.mubr.bf16.mxu0 0
  %5924 = vmatmul.mubr.bf16.gmra.mrb[0].mxu0 %v5463
  %v5925 = vpop.f32.mrb[0].mxu0
  %v5926 = vadd.f32 %v5408, %v5925
  %v5927 = vpop.f32.mrb[0].mxu0
  %v5928 = vpop.f32.mrb[0].mxu0
  %v5929 = vadd.f32 %v5408, %v5928
  %v5930 = vpop.f32.mrb[0].mxu0
  %5931 = vmatprep.mubr.bf16.mxu0 0
  %5932 = vmatmul.mubr.bf16.gmra.mrb[0].mxu0 %v5466
  %v5933 = vpop.f32.mrb[0].mxu0
  %v5934 = vadd.f32 %v5408, %v5933
  %v5935 = vpop.f32.mrb[0].mxu0
  %v5936 = vpop.f32.mrb[0].mxu0
  %v5937 = vadd.f32 %v5408, %v5936
  %v5938 = vpop.f32.mrb[0].mxu0
  %5939 = vmatprep.mubr.bf16.mxu0 0
  %5940 = vmatmul.mubr.bf16.gmra.mrb[0].mxu0 %v5469
  %v5941 = vpop.f32.mrb[0].mxu0
  %v5942 = vadd.f32 %v5408, %v5941
  %v5943 = vpop.f32.mrb[0].mxu0
  %v5944 = vpop.f32.mrb[0].mxu0
  %v5945 = vadd.f32 %v5408, %v5944
  %v5946 = vpop.f32.mrb[0].mxu0
  %5947 = vmatprep.mubr.bf16.mxu0 0
  %5948 = vmatmul.mubr.bf16.gmra.mrb[0].mxu0 %v5472
  %v5949 = vpop.f32.mrb[0].mxu0
  %v5950 = vadd.f32 %v5408, %v5949
  %v5951 = vpop.f32.mrb[0].mxu0
  %v5952 = vpop.f32.mrb[0].mxu0
  %v5953 = vadd.f32 %v5408, %v5952
  %v5954 = vpop.f32.mrb[0].mxu0
  %5955 = vmatprep.mubr.bf16.mxu0 0
  %5956 = vmatmul.mubr.bf16.gmra.mrb[0].mxu0 %v5475
  %v5957 = vpop.f32.mrb[0].mxu0
  %v5958 = vadd.f32 %v5408, %v5957
  %v5959 = vpop.f32.mrb[0].mxu0
  %v5960 = vpop.f32.mrb[0].mxu0
  %v5961 = vadd.f32 %v5408, %v5960
  %v5962 = vpop.f32.mrb[0].mxu0
  %5963 = vmatprep.mubr.bf16.mxu0 0
  %5964 = vmatmul.mubr.bf16.gmra.mrb[0].mxu0 %v5478
  %v5965 = vpop.f32.mrb[0].mxu0
  %v5966 = vadd.f32 %v5408, %v5965
  %v5967 = vpop.f32.mrb[0].mxu0
  %v5968 = vpop.f32.mrb[0].mxu0
  %v5969 = vadd.f32 %v5408, %v5968
  %v5970 = vpop.f32.mrb[0].mxu0
  %5971 = vmatprep.mubr.bf16.mxu0 0
  %5972 = vmatmul.mubr.bf16.gmra.mrb[0].mxu0 %v5481
  %v5973 = vpop.f32.mrb[0].mxu0
  %v5974 = vadd.f32 %v5408, %v5973
  %v5975 = vpop.f32.mrb[0].mxu0
  %v5976 = vpop.f32.mrb[0].mxu0
  %v5977 = vadd.f32 %v5408, %v5976
  %v5978 = vpop.f32.mrb[0].mxu0
  %5979 = vmatprep.mubr.bf16.mxu0 0
  %5980 = vmatmul.mubr.bf16.gmra.mrb[0].mxu0 %v5484
  %v5981 = vpop.f32.mrb[0].mxu0
  %v5982 = vadd.f32 %v5408, %v5981
  %v5983 = vpop.f32.mrb[0].mxu0
  %v5984 = vpop.f32.mrb[0].mxu0
  %v5985 = vadd.f32 %v5408, %v5984
  %v5986 = vpop.f32.mrb[0].mxu0
  %5987 = vmatprep.mubr.bf16.mxu0 0
  %5988 = vmatmul.mubr.bf16.gmra.mrb[0].mxu0 %v5487
  %v5989 = vpop.f32.mrb[0].mxu0
  %v5990 = vadd.f32 %v5408, %v5989
  %v5991 = vpop.f32.mrb[0].mxu0
  %v5992 = vpop.f32.mrb[0].mxu0
  %v5993 = vadd.f32 %v5408, %v5992
  %v5994 = vpop.f32.mrb[0].mxu0
  %5995 = vmatprep.mubr.bf16.mxu0 0
  %5996 = vmatmul.mubr.bf16.gmra.mrb[0].mxu0 %v5490
  %v5997 = vpop.f32.mrb[0].mxu0
  %v5998 = vadd.f32 %v5408, %v5997
  %v5999 = vpop.f32.mrb[0].mxu0
  %v6000 = vpop.f32.mrb[0].mxu0
  %v6001 = vadd.f32 %v5408, %v6000
  %v6002 = vpop.f32.mrb[0].mxu0
  %6003 = vmatprep.mubr.bf16.mxu0 0
  %6004 = vmatmul.mubr.bf16.gmra.mrb[0].mxu0 %v5493
  %v6005 = vpop.f32.mrb[0].mxu0
  %v6006 = vadd.f32 %v5408, %v6005
  %v6007 = vpop.f32.mrb[0].mxu0
  %v6008 = vpop.f32.mrb[0].mxu0
  %v6009 = vadd.f32 %v5408, %v6008
  %v6010 = vpop.f32.mrb[0].mxu0
  %6011 = vmatprep.mubr.bf16.mxu0 0
  %6012 = vmatmul.mubr.bf16.gmra.mrb[0].mxu0 %v5496
  %v6013 = vpop.f32.mrb[0].mxu0
  %v6014 = vadd.f32 %v5408, %v6013
  %v6015 = vpop.f32.mrb[0].mxu0
  %v6016 = vpop.f32.mrb[0].mxu0
  %v6017 = vadd.f32 %v5408, %v6016
  %v6018 = vpop.f32.mrb[0].mxu0
  %6019 = vmatprep.mubr.bf16.mxu0 0
  %6020 = vmatmul.mubr.bf16.gmra.mrb[0].mxu0 %v5499
  %v6021 = vpop.f32.mrb[0].mxu0
  %v6022 = vadd.f32 %v5408, %v6021
  %v6023 = vpop.f32.mrb[0].mxu0
  %v6024 = vpop.f32.mrb[0].mxu0
  %v6025 = vadd.f32 %v5408, %v6024
  %v6026 = vpop.f32.mrb[0].mxu0
  %6027 = vmatprep.mubr.bf16.mxu0 0
  %6028 = vmatmul.mubr.bf16.gmra.mrb[0].mxu0 %v5502
  %v6029 = vpop.f32.mrb[0].mxu0
  %v6030 = vadd.f32 %v5408, %v6029
  %v6031 = vpop.f32.mrb[0].mxu0
  %v6032 = vpop.f32.mrb[0].mxu0
  %v6033 = vadd.f32 %v5408, %v6032
  %v6034 = vpop.f32.mrb[0].mxu0
  %6035 = vmatprep.mubr.bf16.mxu0 0
  %6036 = vmatmul.mubr.bf16.gmra.mrb[0].mxu0 %v5505
  %v6037 = vpop.f32.mrb[0].mxu0
  %v6038 = vadd.f32 %v5408, %v6037
  %v6039 = vpop.f32.mrb[0].mxu0
  %v6040 = vpop.f32.mrb[0].mxu0
  %v6041 = vadd.f32 %v5408, %v6040
  %v6042 = vpop.f32.mrb[0].mxu0
  %6043 = vmatprep.mubr.bf16.mxu0 0
  %6044 = vmatmul.mubr.bf16.gmra.mrb[0].mxu0 %v5508
  %v6045 = vpop.f32.mrb[0].mxu0
  %v6046 = vadd.f32 %v5408, %v6045
  %v6047 = vpop.f32.mrb[0].mxu0
  %v6048 = vpop.f32.mrb[0].mxu0
  %v6049 = vadd.f32 %v5408, %v6048
  %v6050 = vpop.f32.mrb[0].mxu0
  %6051 = vmatprep.mubr.bf16.mxu0 0
  %6052 = vmatmul.mubr.bf16.gmra.mrb[0].mxu0 %v5511
  %v6053 = vpop.f32.mrb[0].mxu0
  %v6054 = vadd.f32 %v5408, %v6053
  %v6055 = vpop.f32.mrb[0].mxu0
  %v6056 = vpop.f32.mrb[0].mxu0
  %v6057 = vadd.f32 %v5408, %v6056
  %v6058 = vpop.f32.mrb[0].mxu0
  %6059 = vmatprep.mubr.bf16.mxu0 0
  %6060 = vmatmul.mubr.bf16.gmra.mrb[0].mxu0 %v5514
  %v6061 = vpop.f32.mrb[0].mxu0
  %v6062 = vadd.f32 %v5408, %v6061
  %v6063 = vpop.f32.mrb[0].mxu0
  %v6064 = vpop.f32.mrb[0].mxu0
  %v6065 = vadd.f32 %v5408, %v6064
  %v6066 = vpop.f32.mrb[0].mxu0
  %6067 = vmatprep.mubr.bf16.mxu0 0
  %6068 = vmatmul.mubr.bf16.gmra.mrb[0].mxu0 %v5517
  %v6069 = vpop.f32.mrb[0].mxu0
  %v6070 = vadd.f32 %v5408, %v6069
  %v6071 = vpop.f32.mrb[0].mxu0
  %v6072 = vpop.f32.mrb[0].mxu0
  %v6073 = vadd.f32 %v5408, %v6072
  %v6074 = vpop.f32.mrb[0].mxu0
  %6075 = vmatprep.mubr.bf16.mxu0 0
  %6076 = vmatmul.mubr.bf16.gmra.mrb[0].mxu0 %v5520
  %v6077 = vpop.f32.mrb[0].mxu0
  %v6078 = vadd.f32 %v5408, %v6077
  %v6079 = vpop.f32.mrb[0].mxu0
  %v6080 = vpop.f32.mrb[0].mxu0
  %v6081 = vadd.f32 %v5408, %v6080
  %v6082 = vpop.f32.mrb[0].mxu0
  %6083 = vmatprep.mubr.bf16.mxu0 0
  %6084 = vmatmul.mubr.bf16.gmra.mrb[0].mxu0 %v5523
  %v6085 = vpop.f32.mrb[0].mxu0
  %v6086 = vadd.f32 %v5408, %v6085
  %v6087 = vpop.f32.mrb[0].mxu0
  %v6088 = vpop.f32.mrb[0].mxu0
  %v6089 = vadd.f32 %v5408, %v6088
  %v6090 = vpop.f32.mrb[0].mxu0
  %6091 = vmatprep.mubr.bf16.mxu0 0
  %6092 = vmatmul.mubr.bf16.gmra.mrb[0].mxu0 %v5526
  %v6093 = vpop.f32.mrb[0].mxu0
  %v6094 = vadd.f32 %v5408, %v6093
  %v6095 = vpop.f32.mrb[0].mxu0
  %v6096 = vpop.f32.mrb[0].mxu0
  %v6097 = vadd.f32 %v5408, %v6096
  %v6098 = vpop.f32.mrb[0].mxu0
  %6099 = vmatprep.mubr.bf16.mxu0 0
  %6100 = vmatmul.mubr.bf16.gmra.mrb[0].mxu0 %v5529
  %v6101 = vpop.f32.mrb[0].mxu0
  %v6102 = vadd.f32 %v5408, %v6101
  %v6103 = vpop.f32.mrb[0].mxu0
  %v6104 = vpop.f32.mrb[0].mxu0
  %v6105 = vadd.f32 %v5408, %v6104
  %v6106 = vpop.f32.mrb[0].mxu0
  %6107 = vmatprep.mubr.bf16.mxu0 0
  %6108 = vmatmul.mubr.bf16.gmra.mrb[0].mxu0 %v5532
  %v6109 = vpop.f32.mrb[0].mxu0
  %v6110 = vadd.f32 %v5408, %v6109
  %v6111 = vpop.f32.mrb[0].mxu0
  %v6112 = vpop.f32.mrb[0].mxu0
  %v6113 = vadd.f32 %v5408, %v6112
  %v6114 = vpop.f32.mrb[0].mxu0
  %6115 = vmatprep.mubr.bf16.mxu0 0
  %6116 = vmatmul.mubr.bf16.gmra.mrb[0].mxu0 %v5535
  %v6117 = vpop.f32.mrb[0].mxu0
  %v6118 = vadd.f32 %v5408, %v6117
  %v6119 = vpop.f32.mrb[0].mxu0
  %v6120 = vpop.f32.mrb[0].mxu0
  %v6121 = vadd.f32 %v5408, %v6120
  %v6122 = vpop.f32.mrb[0].mxu0
  %6123 = vmatprep.mubr.bf16.mxu0 0
  %6124 = vmatmul.mubr.bf16.gmra.mrb[0].mxu0 %v5538
  %v6125 = vpop.f32.mrb[0].mxu0
  %v6126 = vadd.f32 %v5408, %v6125
  %v6127 = vpop.f32.mrb[0].mxu0
  %v6128 = vpop.f32.mrb[0].mxu0
  %v6129 = vadd.f32 %v5408, %v6128
  %v6130 = vpop.f32.mrb[0].mxu0
  %6131 = vmatprep.mubr.bf16.mxu0 0
  %6132 = vmatmul.mubr.bf16.gmra.mrb[0].mxu0 %v5541
  %v6133 = vpop.f32.mrb[0].mxu0
  %v6134 = vadd.f32 %v5408, %v6133
  %v6135 = vpop.f32.mrb[0].mxu0
  %v6136 = vpop.f32.mrb[0].mxu0
  %v6137 = vadd.f32 %v5408, %v6136
  %v6138 = vpop.f32.mrb[0].mxu0
  %6139 = vmatprep.mubr.bf16.mxu0 0
  %6140 = vmatmul.mubr.bf16.gmra.mrb[0].mxu0 %v5544
  %v6141 = vpop.f32.mrb[0].mxu0
  %v6142 = vadd.f32 %v5408, %v6141
  %v6143 = vpop.f32.mrb[0].mxu0
  %v6144 = vpop.f32.mrb[0].mxu0
  %v6145 = vadd.f32 %v5408, %v6144
  %v6146 = vpop.f32.mrb[0].mxu0
  %6147 = vmatprep.mubr.bf16.mxu0 0
  %6148 = vmatmul.mubr.bf16.gmra.mrb[0].mxu0 %v5547
  %v6149 = vpop.f32.mrb[0].mxu0
  %v6150 = vadd.f32 %v5408, %v6149
  %v6151 = vpop.f32.mrb[0].mxu0
  %v6152 = vpop.f32.mrb[0].mxu0
  %v6153 = vadd.f32 %v5408, %v6152
  %v6154 = vpop.f32.mrb[0].mxu0
  %6155 = vmatprep.mubr.bf16.mxu0 0
  %6156 = vmatmul.mubr.bf16.gmra.mrb[0].mxu0 %v5550
  %v6157 = vpop.f32.mrb[0].mxu0
  %v6158 = vadd.f32 %v5408, %v6157
  %v6159 = vpop.f32.mrb[0].mxu0
  %v6160 = vpop.f32.mrb[0].mxu0
  %v6161 = vadd.f32 %v5408, %v6160
  %v6162 = vpop.f32.mrb[0].mxu0
  %6163 = vmatprep.mubr.bf16.mxu0 0
  %6164 = vmatmul.mubr.bf16.gmra.mrb[0].mxu0 %v5553
  %v6165 = vpop.f32.mrb[0].mxu0
  %v6166 = vadd.f32 %v5408, %v6165
  %v6167 = vpop.f32.mrb[0].mxu0
  %v6168 = vpop.f32.mrb[0].mxu0
  %v6169 = vadd.f32 %v5408, %v6168
  %v6170 = vpop.f32.mrb[0].mxu0
  %6171 = vmatprep.mubr.bf16.mxu0 0
  %6172 = vmatmul.mubr.bf16.gmra.mrb[0].mxu0 %v5556
  %v6173 = vpop.f32.mrb[0].mxu0
  %v6174 = vadd.f32 %v5408, %v6173
  %v6175 = vpop.f32.mrb[0].mxu0
  %v6176 = vpop.f32.mrb[0].mxu0
  %v6177 = vadd.f32 %v5408, %v6176
  %v6178 = vpop.f32.mrb[0].mxu0
  %6179 = vmatprep.mubr.bf16.mxu0 0
  %6180 = vmatmul.mubr.bf16.gmra.mrb[0].mxu0 %v5559
  %v6181 = vpop.f32.mrb[0].mxu0
  %v6182 = vadd.f32 %v5408, %v6181
  %v6183 = vpop.f32.mrb[0].mxu0
  %v6184 = vpop.f32.mrb[0].mxu0
  %v6185 = vadd.f32 %v5408, %v6184
  %v6186 = vpop.f32.mrb[0].mxu0
  %6187 = vmatprep.mubr.bf16.mxu0 0
  %6188 = vmatmul.mubr.bf16.gmra.mrb[0].mxu0 %v5562
  %v6189 = vpop.f32.mrb[0].mxu0
  %v6190 = vadd.f32 %v5408, %v6189
  %v6191 = vpop.f32.mrb[0].mxu0
  %v6192 = vpop.f32.mrb[0].mxu0
  %v6193 = vadd.f32 %v5408, %v6192
  %v6194 = vpop.f32.mrb[0].mxu0
  %6195 = vmatprep.mubr.bf16.mxu0 0
  %6196 = vmatmul.mubr.bf16.gmra.mrb[0].mxu0 %v5565
  %v6197 = vpop.f32.mrb[0].mxu0
  %v6198 = vadd.f32 %v5408, %v6197
  %v6199 = vpop.f32.mrb[0].mxu0
  %v6200 = vpop.f32.mrb[0].mxu0
  %v6201 = vadd.f32 %v5408, %v6200
  %v6202 = vpop.f32.mrb[0].mxu0
  %6203 = vmatprep.mubr.bf16.mxu0 0
  %6204 = vmatmul.mubr.bf16.gmra.mrb[0].mxu0 %v5568
  %v6205 = vpop.f32.mrb[0].mxu0
  %v6206 = vadd.f32 %v5408, %v6205
  %v6207 = vpop.f32.mrb[0].mxu0
  %v6208 = vpop.f32.mrb[0].mxu0
  %v6209 = vadd.f32 %v5408, %v6208
  %v6210 = vpop.f32.mrb[0].mxu0
  %6211 = vmatprep.mubr.bf16.mxu0 0
  %6212 = vmatmul.mubr.bf16.gmra.mrb[0].mxu0 %v5571
  %v6213 = vpop.f32.mrb[0].mxu0
  %v6214 = vadd.f32 %v5408, %v6213
  %v6215 = vpop.f32.mrb[0].mxu0
  %v6216 = vpop.f32.mrb[0].mxu0
  %v6217 = vadd.f32 %v5408, %v6216
  %v6218 = vpop.f32.mrb[0].mxu0
  %6219 = vmatprep.mubr.bf16.mxu0 0
  %6220 = vmatmul.mubr.bf16.gmra.mrb[0].mxu0 %v5574
  %v6221 = vpop.f32.mrb[0].mxu0
  %v6222 = vadd.f32 %v5408, %v6221
  %v6223 = vpop.f32.mrb[0].mxu0
  %v6224 = vpop.f32.mrb[0].mxu0
  %v6225 = vadd.f32 %v5408, %v6224
  %v6226 = vpop.f32.mrb[0].mxu0
  %6227 = vmatprep.mubr.bf16.mxu0 0
  %6228 = vmatmul.mubr.bf16.gmra.mrb[0].mxu0 %v5577
  %v6229 = vpop.f32.mrb[0].mxu0
  %v6230 = vadd.f32 %v5408, %v6229
  %v6231 = vpop.f32.mrb[0].mxu0
  %v6232 = vpop.f32.mrb[0].mxu0
  %v6233 = vadd.f32 %v5408, %v6232
  %v6234 = vpop.f32.mrb[0].mxu0
  %6235 = vmatprep.mubr.bf16.mxu0 0
  %6236 = vmatmul.mubr.bf16.gmra.mrb[0].mxu0 %v5580
  %v6237 = vpop.f32.mrb[0].mxu0
  %v6238 = vadd.f32 %v5408, %v6237
  %v6239 = vpop.f32.mrb[0].mxu0
  %v6240 = vpop.f32.mrb[0].mxu0
  %v6241 = vadd.f32 %v5408, %v6240
  %v6242 = vpop.f32.mrb[0].mxu0
  %6243 = vmatprep.mubr.bf16.mxu0 0
  %6244 = vmatmul.mubr.bf16.gmra.mrb[0].mxu0 %v5583
  %v6245 = vpop.f32.mrb[0].mxu0
  %v6246 = vadd.f32 %v5408, %v6245
  %v6247 = vpop.f32.mrb[0].mxu0
  %v6248 = vpop.f32.mrb[0].mxu0
  %v6249 = vadd.f32 %v5408, %v6248
  %v6250 = vpop.f32.mrb[0].mxu0
  %6251 = vmatprep.mubr.bf16.mxu0 0
  %6252 = vmatmul.mubr.bf16.gmra.mrb[0].mxu0 %v5586
  %v6253 = vpop.f32.mrb[0].mxu0
  %v6254 = vadd.f32 %v5408, %v6253
  %v6255 = vpop.f32.mrb[0].mxu0
  %v6256 = vpop.f32.mrb[0].mxu0
  %v6257 = vadd.f32 %v5408, %v6256
  %v6258 = vpop.f32.mrb[0].mxu0
  %6259 = vmatprep.mubr.bf16.mxu0 0
  %6260 = vmatmul.mubr.bf16.gmra.mrb[0].mxu0 %v5589
  %v6261 = vpop.f32.mrb[0].mxu0
  %v6262 = vadd.f32 %v5408, %v6261
  %v6263 = vpop.f32.mrb[0].mxu0
  %v6264 = vpop.f32.mrb[0].mxu0
  %v6265 = vadd.f32 %v5408, %v6264
  %v6266 = vpop.f32.mrb[0].mxu0
  %6267 = vmatprep.mubr.bf16.mxu0 0
  %6268 = vmatmul.mubr.bf16.gmra.mrb[0].mxu0 %v5592
  %v6269 = vpop.f32.mrb[0].mxu0
  %v6270 = vadd.f32 %v5408, %v6269
  %v6271 = vpop.f32.mrb[0].mxu0
  %v6272 = vpop.f32.mrb[0].mxu0
  %v6273 = vadd.f32 %v5408, %v6272
  %v6274 = vpop.f32.mrb[0].mxu0
  %6275 = vmatprep.mubr.bf16.mxu0 0
  %6276 = vmatmul.mubr.bf16.gmra.mrb[0].mxu0 %v5595
  %v6277 = vpop.f32.mrb[0].mxu0
  %v6278 = vadd.f32 %v5408, %v6277
  %v6279 = vpop.f32.mrb[0].mxu0
  %v6280 = vpop.f32.mrb[0].mxu0
  %v6281 = vadd.f32 %v5408, %v6280
  %v6282 = vpop.f32.mrb[0].mxu0
  %6283 = vmatprep.mubr.bf16.mxu0 0
  %6284 = vmatmul.mubr.bf16.gmra.mrb[0].mxu0 %v5598
  %v6285 = vpop.f32.mrb[0].mxu0
  %v6286 = vadd.f32 %v5408, %v6285
  %v6287 = vpop.f32.mrb[0].mxu0
  %v6288 = vpop.f32.mrb[0].mxu0
  %v6289 = vadd.f32 %v5408, %v6288
  %v6290 = vpop.f32.mrb[0].mxu0
  %6291 = vmatprep.mubr.bf16.mxu0 0
  %6292 = vmatmul.mubr.bf16.gmra.mrb[0].mxu0 %v5601
  %v6293 = vpop.f32.mrb[0].mxu0
  %v6294 = vadd.f32 %v5408, %v6293
  %v6295 = vpop.f32.mrb[0].mxu0
  %v6296 = vpop.f32.mrb[0].mxu0
  %v6297 = vadd.f32 %v5408, %v6296
  %v6298 = vpop.f32.mrb[0].mxu0
  %6299 = vmatprep.mubr.bf16.mxu0 0
  %6300 = vmatmul.mubr.bf16.gmra.mrb[0].mxu0 %v5604
  %v6301 = vpop.f32.mrb[0].mxu0
  %v6302 = vadd.f32 %v5408, %v6301
  %v6303 = vpop.f32.mrb[0].mxu0
  %v6304 = vpop.f32.mrb[0].mxu0
  %v6305 = vadd.f32 %v5408, %v6304
  %v6306 = vpop.f32.mrb[0].mxu0
  %6307 = vmatprep.mubr.bf16.mxu0 0
  %6308 = vmatmul.mubr.bf16.gmra.mrb[0].mxu0 %v5607
  %v6309 = vpop.f32.mrb[0].mxu0
  %v6310 = vadd.f32 %v5408, %v6309
  %v6311 = vpop.f32.mrb[0].mxu0
  %v6312 = vpop.f32.mrb[0].mxu0
  %v6313 = vadd.f32 %v5408, %v6312
  %v6314 = vpop.f32.mrb[0].mxu0
  %6315 = vmatprep.mubr.bf16.mxu0 0
  %6316 = vmatmul.mubr.bf16.gmra.mrb[0].mxu0 %v5610
  %v6317 = vpop.f32.mrb[0].mxu0
  %v6318 = vadd.f32 %v5408, %v6317
  %v6319 = vpop.f32.mrb[0].mxu0
  %v6320 = vpop.f32.mrb[0].mxu0
  %v6321 = vadd.f32 %v5408, %v6320
  %v6322 = vpop.f32.mrb[0].mxu0
  %6323 = vmatprep.mubr.bf16.mxu0 0
  %6324 = vmatmul.mubr.bf16.gmra.mrb[0].mxu0 %v5613
  %v6325 = vpop.f32.mrb[0].mxu0
  %v6326 = vadd.f32 %v5408, %v6325
  %v6327 = vpop.f32.mrb[0].mxu0
  %v6328 = vpop.f32.mrb[0].mxu0
  %v6329 = vadd.f32 %v5408, %v6328
  %v6330 = vpop.f32.mrb[0].mxu0
  %6331 = vmatprep.mubr.bf16.mxu0 0
  %6332 = vmatmul.mubr.bf16.gmra.mrb[0].mxu0 %v5616
  %v6333 = vpop.f32.mrb[0].mxu0
  %v6334 = vadd.f32 %v5408, %v6333
  %v6335 = vpop.f32.mrb[0].mxu0
  %v6336 = vpop.f32.mrb[0].mxu0
  %v6337 = vadd.f32 %v5408, %v6336
  %v6338 = vpop.f32.mrb[0].mxu0
  %6339 = vmatprep.mubr.bf16.mxu0 0
  %6340 = vmatmul.mubr.bf16.gmra.mrb[0].mxu0 %v5619
  %v6341 = vpop.f32.mrb[0].mxu0
  %v6342 = vadd.f32 %v5408, %v6341
  %v6343 = vpop.f32.mrb[0].mxu0
  %v6344 = vpop.f32.mrb[0].mxu0
  %v6345 = vadd.f32 %v5408, %v6344
  %v6346 = vpop.f32.mrb[0].mxu0
  %6347 = vmatprep.mubr.bf16.mxu0 0
  %6348 = vmatmul.mubr.bf16.gmra.mrb[0].mxu0 %v5622
  %v6349 = vpop.f32.mrb[0].mxu0
  %v6350 = vadd.f32 %v5408, %v6349
  %v6351 = vpop.f32.mrb[0].mxu0
  %v6352 = vpop.f32.mrb[0].mxu0
  %v6353 = vadd.f32 %v5408, %v6352
  %v6354 = vpop.f32.mrb[0].mxu0
  %6355 = vmatprep.mubr.bf16.mxu0 0
  %6356 = vmatmul.mubr.bf16.gmra.mrb[0].mxu0 %v5625
  %v6357 = vpop.f32.mrb[0].mxu0
  %v6358 = vadd.f32 %v5408, %v6357
  %v6359 = vpop.f32.mrb[0].mxu0
  %v6360 = vpop.f32.mrb[0].mxu0
  %v6361 = vadd.f32 %v5408, %v6360
  %v6362 = vpop.f32.mrb[0].mxu0
  %6363 = vmatprep.mubr.bf16.mxu0 0
  %6364 = vmatmul.mubr.bf16.gmra.mrb[0].mxu0 %v5628
  %v6365 = vpop.f32.mrb[0].mxu0
  %v6366 = vadd.f32 %v5408, %v6365
  %v6367 = vpop.f32.mrb[0].mxu0
  %v6368 = vpop.f32.mrb[0].mxu0
  %v6369 = vadd.f32 %v5408, %v6368
  %v6370 = vpop.f32.mrb[0].mxu0
  %6371 = vmatprep.mubr.bf16.mxu0 0
  %6372 = vmatmul.mubr.bf16.gmra.mrb[0].mxu0 %v5631
  %v6373 = vpop.f32.mrb[0].mxu0
  %v6374 = vadd.f32 %v5408, %v6373
  %v6375 = vpop.f32.mrb[0].mxu0
  %v6376 = vpop.f32.mrb[0].mxu0
  %v6377 = vadd.f32 %v5408, %v6376
  %v6378 = vpop.f32.mrb[0].mxu0
  %6379 = vmatprep.mubr.bf16.mxu0 0
  %6380 = vmatmul.mubr.bf16.gmra.mrb[0].mxu0 %v5634
  %v6381 = vpop.f32.mrb[0].mxu0
  %v6382 = vadd.f32 %v5408, %v6381
  %v6383 = vpop.f32.mrb[0].mxu0
  %v6384 = vpop.f32.mrb[0].mxu0
  %v6385 = vadd.f32 %v5408, %v6384
  %v6386 = vpop.f32.mrb[0].mxu0
  %6387 = vmatprep.mubr.bf16.mxu0 0
  %6388 = vmatmul.mubr.bf16.gmra.mrb[0].mxu0 %v5637
  %v6389 = vpop.f32.mrb[0].mxu0
  %v6390 = vadd.f32 %v5408, %v6389
  %v6391 = vpop.f32.mrb[0].mxu0
  %v6392 = vpop.f32.mrb[0].mxu0
  %v6393 = vadd.f32 %v5408, %v6392
  %v6394 = vpop.f32.mrb[0].mxu0
  %6395 = vmatprep.mubr.bf16.mxu0 0
  %6396 = vmatmul.mubr.bf16.gmra.mrb[0].mxu0 %v5640
  %v6397 = vpop.f32.mrb[0].mxu0
  %v6398 = vadd.f32 %v5408, %v6397
  %v6399 = vpop.f32.mrb[0].mxu0
  %v6400 = vpop.f32.mrb[0].mxu0
  %v6401 = vadd.f32 %v5408, %v6400
  %v6402 = vpop.f32.mrb[0].mxu0
  %6403 = vmatprep.mubr.bf16.mxu0 0
  %6404 = vmatmul.mubr.bf16.gmra.mrb[0].mxu0 %v5643
  %v6405 = vpop.f32.mrb[0].mxu0
  %v6406 = vadd.f32 %v5408, %v6405
  %v6407 = vpop.f32.mrb[0].mxu0
  %v6408 = vpop.f32.mrb[0].mxu0
  %v6409 = vadd.f32 %v5408, %v6408
  %v6410 = vpop.f32.mrb[0].mxu0
  %6411 = vmatprep.mubr.bf16.mxu0 0
  %6412 = vmatmul.mubr.bf16.gmra.mrb[0].mxu0 %v5646
  %v6413 = vpop.f32.mrb[0].mxu0
  %v6414 = vadd.f32 %v5408, %v6413
  %v6415 = vpop.f32.mrb[0].mxu0
  %v6416 = vpop.f32.mrb[0].mxu0
  %v6417 = vadd.f32 %v5408, %v6416
  %v6418 = vpop.f32.mrb[0].mxu0
  %6419 = vmatprep.mubr.bf16.mxu0 0
  %6420 = vmatmul.mubr.bf16.gmra.mrb[0].mxu0 %v5649
  %v6421 = vpop.f32.mrb[0].mxu0
  %v6422 = vadd.f32 %v5408, %v6421
  %v6423 = vpop.f32.mrb[0].mxu0
  %v6424 = vpop.f32.mrb[0].mxu0
  %v6425 = vadd.f32 %v5408, %v6424
  %v6426 = vpop.f32.mrb[0].mxu0
  %6427 = vmatprep.mubr.bf16.mxu0 0
  %6428 = vmatmul.mubr.bf16.gmra.mrb[0].mxu0 %v5652
  %v6429 = vpop.f32.mrb[0].mxu0
  %v6430 = vadd.f32 %v5408, %v6429
  %v6431 = vpop.f32.mrb[0].mxu0
  %v6432 = vpop.f32.mrb[0].mxu0
  %v6433 = vadd.f32 %v5408, %v6432
  %v6434 = vpop.f32.mrb[0].mxu0
  %6435 = vmatprep.mubr.bf16.mxu0 0
  %6436 = vmatmul.mubr.bf16.gmra.mrb[0].mxu0 %v5655
  %v6437 = vpop.f32.mrb[0].mxu0
  %v6438 = vadd.f32 %v5408, %v6437
  %v6439 = vpop.f32.mrb[0].mxu0
  %v6440 = vpop.f32.mrb[0].mxu0
  %v6441 = vadd.f32 %v5408, %v6440
  %v6442 = vpop.f32.mrb[0].mxu0
  %6443 = vmatprep.mubr.bf16.mxu0 0
  %6444 = vmatmul.mubr.bf16.gmra.mrb[0].mxu0 %v5658
  %v6445 = vpop.f32.mrb[0].mxu0
  %v6446 = vadd.f32 %v5408, %v6445
  %v6447 = vpop.f32.mrb[0].mxu0
  %v6448 = vpop.f32.mrb[0].mxu0
  %v6449 = vadd.f32 %v5408, %v6448
  %v6450 = vpop.f32.mrb[0].mxu0
  %6451 = vmatprep.mubr.bf16.mxu0 0
  %6452 = vmatmul.mubr.bf16.gmra.mrb[0].mxu0 %v5661
  %v6453 = vpop.f32.mrb[0].mxu0
  %v6454 = vadd.f32 %v5408, %v6453
  %v6455 = vpop.f32.mrb[0].mxu0
  %v6456 = vpop.f32.mrb[0].mxu0
  %v6457 = vadd.f32 %v5408, %v6456
  %v6458 = vpop.f32.mrb[0].mxu0
  %6459 = vmatprep.mubr.bf16.mxu0 0
  %6460 = vmatmul.mubr.bf16.gmra.mrb[0].mxu0 %v5664
  %v6461 = vpop.f32.mrb[0].mxu0
  %v6462 = vadd.f32 %v5408, %v6461
  %v6463 = vpop.f32.mrb[0].mxu0
  %v6464 = vpop.f32.mrb[0].mxu0
  %v6465 = vadd.f32 %v5408, %v6464
  %v6466 = vpop.f32.mrb[0].mxu0
  %6467 = vmatprep.mubr.bf16.mxu0 0
  %6468 = vmatmul.mubr.bf16.gmra.mrb[0].mxu0 %v5667
  %v6469 = vpop.f32.mrb[0].mxu0
  %v6470 = vadd.f32 %v5408, %v6469
  %v6471 = vpop.f32.mrb[0].mxu0
  %v6472 = vpop.f32.mrb[0].mxu0
  %v6473 = vadd.f32 %v5408, %v6472
  %v6474 = vpop.f32.mrb[0].mxu0
  %6475 = vmatprep.mubr.bf16.mxu0 0
  %6476 = vmatmul.mubr.bf16.gmra.mrb[0].mxu0 %v5670
  %v6477 = vpop.f32.mrb[0].mxu0
  %v6478 = vadd.f32 %v5408, %v6477
  %v6479 = vpop.f32.mrb[0].mxu0
  %v6480 = vpop.f32.mrb[0].mxu0
  %v6481 = vadd.f32 %v5408, %v6480
  %v6482 = vpop.f32.mrb[0].mxu0
  %6483 = vmatprep.mubr.bf16.mxu0 0
  %6484 = vmatmul.mubr.bf16.gmra.mrb[0].mxu0 %v5673
  %v6485 = vpop.f32.mrb[0].mxu0
  %v6486 = vadd.f32 %v5408, %v6485
  %v6487 = vpop.f32.mrb[0].mxu0
  %v6488 = vpop.f32.mrb[0].mxu0
  %v6489 = vadd.f32 %v5408, %v6488
  %v6490 = vpop.f32.mrb[0].mxu0
  %6491 = vmatprep.mubr.bf16.mxu0 0
  %6492 = vmatmul.mubr.bf16.gmra.mrb[0].mxu0 %v5676
  %v6493 = vpop.f32.mrb[0].mxu0
  %v6494 = vadd.f32 %v5408, %v6493
  %v6495 = vpop.f32.mrb[0].mxu0
  %v6496 = vpop.f32.mrb[0].mxu0
  %v6497 = vadd.f32 %v5408, %v6496
  %v6498 = vpop.f32.mrb[0].mxu0
  %6499 = vmatprep.mubr.bf16.mxu0 0
  %6500 = vmatmul.mubr.bf16.gmra.mrb[0].mxu0 %v5679
  %v6501 = vpop.f32.mrb[0].mxu0
  %v6502 = vadd.f32 %v5408, %v6501
  %v6503 = vpop.f32.mrb[0].mxu0
  %v6504 = vpop.f32.mrb[0].mxu0
  %v6505 = vadd.f32 %v5408, %v6504
  %v6506 = vpop.f32.mrb[0].mxu0
  %6507 = vmatprep.mubr.bf16.mxu0 0
  %6508 = vmatmul.mubr.bf16.gmra.mrb[0].mxu0 %v5682
  %v6509 = vpop.f32.mrb[0].mxu0
  %v6510 = vadd.f32 %v5408, %v6509
  %v6511 = vpop.f32.mrb[0].mxu0
  %v6512 = vpop.f32.mrb[0].mxu0
  %v6513 = vadd.f32 %v5408, %v6512
  %v6514 = vpop.f32.mrb[0].mxu0
  %6515 = vmatprep.mubr.bf16.mxu0 0
  %6516 = vmatmul.mubr.bf16.gmra.mrb[0].mxu0 %v5685
  %v6517 = vpop.f32.mrb[0].mxu0
  %v6518 = vadd.f32 %v5408, %v6517
  %v6519 = vpop.f32.mrb[0].mxu0
  %v6520 = vpop.f32.mrb[0].mxu0
  %v6521 = vadd.f32 %v5408, %v6520
  %v6522 = vpop.f32.mrb[0].mxu0
  %6523 = vmatprep.mubr.bf16.mxu0 0
  %6524 = vmatmul.mubr.bf16.gmra.mrb[0].mxu0 %v5688
  %v6525 = vpop.f32.mrb[0].mxu0
  %v6526 = vadd.f32 %v5408, %v6525
  %v6527 = vpop.f32.mrb[0].mxu0
  %v6528 = vpop.f32.mrb[0].mxu0
  %v6529 = vadd.f32 %v5408, %v6528
  %v6530 = vpop.f32.mrb[0].mxu0
  %6531 = vmatprep.mubr.bf16.mxu0 0
  %6532 = vmatmul.mubr.bf16.gmra.mrb[0].mxu0 %v5691
  %v6533 = vpop.f32.mrb[0].mxu0
  %v6534 = vadd.f32 %v5408, %v6533
  %v6535 = vpop.f32.mrb[0].mxu0
  %v6536 = vpop.f32.mrb[0].mxu0
  %v6537 = vadd.f32 %v5408, %v6536
  %v6538 = vpop.f32.mrb[0].mxu0
  %6539 = vmatprep.mubr.bf16.mxu0 0
  %6540 = vmatmul.mubr.bf16.gmra.mrb[0].mxu0 %v5694
  %v6541 = vpop.f32.mrb[0].mxu0
  %v6542 = vadd.f32 %v5408, %v6541
  %v6543 = vpop.f32.mrb[0].mxu0
  %v6544 = vpop.f32.mrb[0].mxu0
  %v6545 = vadd.f32 %v5408, %v6544
  %v6546 = vpop.f32.mrb[0].mxu0
  %6547 = vmatprep.mubr.bf16.mxu0 0
  %6548 = vmatmul.mubr.bf16.gmra.mrb[0].mxu0 %v5697
  %v6549 = vpop.f32.mrb[0].mxu0
  %v6550 = vadd.f32 %v5408, %v6549
  %v6551 = vpop.f32.mrb[0].mxu0
  %v6552 = vpop.f32.mrb[0].mxu0
  %v6553 = vadd.f32 %v5408, %v6552
  %v6554 = vpop.f32.mrb[0].mxu0
  %6555 = vmatprep.mubr.bf16.mxu0 0
  %6556 = vmatmul.mubr.bf16.gmra.mrb[0].mxu0 %v5700
  %v6557 = vpop.f32.mrb[0].mxu0
  %v6558 = vadd.f32 %v5408, %v6557
  %v6559 = vpop.f32.mrb[0].mxu0
  %v6560 = vpop.f32.mrb[0].mxu0
  %v6561 = vadd.f32 %v5408, %v6560
  %v6562 = vpop.f32.mrb[0].mxu0
  %6563 = vmatprep.mubr.bf16.mxu0 0
  %6564 = vmatmul.mubr.bf16.gmra.mrb[0].mxu0 %v5703
  %v6565 = vpop.f32.mrb[0].mxu0
  %v6566 = vadd.f32 %v5408, %v6565
  %v6567 = vpop.f32.mrb[0].mxu0
  %v6568 = vpop.f32.mrb[0].mxu0
  %v6569 = vadd.f32 %v5408, %v6568
  %v6570 = vpop.f32.mrb[0].mxu0
  %6571 = vmatprep.mubr.bf16.mxu0 0
  %6572 = vmatmul.mubr.bf16.gmra.mrb[0].mxu0 %v5706
  %v6573 = vpop.f32.mrb[0].mxu0
  %v6574 = vadd.f32 %v5408, %v6573
  %v6575 = vpop.f32.mrb[0].mxu0
  %v6576 = vpop.f32.mrb[0].mxu0
  %v6577 = vadd.f32 %v5408, %v6576
  %v6578 = vpop.f32.mrb[0].mxu0
  %6579 = vmatprep.mubr.bf16.mxu0 0
  %6580 = vmatmul.mubr.bf16.gmra.mrb[0].mxu0 %v5709
  %v6581 = vpop.f32.mrb[0].mxu0
  %v6582 = vadd.f32 %v5408, %v6581
  %v6583 = vpop.f32.mrb[0].mxu0
  %v6584 = vpop.f32.mrb[0].mxu0
  %v6585 = vadd.f32 %v5408, %v6584
  %v6586 = vpop.f32.mrb[0].mxu0
  %6587 = vmatprep.mubr.bf16.mxu0 0
  %6588 = vmatmul.mubr.bf16.gmra.mrb[0].mxu0 %v5712
  %v6589 = vpop.f32.mrb[0].mxu0
  %v6590 = vadd.f32 %v5408, %v6589
  %v6591 = vpop.f32.mrb[0].mxu0
  %v6592 = vpop.f32.mrb[0].mxu0
  %v6593 = vadd.f32 %v5408, %v6592
  %v6594 = vpop.f32.mrb[0].mxu0
  %6595 = vmatprep.mubr.bf16.mxu0 0
  %6596 = vmatmul.mubr.bf16.gmra.mrb[0].mxu0 %v5715
  %v6597 = vpop.f32.mrb[0].mxu0
  %v6598 = vadd.f32 %v5408, %v6597
  %v6599 = vpop.f32.mrb[0].mxu0
  %v6600 = vpop.f32.mrb[0].mxu0
  %v6601 = vadd.f32 %v5408, %v6600
  %v6602 = vpop.f32.mrb[0].mxu0
  %6603 = vmatprep.mubr.bf16.mxu0 0
  %6604 = vmatmul.mubr.bf16.gmra.mrb[0].mxu0 %v5718
  %v6605 = vpop.f32.mrb[0].mxu0
  %v6606 = vadd.f32 %v5408, %v6605
  %v6607 = vpop.f32.mrb[0].mxu0
  %v6608 = vpop.f32.mrb[0].mxu0
  %v6609 = vadd.f32 %v5408, %v6608
  %v6610 = vpop.f32.mrb[0].mxu0
  %6611 = vmatprep.mubr.bf16.mxu0 0
  %6612 = vmatmul.mubr.bf16.gmra.mrb[0].mxu0 %v5721
  %v6613 = vpop.f32.mrb[0].mxu0
  %v6614 = vadd.f32 %v5408, %v6613
  %v6615 = vpop.f32.mrb[0].mxu0
  %v6616 = vpop.f32.mrb[0].mxu0
  %v6617 = vadd.f32 %v5408, %v6616
  %v6618 = vpop.f32.mrb[0].mxu0
  %6619 = vmatprep.mubr.bf16.mxu0 0
  %6620 = vmatmul.mubr.bf16.gmra.mrb[0].mxu0 %v5724
  %v6621 = vpop.f32.mrb[0].mxu0
  %v6622 = vadd.f32 %v5408, %v6621
  %v6623 = vpop.f32.mrb[0].mxu0
  %v6624 = vpop.f32.mrb[0].mxu0
  %v6625 = vadd.f32 %v5408, %v6624
  %v6626 = vpop.f32.mrb[0].mxu0
  %6627 = vmatprep.mubr.bf16.mxu0 0
  %6628 = vmatmul.mubr.bf16.gmra.mrb[0].mxu0 %v5727
  %v6629 = vpop.f32.mrb[0].mxu0
  %v6630 = vadd.f32 %v5408, %v6629
  %v6631 = vpop.f32.mrb[0].mxu0
  %v6632 = vpop.f32.mrb[0].mxu0
  %v6633 = vadd.f32 %v5408, %v6632
  %v6634 = vpop.f32.mrb[0].mxu0
  %6635 = vmatprep.mubr.bf16.mxu0 0
  %6636 = vmatmul.mubr.bf16.gmra.mrb[0].mxu0 %v5730
  %v6637 = vpop.f32.mrb[0].mxu0
  %v6638 = vadd.f32 %v5408, %v6637
  %v6639 = vpop.f32.mrb[0].mxu0
  %v6640 = vpop.f32.mrb[0].mxu0
  %v6641 = vadd.f32 %v5408, %v6640
  %v6642 = vpop.f32.mrb[0].mxu0
  %6643 = vmatprep.mubr.bf16.mxu0 0
  %6644 = vmatmul.mubr.bf16.gmra.mrb[0].mxu0 %v5733
  %v6645 = vpop.f32.mrb[0].mxu0
  %v6646 = vadd.f32 %v5408, %v6645
  %v6647 = vpop.f32.mrb[0].mxu0
  %v6648 = vpop.f32.mrb[0].mxu0
  %v6649 = vadd.f32 %v5408, %v6648
  %v6650 = vpop.f32.mrb[0].mxu0
  %6651 = vmatprep.mubr.bf16.mxu0 0
  %6652 = vmatmul.mubr.bf16.gmra.mrb[0].mxu0 %v5736
  %v6653 = vpop.f32.mrb[0].mxu0
  %v6654 = vadd.f32 %v5408, %v6653
  %v6655 = vpop.f32.mrb[0].mxu0
  %v6656 = vpop.f32.mrb[0].mxu0
  %v6657 = vadd.f32 %v5408, %v6656
  %v6658 = vpop.f32.mrb[0].mxu0
  %6659 = vmatprep.mubr.bf16.mxu0 0
  %6660 = vmatmul.mubr.bf16.gmra.mrb[0].mxu0 %v5739
  %v6661 = vpop.f32.mrb[0].mxu0
  %v6662 = vadd.f32 %v5408, %v6661
  %v6663 = vpop.f32.mrb[0].mxu0
  %v6664 = vpop.f32.mrb[0].mxu0
  %v6665 = vadd.f32 %v5408, %v6664
  %v6666 = vpop.f32.mrb[0].mxu0
  %6667 = vmatprep.mubr.bf16.mxu0 0
  %6668 = vmatmul.mubr.bf16.gmra.mrb[0].mxu0 %v5742
  %v6669 = vpop.f32.mrb[0].mxu0
  %v6670 = vadd.f32 %v5408, %v6669
  %v6671 = vpop.f32.mrb[0].mxu0
  %v6672 = vpop.f32.mrb[0].mxu0
  %v6673 = vadd.f32 %v5408, %v6672
  %v6674 = vpop.f32.mrb[0].mxu0
  %6675 = vmatprep.mubr.bf16.mxu0 0
  %6676 = vmatmul.mubr.bf16.gmra.mrb[0].mxu0 %v5745
  %v6677 = vpop.f32.mrb[0].mxu0
  %v6678 = vadd.f32 %v5408, %v6677
  %v6679 = vpop.f32.mrb[0].mxu0
  %v6680 = vpop.f32.mrb[0].mxu0
  %v6681 = vadd.f32 %v5408, %v6680
  %v6682 = vpop.f32.mrb[0].mxu0
  %6683 = vmatprep.mubr.bf16.mxu0 0
  %6684 = vmatmul.mubr.bf16.gmra.mrb[0].mxu0 %v5748
  %v6685 = vpop.f32.mrb[0].mxu0
  %v6686 = vadd.f32 %v5408, %v6685
  %v6687 = vpop.f32.mrb[0].mxu0
  %v6688 = vpop.f32.mrb[0].mxu0
  %v6689 = vadd.f32 %v5408, %v6688
  %v6690 = vpop.f32.mrb[0].mxu0
  %6691 = vmatprep.mubr.bf16.mxu0 0
  %6692 = vmatmul.mubr.bf16.gmra.mrb[0].mxu0 %v5751
  %v6693 = vpop.f32.mrb[0].mxu0
  %v6694 = vadd.f32 %v5408, %v6693
  %v6695 = vpop.f32.mrb[0].mxu0
  %v6696 = vpop.f32.mrb[0].mxu0
  %v6697 = vadd.f32 %v5408, %v6696
  %v6698 = vpop.f32.mrb[0].mxu0
  %6699 = vmatprep.mubr.bf16.mxu0 0
  %6700 = vmatmul.mubr.bf16.gmra.mrb[0].mxu0 %v5754
  %v6701 = vpop.f32.mrb[0].mxu0
  %v6702 = vadd.f32 %v5408, %v6701
  %v6703 = vpop.f32.mrb[0].mxu0
  %v6704 = vpop.f32.mrb[0].mxu0
  %v6705 = vadd.f32 %v5408, %v6704
  %v6706 = vpop.f32.mrb[0].mxu0
  %6707 = vmatprep.mubr.bf16.mxu0 0
  %6708 = vmatmul.mubr.bf16.gmra.mrb[0].mxu0 %v5757
  %v6709 = vpop.f32.mrb[0].mxu0
  %v6710 = vadd.f32 %v5408, %v6709
  %v6711 = vpop.f32.mrb[0].mxu0
  %v6712 = vpop.f32.mrb[0].mxu0
  %v6713 = vadd.f32 %v5408, %v6712
  %v6714 = vpop.f32.mrb[0].mxu0
  %6715 = vmatprep.mubr.bf16.mxu0 0
  %6716 = vmatmul.mubr.bf16.gmra.mrb[0].mxu0 %v5760
  %v6717 = vpop.f32.mrb[0].mxu0
  %v6718 = vadd.f32 %v5408, %v6717
  %v6719 = vpop.f32.mrb[0].mxu0
  %v6720 = vpop.f32.mrb[0].mxu0
  %v6721 = vadd.f32 %v5408, %v6720
  %v6722 = vpop.f32.mrb[0].mxu0
  %6723 = vmatprep.mubr.bf16.mxu0 0
  %6724 = vmatmul.mubr.bf16.gmra.mrb[0].mxu0 %v5763
  %v6725 = vpop.f32.mrb[0].mxu0
  %v6726 = vadd.f32 %v5408, %v6725
  %v6727 = vpop.f32.mrb[0].mxu0
  %v6728 = vpop.f32.mrb[0].mxu0
  %v6729 = vadd.f32 %v5408, %v6728
  %v6730 = vpop.f32.mrb[0].mxu0
  %6731 = vmatprep.mubr.bf16.mxu0 0
  %6732 = vmatmul.mubr.bf16.gmra.mrb[0].mxu0 %v5766
  %v6733 = vpop.f32.mrb[0].mxu0
  %v6734 = vadd.f32 %v5408, %v6733
  %v6735 = vpop.f32.mrb[0].mxu0
  %v6736 = vpop.f32.mrb[0].mxu0
  %v6737 = vadd.f32 %v5408, %v6736
  %v6738 = vpop.f32.mrb[0].mxu0
  %6739 = vmatprep.mubr.bf16.mxu0 0
  %6740 = vmatmul.mubr.bf16.gmra.mrb[0].mxu0 %v5769
  %v6741 = vpop.f32.mrb[0].mxu0
  %v6742 = vadd.f32 %v5408, %v6741
  %v6743 = vpop.f32.mrb[0].mxu0
  %v6744 = vpop.f32.mrb[0].mxu0
  %v6745 = vadd.f32 %v5408, %v6744
  %v6746 = vpop.f32.mrb[0].mxu0
  %6747 = vmatprep.mubr.bf16.mxu0 0
  %6748 = vmatmul.mubr.bf16.gmra.mrb[0].mxu0 %v5772
  %v6749 = vpop.f32.mrb[0].mxu0
  %v6750 = vadd.f32 %v5408, %v6749
  %v6751 = vpop.f32.mrb[0].mxu0
  %v6752 = vpop.f32.mrb[0].mxu0
  %v6753 = vadd.f32 %v5408, %v6752
  %v6754 = vpop.f32.mrb[0].mxu0
  %6755 = vmatprep.mubr.bf16.mxu0 0
  %6756 = vmatmul.mubr.bf16.gmra.mrb[0].mxu0 %v5775
  %v6757 = vpop.f32.mrb[0].mxu0
  %v6758 = vadd.f32 %v5408, %v6757
  %v6759 = vpop.f32.mrb[0].mxu0
  %v6760 = vpop.f32.mrb[0].mxu0
  %v6761 = vadd.f32 %v5408, %v6760
  %v6762 = vpop.f32.mrb[0].mxu0
  %6763 = vmatprep.mubr.bf16.mxu0 0
  %6764 = vmatmul.mubr.bf16.gmra.mrb[0].mxu0 %v5778
  %v6765 = vpop.f32.mrb[0].mxu0
  %v6766 = vadd.f32 %v5408, %v6765
  %v6767 = vpop.f32.mrb[0].mxu0
  %v6768 = vpop.f32.mrb[0].mxu0
  %v6769 = vadd.f32 %v5408, %v6768
  %v6770 = vpop.f32.mrb[0].mxu0
  %6771 = vmatprep.mubr.bf16.mxu0 0
  %6772 = vmatmul.mubr.bf16.gmra.mrb[0].mxu0 %v5781
  %v6773 = vpop.f32.mrb[0].mxu0
  %v6774 = vadd.f32 %v5408, %v6773
  %v6775 = vpop.f32.mrb[0].mxu0
  %v6776 = vpop.f32.mrb[0].mxu0
  %v6777 = vadd.f32 %v5408, %v6776
  %v6778 = vpop.f32.mrb[0].mxu0
  %6779 = vmatprep.mubr.bf16.mxu0 0
  %6780 = vmatmul.mubr.bf16.gmra.mrb[0].mxu0 %v5784
  %v6781 = vpop.f32.mrb[0].mxu0
  %v6782 = vadd.f32 %v5408, %v6781
  %v6783 = vpop.f32.mrb[0].mxu0
  %v6784 = vpop.f32.mrb[0].mxu0
  %v6785 = vadd.f32 %v5408, %v6784
  %v6786 = vpop.f32.mrb[0].mxu0
  %6787 = vmatprep.mubr.bf16.mxu0 0
  %6788 = vmatmul.mubr.bf16.gmra.mrb[0].mxu0 %v5787
  %v6789 = vpop.f32.mrb[0].mxu0
  %v6790 = vadd.f32 %v5408, %v6789
  %v6791 = vpop.f32.mrb[0].mxu0
  %v6792 = vpop.f32.mrb[0].mxu0
  %v6793 = vadd.f32 %v5408, %v6792
  %v6794 = vpop.f32.mrb[0].mxu0
  %6795 = vmatprep.mubr.bf16.mxu0 0
  %6796 = vmatmul.mubr.bf16.gmra.mrb[0].mxu0 %v5790
  %v6797 = vpop.f32.mrb[0].mxu0
  %v6798 = vadd.f32 %v5408, %v6797
  %v6799 = vpop.f32.mrb[0].mxu0
  %v6800 = vpop.f32.mrb[0].mxu0
  %v6801 = vadd.f32 %v5408, %v6800
  %v6802 = vpop.f32.mrb[0].mxu0
  %6803 = vmatprep.mubr.bf16.mxu0 0
  %6804 = vmatmul.mubr.bf16.gmra.mrb[0].mxu0 %v5793
  %v6805 = vpop.f32.mrb[0].mxu0
  %v6806 = vadd.f32 %v5408, %v6805
  %v6807 = vpop.f32.mrb[0].mxu0
  %v6808 = vpop.f32.mrb[0].mxu0
  %v6809 = vadd.f32 %v5408, %v6808
  %v6810 = vpop.f32.mrb[0].mxu0
  %6811 = vmatprep.mubr.bf16.mxu0 0
  %6812 = vmatmul.mubr.bf16.gmra.mrb[0].mxu0 %v5796
  %v6813 = vpop.f32.mrb[0].mxu0
  %v6814 = vadd.f32 %v5408, %v6813
  %v6815 = vpop.f32.mrb[0].mxu0
  %v6816 = vpop.f32.mrb[0].mxu0
  %v6817 = vadd.f32 %v5408, %v6816
  %v6818 = vpop.f32.mrb[0].mxu0
  %6819 = vmatprep.mubr.bf16.mxu0 0
  %6820 = vmatmul.mubr.bf16.gmra.mrb[0].mxu0 %v5799
  %v6821 = vpop.f32.mrb[0].mxu0
  %v6822 = vadd.f32 %v5408, %v6821
  %v6823 = vpop.f32.mrb[0].mxu0
  %v6824 = vpop.f32.mrb[0].mxu0
  %v6825 = vadd.f32 %v5408, %v6824
  %v6826 = vpop.f32.mrb[0].mxu0
  %6827 = vmatprep.mubr.bf16.mxu0 0
  %6828 = vmatmul.mubr.bf16.gmra.mrb[0].mxu0 %v5802
  %v6829 = vpop.f32.mrb[0].mxu0
  %v6830 = vadd.f32 %v5408, %v6829
  %v6831 = vpop.f32.mrb[0].mxu0
  %v6832 = vpop.f32.mrb[0].mxu0
  %v6833 = vadd.f32 %v5408, %v6832
  %v6834 = vpop.f32.mrb[0].mxu0
  %6835 = vmatprep.mubr.bf16.mxu0 0
  %6836 = vmatmul.mubr.bf16.gmra.mrb[0].mxu0 %v5805
  %v6837 = vpop.f32.mrb[0].mxu0
  %v6838 = vadd.f32 %v5408, %v6837
  %v6839 = vpop.f32.mrb[0].mxu0
  %v6840 = vpop.f32.mrb[0].mxu0
  %v6841 = vadd.f32 %v5408, %v6840
  %v6842 = vpop.f32.mrb[0].mxu0
  %6843 = vmatprep.mubr.bf16.mxu0 0
  %6844 = vmatmul.mubr.bf16.gmra.mrb[0].mxu0 %v5808
  %v6845 = vpop.f32.mrb[0].mxu0
  %v6846 = vadd.f32 %v5408, %v6845
  %v6847 = vpop.f32.mrb[0].mxu0
  %v6848 = vpop.f32.mrb[0].mxu0
  %v6849 = vadd.f32 %v5408, %v6848
  %v6850 = vpop.f32.mrb[0].mxu0
  %6851 = vmatprep.mubr.bf16.mxu0 0
  %6852 = vmatmul.mubr.bf16.gmra.mrb[0].mxu0 %v5811
  %v6853 = vpop.f32.mrb[0].mxu0
  %v6854 = vadd.f32 %v5408, %v6853
  %v6855 = vpop.f32.mrb[0].mxu0
  %v6856 = vpop.f32.mrb[0].mxu0
  %v6857 = vadd.f32 %v5408, %v6856
  %v6858 = vpop.f32.mrb[0].mxu0
  %6859 = vmatprep.mubr.bf16.mxu0 0
  %6860 = vmatmul.mubr.bf16.gmra.mrb[0].mxu0 %v5814
  %v6861 = vpop.f32.mrb[0].mxu0
  %v6862 = vadd.f32 %v5408, %v6861
  %v6863 = vpop.f32.mrb[0].mxu0
  %v6864 = vpop.f32.mrb[0].mxu0
  %v6865 = vadd.f32 %v5408, %v6864
  %v6866 = vpop.f32.mrb[0].mxu0
  %6867 = vmatprep.mubr.bf16.mxu0 0
  %6868 = vmatmul.mubr.bf16.gmra.mrb[0].mxu0 %v5817
  %v6869 = vpop.f32.mrb[0].mxu0
  %v6870 = vadd.f32 %v5408, %v6869
  %v6871 = vpop.f32.mrb[0].mxu0
  %v6872 = vpop.f32.mrb[0].mxu0
  %v6873 = vadd.f32 %v5408, %v6872
  %v6874 = vpop.f32.mrb[0].mxu0
  %6875 = vdwg.mxu0
  %v6876 = vmax.f32 %v5854, 0.0
  %v6877 = vmax.f32 %v5857, 0.0
  %v6878 = vmax.f32 %v5862, 0.0
  %v6879 = vmax.f32 %v5865, 0.0
  %v6880 = vmax.f32 %v5870, 0.0
  %v6881 = vmax.f32 %v5873, 0.0
  %v6882 = vmax.f32 %v5878, 0.0
  %v6883 = vmax.f32 %v5881, 0.0
  %v6884 = vmax.f32 %v5886, 0.0
  %v6885 = vmax.f32 %v5889, 0.0
  %v6886 = vmax.f32 %v5894, 0.0
  %v6887 = vmax.f32 %v5897, 0.0
  %v6888 = vmax.f32 %v5902, 0.0
  %v6889 = vmax.f32 %v5905, 0.0
  %v6890 = vmax.f32 %v5910, 0.0
  %v6891 = vmax.f32 %v5913, 0.0
  %v6892 = vmax.f32 %v5918, 0.0
  %v6893 = vmax.f32 %v5921, 0.0
  %v6894 = vmax.f32 %v5926, 0.0
  %v6895 = vmax.f32 %v5929, 0.0
  %v6896 = vmax.f32 %v5934, 0.0
  %v6897 = vmax.f32 %v5937, 0.0
  %v6898 = vmax.f32 %v5942, 0.0
  %v6899 = vmax.f32 %v5945, 0.0
  %v6900 = vmax.f32 %v5950, 0.0
  %v6901 = vmax.f32 %v5953, 0.0
  %v6902 = vmax.f32 %v5958, 0.0
  %v6903 = vmax.f32 %v5961, 0.0
  %v6904 = vmax.f32 %v5966, 0.0
  %v6905 = vmax.f32 %v5969, 0.0
  %v6906 = vmax.f32 %v5974, 0.0
  %v6907 = vmax.f32 %v5977, 0.0
  %v6908 = vmax.f32 %v5982, 0.0
  %v6909 = vmax.f32 %v5985, 0.0
  %v6910 = vmax.f32 %v5990, 0.0
  %v6911 = vmax.f32 %v5993, 0.0
  %v6912 = vmax.f32 %v5998, 0.0
  %v6913 = vmax.f32 %v6001, 0.0
  %v6914 = vmax.f32 %v6006, 0.0
  %v6915 = vmax.f32 %v6009, 0.0
  %v6916 = vmax.f32 %v6014, 0.0
  %v6917 = vmax.f32 %v6017, 0.0
  %v6918 = vmax.f32 %v6022, 0.0
  %v6919 = vmax.f32 %v6025, 0.0
  %v6920 = vmax.f32 %v6030, 0.0
  %v6921 = vmax.f32 %v6033, 0.0
  %v6922 = vmax.f32 %v6038, 0.0
  %v6923 = vmax.f32 %v6041, 0.0
  %v6924 = vmax.f32 %v6046, 0.0
  %v6925 = vmax.f32 %v6049, 0.0
  %v6926 = vmax.f32 %v6054, 0.0
  %v6927 = vmax.f32 %v6057, 0.0
  %v6928 = vmax.f32 %v6062, 0.0
  %v6929 = vmax.f32 %v6065, 0.0
  %v6930 = vmax.f32 %v6070, 0.0
  %v6931 = vmax.f32 %v6073, 0.0
  %v6932 = vmax.f32 %v6078, 0.0
  %v6933 = vmax.f32 %v6081, 0.0
  %v6934 = vmax.f32 %v6086, 0.0
  %v6935 = vmax.f32 %v6089, 0.0
  %v6936 = vmax.f32 %v6094, 0.0
  %v6937 = vmax.f32 %v6097, 0.0
  %v6938 = vmax.f32 %v6102, 0.0
  %v6939 = vmax.f32 %v6105, 0.0
  %v6940 = vmax.f32 %v6110, 0.0
  %v6941 = vmax.f32 %v6113, 0.0
  %v6942 = vmax.f32 %v6118, 0.0
  %v6943 = vmax.f32 %v6121, 0.0
  %v6944 = vmax.f32 %v6126, 0.0
  %v6945 = vmax.f32 %v6129, 0.0
  %v6946 = vmax.f32 %v6134, 0.0
  %v6947 = vmax.f32 %v6137, 0.0
  %v6948 = vmax.f32 %v6142, 0.0
  %v6949 = vmax.f32 %v6145, 0.0
  %v6950 = vmax.f32 %v6150, 0.0
  %v6951 = vmax.f32 %v6153, 0.0
  %v6952 = vmax.f32 %v6158, 0.0
  %v6953 = vmax.f32 %v6161, 0.0
  %v6954 = vmax.f32 %v6166, 0.0
  %v6955 = vmax.f32 %v6169, 0.0
  %v6956 = vmax.f32 %v6174, 0.0
  %v6957 = vmax.f32 %v6177, 0.0
  %v6958 = vmax.f32 %v6182, 0.0
  %v6959 = vmax.f32 %v6185, 0.0
  %v6960 = vmax.f32 %v6190, 0.0
  %v6961 = vmax.f32 %v6193, 0.0
  %v6962 = vmax.f32 %v6198, 0.0
  %v6963 = vmax.f32 %v6201, 0.0
  %v6964 = vmax.f32 %v6206, 0.0
  %v6965 = vmax.f32 %v6209, 0.0
  %v6966 = vmax.f32 %v6214, 0.0
  %v6967 = vmax.f32 %v6217, 0.0
  %v6968 = vmax.f32 %v6222, 0.0
  %v6969 = vmax.f32 %v6225, 0.0
  %v6970 = vmax.f32 %v6230, 0.0
  %v6971 = vmax.f32 %v6233, 0.0
  %v6972 = vmax.f32 %v6238, 0.0
  %v6973 = vmax.f32 %v6241, 0.0
  %v6974 = vmax.f32 %v6246, 0.0
  %v6975 = vmax.f32 %v6249, 0.0
  %v6976 = vmax.f32 %v6254, 0.0
  %v6977 = vmax.f32 %v6257, 0.0
  %v6978 = vmax.f32 %v6262, 0.0
  %v6979 = vmax.f32 %v6265, 0.0
  %v6980 = vmax.f32 %v6270, 0.0
  %v6981 = vmax.f32 %v6273, 0.0
  %v6982 = vmax.f32 %v6278, 0.0
  %v6983 = vmax.f32 %v6281, 0.0
  %v6984 = vmax.f32 %v6286, 0.0
  %v6985 = vmax.f32 %v6289, 0.0
  %v6986 = vmax.f32 %v6294, 0.0
  %v6987 = vmax.f32 %v6297, 0.0
  %v6988 = vmax.f32 %v6302, 0.0
  %v6989 = vmax.f32 %v6305, 0.0
  %v6990 = vmax.f32 %v6310, 0.0
  %v6991 = vmax.f32 %v6313, 0.0
  %v6992 = vmax.f32 %v6318, 0.0
  %v6993 = vmax.f32 %v6321, 0.0
  %v6994 = vmax.f32 %v6326, 0.0
  %v6995 = vmax.f32 %v6329, 0.0
  %v6996 = vmax.f32 %v6334, 0.0
  %v6997 = vmax.f32 %v6337, 0.0
  %v6998 = vmax.f32 %v6342, 0.0
  %v6999 = vmax.f32 %v6345, 0.0
  %v7000 = vmax.f32 %v6350, 0.0
  %v7001 = vmax.f32 %v6353, 0.0
  %v7002 = vmax.f32 %v6358, 0.0
  %v7003 = vmax.f32 %v6361, 0.0
  %v7004 = vmax.f32 %v6366, 0.0
  %v7005 = vmax.f32 %v6369, 0.0
  %v7006 = vmax.f32 %v6374, 0.0
  %v7007 = vmax.f32 %v6377, 0.0
  %v7008 = vmax.f32 %v6382, 0.0
  %v7009 = vmax.f32 %v6385, 0.0
  %v7010 = vmax.f32 %v6390, 0.0
  %v7011 = vmax.f32 %v6393, 0.0
  %v7012 = vmax.f32 %v6398, 0.0
  %v7013 = vmax.f32 %v6401, 0.0
  %v7014 = vmax.f32 %v6406, 0.0
  %v7015 = vmax.f32 %v6409, 0.0
  %v7016 = vmax.f32 %v6414, 0.0
  %v7017 = vmax.f32 %v6417, 0.0
  %v7018 = vmax.f32 %v6422, 0.0
  %v7019 = vmax.f32 %v6425, 0.0
  %v7020 = vmax.f32 %v6430, 0.0
  %v7021 = vmax.f32 %v6433, 0.0
  %v7022 = vmax.f32 %v6438, 0.0
  %v7023 = vmax.f32 %v6441, 0.0
  %v7024 = vmax.f32 %v6446, 0.0
  %v7025 = vmax.f32 %v6449, 0.0
  %v7026 = vmax.f32 %v6454, 0.0
  %v7027 = vmax.f32 %v6457, 0.0
  %v7028 = vmax.f32 %v6462, 0.0
  %v7029 = vmax.f32 %v6465, 0.0
  %v7030 = vmax.f32 %v6470, 0.0
  %v7031 = vmax.f32 %v6473, 0.0
  %v7032 = vmax.f32 %v6478, 0.0
  %v7033 = vmax.f32 %v6481, 0.0
  %v7034 = vmax.f32 %v6486, 0.0
  %v7035 = vmax.f32 %v6489, 0.0
  %v7036 = vmax.f32 %v6494, 0.0
  %v7037 = vmax.f32 %v6497, 0.0
  %v7038 = vmax.f32 %v6502, 0.0
  %v7039 = vmax.f32 %v6505, 0.0
  %v7040 = vmax.f32 %v6510, 0.0
  %v7041 = vmax.f32 %v6513, 0.0
  %v7042 = vmax.f32 %v6518, 0.0
  %v7043 = vmax.f32 %v6521, 0.0
  %v7044 = vmax.f32 %v6526, 0.0
  %v7045 = vmax.f32 %v6529, 0.0
  %v7046 = vmax.f32 %v6534, 0.0
  %v7047 = vmax.f32 %v6537, 0.0
  %v7048 = vmax.f32 %v6542, 0.0
  %v7049 = vmax.f32 %v6545, 0.0
  %v7050 = vmax.f32 %v6550, 0.0
  %v7051 = vmax.f32 %v6553, 0.0
  %v7052 = vmax.f32 %v6558, 0.0
  %v7053 = vmax.f32 %v6561, 0.0
  %v7054 = vmax.f32 %v6566, 0.0
  %v7055 = vmax.f32 %v6569, 0.0
  %v7056 = vmax.f32 %v6574, 0.0
  %v7057 = vmax.f32 %v6577, 0.0
  %v7058 = vmax.f32 %v6582, 0.0
  %v7059 = vmax.f32 %v6585, 0.0
  %v7060 = vmax.f32 %v6590, 0.0
  %v7061 = vmax.f32 %v6593, 0.0
  %v7062 = vmax.f32 %v6598, 0.0
  %v7063 = vmax.f32 %v6601, 0.0
  %v7064 = vmax.f32 %v6606, 0.0
  %v7065 = vmax.f32 %v6609, 0.0
  %v7066 = vmax.f32 %v6614, 0.0
  %v7067 = vmax.f32 %v6617, 0.0
  %v7068 = vmax.f32 %v6622, 0.0
  %v7069 = vmax.f32 %v6625, 0.0
  %v7070 = vmax.f32 %v6630, 0.0
  %v7071 = vmax.f32 %v6633, 0.0
  %v7072 = vmax.f32 %v6638, 0.0
  %v7073 = vmax.f32 %v6641, 0.0
  %v7074 = vmax.f32 %v6646, 0.0
  %v7075 = vmax.f32 %v6649, 0.0
  %v7076 = vmax.f32 %v6654, 0.0
  %v7077 = vmax.f32 %v6657, 0.0
  %v7078 = vmax.f32 %v6662, 0.0
  %v7079 = vmax.f32 %v6665, 0.0
  %v7080 = vmax.f32 %v6670, 0.0
  %v7081 = vmax.f32 %v6673, 0.0
  %v7082 = vmax.f32 %v6678, 0.0
  %v7083 = vmax.f32 %v6681, 0.0
  %v7084 = vmax.f32 %v6686, 0.0
  %v7085 = vmax.f32 %v6689, 0.0
  %v7086 = vmax.f32 %v6694, 0.0
  %v7087 = vmax.f32 %v6697, 0.0
  %v7088 = vmax.f32 %v6702, 0.0
  %v7089 = vmax.f32 %v6705, 0.0
  %v7090 = vmax.f32 %v6710, 0.0
  %v7091 = vmax.f32 %v6713, 0.0
  %v7092 = vmax.f32 %v6718, 0.0
  %v7093 = vmax.f32 %v6721, 0.0
  %v7094 = vmax.f32 %v6726, 0.0
  %v7095 = vmax.f32 %v6729, 0.0
  %v7096 = vmax.f32 %v6734, 0.0
  %v7097 = vmax.f32 %v6737, 0.0
  %v7098 = vmax.f32 %v6742, 0.0
  %v7099 = vmax.f32 %v6745, 0.0
  %v7100 = vmax.f32 %v6750, 0.0
  %v7101 = vmax.f32 %v6753, 0.0
  %v7102 = vmax.f32 %v6758, 0.0
  %v7103 = vmax.f32 %v6761, 0.0
  %v7104 = vmax.f32 %v6766, 0.0
  %v7105 = vmax.f32 %v6769, 0.0
  %v7106 = vmax.f32 %v6774, 0.0
  %v7107 = vmax.f32 %v6777, 0.0
  %v7108 = vmax.f32 %v6782, 0.0
  %v7109 = vmax.f32 %v6785, 0.0
  %v7110 = vmax.f32 %v6790, 0.0
  %v7111 = vmax.f32 %v6793, 0.0
  %v7112 = vmax.f32 %v6798, 0.0
  %v7113 = vmax.f32 %v6801, 0.0
  %v7114 = vmax.f32 %v6806, 0.0
  %v7115 = vmax.f32 %v6809, 0.0
  %v7116 = vmax.f32 %v6814, 0.0
  %v7117 = vmax.f32 %v6817, 0.0
  %v7118 = vmax.f32 %v6822, 0.0
  %v7119 = vmax.f32 %v6825, 0.0
  %v7120 = vmax.f32 %v6830, 0.0
  %v7121 = vmax.f32 %v6833, 0.0
  %v7122 = vmax.f32 %v6838, 0.0
  %v7123 = vmax.f32 %v6841, 0.0
  %v7124 = vmax.f32 %v6846, 0.0
  %v7125 = vmax.f32 %v6849, 0.0
  %v7126 = vmax.f32 %v6854, 0.0
  %v7127 = vmax.f32 %v6857, 0.0
  %v7128 = vmax.f32 %v6862, 0.0
  %v7129 = vmax.f32 %v6865, 0.0
  %v7130 = vmax.f32 %v6870, 0.0
  %v7131 = vmax.f32 %v6873, 0.0
  %v7132 = vpack.c.bf16 %v6877, %v6876
  %v7133 = vpack.c.bf16 %v6879, %v6878
  %v7134 = vpack.c.bf16 %v6881, %v6880
  %v7135 = vpack.c.bf16 %v6883, %v6882
  %v7136 = vpack.c.bf16 %v6885, %v6884
  %v7137 = vpack.c.bf16 %v6887, %v6886
  %v7138 = vpack.c.bf16 %v6889, %v6888
  %v7139 = vpack.c.bf16 %v6891, %v6890
  %v7140 = vpack.c.bf16 %v6893, %v6892
  %v7141 = vpack.c.bf16 %v6895, %v6894
  %v7142 = vpack.c.bf16 %v6897, %v6896
  %v7143 = vpack.c.bf16 %v6899, %v6898
  %v7144 = vpack.c.bf16 %v6901, %v6900
  %v7145 = vpack.c.bf16 %v6903, %v6902
  %v7146 = vpack.c.bf16 %v6905, %v6904
  %v7147 = vpack.c.bf16 %v6907, %v6906
  %v7148 = vpack.c.bf16 %v6909, %v6908
  %v7149 = vpack.c.bf16 %v6911, %v6910
  %v7150 = vpack.c.bf16 %v6913, %v6912
  %v7151 = vpack.c.bf16 %v6915, %v6914
  %v7152 = vpack.c.bf16 %v6917, %v6916
  %v7153 = vpack.c.bf16 %v6919, %v6918
  %v7154 = vpack.c.bf16 %v6921, %v6920
  %v7155 = vpack.c.bf16 %v6923, %v6922
  %v7156 = vpack.c.bf16 %v6925, %v6924
  %v7157 = vpack.c.bf16 %v6927, %v6926
  %v7158 = vpack.c.bf16 %v6929, %v6928
  %v7159 = vpack.c.bf16 %v6931, %v6930
  %v7160 = vpack.c.bf16 %v6933, %v6932
  %v7161 = vpack.c.bf16 %v6935, %v6934
  %v7162 = vpack.c.bf16 %v6937, %v6936
  %v7163 = vpack.c.bf16 %v6939, %v6938
  %v7164 = vpack.c.bf16 %v6941, %v6940
  %v7165 = vpack.c.bf16 %v6943, %v6942
  %v7166 = vpack.c.bf16 %v6945, %v6944
  %v7167 = vpack.c.bf16 %v6947, %v6946
  %v7168 = vpack.c.bf16 %v6949, %v6948
  %v7169 = vpack.c.bf16 %v6951, %v6950
  %v7170 = vpack.c.bf16 %v6953, %v6952
  %v7171 = vpack.c.bf16 %v6955, %v6954
  %v7172 = vpack.c.bf16 %v6957, %v6956
  %v7173 = vpack.c.bf16 %v6959, %v6958
  %v7174 = vpack.c.bf16 %v6961, %v6960
  %v7175 = vpack.c.bf16 %v6963, %v6962
  %v7176 = vpack.c.bf16 %v6965, %v6964
  %v7177 = vpack.c.bf16 %v6967, %v6966
  %v7178 = vpack.c.bf16 %v6969, %v6968
  %v7179 = vpack.c.bf16 %v6971, %v6970
  %v7180 = vpack.c.bf16 %v6973, %v6972
  %v7181 = vpack.c.bf16 %v6975, %v6974
  %v7182 = vpack.c.bf16 %v6977, %v6976
  %v7183 = vpack.c.bf16 %v6979, %v6978
  %v7184 = vpack.c.bf16 %v6981, %v6980
  %v7185 = vpack.c.bf16 %v6983, %v6982
  %v7186 = vpack.c.bf16 %v6985, %v6984
  %v7187 = vpack.c.bf16 %v6987, %v6986
  %v7188 = vpack.c.bf16 %v6989, %v6988
  %v7189 = vpack.c.bf16 %v6991, %v6990
  %v7190 = vpack.c.bf16 %v6993, %v6992
  %v7191 = vpack.c.bf16 %v6995, %v6994
  %v7192 = vpack.c.bf16 %v6997, %v6996
  %v7193 = vpack.c.bf16 %v6999, %v6998
  %v7194 = vpack.c.bf16 %v7001, %v7000
  %v7195 = vpack.c.bf16 %v7003, %v7002
  %v7196 = vpack.c.bf16 %v7005, %v7004
  %v7197 = vpack.c.bf16 %v7007, %v7006
  %v7198 = vpack.c.bf16 %v7009, %v7008
  %v7199 = vpack.c.bf16 %v7011, %v7010
  %v7200 = vpack.c.bf16 %v7013, %v7012
  %v7201 = vpack.c.bf16 %v7015, %v7014
  %v7202 = vpack.c.bf16 %v7017, %v7016
  %v7203 = vpack.c.bf16 %v7019, %v7018
  %v7204 = vpack.c.bf16 %v7021, %v7020
  %v7205 = vpack.c.bf16 %v7023, %v7022
  %v7206 = vpack.c.bf16 %v7025, %v7024
  %v7207 = vpack.c.bf16 %v7027, %v7026
  %v7208 = vpack.c.bf16 %v7029, %v7028
  %v7209 = vpack.c.bf16 %v7031, %v7030
  %v7210 = vpack.c.bf16 %v7033, %v7032
  %v7211 = vpack.c.bf16 %v7035, %v7034
  %v7212 = vpack.c.bf16 %v7037, %v7036
  %v7213 = vpack.c.bf16 %v7039, %v7038
  %v7214 = vpack.c.bf16 %v7041, %v7040
  %v7215 = vpack.c.bf16 %v7043, %v7042
  %v7216 = vpack.c.bf16 %v7045, %v7044
  %v7217 = vpack.c.bf16 %v7047, %v7046
  %v7218 = vpack.c.bf16 %v7049, %v7048
  %v7219 = vpack.c.bf16 %v7051, %v7050
  %v7220 = vpack.c.bf16 %v7053, %v7052
  %v7221 = vpack.c.bf16 %v7055, %v7054
  %v7222 = vpack.c.bf16 %v7057, %v7056
  %v7223 = vpack.c.bf16 %v7059, %v7058
  %v7224 = vpack.c.bf16 %v7061, %v7060
  %v7225 = vpack.c.bf16 %v7063, %v7062
  %v7226 = vpack.c.bf16 %v7065, %v7064
  %v7227 = vpack.c.bf16 %v7067, %v7066
  %v7228 = vpack.c.bf16 %v7069, %v7068
  %v7229 = vpack.c.bf16 %v7071, %v7070
  %v7230 = vpack.c.bf16 %v7073, %v7072
  %v7231 = vpack.c.bf16 %v7075, %v7074
  %v7232 = vpack.c.bf16 %v7077, %v7076
  %v7233 = vpack.c.bf16 %v7079, %v7078
  %v7234 = vpack.c.bf16 %v7081, %v7080
  %v7235 = vpack.c.bf16 %v7083, %v7082
  %v7236 = vpack.c.bf16 %v7085, %v7084
  %v7237 = vpack.c.bf16 %v7087, %v7086
  %v7238 = vpack.c.bf16 %v7089, %v7088
  %v7239 = vpack.c.bf16 %v7091, %v7090
  %v7240 = vpack.c.bf16 %v7093, %v7092
  %v7241 = vpack.c.bf16 %v7095, %v7094
  %v7242 = vpack.c.bf16 %v7097, %v7096
  %v7243 = vpack.c.bf16 %v7099, %v7098
  %v7244 = vpack.c.bf16 %v7101, %v7100
  %v7245 = vpack.c.bf16 %v7103, %v7102
  %v7246 = vpack.c.bf16 %v7105, %v7104
  %v7247 = vpack.c.bf16 %v7107, %v7106
  %v7248 = vpack.c.bf16 %v7109, %v7108
  %v7249 = vpack.c.bf16 %v7111, %v7110
  %v7250 = vpack.c.bf16 %v7113, %v7112
  %v7251 = vpack.c.bf16 %v7115, %v7114
  %v7252 = vpack.c.bf16 %v7117, %v7116
  %v7253 = vpack.c.bf16 %v7119, %v7118
  %v7254 = vpack.c.bf16 %v7121, %v7120
  %v7255 = vpack.c.bf16 %v7123, %v7122
  %v7256 = vpack.c.bf16 %v7125, %v7124
  %v7257 = vpack.c.bf16 %v7127, %v7126
  %v7258 = vpack.c.bf16 %v7129, %v7128
  %v7259 = vpack.c.bf16 %v7131, %v7130
  %v7260 = vld [vmem:[%s7] sm:$0xf]
  %v7261 = vld [vmem:[%s7 + $0x4] sm:$0xf]
  %v7262 = vld [vmem:[%s7 + $0x8] sm:$0xf]
  %v7263 = vld [vmem:[%s7 + $0xc] sm:$0xf]
  %v7264 = vld [vmem:[%s7 + $0x10] sm:$0xf]
  %v7265 = vld [vmem:[%s7 + $0x14] sm:$0xf]
  %v7266 = vld [vmem:[%s7 + $0x18] sm:$0xf]
  %v7267 = vld [vmem:[%s7 + $0x1c] sm:$0xf]
  %v7268 = vld [vmem:[%s8] sm:$0x1]
  %v7270 = vlaneseq
  %v7271 = vshrl.u32 %v7270, 7
  %v7272 = vsub.s32 0, %v7271
  %v7273 = vrot.slane %v7268, %v7272
  %v7283 = vunpack.c.l.b16 %v7260
  %v7284 = vunpack.c.l.b16 %v7261
  %v7285 = vunpack.c.l.b16 %v7262
  %v7286 = vunpack.c.l.b16 %v7263
  %v7287 = vunpack.c.l.b16 %v7264
  %v7288 = vunpack.c.l.b16 %v7265
  %v7289 = vunpack.c.l.b16 %v7266
  %v7290 = vunpack.c.l.b16 %v7267
  %v7291 = vpack.c.b16 %v7284, %v7283
  %v7292 = vpack.c.b16 %v7286, %v7285
  %v7293 = vpack.c.b16 %v7288, %v7287
  %v7294 = vpack.c.b16 %v7290, %v7289
  %v7300 = vsel %vm5434, %v7132, 0
  %v7303 = vsel %vm5434, %v7133, 0
  %v7306 = vsel %vm5434, %v7134, 0
  %v7309 = vsel %vm5434, %v7135, 0
  %v7312 = vsel %vm5434, %v7136, 0
  %v7315 = vsel %vm5434, %v7137, 0
  %v7318 = vsel %vm5434, %v7138, 0
  %v7321 = vsel %vm5434, %v7139, 0
  %v7324 = vsel %vm5434, %v7140, 0
  %v7327 = vsel %vm5434, %v7141, 0
  %v7330 = vsel %vm5434, %v7142, 0
  %v7333 = vsel %vm5434, %v7143, 0
  %v7336 = vsel %vm5434, %v7144, 0
  %v7339 = vsel %vm5434, %v7145, 0
  %v7342 = vsel %vm5434, %v7146, 0
  %v7345 = vsel %vm5434, %v7147, 0
  %v7348 = vsel %vm5434, %v7148, 0
  %v7351 = vsel %vm5434, %v7149, 0
  %v7354 = vsel %vm5434, %v7150, 0
  %v7357 = vsel %vm5434, %v7151, 0
  %v7360 = vsel %vm5434, %v7152, 0
  %v7363 = vsel %vm5434, %v7153, 0
  %v7366 = vsel %vm5434, %v7154, 0
  %v7369 = vsel %vm5434, %v7155, 0
  %v7372 = vsel %vm5434, %v7156, 0
  %v7375 = vsel %vm5434, %v7157, 0
  %v7378 = vsel %vm5434, %v7158, 0
  %v7381 = vsel %vm5434, %v7159, 0
  %v7384 = vsel %vm5434, %v7160, 0
  %v7387 = vsel %vm5434, %v7161, 0
  %v7390 = vsel %vm5434, %v7162, 0
  %v7393 = vsel %vm5434, %v7163, 0
  %v7396 = vsel %vm5434, %v7164, 0
  %v7399 = vsel %vm5434, %v7165, 0
  %v7402 = vsel %vm5434, %v7166, 0
  %v7405 = vsel %vm5434, %v7167, 0
  %v7408 = vsel %vm5434, %v7168, 0
  %v7411 = vsel %vm5434, %v7169, 0
  %v7414 = vsel %vm5434, %v7170, 0
  %v7417 = vsel %vm5434, %v7171, 0
  %v7420 = vsel %vm5434, %v7172, 0
  %v7423 = vsel %vm5434, %v7173, 0
  %v7426 = vsel %vm5434, %v7174, 0
  %v7429 = vsel %vm5434, %v7175, 0
  %v7432 = vsel %vm5434, %v7176, 0
  %v7435 = vsel %vm5434, %v7177, 0
  %v7438 = vsel %vm5434, %v7178, 0
  %v7441 = vsel %vm5434, %v7179, 0
  %v7444 = vsel %vm5434, %v7180, 0
  %v7447 = vsel %vm5434, %v7181, 0
  %v7450 = vsel %vm5434, %v7182, 0
  %v7453 = vsel %vm5434, %v7183, 0
  %v7456 = vsel %vm5434, %v7184, 0
  %v7459 = vsel %vm5434, %v7185, 0
  %v7462 = vsel %vm5434, %v7186, 0
  %v7465 = vsel %vm5434, %v7187, 0
  %v7468 = vsel %vm5434, %v7188, 0
  %v7471 = vsel %vm5434, %v7189, 0
  %v7474 = vsel %vm5434, %v7190, 0
  %v7477 = vsel %vm5434, %v7191, 0
  %v7480 = vsel %vm5434, %v7192, 0
  %v7483 = vsel %vm5434, %v7193, 0
  %v7486 = vsel %vm5434, %v7194, 0
  %v7489 = vsel %vm5434, %v7195, 0
  %v7492 = vsel %vm5434, %v7196, 0
  %v7495 = vsel %vm5434, %v7197, 0
  %v7498 = vsel %vm5434, %v7198, 0
  %v7501 = vsel %vm5434, %v7199, 0
  %v7504 = vsel %vm5434, %v7200, 0
  %v7507 = vsel %vm5434, %v7201, 0
  %v7510 = vsel %vm5434, %v7202, 0
  %v7513 = vsel %vm5434, %v7203, 0
  %v7516 = vsel %vm5434, %v7204, 0
  %v7519 = vsel %vm5434, %v7205, 0
  %v7522 = vsel %vm5434, %v7206, 0
  %v7525 = vsel %vm5434, %v7207, 0
  %v7528 = vsel %vm5434, %v7208, 0
  %v7531 = vsel %vm5434, %v7209, 0
  %v7534 = vsel %vm5434, %v7210, 0
  %v7537 = vsel %vm5434, %v7211, 0
  %v7540 = vsel %vm5434, %v7212, 0
  %v7543 = vsel %vm5434, %v7213, 0
  %v7546 = vsel %vm5434, %v7214, 0
  %v7549 = vsel %vm5434, %v7215, 0
  %v7552 = vsel %vm5434, %v7216, 0
  %v7555 = vsel %vm5434, %v7217, 0
  %v7558 = vsel %vm5434, %v7218, 0
  %v7561 = vsel %vm5434, %v7219, 0
  %v7564 = vsel %vm5434, %v7220, 0
  %v7567 = vsel %vm5434, %v7221, 0
  %v7570 = vsel %vm5434, %v7222, 0
  %v7573 = vsel %vm5434, %v7223, 0
  %v7576 = vsel %vm5434, %v7224, 0
  %v7579 = vsel %vm5434, %v7225, 0
  %v7582 = vsel %vm5434, %v7226, 0
  %v7585 = vsel %vm5434, %v7227, 0
  %v7588 = vsel %vm5434, %v7228, 0
  %v7591 = vsel %vm5434, %v7229, 0
  %v7594 = vsel %vm5434, %v7230, 0
  %v7597 = vsel %vm5434, %v7231, 0
  %v7600 = vsel %vm5434, %v7232, 0
  %v7603 = vsel %vm5434, %v7233, 0
  %v7606 = vsel %vm5434, %v7234, 0
  %v7609 = vsel %vm5434, %v7235, 0
  %v7612 = vsel %vm5434, %v7236, 0
  %v7615 = vsel %vm5434, %v7237, 0
  %v7618 = vsel %vm5434, %v7238, 0
  %v7621 = vsel %vm5434, %v7239, 0
  %v7624 = vsel %vm5434, %v7240, 0
  %v7627 = vsel %vm5434, %v7241, 0
  %v7630 = vsel %vm5434, %v7242, 0
  %v7633 = vsel %vm5434, %v7243, 0
  %v7636 = vsel %vm5434, %v7244, 0
  %v7639 = vsel %vm5434, %v7245, 0
  %v7642 = vsel %vm5434, %v7246, 0
  %v7645 = vsel %vm5434, %v7247, 0
  %v7648 = vsel %vm5434, %v7248, 0
  %v7651 = vsel %vm5434, %v7249, 0
  %v7654 = vsel %vm5434, %v7250, 0
  %v7657 = vsel %vm5434, %v7251, 0
  %v7660 = vsel %vm5434, %v7252, 0
  %v7663 = vsel %vm5434, %v7253, 0
  %v7666 = vsel %vm5434, %v7254, 0
  %v7669 = vsel %vm5434, %v7255, 0
  %v7672 = vsel %vm5434, %v7256, 0
  %v7675 = vsel %vm5434, %v7257, 0
  %v7678 = vsel %vm5434, %v7258, 0
  %v7681 = vsel %vm5434, %v7259, 0
  %7683 = vmatprep.subr.bf16.mxu0 0
  %7684 = vmatpush1.bf16.msra.mxu0 %v7291
  %7685 = vmatprep.subr.bf16.mxu0 0
  %7686 = vmatpush1.bf16.msra.mxu0 %v7292
  %7687 = vmatprep.subr.bf16.mxu0 0
  %7688 = vmatpush1.bf16.msra.mxu0 %v7293
  %7689 = vmatprep.subr.bf16.mxu0 0
  %7690 = vmatpush1.bf16.msra.mxu0 %v7294
  %7691 = vmatprep.subr.bf16.mxu0 0
  %7692 = vmatpush1.bf16.msra.mxu0 0
  %7693 = vmatprep.subr.bf16.mxu0 0
  %7694 = vmatpush1.bf16.msra.mxu0 0
  %7695 = vmatprep.subr.bf16.mxu0 0
  %7696 = vmatpush1.bf16.msra.mxu0 0
  %7697 = vmatprep.subr.bf16.mxu0 0
  %7698 = vmatpush1.bf16.msra.mxu0 0
  %7699 = vmatprep.subr.bf16.mxu0 0
  %7700 = vmatpush1.bf16.msra.mxu0 0
  %7701 = vmatprep.subr.bf16.mxu0 0
  %7702 = vmatpush1.bf16.msra.mxu0 0
  %7703 = vmatprep.subr.bf16.mxu0 0
  %7704 = vmatpush1.bf16.msra.mxu0 0
  %7705 = vmatprep.subr.bf16.mxu0 0
  %7706 = vmatpush1.bf16.msra.mxu0 0
  %7707 = vmatprep.subr.bf16.mxu0 0
  %7708 = vmatpush1.bf16.msra.mxu0 0
  %7709 = vmatprep.subr.bf16.mxu0 0
  %7710 = vmatpush1.bf16.msra.mxu0 0
  %7711 = vmatprep.subr.bf16.mxu0 0
  %7712 = vmatpush1.bf16.msra.mxu0 0
  %7713 = vmatprep.subr.bf16.mxu0 0
  %7714 = vmatpush1.bf16.msra.mxu0 0
  %7715 = vmatprep.mubr.bf16.mxu0 0
  %7716 = vmatmul.mubr.bf16.gmra.mrb[0].mxu0 %v7300
  %v7717 = vpop.f32.mrb[0].mxu0
  %v7718 = vadd.f32 %v7273, %v7717
  %v7719 = vpop.f32.mrb[0].mxu0
  %v7720 = vpop.f32.mrb[0].mxu0
  %v7721 = vadd.f32 %v7273, %v7720
  %v7722 = vpop.f32.mrb[0].mxu0
  %7723 = vmatprep.mubr.bf16.mxu0 0
  %7724 = vmatmul.mubr.bf16.gmra.mrb[0].mxu0 %v7303
  %v7725 = vpop.f32.mrb[0].mxu0
  %v7726 = vadd.f32 %v7273, %v7725
  %v7727 = vpop.f32.mrb[0].mxu0
  %v7728 = vpop.f32.mrb[0].mxu0
  %v7729 = vadd.f32 %v7273, %v7728
  %v7730 = vpop.f32.mrb[0].mxu0
  %7731 = vmatprep.mubr.bf16.mxu0 0
  %7732 = vmatmul.mubr.bf16.gmra.mrb[0].mxu0 %v7306
  %v7733 = vpop.f32.mrb[0].mxu0
  %v7734 = vadd.f32 %v7273, %v7733
  %v7735 = vpop.f32.mrb[0].mxu0
  %v7736 = vpop.f32.mrb[0].mxu0
  %v7737 = vadd.f32 %v7273, %v7736
  %v7738 = vpop.f32.mrb[0].mxu0
  %7739 = vmatprep.mubr.bf16.mxu0 0
  %7740 = vmatmul.mubr.bf16.gmra.mrb[0].mxu0 %v7309
  %v7741 = vpop.f32.mrb[0].mxu0
  %v7742 = vadd.f32 %v7273, %v7741
  %v7743 = vpop.f32.mrb[0].mxu0
  %v7744 = vpop.f32.mrb[0].mxu0
  %v7745 = vadd.f32 %v7273, %v7744
  %v7746 = vpop.f32.mrb[0].mxu0
  %7747 = vmatprep.mubr.bf16.mxu0 0
  %7748 = vmatmul.mubr.bf16.gmra.mrb[0].mxu0 %v7312
  %v7749 = vpop.f32.mrb[0].mxu0
  %v7750 = vadd.f32 %v7273, %v7749
  %v7751 = vpop.f32.mrb[0].mxu0
  %v7752 = vpop.f32.mrb[0].mxu0
  %v7753 = vadd.f32 %v7273, %v7752
  %v7754 = vpop.f32.mrb[0].mxu0
  %7755 = vmatprep.mubr.bf16.mxu0 0
  %7756 = vmatmul.mubr.bf16.gmra.mrb[0].mxu0 %v7315
  %v7757 = vpop.f32.mrb[0].mxu0
  %v7758 = vadd.f32 %v7273, %v7757
  %v7759 = vpop.f32.mrb[0].mxu0
  %v7760 = vpop.f32.mrb[0].mxu0
  %v7761 = vadd.f32 %v7273, %v7760
  %v7762 = vpop.f32.mrb[0].mxu0
  %7763 = vmatprep.mubr.bf16.mxu0 0
  %7764 = vmatmul.mubr.bf16.gmra.mrb[0].mxu0 %v7318
  %v7765 = vpop.f32.mrb[0].mxu0
  %v7766 = vadd.f32 %v7273, %v7765
  %v7767 = vpop.f32.mrb[0].mxu0
  %v7768 = vpop.f32.mrb[0].mxu0
  %v7769 = vadd.f32 %v7273, %v7768
  %v7770 = vpop.f32.mrb[0].mxu0
  %7771 = vmatprep.mubr.bf16.mxu0 0
  %7772 = vmatmul.mubr.bf16.gmra.mrb[0].mxu0 %v7321
  %v7773 = vpop.f32.mrb[0].mxu0
  %v7774 = vadd.f32 %v7273, %v7773
  %v7775 = vpop.f32.mrb[0].mxu0
  %v7776 = vpop.f32.mrb[0].mxu0
  %v7777 = vadd.f32 %v7273, %v7776
  %v7778 = vpop.f32.mrb[0].mxu0
  %7779 = vmatprep.mubr.bf16.mxu0 0
  %7780 = vmatmul.mubr.bf16.gmra.mrb[0].mxu0 %v7324
  %v7781 = vpop.f32.mrb[0].mxu0
  %v7782 = vadd.f32 %v7273, %v7781
  %v7783 = vpop.f32.mrb[0].mxu0
  %v7784 = vpop.f32.mrb[0].mxu0
  %v7785 = vadd.f32 %v7273, %v7784
  %v7786 = vpop.f32.mrb[0].mxu0
  %7787 = vmatprep.mubr.bf16.mxu0 0
  %7788 = vmatmul.mubr.bf16.gmra.mrb[0].mxu0 %v7327
  %v7789 = vpop.f32.mrb[0].mxu0
  %v7790 = vadd.f32 %v7273, %v7789
  %v7791 = vpop.f32.mrb[0].mxu0
  %v7792 = vpop.f32.mrb[0].mxu0
  %v7793 = vadd.f32 %v7273, %v7792
  %v7794 = vpop.f32.mrb[0].mxu0
  %7795 = vmatprep.mubr.bf16.mxu0 0
  %7796 = vmatmul.mubr.bf16.gmra.mrb[0].mxu0 %v7330
  %v7797 = vpop.f32.mrb[0].mxu0
  %v7798 = vadd.f32 %v7273, %v7797
  %v7799 = vpop.f32.mrb[0].mxu0
  %v7800 = vpop.f32.mrb[0].mxu0
  %v7801 = vadd.f32 %v7273, %v7800
  %v7802 = vpop.f32.mrb[0].mxu0
  %7803 = vmatprep.mubr.bf16.mxu0 0
  %7804 = vmatmul.mubr.bf16.gmra.mrb[0].mxu0 %v7333
  %v7805 = vpop.f32.mrb[0].mxu0
  %v7806 = vadd.f32 %v7273, %v7805
  %v7807 = vpop.f32.mrb[0].mxu0
  %v7808 = vpop.f32.mrb[0].mxu0
  %v7809 = vadd.f32 %v7273, %v7808
  %v7810 = vpop.f32.mrb[0].mxu0
  %7811 = vmatprep.mubr.bf16.mxu0 0
  %7812 = vmatmul.mubr.bf16.gmra.mrb[0].mxu0 %v7336
  %v7813 = vpop.f32.mrb[0].mxu0
  %v7814 = vadd.f32 %v7273, %v7813
  %v7815 = vpop.f32.mrb[0].mxu0
  %v7816 = vpop.f32.mrb[0].mxu0
  %v7817 = vadd.f32 %v7273, %v7816
  %v7818 = vpop.f32.mrb[0].mxu0
  %7819 = vmatprep.mubr.bf16.mxu0 0
  %7820 = vmatmul.mubr.bf16.gmra.mrb[0].mxu0 %v7339
  %v7821 = vpop.f32.mrb[0].mxu0
  %v7822 = vadd.f32 %v7273, %v7821
  %v7823 = vpop.f32.mrb[0].mxu0
  %v7824 = vpop.f32.mrb[0].mxu0
  %v7825 = vadd.f32 %v7273, %v7824
  %v7826 = vpop.f32.mrb[0].mxu0
  %7827 = vmatprep.mubr.bf16.mxu0 0
  %7828 = vmatmul.mubr.bf16.gmra.mrb[0].mxu0 %v7342
  %v7829 = vpop.f32.mrb[0].mxu0
  %v7830 = vadd.f32 %v7273, %v7829
  %v7831 = vpop.f32.mrb[0].mxu0
  %v7832 = vpop.f32.mrb[0].mxu0
  %v7833 = vadd.f32 %v7273, %v7832
  %v7834 = vpop.f32.mrb[0].mxu0
  %7835 = vmatprep.mubr.bf16.mxu0 0
  %7836 = vmatmul.mubr.bf16.gmra.mrb[0].mxu0 %v7345
  %v7837 = vpop.f32.mrb[0].mxu0
  %v7838 = vadd.f32 %v7273, %v7837
  %v7839 = vpop.f32.mrb[0].mxu0
  %v7840 = vpop.f32.mrb[0].mxu0
  %v7841 = vadd.f32 %v7273, %v7840
  %v7842 = vpop.f32.mrb[0].mxu0
  %7843 = vmatprep.mubr.bf16.mxu0 0
  %7844 = vmatmul.mubr.bf16.gmra.mrb[0].mxu0 %v7348
  %v7845 = vpop.f32.mrb[0].mxu0
  %v7846 = vadd.f32 %v7273, %v7845
  %v7847 = vpop.f32.mrb[0].mxu0
  %v7848 = vpop.f32.mrb[0].mxu0
  %v7849 = vadd.f32 %v7273, %v7848
  %v7850 = vpop.f32.mrb[0].mxu0
  %7851 = vmatprep.mubr.bf16.mxu0 0
  %7852 = vmatmul.mubr.bf16.gmra.mrb[0].mxu0 %v7351
  %v7853 = vpop.f32.mrb[0].mxu0
  %v7854 = vadd.f32 %v7273, %v7853
  %v7855 = vpop.f32.mrb[0].mxu0
  %v7856 = vpop.f32.mrb[0].mxu0
  %v7857 = vadd.f32 %v7273, %v7856
  %v7858 = vpop.f32.mrb[0].mxu0
  %7859 = vmatprep.mubr.bf16.mxu0 0
  %7860 = vmatmul.mubr.bf16.gmra.mrb[0].mxu0 %v7354
  %v7861 = vpop.f32.mrb[0].mxu0
  %v7862 = vadd.f32 %v7273, %v7861
  %v7863 = vpop.f32.mrb[0].mxu0
  %v7864 = vpop.f32.mrb[0].mxu0
  %v7865 = vadd.f32 %v7273, %v7864
  %v7866 = vpop.f32.mrb[0].mxu0
  %7867 = vmatprep.mubr.bf16.mxu0 0
  %7868 = vmatmul.mubr.bf16.gmra.mrb[0].mxu0 %v7357
  %v7869 = vpop.f32.mrb[0].mxu0
  %v7870 = vadd.f32 %v7273, %v7869
  %v7871 = vpop.f32.mrb[0].mxu0
  %v7872 = vpop.f32.mrb[0].mxu0
  %v7873 = vadd.f32 %v7273, %v7872
  %v7874 = vpop.f32.mrb[0].mxu0
  %7875 = vmatprep.mubr.bf16.mxu0 0
  %7876 = vmatmul.mubr.bf16.gmra.mrb[0].mxu0 %v7360
  %v7877 = vpop.f32.mrb[0].mxu0
  %v7878 = vadd.f32 %v7273, %v7877
  %v7879 = vpop.f32.mrb[0].mxu0
  %v7880 = vpop.f32.mrb[0].mxu0
  %v7881 = vadd.f32 %v7273, %v7880
  %v7882 = vpop.f32.mrb[0].mxu0
  %7883 = vmatprep.mubr.bf16.mxu0 0
  %7884 = vmatmul.mubr.bf16.gmra.mrb[0].mxu0 %v7363
  %v7885 = vpop.f32.mrb[0].mxu0
  %v7886 = vadd.f32 %v7273, %v7885
  %v7887 = vpop.f32.mrb[0].mxu0
  %v7888 = vpop.f32.mrb[0].mxu0
  %v7889 = vadd.f32 %v7273, %v7888
  %v7890 = vpop.f32.mrb[0].mxu0
  %7891 = vmatprep.mubr.bf16.mxu0 0
  %7892 = vmatmul.mubr.bf16.gmra.mrb[0].mxu0 %v7366
  %v7893 = vpop.f32.mrb[0].mxu0
  %v7894 = vadd.f32 %v7273, %v7893
  %v7895 = vpop.f32.mrb[0].mxu0
  %v7896 = vpop.f32.mrb[0].mxu0
  %v7897 = vadd.f32 %v7273, %v7896
  %v7898 = vpop.f32.mrb[0].mxu0
  %7899 = vmatprep.mubr.bf16.mxu0 0
  %7900 = vmatmul.mubr.bf16.gmra.mrb[0].mxu0 %v7369
  %v7901 = vpop.f32.mrb[0].mxu0
  %v7902 = vadd.f32 %v7273, %v7901
  %v7903 = vpop.f32.mrb[0].mxu0
  %v7904 = vpop.f32.mrb[0].mxu0
  %v7905 = vadd.f32 %v7273, %v7904
  %v7906 = vpop.f32.mrb[0].mxu0
  %7907 = vmatprep.mubr.bf16.mxu0 0
  %7908 = vmatmul.mubr.bf16.gmra.mrb[0].mxu0 %v7372
  %v7909 = vpop.f32.mrb[0].mxu0
  %v7910 = vadd.f32 %v7273, %v7909
  %v7911 = vpop.f32.mrb[0].mxu0
  %v7912 = vpop.f32.mrb[0].mxu0
  %v7913 = vadd.f32 %v7273, %v7912
  %v7914 = vpop.f32.mrb[0].mxu0
  %7915 = vmatprep.mubr.bf16.mxu0 0
  %7916 = vmatmul.mubr.bf16.gmra.mrb[0].mxu0 %v7375
  %v7917 = vpop.f32.mrb[0].mxu0
  %v7918 = vadd.f32 %v7273, %v7917
  %v7919 = vpop.f32.mrb[0].mxu0
  %v7920 = vpop.f32.mrb[0].mxu0
  %v7921 = vadd.f32 %v7273, %v7920
  %v7922 = vpop.f32.mrb[0].mxu0
  %7923 = vmatprep.mubr.bf16.mxu0 0
  %7924 = vmatmul.mubr.bf16.gmra.mrb[0].mxu0 %v7378
  %v7925 = vpop.f32.mrb[0].mxu0
  %v7926 = vadd.f32 %v7273, %v7925
  %v7927 = vpop.f32.mrb[0].mxu0
  %v7928 = vpop.f32.mrb[0].mxu0
  %v7929 = vadd.f32 %v7273, %v7928
  %v7930 = vpop.f32.mrb[0].mxu0
  %7931 = vmatprep.mubr.bf16.mxu0 0
  %7932 = vmatmul.mubr.bf16.gmra.mrb[0].mxu0 %v7381
  %v7933 = vpop.f32.mrb[0].mxu0
  %v7934 = vadd.f32 %v7273, %v7933
  %v7935 = vpop.f32.mrb[0].mxu0
  %v7936 = vpop.f32.mrb[0].mxu0
  %v7937 = vadd.f32 %v7273, %v7936
  %v7938 = vpop.f32.mrb[0].mxu0
  %7939 = vmatprep.mubr.bf16.mxu0 0
  %7940 = vmatmul.mubr.bf16.gmra.mrb[0].mxu0 %v7384
  %v7941 = vpop.f32.mrb[0].mxu0
  %v7942 = vadd.f32 %v7273, %v7941
  %v7943 = vpop.f32.mrb[0].mxu0
  %v7944 = vpop.f32.mrb[0].mxu0
  %v7945 = vadd.f32 %v7273, %v7944
  %v7946 = vpop.f32.mrb[0].mxu0
  %7947 = vmatprep.mubr.bf16.mxu0 0
  %7948 = vmatmul.mubr.bf16.gmra.mrb[0].mxu0 %v7387
  %v7949 = vpop.f32.mrb[0].mxu0
  %v7950 = vadd.f32 %v7273, %v7949
  %v7951 = vpop.f32.mrb[0].mxu0
  %v7952 = vpop.f32.mrb[0].mxu0
  %v7953 = vadd.f32 %v7273, %v7952
  %v7954 = vpop.f32.mrb[0].mxu0
  %7955 = vmatprep.mubr.bf16.mxu0 0
  %7956 = vmatmul.mubr.bf16.gmra.mrb[0].mxu0 %v7390
  %v7957 = vpop.f32.mrb[0].mxu0
  %v7958 = vadd.f32 %v7273, %v7957
  %v7959 = vpop.f32.mrb[0].mxu0
  %v7960 = vpop.f32.mrb[0].mxu0
  %v7961 = vadd.f32 %v7273, %v7960
  %v7962 = vpop.f32.mrb[0].mxu0
  %7963 = vmatprep.mubr.bf16.mxu0 0
  %7964 = vmatmul.mubr.bf16.gmra.mrb[0].mxu0 %v7393
  %v7965 = vpop.f32.mrb[0].mxu0
  %v7966 = vadd.f32 %v7273, %v7965
  %v7967 = vpop.f32.mrb[0].mxu0
  %v7968 = vpop.f32.mrb[0].mxu0
  %v7969 = vadd.f32 %v7273, %v7968
  %v7970 = vpop.f32.mrb[0].mxu0
  %7971 = vmatprep.mubr.bf16.mxu0 0
  %7972 = vmatmul.mubr.bf16.gmra.mrb[0].mxu0 %v7396
  %v7973 = vpop.f32.mrb[0].mxu0
  %v7974 = vadd.f32 %v7273, %v7973
  %v7975 = vpop.f32.mrb[0].mxu0
  %v7976 = vpop.f32.mrb[0].mxu0
  %v7977 = vadd.f32 %v7273, %v7976
  %v7978 = vpop.f32.mrb[0].mxu0
  %7979 = vmatprep.mubr.bf16.mxu0 0
  %7980 = vmatmul.mubr.bf16.gmra.mrb[0].mxu0 %v7399
  %v7981 = vpop.f32.mrb[0].mxu0
  %v7982 = vadd.f32 %v7273, %v7981
  %v7983 = vpop.f32.mrb[0].mxu0
  %v7984 = vpop.f32.mrb[0].mxu0
  %v7985 = vadd.f32 %v7273, %v7984
  %v7986 = vpop.f32.mrb[0].mxu0
  %7987 = vmatprep.mubr.bf16.mxu0 0
  %7988 = vmatmul.mubr.bf16.gmra.mrb[0].mxu0 %v7402
  %v7989 = vpop.f32.mrb[0].mxu0
  %v7990 = vadd.f32 %v7273, %v7989
  %v7991 = vpop.f32.mrb[0].mxu0
  %v7992 = vpop.f32.mrb[0].mxu0
  %v7993 = vadd.f32 %v7273, %v7992
  %v7994 = vpop.f32.mrb[0].mxu0
  %7995 = vmatprep.mubr.bf16.mxu0 0
  %7996 = vmatmul.mubr.bf16.gmra.mrb[0].mxu0 %v7405
  %v7997 = vpop.f32.mrb[0].mxu0
  %v7998 = vadd.f32 %v7273, %v7997
  %v7999 = vpop.f32.mrb[0].mxu0
  %v8000 = vpop.f32.mrb[0].mxu0
  %v8001 = vadd.f32 %v7273, %v8000
  %v8002 = vpop.f32.mrb[0].mxu0
  %8003 = vmatprep.mubr.bf16.mxu0 0
  %8004 = vmatmul.mubr.bf16.gmra.mrb[0].mxu0 %v7408
  %v8005 = vpop.f32.mrb[0].mxu0
  %v8006 = vadd.f32 %v7273, %v8005
  %v8007 = vpop.f32.mrb[0].mxu0
  %v8008 = vpop.f32.mrb[0].mxu0
  %v8009 = vadd.f32 %v7273, %v8008
  %v8010 = vpop.f32.mrb[0].mxu0
  %8011 = vmatprep.mubr.bf16.mxu0 0
  %8012 = vmatmul.mubr.bf16.gmra.mrb[0].mxu0 %v7411
  %v8013 = vpop.f32.mrb[0].mxu0
  %v8014 = vadd.f32 %v7273, %v8013
  %v8015 = vpop.f32.mrb[0].mxu0
  %v8016 = vpop.f32.mrb[0].mxu0
  %v8017 = vadd.f32 %v7273, %v8016
  %v8018 = vpop.f32.mrb[0].mxu0
  %8019 = vmatprep.mubr.bf16.mxu0 0
  %8020 = vmatmul.mubr.bf16.gmra.mrb[0].mxu0 %v7414
  %v8021 = vpop.f32.mrb[0].mxu0
  %v8022 = vadd.f32 %v7273, %v8021
  %v8023 = vpop.f32.mrb[0].mxu0
  %v8024 = vpop.f32.mrb[0].mxu0
  %v8025 = vadd.f32 %v7273, %v8024
  %v8026 = vpop.f32.mrb[0].mxu0
  %8027 = vmatprep.mubr.bf16.mxu0 0
  %8028 = vmatmul.mubr.bf16.gmra.mrb[0].mxu0 %v7417
  %v8029 = vpop.f32.mrb[0].mxu0
  %v8030 = vadd.f32 %v7273, %v8029
  %v8031 = vpop.f32.mrb[0].mxu0
  %v8032 = vpop.f32.mrb[0].mxu0
  %v8033 = vadd.f32 %v7273, %v8032
  %v8034 = vpop.f32.mrb[0].mxu0
  %8035 = vmatprep.mubr.bf16.mxu0 0
  %8036 = vmatmul.mubr.bf16.gmra.mrb[0].mxu0 %v7420
  %v8037 = vpop.f32.mrb[0].mxu0
  %v8038 = vadd.f32 %v7273, %v8037
  %v8039 = vpop.f32.mrb[0].mxu0
  %v8040 = vpop.f32.mrb[0].mxu0
  %v8041 = vadd.f32 %v7273, %v8040
  %v8042 = vpop.f32.mrb[0].mxu0
  %8043 = vmatprep.mubr.bf16.mxu0 0
  %8044 = vmatmul.mubr.bf16.gmra.mrb[0].mxu0 %v7423
  %v8045 = vpop.f32.mrb[0].mxu0
  %v8046 = vadd.f32 %v7273, %v8045
  %v8047 = vpop.f32.mrb[0].mxu0
  %v8048 = vpop.f32.mrb[0].mxu0
  %v8049 = vadd.f32 %v7273, %v8048
  %v8050 = vpop.f32.mrb[0].mxu0
  %8051 = vmatprep.mubr.bf16.mxu0 0
  %8052 = vmatmul.mubr.bf16.gmra.mrb[0].mxu0 %v7426
  %v8053 = vpop.f32.mrb[0].mxu0
  %v8054 = vadd.f32 %v7273, %v8053
  %v8055 = vpop.f32.mrb[0].mxu0
  %v8056 = vpop.f32.mrb[0].mxu0
  %v8057 = vadd.f32 %v7273, %v8056
  %v8058 = vpop.f32.mrb[0].mxu0
  %8059 = vmatprep.mubr.bf16.mxu0 0
  %8060 = vmatmul.mubr.bf16.gmra.mrb[0].mxu0 %v7429
  %v8061 = vpop.f32.mrb[0].mxu0
  %v8062 = vadd.f32 %v7273, %v8061
  %v8063 = vpop.f32.mrb[0].mxu0
  %v8064 = vpop.f32.mrb[0].mxu0
  %v8065 = vadd.f32 %v7273, %v8064
  %v8066 = vpop.f32.mrb[0].mxu0
  %8067 = vmatprep.mubr.bf16.mxu0 0
  %8068 = vmatmul.mubr.bf16.gmra.mrb[0].mxu0 %v7432
  %v8069 = vpop.f32.mrb[0].mxu0
  %v8070 = vadd.f32 %v7273, %v8069
  %v8071 = vpop.f32.mrb[0].mxu0
  %v8072 = vpop.f32.mrb[0].mxu0
  %v8073 = vadd.f32 %v7273, %v8072
  %v8074 = vpop.f32.mrb[0].mxu0
  %8075 = vmatprep.mubr.bf16.mxu0 0
  %8076 = vmatmul.mubr.bf16.gmra.mrb[0].mxu0 %v7435
  %v8077 = vpop.f32.mrb[0].mxu0
  %v8078 = vadd.f32 %v7273, %v8077
  %v8079 = vpop.f32.mrb[0].mxu0
  %v8080 = vpop.f32.mrb[0].mxu0
  %v8081 = vadd.f32 %v7273, %v8080
  %v8082 = vpop.f32.mrb[0].mxu0
  %8083 = vmatprep.mubr.bf16.mxu0 0
  %8084 = vmatmul.mubr.bf16.gmra.mrb[0].mxu0 %v7438
  %v8085 = vpop.f32.mrb[0].mxu0
  %v8086 = vadd.f32 %v7273, %v8085
  %v8087 = vpop.f32.mrb[0].mxu0
  %v8088 = vpop.f32.mrb[0].mxu0
  %v8089 = vadd.f32 %v7273, %v8088
  %v8090 = vpop.f32.mrb[0].mxu0
  %8091 = vmatprep.mubr.bf16.mxu0 0
  %8092 = vmatmul.mubr.bf16.gmra.mrb[0].mxu0 %v7441
  %v8093 = vpop.f32.mrb[0].mxu0
  %v8094 = vadd.f32 %v7273, %v8093
  %v8095 = vpop.f32.mrb[0].mxu0
  %v8096 = vpop.f32.mrb[0].mxu0
  %v8097 = vadd.f32 %v7273, %v8096
  %v8098 = vpop.f32.mrb[0].mxu0
  %8099 = vmatprep.mubr.bf16.mxu0 0
  %8100 = vmatmul.mubr.bf16.gmra.mrb[0].mxu0 %v7444
  %v8101 = vpop.f32.mrb[0].mxu0
  %v8102 = vadd.f32 %v7273, %v8101
  %v8103 = vpop.f32.mrb[0].mxu0
  %v8104 = vpop.f32.mrb[0].mxu0
  %v8105 = vadd.f32 %v7273, %v8104
  %v8106 = vpop.f32.mrb[0].mxu0
  %8107 = vmatprep.mubr.bf16.mxu0 0
  %8108 = vmatmul.mubr.bf16.gmra.mrb[0].mxu0 %v7447
  %v8109 = vpop.f32.mrb[0].mxu0
  %v8110 = vadd.f32 %v7273, %v8109
  %v8111 = vpop.f32.mrb[0].mxu0
  %v8112 = vpop.f32.mrb[0].mxu0
  %v8113 = vadd.f32 %v7273, %v8112
  %v8114 = vpop.f32.mrb[0].mxu0
  %8115 = vmatprep.mubr.bf16.mxu0 0
  %8116 = vmatmul.mubr.bf16.gmra.mrb[0].mxu0 %v7450
  %v8117 = vpop.f32.mrb[0].mxu0
  %v8118 = vadd.f32 %v7273, %v8117
  %v8119 = vpop.f32.mrb[0].mxu0
  %v8120 = vpop.f32.mrb[0].mxu0
  %v8121 = vadd.f32 %v7273, %v8120
  %v8122 = vpop.f32.mrb[0].mxu0
  %8123 = vmatprep.mubr.bf16.mxu0 0
  %8124 = vmatmul.mubr.bf16.gmra.mrb[0].mxu0 %v7453
  %v8125 = vpop.f32.mrb[0].mxu0
  %v8126 = vadd.f32 %v7273, %v8125
  %v8127 = vpop.f32.mrb[0].mxu0
  %v8128 = vpop.f32.mrb[0].mxu0
  %v8129 = vadd.f32 %v7273, %v8128
  %v8130 = vpop.f32.mrb[0].mxu0
  %8131 = vmatprep.mubr.bf16.mxu0 0
  %8132 = vmatmul.mubr.bf16.gmra.mrb[0].mxu0 %v7456
  %v8133 = vpop.f32.mrb[0].mxu0
  %v8134 = vadd.f32 %v7273, %v8133
  %v8135 = vpop.f32.mrb[0].mxu0
  %v8136 = vpop.f32.mrb[0].mxu0
  %v8137 = vadd.f32 %v7273, %v8136
  %v8138 = vpop.f32.mrb[0].mxu0
  %8139 = vmatprep.mubr.bf16.mxu0 0
  %8140 = vmatmul.mubr.bf16.gmra.mrb[0].mxu0 %v7459
  %v8141 = vpop.f32.mrb[0].mxu0
  %v8142 = vadd.f32 %v7273, %v8141
  %v8143 = vpop.f32.mrb[0].mxu0
  %v8144 = vpop.f32.mrb[0].mxu0
  %v8145 = vadd.f32 %v7273, %v8144
  %v8146 = vpop.f32.mrb[0].mxu0
  %8147 = vmatprep.mubr.bf16.mxu0 0
  %8148 = vmatmul.mubr.bf16.gmra.mrb[0].mxu0 %v7462
  %v8149 = vpop.f32.mrb[0].mxu0
  %v8150 = vadd.f32 %v7273, %v8149
  %v8151 = vpop.f32.mrb[0].mxu0
  %v8152 = vpop.f32.mrb[0].mxu0
  %v8153 = vadd.f32 %v7273, %v8152
  %v8154 = vpop.f32.mrb[0].mxu0
  %8155 = vmatprep.mubr.bf16.mxu0 0
  %8156 = vmatmul.mubr.bf16.gmra.mrb[0].mxu0 %v7465
  %v8157 = vpop.f32.mrb[0].mxu0
  %v8158 = vadd.f32 %v7273, %v8157
  %v8159 = vpop.f32.mrb[0].mxu0
  %v8160 = vpop.f32.mrb[0].mxu0
  %v8161 = vadd.f32 %v7273, %v8160
  %v8162 = vpop.f32.mrb[0].mxu0
  %8163 = vmatprep.mubr.bf16.mxu0 0
  %8164 = vmatmul.mubr.bf16.gmra.mrb[0].mxu0 %v7468
  %v8165 = vpop.f32.mrb[0].mxu0
  %v8166 = vadd.f32 %v7273, %v8165
  %v8167 = vpop.f32.mrb[0].mxu0
  %v8168 = vpop.f32.mrb[0].mxu0
  %v8169 = vadd.f32 %v7273, %v8168
  %v8170 = vpop.f32.mrb[0].mxu0
  %8171 = vmatprep.mubr.bf16.mxu0 0
  %8172 = vmatmul.mubr.bf16.gmra.mrb[0].mxu0 %v7471
  %v8173 = vpop.f32.mrb[0].mxu0
  %v8174 = vadd.f32 %v7273, %v8173
  %v8175 = vpop.f32.mrb[0].mxu0
  %v8176 = vpop.f32.mrb[0].mxu0
  %v8177 = vadd.f32 %v7273, %v8176
  %v8178 = vpop.f32.mrb[0].mxu0
  %8179 = vmatprep.mubr.bf16.mxu0 0
  %8180 = vmatmul.mubr.bf16.gmra.mrb[0].mxu0 %v7474
  %v8181 = vpop.f32.mrb[0].mxu0
  %v8182 = vadd.f32 %v7273, %v8181
  %v8183 = vpop.f32.mrb[0].mxu0
  %v8184 = vpop.f32.mrb[0].mxu0
  %v8185 = vadd.f32 %v7273, %v8184
  %v8186 = vpop.f32.mrb[0].mxu0
  %8187 = vmatprep.mubr.bf16.mxu0 0
  %8188 = vmatmul.mubr.bf16.gmra.mrb[0].mxu0 %v7477
  %v8189 = vpop.f32.mrb[0].mxu0
  %v8190 = vadd.f32 %v7273, %v8189
  %v8191 = vpop.f32.mrb[0].mxu0
  %v8192 = vpop.f32.mrb[0].mxu0
  %v8193 = vadd.f32 %v7273, %v8192
  %v8194 = vpop.f32.mrb[0].mxu0
  %8195 = vmatprep.mubr.bf16.mxu0 0
  %8196 = vmatmul.mubr.bf16.gmra.mrb[0].mxu0 %v7480
  %v8197 = vpop.f32.mrb[0].mxu0
  %v8198 = vadd.f32 %v7273, %v8197
  %v8199 = vpop.f32.mrb[0].mxu0
  %v8200 = vpop.f32.mrb[0].mxu0
  %v8201 = vadd.f32 %v7273, %v8200
  %v8202 = vpop.f32.mrb[0].mxu0
  %8203 = vmatprep.mubr.bf16.mxu0 0
  %8204 = vmatmul.mubr.bf16.gmra.mrb[0].mxu0 %v7483
  %v8205 = vpop.f32.mrb[0].mxu0
  %v8206 = vadd.f32 %v7273, %v8205
  %v8207 = vpop.f32.mrb[0].mxu0
  %v8208 = vpop.f32.mrb[0].mxu0
  %v8209 = vadd.f32 %v7273, %v8208
  %v8210 = vpop.f32.mrb[0].mxu0
  %8211 = vmatprep.mubr.bf16.mxu0 0
  %8212 = vmatmul.mubr.bf16.gmra.mrb[0].mxu0 %v7486
  %v8213 = vpop.f32.mrb[0].mxu0
  %v8214 = vadd.f32 %v7273, %v8213
  %v8215 = vpop.f32.mrb[0].mxu0
  %v8216 = vpop.f32.mrb[0].mxu0
  %v8217 = vadd.f32 %v7273, %v8216
  %v8218 = vpop.f32.mrb[0].mxu0
  %8219 = vmatprep.mubr.bf16.mxu0 0
  %8220 = vmatmul.mubr.bf16.gmra.mrb[0].mxu0 %v7489
  %v8221 = vpop.f32.mrb[0].mxu0
  %v8222 = vadd.f32 %v7273, %v8221
  %v8223 = vpop.f32.mrb[0].mxu0
  %v8224 = vpop.f32.mrb[0].mxu0
  %v8225 = vadd.f32 %v7273, %v8224
  %v8226 = vpop.f32.mrb[0].mxu0
  %8227 = vmatprep.mubr.bf16.mxu0 0
  %8228 = vmatmul.mubr.bf16.gmra.mrb[0].mxu0 %v7492
  %v8229 = vpop.f32.mrb[0].mxu0
  %v8230 = vadd.f32 %v7273, %v8229
  %v8231 = vpop.f32.mrb[0].mxu0
  %v8232 = vpop.f32.mrb[0].mxu0
  %v8233 = vadd.f32 %v7273, %v8232
  %v8234 = vpop.f32.mrb[0].mxu0
  %8235 = vmatprep.mubr.bf16.mxu0 0
  %8236 = vmatmul.mubr.bf16.gmra.mrb[0].mxu0 %v7495
  %v8237 = vpop.f32.mrb[0].mxu0
  %v8238 = vadd.f32 %v7273, %v8237
  %v8239 = vpop.f32.mrb[0].mxu0
  %v8240 = vpop.f32.mrb[0].mxu0
  %v8241 = vadd.f32 %v7273, %v8240
  %v8242 = vpop.f32.mrb[0].mxu0
  %8243 = vmatprep.mubr.bf16.mxu0 0
  %8244 = vmatmul.mubr.bf16.gmra.mrb[0].mxu0 %v7498
  %v8245 = vpop.f32.mrb[0].mxu0
  %v8246 = vadd.f32 %v7273, %v8245
  %v8247 = vpop.f32.mrb[0].mxu0
  %v8248 = vpop.f32.mrb[0].mxu0
  %v8249 = vadd.f32 %v7273, %v8248
  %v8250 = vpop.f32.mrb[0].mxu0
  %8251 = vmatprep.mubr.bf16.mxu0 0
  %8252 = vmatmul.mubr.bf16.gmra.mrb[0].mxu0 %v7501
  %v8253 = vpop.f32.mrb[0].mxu0
  %v8254 = vadd.f32 %v7273, %v8253
  %v8255 = vpop.f32.mrb[0].mxu0
  %v8256 = vpop.f32.mrb[0].mxu0
  %v8257 = vadd.f32 %v7273, %v8256
  %v8258 = vpop.f32.mrb[0].mxu0
  %8259 = vmatprep.mubr.bf16.mxu0 0
  %8260 = vmatmul.mubr.bf16.gmra.mrb[0].mxu0 %v7504
  %v8261 = vpop.f32.mrb[0].mxu0
  %v8262 = vadd.f32 %v7273, %v8261
  %v8263 = vpop.f32.mrb[0].mxu0
  %v8264 = vpop.f32.mrb[0].mxu0
  %v8265 = vadd.f32 %v7273, %v8264
  %v8266 = vpop.f32.mrb[0].mxu0
  %8267 = vmatprep.mubr.bf16.mxu0 0
  %8268 = vmatmul.mubr.bf16.gmra.mrb[0].mxu0 %v7507
  %v8269 = vpop.f32.mrb[0].mxu0
  %v8270 = vadd.f32 %v7273, %v8269
  %v8271 = vpop.f32.mrb[0].mxu0
  %v8272 = vpop.f32.mrb[0].mxu0
  %v8273 = vadd.f32 %v7273, %v8272
  %v8274 = vpop.f32.mrb[0].mxu0
  %8275 = vmatprep.mubr.bf16.mxu0 0
  %8276 = vmatmul.mubr.bf16.gmra.mrb[0].mxu0 %v7510
  %v8277 = vpop.f32.mrb[0].mxu0
  %v8278 = vadd.f32 %v7273, %v8277
  %v8279 = vpop.f32.mrb[0].mxu0
  %v8280 = vpop.f32.mrb[0].mxu0
  %v8281 = vadd.f32 %v7273, %v8280
  %v8282 = vpop.f32.mrb[0].mxu0
  %8283 = vmatprep.mubr.bf16.mxu0 0
  %8284 = vmatmul.mubr.bf16.gmra.mrb[0].mxu0 %v7513
  %v8285 = vpop.f32.mrb[0].mxu0
  %v8286 = vadd.f32 %v7273, %v8285
  %v8287 = vpop.f32.mrb[0].mxu0
  %v8288 = vpop.f32.mrb[0].mxu0
  %v8289 = vadd.f32 %v7273, %v8288
  %v8290 = vpop.f32.mrb[0].mxu0
  %8291 = vmatprep.mubr.bf16.mxu0 0
  %8292 = vmatmul.mubr.bf16.gmra.mrb[0].mxu0 %v7516
  %v8293 = vpop.f32.mrb[0].mxu0
  %v8294 = vadd.f32 %v7273, %v8293
  %v8295 = vpop.f32.mrb[0].mxu0
  %v8296 = vpop.f32.mrb[0].mxu0
  %v8297 = vadd.f32 %v7273, %v8296
  %v8298 = vpop.f32.mrb[0].mxu0
  %8299 = vmatprep.mubr.bf16.mxu0 0
  %8300 = vmatmul.mubr.bf16.gmra.mrb[0].mxu0 %v7519
  %v8301 = vpop.f32.mrb[0].mxu0
  %v8302 = vadd.f32 %v7273, %v8301
  %v8303 = vpop.f32.mrb[0].mxu0
  %v8304 = vpop.f32.mrb[0].mxu0
  %v8305 = vadd.f32 %v7273, %v8304
  %v8306 = vpop.f32.mrb[0].mxu0
  %8307 = vmatprep.mubr.bf16.mxu0 0
  %8308 = vmatmul.mubr.bf16.gmra.mrb[0].mxu0 %v7522
  %v8309 = vpop.f32.mrb[0].mxu0
  %v8310 = vadd.f32 %v7273, %v8309
  %v8311 = vpop.f32.mrb[0].mxu0
  %v8312 = vpop.f32.mrb[0].mxu0
  %v8313 = vadd.f32 %v7273, %v8312
  %v8314 = vpop.f32.mrb[0].mxu0
  %8315 = vmatprep.mubr.bf16.mxu0 0
  %8316 = vmatmul.mubr.bf16.gmra.mrb[0].mxu0 %v7525
  %v8317 = vpop.f32.mrb[0].mxu0
  %v8318 = vadd.f32 %v7273, %v8317
  %v8319 = vpop.f32.mrb[0].mxu0
  %v8320 = vpop.f32.mrb[0].mxu0
  %v8321 = vadd.f32 %v7273, %v8320
  %v8322 = vpop.f32.mrb[0].mxu0
  %8323 = vmatprep.mubr.bf16.mxu0 0
  %8324 = vmatmul.mubr.bf16.gmra.mrb[0].mxu0 %v7528
  %v8325 = vpop.f32.mrb[0].mxu0
  %v8326 = vadd.f32 %v7273, %v8325
  %v8327 = vpop.f32.mrb[0].mxu0
  %v8328 = vpop.f32.mrb[0].mxu0
  %v8329 = vadd.f32 %v7273, %v8328
  %v8330 = vpop.f32.mrb[0].mxu0
  %8331 = vmatprep.mubr.bf16.mxu0 0
  %8332 = vmatmul.mubr.bf16.gmra.mrb[0].mxu0 %v7531
  %v8333 = vpop.f32.mrb[0].mxu0
  %v8334 = vadd.f32 %v7273, %v8333
  %v8335 = vpop.f32.mrb[0].mxu0
  %v8336 = vpop.f32.mrb[0].mxu0
  %v8337 = vadd.f32 %v7273, %v8336
  %v8338 = vpop.f32.mrb[0].mxu0
  %8339 = vmatprep.mubr.bf16.mxu0 0
  %8340 = vmatmul.mubr.bf16.gmra.mrb[0].mxu0 %v7534
  %v8341 = vpop.f32.mrb[0].mxu0
  %v8342 = vadd.f32 %v7273, %v8341
  %v8343 = vpop.f32.mrb[0].mxu0
  %v8344 = vpop.f32.mrb[0].mxu0
  %v8345 = vadd.f32 %v7273, %v8344
  %v8346 = vpop.f32.mrb[0].mxu0
  %8347 = vmatprep.mubr.bf16.mxu0 0
  %8348 = vmatmul.mubr.bf16.gmra.mrb[0].mxu0 %v7537
  %v8349 = vpop.f32.mrb[0].mxu0
  %v8350 = vadd.f32 %v7273, %v8349
  %v8351 = vpop.f32.mrb[0].mxu0
  %v8352 = vpop.f32.mrb[0].mxu0
  %v8353 = vadd.f32 %v7273, %v8352
  %v8354 = vpop.f32.mrb[0].mxu0
  %8355 = vmatprep.mubr.bf16.mxu0 0
  %8356 = vmatmul.mubr.bf16.gmra.mrb[0].mxu0 %v7540
  %v8357 = vpop.f32.mrb[0].mxu0
  %v8358 = vadd.f32 %v7273, %v8357
  %v8359 = vpop.f32.mrb[0].mxu0
  %v8360 = vpop.f32.mrb[0].mxu0
  %v8361 = vadd.f32 %v7273, %v8360
  %v8362 = vpop.f32.mrb[0].mxu0
  %8363 = vmatprep.mubr.bf16.mxu0 0
  %8364 = vmatmul.mubr.bf16.gmra.mrb[0].mxu0 %v7543
  %v8365 = vpop.f32.mrb[0].mxu0
  %v8366 = vadd.f32 %v7273, %v8365
  %v8367 = vpop.f32.mrb[0].mxu0
  %v8368 = vpop.f32.mrb[0].mxu0
  %v8369 = vadd.f32 %v7273, %v8368
  %v8370 = vpop.f32.mrb[0].mxu0
  %8371 = vmatprep.mubr.bf16.mxu0 0
  %8372 = vmatmul.mubr.bf16.gmra.mrb[0].mxu0 %v7546
  %v8373 = vpop.f32.mrb[0].mxu0
  %v8374 = vadd.f32 %v7273, %v8373
  %v8375 = vpop.f32.mrb[0].mxu0
  %v8376 = vpop.f32.mrb[0].mxu0
  %v8377 = vadd.f32 %v7273, %v8376
  %v8378 = vpop.f32.mrb[0].mxu0
  %8379 = vmatprep.mubr.bf16.mxu0 0
  %8380 = vmatmul.mubr.bf16.gmra.mrb[0].mxu0 %v7549
  %v8381 = vpop.f32.mrb[0].mxu0
  %v8382 = vadd.f32 %v7273, %v8381
  %v8383 = vpop.f32.mrb[0].mxu0
  %v8384 = vpop.f32.mrb[0].mxu0
  %v8385 = vadd.f32 %v7273, %v8384
  %v8386 = vpop.f32.mrb[0].mxu0
  %8387 = vmatprep.mubr.bf16.mxu0 0
  %8388 = vmatmul.mubr.bf16.gmra.mrb[0].mxu0 %v7552
  %v8389 = vpop.f32.mrb[0].mxu0
  %v8390 = vadd.f32 %v7273, %v8389
  %v8391 = vpop.f32.mrb[0].mxu0
  %v8392 = vpop.f32.mrb[0].mxu0
  %v8393 = vadd.f32 %v7273, %v8392
  %v8394 = vpop.f32.mrb[0].mxu0
  %8395 = vmatprep.mubr.bf16.mxu0 0
  %8396 = vmatmul.mubr.bf16.gmra.mrb[0].mxu0 %v7555
  %v8397 = vpop.f32.mrb[0].mxu0
  %v8398 = vadd.f32 %v7273, %v8397
  %v8399 = vpop.f32.mrb[0].mxu0
  %v8400 = vpop.f32.mrb[0].mxu0
  %v8401 = vadd.f32 %v7273, %v8400
  %v8402 = vpop.f32.mrb[0].mxu0
  %8403 = vmatprep.mubr.bf16.mxu0 0
  %8404 = vmatmul.mubr.bf16.gmra.mrb[0].mxu0 %v7558
  %v8405 = vpop.f32.mrb[0].mxu0
  %v8406 = vadd.f32 %v7273, %v8405
  %v8407 = vpop.f32.mrb[0].mxu0
  %v8408 = vpop.f32.mrb[0].mxu0
  %v8409 = vadd.f32 %v7273, %v8408
  %v8410 = vpop.f32.mrb[0].mxu0
  %8411 = vmatprep.mubr.bf16.mxu0 0
  %8412 = vmatmul.mubr.bf16.gmra.mrb[0].mxu0 %v7561
  %v8413 = vpop.f32.mrb[0].mxu0
  %v8414 = vadd.f32 %v7273, %v8413
  %v8415 = vpop.f32.mrb[0].mxu0
  %v8416 = vpop.f32.mrb[0].mxu0
  %v8417 = vadd.f32 %v7273, %v8416
  %v8418 = vpop.f32.mrb[0].mxu0
  %8419 = vmatprep.mubr.bf16.mxu0 0
  %8420 = vmatmul.mubr.bf16.gmra.mrb[0].mxu0 %v7564
  %v8421 = vpop.f32.mrb[0].mxu0
  %v8422 = vadd.f32 %v7273, %v8421
  %v8423 = vpop.f32.mrb[0].mxu0
  %v8424 = vpop.f32.mrb[0].mxu0
  %v8425 = vadd.f32 %v7273, %v8424
  %v8426 = vpop.f32.mrb[0].mxu0
  %8427 = vmatprep.mubr.bf16.mxu0 0
  %8428 = vmatmul.mubr.bf16.gmra.mrb[0].mxu0 %v7567
  %v8429 = vpop.f32.mrb[0].mxu0
  %v8430 = vadd.f32 %v7273, %v8429
  %v8431 = vpop.f32.mrb[0].mxu0
  %v8432 = vpop.f32.mrb[0].mxu0
  %v8433 = vadd.f32 %v7273, %v8432
  %v8434 = vpop.f32.mrb[0].mxu0
  %8435 = vmatprep.mubr.bf16.mxu0 0
  %8436 = vmatmul.mubr.bf16.gmra.mrb[0].mxu0 %v7570
  %v8437 = vpop.f32.mrb[0].mxu0
  %v8438 = vadd.f32 %v7273, %v8437
  %v8439 = vpop.f32.mrb[0].mxu0
  %v8440 = vpop.f32.mrb[0].mxu0
  %v8441 = vadd.f32 %v7273, %v8440
  %v8442 = vpop.f32.mrb[0].mxu0
  %8443 = vmatprep.mubr.bf16.mxu0 0
  %8444 = vmatmul.mubr.bf16.gmra.mrb[0].mxu0 %v7573
  %v8445 = vpop.f32.mrb[0].mxu0
  %v8446 = vadd.f32 %v7273, %v8445
  %v8447 = vpop.f32.mrb[0].mxu0
  %v8448 = vpop.f32.mrb[0].mxu0
  %v8449 = vadd.f32 %v7273, %v8448
  %v8450 = vpop.f32.mrb[0].mxu0
  %8451 = vmatprep.mubr.bf16.mxu0 0
  %8452 = vmatmul.mubr.bf16.gmra.mrb[0].mxu0 %v7576
  %v8453 = vpop.f32.mrb[0].mxu0
  %v8454 = vadd.f32 %v7273, %v8453
  %v8455 = vpop.f32.mrb[0].mxu0
  %v8456 = vpop.f32.mrb[0].mxu0
  %v8457 = vadd.f32 %v7273, %v8456
  %v8458 = vpop.f32.mrb[0].mxu0
  %8459 = vmatprep.mubr.bf16.mxu0 0
  %8460 = vmatmul.mubr.bf16.gmra.mrb[0].mxu0 %v7579
  %v8461 = vpop.f32.mrb[0].mxu0
  %v8462 = vadd.f32 %v7273, %v8461
  %v8463 = vpop.f32.mrb[0].mxu0
  %v8464 = vpop.f32.mrb[0].mxu0
  %v8465 = vadd.f32 %v7273, %v8464
  %v8466 = vpop.f32.mrb[0].mxu0
  %8467 = vmatprep.mubr.bf16.mxu0 0
  %8468 = vmatmul.mubr.bf16.gmra.mrb[0].mxu0 %v7582
  %v8469 = vpop.f32.mrb[0].mxu0
  %v8470 = vadd.f32 %v7273, %v8469
  %v8471 = vpop.f32.mrb[0].mxu0
  %v8472 = vpop.f32.mrb[0].mxu0
  %v8473 = vadd.f32 %v7273, %v8472
  %v8474 = vpop.f32.mrb[0].mxu0
  %8475 = vmatprep.mubr.bf16.mxu0 0
  %8476 = vmatmul.mubr.bf16.gmra.mrb[0].mxu0 %v7585
  %v8477 = vpop.f32.mrb[0].mxu0
  %v8478 = vadd.f32 %v7273, %v8477
  %v8479 = vpop.f32.mrb[0].mxu0
  %v8480 = vpop.f32.mrb[0].mxu0
  %v8481 = vadd.f32 %v7273, %v8480
  %v8482 = vpop.f32.mrb[0].mxu0
  %8483 = vmatprep.mubr.bf16.mxu0 0
  %8484 = vmatmul.mubr.bf16.gmra.mrb[0].mxu0 %v7588
  %v8485 = vpop.f32.mrb[0].mxu0
  %v8486 = vadd.f32 %v7273, %v8485
  %v8487 = vpop.f32.mrb[0].mxu0
  %v8488 = vpop.f32.mrb[0].mxu0
  %v8489 = vadd.f32 %v7273, %v8488
  %v8490 = vpop.f32.mrb[0].mxu0
  %8491 = vmatprep.mubr.bf16.mxu0 0
  %8492 = vmatmul.mubr.bf16.gmra.mrb[0].mxu0 %v7591
  %v8493 = vpop.f32.mrb[0].mxu0
  %v8494 = vadd.f32 %v7273, %v8493
  %v8495 = vpop.f32.mrb[0].mxu0
  %v8496 = vpop.f32.mrb[0].mxu0
  %v8497 = vadd.f32 %v7273, %v8496
  %v8498 = vpop.f32.mrb[0].mxu0
  %8499 = vmatprep.mubr.bf16.mxu0 0
  %8500 = vmatmul.mubr.bf16.gmra.mrb[0].mxu0 %v7594
  %v8501 = vpop.f32.mrb[0].mxu0
  %v8502 = vadd.f32 %v7273, %v8501
  %v8503 = vpop.f32.mrb[0].mxu0
  %v8504 = vpop.f32.mrb[0].mxu0
  %v8505 = vadd.f32 %v7273, %v8504
  %v8506 = vpop.f32.mrb[0].mxu0
  %8507 = vmatprep.mubr.bf16.mxu0 0
  %8508 = vmatmul.mubr.bf16.gmra.mrb[0].mxu0 %v7597
  %v8509 = vpop.f32.mrb[0].mxu0
  %v8510 = vadd.f32 %v7273, %v8509
  %v8511 = vpop.f32.mrb[0].mxu0
  %v8512 = vpop.f32.mrb[0].mxu0
  %v8513 = vadd.f32 %v7273, %v8512
  %v8514 = vpop.f32.mrb[0].mxu0
  %8515 = vmatprep.mubr.bf16.mxu0 0
  %8516 = vmatmul.mubr.bf16.gmra.mrb[0].mxu0 %v7600
  %v8517 = vpop.f32.mrb[0].mxu0
  %v8518 = vadd.f32 %v7273, %v8517
  %v8519 = vpop.f32.mrb[0].mxu0
  %v8520 = vpop.f32.mrb[0].mxu0
  %v8521 = vadd.f32 %v7273, %v8520
  %v8522 = vpop.f32.mrb[0].mxu0
  %8523 = vmatprep.mubr.bf16.mxu0 0
  %8524 = vmatmul.mubr.bf16.gmra.mrb[0].mxu0 %v7603
  %v8525 = vpop.f32.mrb[0].mxu0
  %v8526 = vadd.f32 %v7273, %v8525
  %v8527 = vpop.f32.mrb[0].mxu0
  %v8528 = vpop.f32.mrb[0].mxu0
  %v8529 = vadd.f32 %v7273, %v8528
  %v8530 = vpop.f32.mrb[0].mxu0
  %8531 = vmatprep.mubr.bf16.mxu0 0
  %8532 = vmatmul.mubr.bf16.gmra.mrb[0].mxu0 %v7606
  %v8533 = vpop.f32.mrb[0].mxu0
  %v8534 = vadd.f32 %v7273, %v8533
  %v8535 = vpop.f32.mrb[0].mxu0
  %v8536 = vpop.f32.mrb[0].mxu0
  %v8537 = vadd.f32 %v7273, %v8536
  %v8538 = vpop.f32.mrb[0].mxu0
  %8539 = vmatprep.mubr.bf16.mxu0 0
  %8540 = vmatmul.mubr.bf16.gmra.mrb[0].mxu0 %v7609
  %v8541 = vpop.f32.mrb[0].mxu0
  %v8542 = vadd.f32 %v7273, %v8541
  %v8543 = vpop.f32.mrb[0].mxu0
  %v8544 = vpop.f32.mrb[0].mxu0
  %v8545 = vadd.f32 %v7273, %v8544
  %v8546 = vpop.f32.mrb[0].mxu0
  %8547 = vmatprep.mubr.bf16.mxu0 0
  %8548 = vmatmul.mubr.bf16.gmra.mrb[0].mxu0 %v7612
  %v8549 = vpop.f32.mrb[0].mxu0
  %v8550 = vadd.f32 %v7273, %v8549
  %v8551 = vpop.f32.mrb[0].mxu0
  %v8552 = vpop.f32.mrb[0].mxu0
  %v8553 = vadd.f32 %v7273, %v8552
  %v8554 = vpop.f32.mrb[0].mxu0
  %8555 = vmatprep.mubr.bf16.mxu0 0
  %8556 = vmatmul.mubr.bf16.gmra.mrb[0].mxu0 %v7615
  %v8557 = vpop.f32.mrb[0].mxu0
  %v8558 = vadd.f32 %v7273, %v8557
  %v8559 = vpop.f32.mrb[0].mxu0
  %v8560 = vpop.f32.mrb[0].mxu0
  %v8561 = vadd.f32 %v7273, %v8560
  %v8562 = vpop.f32.mrb[0].mxu0
  %8563 = vmatprep.mubr.bf16.mxu0 0
  %8564 = vmatmul.mubr.bf16.gmra.mrb[0].mxu0 %v7618
  %v8565 = vpop.f32.mrb[0].mxu0
  %v8566 = vadd.f32 %v7273, %v8565
  %v8567 = vpop.f32.mrb[0].mxu0
  %v8568 = vpop.f32.mrb[0].mxu0
  %v8569 = vadd.f32 %v7273, %v8568
  %v8570 = vpop.f32.mrb[0].mxu0
  %8571 = vmatprep.mubr.bf16.mxu0 0
  %8572 = vmatmul.mubr.bf16.gmra.mrb[0].mxu0 %v7621
  %v8573 = vpop.f32.mrb[0].mxu0
  %v8574 = vadd.f32 %v7273, %v8573
  %v8575 = vpop.f32.mrb[0].mxu0
  %v8576 = vpop.f32.mrb[0].mxu0
  %v8577 = vadd.f32 %v7273, %v8576
  %v8578 = vpop.f32.mrb[0].mxu0
  %8579 = vmatprep.mubr.bf16.mxu0 0
  %8580 = vmatmul.mubr.bf16.gmra.mrb[0].mxu0 %v7624
  %v8581 = vpop.f32.mrb[0].mxu0
  %v8582 = vadd.f32 %v7273, %v8581
  %v8583 = vpop.f32.mrb[0].mxu0
  %v8584 = vpop.f32.mrb[0].mxu0
  %v8585 = vadd.f32 %v7273, %v8584
  %v8586 = vpop.f32.mrb[0].mxu0
  %8587 = vmatprep.mubr.bf16.mxu0 0
  %8588 = vmatmul.mubr.bf16.gmra.mrb[0].mxu0 %v7627
  %v8589 = vpop.f32.mrb[0].mxu0
  %v8590 = vadd.f32 %v7273, %v8589
  %v8591 = vpop.f32.mrb[0].mxu0
  %v8592 = vpop.f32.mrb[0].mxu0
  %v8593 = vadd.f32 %v7273, %v8592
  %v8594 = vpop.f32.mrb[0].mxu0
  %8595 = vmatprep.mubr.bf16.mxu0 0
  %8596 = vmatmul.mubr.bf16.gmra.mrb[0].mxu0 %v7630
  %v8597 = vpop.f32.mrb[0].mxu0
  %v8598 = vadd.f32 %v7273, %v8597
  %v8599 = vpop.f32.mrb[0].mxu0
  %v8600 = vpop.f32.mrb[0].mxu0
  %v8601 = vadd.f32 %v7273, %v8600
  %v8602 = vpop.f32.mrb[0].mxu0
  %8603 = vmatprep.mubr.bf16.mxu0 0
  %8604 = vmatmul.mubr.bf16.gmra.mrb[0].mxu0 %v7633
  %v8605 = vpop.f32.mrb[0].mxu0
  %v8606 = vadd.f32 %v7273, %v8605
  %v8607 = vpop.f32.mrb[0].mxu0
  %v8608 = vpop.f32.mrb[0].mxu0
  %v8609 = vadd.f32 %v7273, %v8608
  %v8610 = vpop.f32.mrb[0].mxu0
  %8611 = vmatprep.mubr.bf16.mxu0 0
  %8612 = vmatmul.mubr.bf16.gmra.mrb[0].mxu0 %v7636
  %v8613 = vpop.f32.mrb[0].mxu0
  %v8614 = vadd.f32 %v7273, %v8613
  %v8615 = vpop.f32.mrb[0].mxu0
  %v8616 = vpop.f32.mrb[0].mxu0
  %v8617 = vadd.f32 %v7273, %v8616
  %v8618 = vpop.f32.mrb[0].mxu0
  %8619 = vmatprep.mubr.bf16.mxu0 0
  %8620 = vmatmul.mubr.bf16.gmra.mrb[0].mxu0 %v7639
  %v8621 = vpop.f32.mrb[0].mxu0
  %v8622 = vadd.f32 %v7273, %v8621
  %v8623 = vpop.f32.mrb[0].mxu0
  %v8624 = vpop.f32.mrb[0].mxu0
  %v8625 = vadd.f32 %v7273, %v8624
  %v8626 = vpop.f32.mrb[0].mxu0
  %8627 = vmatprep.mubr.bf16.mxu0 0
  %8628 = vmatmul.mubr.bf16.gmra.mrb[0].mxu0 %v7642
  %v8629 = vpop.f32.mrb[0].mxu0
  %v8630 = vadd.f32 %v7273, %v8629
  %v8631 = vpop.f32.mrb[0].mxu0
  %v8632 = vpop.f32.mrb[0].mxu0
  %v8633 = vadd.f32 %v7273, %v8632
  %v8634 = vpop.f32.mrb[0].mxu0
  %8635 = vmatprep.mubr.bf16.mxu0 0
  %8636 = vmatmul.mubr.bf16.gmra.mrb[0].mxu0 %v7645
  %v8637 = vpop.f32.mrb[0].mxu0
  %v8638 = vadd.f32 %v7273, %v8637
  %v8639 = vpop.f32.mrb[0].mxu0
  %v8640 = vpop.f32.mrb[0].mxu0
  %v8641 = vadd.f32 %v7273, %v8640
  %v8642 = vpop.f32.mrb[0].mxu0
  %8643 = vmatprep.mubr.bf16.mxu0 0
  %8644 = vmatmul.mubr.bf16.gmra.mrb[0].mxu0 %v7648
  %v8645 = vpop.f32.mrb[0].mxu0
  %v8646 = vadd.f32 %v7273, %v8645
  %v8647 = vpop.f32.mrb[0].mxu0
  %v8648 = vpop.f32.mrb[0].mxu0
  %v8649 = vadd.f32 %v7273, %v8648
  %v8650 = vpop.f32.mrb[0].mxu0
  %8651 = vmatprep.mubr.bf16.mxu0 0
  %8652 = vmatmul.mubr.bf16.gmra.mrb[0].mxu0 %v7651
  %v8653 = vpop.f32.mrb[0].mxu0
  %v8654 = vadd.f32 %v7273, %v8653
  %v8655 = vpop.f32.mrb[0].mxu0
  %v8656 = vpop.f32.mrb[0].mxu0
  %v8657 = vadd.f32 %v7273, %v8656
  %v8658 = vpop.f32.mrb[0].mxu0
  %8659 = vmatprep.mubr.bf16.mxu0 0
  %8660 = vmatmul.mubr.bf16.gmra.mrb[0].mxu0 %v7654
  %v8661 = vpop.f32.mrb[0].mxu0
  %v8662 = vadd.f32 %v7273, %v8661
  %v8663 = vpop.f32.mrb[0].mxu0
  %v8664 = vpop.f32.mrb[0].mxu0
  %v8665 = vadd.f32 %v7273, %v8664
  %v8666 = vpop.f32.mrb[0].mxu0
  %8667 = vmatprep.mubr.bf16.mxu0 0
  %8668 = vmatmul.mubr.bf16.gmra.mrb[0].mxu0 %v7657
  %v8669 = vpop.f32.mrb[0].mxu0
  %v8670 = vadd.f32 %v7273, %v8669
  %v8671 = vpop.f32.mrb[0].mxu0
  %v8672 = vpop.f32.mrb[0].mxu0
  %v8673 = vadd.f32 %v7273, %v8672
  %v8674 = vpop.f32.mrb[0].mxu0
  %8675 = vmatprep.mubr.bf16.mxu0 0
  %8676 = vmatmul.mubr.bf16.gmra.mrb[0].mxu0 %v7660
  %v8677 = vpop.f32.mrb[0].mxu0
  %v8678 = vadd.f32 %v7273, %v8677
  %v8679 = vpop.f32.mrb[0].mxu0
  %v8680 = vpop.f32.mrb[0].mxu0
  %v8681 = vadd.f32 %v7273, %v8680
  %v8682 = vpop.f32.mrb[0].mxu0
  %8683 = vmatprep.mubr.bf16.mxu0 0
  %8684 = vmatmul.mubr.bf16.gmra.mrb[0].mxu0 %v7663
  %v8685 = vpop.f32.mrb[0].mxu0
  %v8686 = vadd.f32 %v7273, %v8685
  %v8687 = vpop.f32.mrb[0].mxu0
  %v8688 = vpop.f32.mrb[0].mxu0
  %v8689 = vadd.f32 %v7273, %v8688
  %v8690 = vpop.f32.mrb[0].mxu0
  %8691 = vmatprep.mubr.bf16.mxu0 0
  %8692 = vmatmul.mubr.bf16.gmra.mrb[0].mxu0 %v7666
  %v8693 = vpop.f32.mrb[0].mxu0
  %v8694 = vadd.f32 %v7273, %v8693
  %v8695 = vpop.f32.mrb[0].mxu0
  %v8696 = vpop.f32.mrb[0].mxu0
  %v8697 = vadd.f32 %v7273, %v8696
  %v8698 = vpop.f32.mrb[0].mxu0
  %8699 = vmatprep.mubr.bf16.mxu0 0
  %8700 = vmatmul.mubr.bf16.gmra.mrb[0].mxu0 %v7669
  %v8701 = vpop.f32.mrb[0].mxu0
  %v8702 = vadd.f32 %v7273, %v8701
  %v8703 = vpop.f32.mrb[0].mxu0
  %v8704 = vpop.f32.mrb[0].mxu0
  %v8705 = vadd.f32 %v7273, %v8704
  %v8706 = vpop.f32.mrb[0].mxu0
  %8707 = vmatprep.mubr.bf16.mxu0 0
  %8708 = vmatmul.mubr.bf16.gmra.mrb[0].mxu0 %v7672
  %v8709 = vpop.f32.mrb[0].mxu0
  %v8710 = vadd.f32 %v7273, %v8709
  %v8711 = vpop.f32.mrb[0].mxu0
  %v8712 = vpop.f32.mrb[0].mxu0
  %v8713 = vadd.f32 %v7273, %v8712
  %v8714 = vpop.f32.mrb[0].mxu0
  %8715 = vmatprep.mubr.bf16.mxu0 0
  %8716 = vmatmul.mubr.bf16.gmra.mrb[0].mxu0 %v7675
  %v8717 = vpop.f32.mrb[0].mxu0
  %v8718 = vadd.f32 %v7273, %v8717
  %v8719 = vpop.f32.mrb[0].mxu0
  %v8720 = vpop.f32.mrb[0].mxu0
  %v8721 = vadd.f32 %v7273, %v8720
  %v8722 = vpop.f32.mrb[0].mxu0
  %8723 = vmatprep.mubr.bf16.mxu0 0
  %8724 = vmatmul.mubr.bf16.gmra.mrb[0].mxu0 %v7678
  %v8725 = vpop.f32.mrb[0].mxu0
  %v8726 = vadd.f32 %v7273, %v8725
  %v8727 = vpop.f32.mrb[0].mxu0
  %v8728 = vpop.f32.mrb[0].mxu0
  %v8729 = vadd.f32 %v7273, %v8728
  %v8730 = vpop.f32.mrb[0].mxu0
  %8731 = vmatprep.mubr.bf16.mxu0 0
  %8732 = vmatmul.mubr.bf16.gmra.mrb[0].mxu0 %v7681
  %v8733 = vpop.f32.mrb[0].mxu0
  %v8734 = vadd.f32 %v7273, %v8733
  %v8735 = vpop.f32.mrb[0].mxu0
  %v8736 = vpop.f32.mrb[0].mxu0
  %v8737 = vadd.f32 %v7273, %v8736
  %v8738 = vpop.f32.mrb[0].mxu0
  %8739 = vdwg.mxu0
  %v8740 = vmax.f32 %v7718, 0.0
  %v8741 = vmax.f32 %v7721, 0.0
  %v8742 = vmax.f32 %v7726, 0.0
  %v8743 = vmax.f32 %v7729, 0.0
  %v8744 = vmax.f32 %v7734, 0.0
  %v8745 = vmax.f32 %v7737, 0.0
  %v8746 = vmax.f32 %v7742, 0.0
  %v8747 = vmax.f32 %v7745, 0.0
  %v8748 = vmax.f32 %v7750, 0.0
  %v8749 = vmax.f32 %v7753, 0.0
  %v8750 = vmax.f32 %v7758, 0.0
  %v8751 = vmax.f32 %v7761, 0.0
  %v8752 = vmax.f32 %v7766, 0.0
  %v8753 = vmax.f32 %v7769, 0.0
  %v8754 = vmax.f32 %v7774, 0.0
  %v8755 = vmax.f32 %v7777, 0.0
  %v8756 = vmax.f32 %v7782, 0.0
  %v8757 = vmax.f32 %v7785, 0.0
  %v8758 = vmax.f32 %v7790, 0.0
  %v8759 = vmax.f32 %v7793, 0.0
  %v8760 = vmax.f32 %v7798, 0.0
  %v8761 = vmax.f32 %v7801, 0.0
  %v8762 = vmax.f32 %v7806, 0.0
  %v8763 = vmax.f32 %v7809, 0.0
  %v8764 = vmax.f32 %v7814, 0.0
  %v8765 = vmax.f32 %v7817, 0.0
  %v8766 = vmax.f32 %v7822, 0.0
  %v8767 = vmax.f32 %v7825, 0.0
  %v8768 = vmax.f32 %v7830, 0.0
  %v8769 = vmax.f32 %v7833, 0.0
  %v8770 = vmax.f32 %v7838, 0.0
  %v8771 = vmax.f32 %v7841, 0.0
  %v8772 = vmax.f32 %v7846, 0.0
  %v8773 = vmax.f32 %v7849, 0.0
  %v8774 = vmax.f32 %v7854, 0.0
  %v8775 = vmax.f32 %v7857, 0.0
  %v8776 = vmax.f32 %v7862, 0.0
  %v8777 = vmax.f32 %v7865, 0.0
  %v8778 = vmax.f32 %v7870, 0.0
  %v8779 = vmax.f32 %v7873, 0.0
  %v8780 = vmax.f32 %v7878, 0.0
  %v8781 = vmax.f32 %v7881, 0.0
  %v8782 = vmax.f32 %v7886, 0.0
  %v8783 = vmax.f32 %v7889, 0.0
  %v8784 = vmax.f32 %v7894, 0.0
  %v8785 = vmax.f32 %v7897, 0.0
  %v8786 = vmax.f32 %v7902, 0.0
  %v8787 = vmax.f32 %v7905, 0.0
  %v8788 = vmax.f32 %v7910, 0.0
  %v8789 = vmax.f32 %v7913, 0.0
  %v8790 = vmax.f32 %v7918, 0.0
  %v8791 = vmax.f32 %v7921, 0.0
  %v8792 = vmax.f32 %v7926, 0.0
  %v8793 = vmax.f32 %v7929, 0.0
  %v8794 = vmax.f32 %v7934, 0.0
  %v8795 = vmax.f32 %v7937, 0.0
  %v8796 = vmax.f32 %v7942, 0.0
  %v8797 = vmax.f32 %v7945, 0.0
  %v8798 = vmax.f32 %v7950, 0.0
  %v8799 = vmax.f32 %v7953, 0.0
  %v8800 = vmax.f32 %v7958, 0.0
  %v8801 = vmax.f32 %v7961, 0.0
  %v8802 = vmax.f32 %v7966, 0.0
  %v8803 = vmax.f32 %v7969, 0.0
  %v8804 = vmax.f32 %v7974, 0.0
  %v8805 = vmax.f32 %v7977, 0.0
  %v8806 = vmax.f32 %v7982, 0.0
  %v8807 = vmax.f32 %v7985, 0.0
  %v8808 = vmax.f32 %v7990, 0.0
  %v8809 = vmax.f32 %v7993, 0.0
  %v8810 = vmax.f32 %v7998, 0.0
  %v8811 = vmax.f32 %v8001, 0.0
  %v8812 = vmax.f32 %v8006, 0.0
  %v8813 = vmax.f32 %v8009, 0.0
  %v8814 = vmax.f32 %v8014, 0.0
  %v8815 = vmax.f32 %v8017, 0.0
  %v8816 = vmax.f32 %v8022, 0.0
  %v8817 = vmax.f32 %v8025, 0.0
  %v8818 = vmax.f32 %v8030, 0.0
  %v8819 = vmax.f32 %v8033, 0.0
  %v8820 = vmax.f32 %v8038, 0.0
  %v8821 = vmax.f32 %v8041, 0.0
  %v8822 = vmax.f32 %v8046, 0.0
  %v8823 = vmax.f32 %v8049, 0.0
  %v8824 = vmax.f32 %v8054, 0.0
  %v8825 = vmax.f32 %v8057, 0.0
  %v8826 = vmax.f32 %v8062, 0.0
  %v8827 = vmax.f32 %v8065, 0.0
  %v8828 = vmax.f32 %v8070, 0.0
  %v8829 = vmax.f32 %v8073, 0.0
  %v8830 = vmax.f32 %v8078, 0.0
  %v8831 = vmax.f32 %v8081, 0.0
  %v8832 = vmax.f32 %v8086, 0.0
  %v8833 = vmax.f32 %v8089, 0.0
  %v8834 = vmax.f32 %v8094, 0.0
  %v8835 = vmax.f32 %v8097, 0.0
  %v8836 = vmax.f32 %v8102, 0.0
  %v8837 = vmax.f32 %v8105, 0.0
  %v8838 = vmax.f32 %v8110, 0.0
  %v8839 = vmax.f32 %v8113, 0.0
  %v8840 = vmax.f32 %v8118, 0.0
  %v8841 = vmax.f32 %v8121, 0.0
  %v8842 = vmax.f32 %v8126, 0.0
  %v8843 = vmax.f32 %v8129, 0.0
  %v8844 = vmax.f32 %v8134, 0.0
  %v8845 = vmax.f32 %v8137, 0.0
  %v8846 = vmax.f32 %v8142, 0.0
  %v8847 = vmax.f32 %v8145, 0.0
  %v8848 = vmax.f32 %v8150, 0.0
  %v8849 = vmax.f32 %v8153, 0.0
  %v8850 = vmax.f32 %v8158, 0.0
  %v8851 = vmax.f32 %v8161, 0.0
  %v8852 = vmax.f32 %v8166, 0.0
  %v8853 = vmax.f32 %v8169, 0.0
  %v8854 = vmax.f32 %v8174, 0.0
  %v8855 = vmax.f32 %v8177, 0.0
  %v8856 = vmax.f32 %v8182, 0.0
  %v8857 = vmax.f32 %v8185, 0.0
  %v8858 = vmax.f32 %v8190, 0.0
  %v8859 = vmax.f32 %v8193, 0.0
  %v8860 = vmax.f32 %v8198, 0.0
  %v8861 = vmax.f32 %v8201, 0.0
  %v8862 = vmax.f32 %v8206, 0.0
  %v8863 = vmax.f32 %v8209, 0.0
  %v8864 = vmax.f32 %v8214, 0.0
  %v8865 = vmax.f32 %v8217, 0.0
  %v8866 = vmax.f32 %v8222, 0.0
  %v8867 = vmax.f32 %v8225, 0.0
  %v8868 = vmax.f32 %v8230, 0.0
  %v8869 = vmax.f32 %v8233, 0.0
  %v8870 = vmax.f32 %v8238, 0.0
  %v8871 = vmax.f32 %v8241, 0.0
  %v8872 = vmax.f32 %v8246, 0.0
  %v8873 = vmax.f32 %v8249, 0.0
  %v8874 = vmax.f32 %v8254, 0.0
  %v8875 = vmax.f32 %v8257, 0.0
  %v8876 = vmax.f32 %v8262, 0.0
  %v8877 = vmax.f32 %v8265, 0.0
  %v8878 = vmax.f32 %v8270, 0.0
  %v8879 = vmax.f32 %v8273, 0.0
  %v8880 = vmax.f32 %v8278, 0.0
  %v8881 = vmax.f32 %v8281, 0.0
  %v8882 = vmax.f32 %v8286, 0.0
  %v8883 = vmax.f32 %v8289, 0.0
  %v8884 = vmax.f32 %v8294, 0.0
  %v8885 = vmax.f32 %v8297, 0.0
  %v8886 = vmax.f32 %v8302, 0.0
  %v8887 = vmax.f32 %v8305, 0.0
  %v8888 = vmax.f32 %v8310, 0.0
  %v8889 = vmax.f32 %v8313, 0.0
  %v8890 = vmax.f32 %v8318, 0.0
  %v8891 = vmax.f32 %v8321, 0.0
  %v8892 = vmax.f32 %v8326, 0.0
  %v8893 = vmax.f32 %v8329, 0.0
  %v8894 = vmax.f32 %v8334, 0.0
  %v8895 = vmax.f32 %v8337, 0.0
  %v8896 = vmax.f32 %v8342, 0.0
  %v8897 = vmax.f32 %v8345, 0.0
  %v8898 = vmax.f32 %v8350, 0.0
  %v8899 = vmax.f32 %v8353, 0.0
  %v8900 = vmax.f32 %v8358, 0.0
  %v8901 = vmax.f32 %v8361, 0.0
  %v8902 = vmax.f32 %v8366, 0.0
  %v8903 = vmax.f32 %v8369, 0.0
  %v8904 = vmax.f32 %v8374, 0.0
  %v8905 = vmax.f32 %v8377, 0.0
  %v8906 = vmax.f32 %v8382, 0.0
  %v8907 = vmax.f32 %v8385, 0.0
  %v8908 = vmax.f32 %v8390, 0.0
  %v8909 = vmax.f32 %v8393, 0.0
  %v8910 = vmax.f32 %v8398, 0.0
  %v8911 = vmax.f32 %v8401, 0.0
  %v8912 = vmax.f32 %v8406, 0.0
  %v8913 = vmax.f32 %v8409, 0.0
  %v8914 = vmax.f32 %v8414, 0.0
  %v8915 = vmax.f32 %v8417, 0.0
  %v8916 = vmax.f32 %v8422, 0.0
  %v8917 = vmax.f32 %v8425, 0.0
  %v8918 = vmax.f32 %v8430, 0.0
  %v8919 = vmax.f32 %v8433, 0.0
  %v8920 = vmax.f32 %v8438, 0.0
  %v8921 = vmax.f32 %v8441, 0.0
  %v8922 = vmax.f32 %v8446, 0.0
  %v8923 = vmax.f32 %v8449, 0.0
  %v8924 = vmax.f32 %v8454, 0.0
  %v8925 = vmax.f32 %v8457, 0.0
  %v8926 = vmax.f32 %v8462, 0.0
  %v8927 = vmax.f32 %v8465, 0.0
  %v8928 = vmax.f32 %v8470, 0.0
  %v8929 = vmax.f32 %v8473, 0.0
  %v8930 = vmax.f32 %v8478, 0.0
  %v8931 = vmax.f32 %v8481, 0.0
  %v8932 = vmax.f32 %v8486, 0.0
  %v8933 = vmax.f32 %v8489, 0.0
  %v8934 = vmax.f32 %v8494, 0.0
  %v8935 = vmax.f32 %v8497, 0.0
  %v8936 = vmax.f32 %v8502, 0.0
  %v8937 = vmax.f32 %v8505, 0.0
  %v8938 = vmax.f32 %v8510, 0.0
  %v8939 = vmax.f32 %v8513, 0.0
  %v8940 = vmax.f32 %v8518, 0.0
  %v8941 = vmax.f32 %v8521, 0.0
  %v8942 = vmax.f32 %v8526, 0.0
  %v8943 = vmax.f32 %v8529, 0.0
  %v8944 = vmax.f32 %v8534, 0.0
  %v8945 = vmax.f32 %v8537, 0.0
  %v8946 = vmax.f32 %v8542, 0.0
  %v8947 = vmax.f32 %v8545, 0.0
  %v8948 = vmax.f32 %v8550, 0.0
  %v8949 = vmax.f32 %v8553, 0.0
  %v8950 = vmax.f32 %v8558, 0.0
  %v8951 = vmax.f32 %v8561, 0.0
  %v8952 = vmax.f32 %v8566, 0.0
  %v8953 = vmax.f32 %v8569, 0.0
  %v8954 = vmax.f32 %v8574, 0.0
  %v8955 = vmax.f32 %v8577, 0.0
  %v8956 = vmax.f32 %v8582, 0.0
  %v8957 = vmax.f32 %v8585, 0.0
  %v8958 = vmax.f32 %v8590, 0.0
  %v8959 = vmax.f32 %v8593, 0.0
  %v8960 = vmax.f32 %v8598, 0.0
  %v8961 = vmax.f32 %v8601, 0.0
  %v8962 = vmax.f32 %v8606, 0.0
  %v8963 = vmax.f32 %v8609, 0.0
  %v8964 = vmax.f32 %v8614, 0.0
  %v8965 = vmax.f32 %v8617, 0.0
  %v8966 = vmax.f32 %v8622, 0.0
  %v8967 = vmax.f32 %v8625, 0.0
  %v8968 = vmax.f32 %v8630, 0.0
  %v8969 = vmax.f32 %v8633, 0.0
  %v8970 = vmax.f32 %v8638, 0.0
  %v8971 = vmax.f32 %v8641, 0.0
  %v8972 = vmax.f32 %v8646, 0.0
  %v8973 = vmax.f32 %v8649, 0.0
  %v8974 = vmax.f32 %v8654, 0.0
  %v8975 = vmax.f32 %v8657, 0.0
  %v8976 = vmax.f32 %v8662, 0.0
  %v8977 = vmax.f32 %v8665, 0.0
  %v8978 = vmax.f32 %v8670, 0.0
  %v8979 = vmax.f32 %v8673, 0.0
  %v8980 = vmax.f32 %v8678, 0.0
  %v8981 = vmax.f32 %v8681, 0.0
  %v8982 = vmax.f32 %v8686, 0.0
  %v8983 = vmax.f32 %v8689, 0.0
  %v8984 = vmax.f32 %v8694, 0.0
  %v8985 = vmax.f32 %v8697, 0.0
  %v8986 = vmax.f32 %v8702, 0.0
  %v8987 = vmax.f32 %v8705, 0.0
  %v8988 = vmax.f32 %v8710, 0.0
  %v8989 = vmax.f32 %v8713, 0.0
  %v8990 = vmax.f32 %v8718, 0.0
  %v8991 = vmax.f32 %v8721, 0.0
  %v8992 = vmax.f32 %v8726, 0.0
  %v8993 = vmax.f32 %v8729, 0.0
  %v8994 = vmax.f32 %v8734, 0.0
  %v8995 = vmax.f32 %v8737, 0.0
  %v8996 = vld [vmem:[%s9] sm:$0x1]
  %v8998 = vlaneseq
  %v8999 = vshrl.u32 %v8998, 7
  %v9000 = vsub.s32 0, %v8999
  %v9001 = vrot.slane %v8996, %v9000
  %v9003 = vmul.f32 %v8740, %v9001
  %v9004 = vmul.f32 %v8741, %v9001
  %v9005 = vmul.f32 %v8742, %v9001
  %v9006 = vmul.f32 %v8743, %v9001
  %v9007 = vmul.f32 %v8744, %v9001
  %v9008 = vmul.f32 %v8745, %v9001
  %v9009 = vmul.f32 %v8746, %v9001
  %v9010 = vmul.f32 %v8747, %v9001
  %v9011 = vmul.f32 %v8748, %v9001
  %v9012 = vmul.f32 %v8749, %v9001
  %v9013 = vmul.f32 %v8750, %v9001
  %v9014 = vmul.f32 %v8751, %v9001
  %v9015 = vmul.f32 %v8752, %v9001
  %v9016 = vmul.f32 %v8753, %v9001
  %v9017 = vmul.f32 %v8754, %v9001
  %v9018 = vmul.f32 %v8755, %v9001
  %v9019 = vmul.f32 %v8756, %v9001
  %v9020 = vmul.f32 %v8757, %v9001
  %v9021 = vmul.f32 %v8758, %v9001
  %v9022 = vmul.f32 %v8759, %v9001
  %v9023 = vmul.f32 %v8760, %v9001
  %v9024 = vmul.f32 %v8761, %v9001
  %v9025 = vmul.f32 %v8762, %v9001
  %v9026 = vmul.f32 %v8763, %v9001
  %v9027 = vmul.f32 %v8764, %v9001
  %v9028 = vmul.f32 %v8765, %v9001
  %v9029 = vmul.f32 %v8766, %v9001
  %v9030 = vmul.f32 %v8767, %v9001
  %v9031 = vmul.f32 %v8768, %v9001
  %v9032 = vmul.f32 %v8769, %v9001
  %v9033 = vmul.f32 %v8770, %v9001
  %v9034 = vmul.f32 %v8771, %v9001
  %v9035 = vmul.f32 %v8772, %v9001
  %v9036 = vmul.f32 %v8773, %v9001
  %v9037 = vmul.f32 %v8774, %v9001
  %v9038 = vmul.f32 %v8775, %v9001
  %v9039 = vmul.f32 %v8776, %v9001
  %v9040 = vmul.f32 %v8777, %v9001
  %v9041 = vmul.f32 %v8778, %v9001
  %v9042 = vmul.f32 %v8779, %v9001
  %v9043 = vmul.f32 %v8780, %v9001
  %v9044 = vmul.f32 %v8781, %v9001
  %v9045 = vmul.f32 %v8782, %v9001
  %v9046 = vmul.f32 %v8783, %v9001
  %v9047 = vmul.f32 %v8784, %v9001
  %v9048 = vmul.f32 %v8785, %v9001
  %v9049 = vmul.f32 %v8786, %v9001
  %v9050 = vmul.f32 %v8787, %v9001
  %v9051 = vmul.f32 %v8788, %v9001
  %v9052 = vmul.f32 %v8789, %v9001
  %v9053 = vmul.f32 %v8790, %v9001
  %v9054 = vmul.f32 %v8791, %v9001
  %v9055 = vmul.f32 %v8792, %v9001
  %v9056 = vmul.f32 %v8793, %v9001
  %v9057 = vmul.f32 %v8794, %v9001
  %v9058 = vmul.f32 %v8795, %v9001
  %v9059 = vmul.f32 %v8796, %v9001
  %v9060 = vmul.f32 %v8797, %v9001
  %v9061 = vmul.f32 %v8798, %v9001
  %v9062 = vmul.f32 %v8799, %v9001
  %v9063 = vmul.f32 %v8800, %v9001
  %v9064 = vmul.f32 %v8801, %v9001
  %v9065 = vmul.f32 %v8802, %v9001
  %v9066 = vmul.f32 %v8803, %v9001
  %v9067 = vmul.f32 %v8804, %v9001
  %v9068 = vmul.f32 %v8805, %v9001
  %v9069 = vmul.f32 %v8806, %v9001
  %v9070 = vmul.f32 %v8807, %v9001
  %v9071 = vmul.f32 %v8808, %v9001
  %v9072 = vmul.f32 %v8809, %v9001
  %v9073 = vmul.f32 %v8810, %v9001
  %v9074 = vmul.f32 %v8811, %v9001
  %v9075 = vmul.f32 %v8812, %v9001
  %v9076 = vmul.f32 %v8813, %v9001
  %v9077 = vmul.f32 %v8814, %v9001
  %v9078 = vmul.f32 %v8815, %v9001
  %v9079 = vmul.f32 %v8816, %v9001
  %v9080 = vmul.f32 %v8817, %v9001
  %v9081 = vmul.f32 %v8818, %v9001
  %v9082 = vmul.f32 %v8819, %v9001
  %v9083 = vmul.f32 %v8820, %v9001
  %v9084 = vmul.f32 %v8821, %v9001
  %v9085 = vmul.f32 %v8822, %v9001
  %v9086 = vmul.f32 %v8823, %v9001
  %v9087 = vmul.f32 %v8824, %v9001
  %v9088 = vmul.f32 %v8825, %v9001
  %v9089 = vmul.f32 %v8826, %v9001
  %v9090 = vmul.f32 %v8827, %v9001
  %v9091 = vmul.f32 %v8828, %v9001
  %v9092 = vmul.f32 %v8829, %v9001
  %v9093 = vmul.f32 %v8830, %v9001
  %v9094 = vmul.f32 %v8831, %v9001
  %v9095 = vmul.f32 %v8832, %v9001
  %v9096 = vmul.f32 %v8833, %v9001
  %v9097 = vmul.f32 %v8834, %v9001
  %v9098 = vmul.f32 %v8835, %v9001
  %v9099 = vmul.f32 %v8836, %v9001
  %v9100 = vmul.f32 %v8837, %v9001
  %v9101 = vmul.f32 %v8838, %v9001
  %v9102 = vmul.f32 %v8839, %v9001
  %v9103 = vmul.f32 %v8840, %v9001
  %v9104 = vmul.f32 %v8841, %v9001
  %v9105 = vmul.f32 %v8842, %v9001
  %v9106 = vmul.f32 %v8843, %v9001
  %v9107 = vmul.f32 %v8844, %v9001
  %v9108 = vmul.f32 %v8845, %v9001
  %v9109 = vmul.f32 %v8846, %v9001
  %v9110 = vmul.f32 %v8847, %v9001
  %v9111 = vmul.f32 %v8848, %v9001
  %v9112 = vmul.f32 %v8849, %v9001
  %v9113 = vmul.f32 %v8850, %v9001
  %v9114 = vmul.f32 %v8851, %v9001
  %v9115 = vmul.f32 %v8852, %v9001
  %v9116 = vmul.f32 %v8853, %v9001
  %v9117 = vmul.f32 %v8854, %v9001
  %v9118 = vmul.f32 %v8855, %v9001
  %v9119 = vmul.f32 %v8856, %v9001
  %v9120 = vmul.f32 %v8857, %v9001
  %v9121 = vmul.f32 %v8858, %v9001
  %v9122 = vmul.f32 %v8859, %v9001
  %v9123 = vmul.f32 %v8860, %v9001
  %v9124 = vmul.f32 %v8861, %v9001
  %v9125 = vmul.f32 %v8862, %v9001
  %v9126 = vmul.f32 %v8863, %v9001
  %v9127 = vmul.f32 %v8864, %v9001
  %v9128 = vmul.f32 %v8865, %v9001
  %v9129 = vmul.f32 %v8866, %v9001
  %v9130 = vmul.f32 %v8867, %v9001
  %v9131 = vmul.f32 %v8868, %v9001
  %v9132 = vmul.f32 %v8869, %v9001
  %v9133 = vmul.f32 %v8870, %v9001
  %v9134 = vmul.f32 %v8871, %v9001
  %v9135 = vmul.f32 %v8872, %v9001
  %v9136 = vmul.f32 %v8873, %v9001
  %v9137 = vmul.f32 %v8874, %v9001
  %v9138 = vmul.f32 %v8875, %v9001
  %v9139 = vmul.f32 %v8876, %v9001
  %v9140 = vmul.f32 %v8877, %v9001
  %v9141 = vmul.f32 %v8878, %v9001
  %v9142 = vmul.f32 %v8879, %v9001
  %v9143 = vmul.f32 %v8880, %v9001
  %v9144 = vmul.f32 %v8881, %v9001
  %v9145 = vmul.f32 %v8882, %v9001
  %v9146 = vmul.f32 %v8883, %v9001
  %v9147 = vmul.f32 %v8884, %v9001
  %v9148 = vmul.f32 %v8885, %v9001
  %v9149 = vmul.f32 %v8886, %v9001
  %v9150 = vmul.f32 %v8887, %v9001
  %v9151 = vmul.f32 %v8888, %v9001
  %v9152 = vmul.f32 %v8889, %v9001
  %v9153 = vmul.f32 %v8890, %v9001
  %v9154 = vmul.f32 %v8891, %v9001
  %v9155 = vmul.f32 %v8892, %v9001
  %v9156 = vmul.f32 %v8893, %v9001
  %v9157 = vmul.f32 %v8894, %v9001
  %v9158 = vmul.f32 %v8895, %v9001
  %v9159 = vmul.f32 %v8896, %v9001
  %v9160 = vmul.f32 %v8897, %v9001
  %v9161 = vmul.f32 %v8898, %v9001
  %v9162 = vmul.f32 %v8899, %v9001
  %v9163 = vmul.f32 %v8900, %v9001
  %v9164 = vmul.f32 %v8901, %v9001
  %v9165 = vmul.f32 %v8902, %v9001
  %v9166 = vmul.f32 %v8903, %v9001
  %v9167 = vmul.f32 %v8904, %v9001
  %v9168 = vmul.f32 %v8905, %v9001
  %v9169 = vmul.f32 %v8906, %v9001
  %v9170 = vmul.f32 %v8907, %v9001
  %v9171 = vmul.f32 %v8908, %v9001
  %v9172 = vmul.f32 %v8909, %v9001
  %v9173 = vmul.f32 %v8910, %v9001
  %v9174 = vmul.f32 %v8911, %v9001
  %v9175 = vmul.f32 %v8912, %v9001
  %v9176 = vmul.f32 %v8913, %v9001
  %v9177 = vmul.f32 %v8914, %v9001
  %v9178 = vmul.f32 %v8915, %v9001
  %v9179 = vmul.f32 %v8916, %v9001
  %v9180 = vmul.f32 %v8917, %v9001
  %v9181 = vmul.f32 %v8918, %v9001
  %v9182 = vmul.f32 %v8919, %v9001
  %v9183 = vmul.f32 %v8920, %v9001
  %v9184 = vmul.f32 %v8921, %v9001
  %v9185 = vmul.f32 %v8922, %v9001
  %v9186 = vmul.f32 %v8923, %v9001
  %v9187 = vmul.f32 %v8924, %v9001
  %v9188 = vmul.f32 %v8925, %v9001
  %v9189 = vmul.f32 %v8926, %v9001
  %v9190 = vmul.f32 %v8927, %v9001
  %v9191 = vmul.f32 %v8928, %v9001
  %v9192 = vmul.f32 %v8929, %v9001
  %v9193 = vmul.f32 %v8930, %v9001
  %v9194 = vmul.f32 %v8931, %v9001
  %v9195 = vmul.f32 %v8932, %v9001
  %v9196 = vmul.f32 %v8933, %v9001
  %v9197 = vmul.f32 %v8934, %v9001
  %v9198 = vmul.f32 %v8935, %v9001
  %v9199 = vmul.f32 %v8936, %v9001
  %v9200 = vmul.f32 %v8937, %v9001
  %v9201 = vmul.f32 %v8938, %v9001
  %v9202 = vmul.f32 %v8939, %v9001
  %v9203 = vmul.f32 %v8940, %v9001
  %v9204 = vmul.f32 %v8941, %v9001
  %v9205 = vmul.f32 %v8942, %v9001
  %v9206 = vmul.f32 %v8943, %v9001
  %v9207 = vmul.f32 %v8944, %v9001
  %v9208 = vmul.f32 %v8945, %v9001
  %v9209 = vmul.f32 %v8946, %v9001
  %v9210 = vmul.f32 %v8947, %v9001
  %v9211 = vmul.f32 %v8948, %v9001
  %v9212 = vmul.f32 %v8949, %v9001
  %v9213 = vmul.f32 %v8950, %v9001
  %v9214 = vmul.f32 %v8951, %v9001
  %v9215 = vmul.f32 %v8952, %v9001
  %v9216 = vmul.f32 %v8953, %v9001
  %v9217 = vmul.f32 %v8954, %v9001
  %v9218 = vmul.f32 %v8955, %v9001
  %v9219 = vmul.f32 %v8956, %v9001
  %v9220 = vmul.f32 %v8957, %v9001
  %v9221 = vmul.f32 %v8958, %v9001
  %v9222 = vmul.f32 %v8959, %v9001
  %v9223 = vmul.f32 %v8960, %v9001
  %v9224 = vmul.f32 %v8961, %v9001
  %v9225 = vmul.f32 %v8962, %v9001
  %v9226 = vmul.f32 %v8963, %v9001
  %v9227 = vmul.f32 %v8964, %v9001
  %v9228 = vmul.f32 %v8965, %v9001
  %v9229 = vmul.f32 %v8966, %v9001
  %v9230 = vmul.f32 %v8967, %v9001
  %v9231 = vmul.f32 %v8968, %v9001
  %v9232 = vmul.f32 %v8969, %v9001
  %v9233 = vmul.f32 %v8970, %v9001
  %v9234 = vmul.f32 %v8971, %v9001
  %v9235 = vmul.f32 %v8972, %v9001
  %v9236 = vmul.f32 %v8973, %v9001
  %v9237 = vmul.f32 %v8974, %v9001
  %v9238 = vmul.f32 %v8975, %v9001
  %v9239 = vmul.f32 %v8976, %v9001
  %v9240 = vmul.f32 %v8977, %v9001
  %v9241 = vmul.f32 %v8978, %v9001
  %v9242 = vmul.f32 %v8979, %v9001
  %v9243 = vmul.f32 %v8980, %v9001
  %v9244 = vmul.f32 %v8981, %v9001
  %v9245 = vmul.f32 %v8982, %v9001
  %v9246 = vmul.f32 %v8983, %v9001
  %v9247 = vmul.f32 %v8984, %v9001
  %v9248 = vmul.f32 %v8985, %v9001
  %v9249 = vmul.f32 %v8986, %v9001
  %v9250 = vmul.f32 %v8987, %v9001
  %v9251 = vmul.f32 %v8988, %v9001
  %v9252 = vmul.f32 %v8989, %v9001
  %v9253 = vmul.f32 %v8990, %v9001
  %v9254 = vmul.f32 %v8991, %v9001
  %v9255 = vmul.f32 %v8992, %v9001
  %v9256 = vmul.f32 %v8993, %v9001
  %v9257 = vmul.f32 %v8994, %v9001
  %v9258 = vmul.f32 %v8995, %v9001
  %v9259 = vsel %vm5434, %v9003, 0.0
  %9260 = vadd.xlane.f32.xlu0 %v9259
  %v9261 = vpop.xlane.xlu0 %9260
  %v9262 = vsel %vm5434, %v9004, 0.0
  %9263 = vadd.xlane.f32.xlu0 %v9262
  %v9264 = vpop.xlane.xlu0 %9263
  %v9265 = vsel %vm5434, %v9005, 0.0
  %9266 = vadd.xlane.f32.xlu0 %v9265
  %v9267 = vpop.xlane.xlu0 %9266
  %v9268 = vsel %vm5434, %v9006, 0.0
  %9269 = vadd.xlane.f32.xlu0 %v9268
  %v9270 = vpop.xlane.xlu0 %9269
  %v9271 = vsel %vm5434, %v9007, 0.0
  %9272 = vadd.xlane.f32.xlu0 %v9271
  %v9273 = vpop.xlane.xlu0 %9272
  %v9274 = vsel %vm5434, %v9008, 0.0
  %9275 = vadd.xlane.f32.xlu0 %v9274
  %v9276 = vpop.xlane.xlu0 %9275
  %v9277 = vsel %vm5434, %v9009, 0.0
  %9278 = vadd.xlane.f32.xlu0 %v9277
  %v9279 = vpop.xlane.xlu0 %9278
  %v9280 = vsel %vm5434, %v9010, 0.0
  %9281 = vadd.xlane.f32.xlu0 %v9280
  %v9282 = vpop.xlane.xlu0 %9281
  %v9283 = vsel %vm5434, %v9011, 0.0
  %9284 = vadd.xlane.f32.xlu0 %v9283
  %v9285 = vpop.xlane.xlu0 %9284
  %v9286 = vsel %vm5434, %v9012, 0.0
  %9287 = vadd.xlane.f32.xlu0 %v9286
  %v9288 = vpop.xlane.xlu0 %9287
  %v9289 = vsel %vm5434, %v9013, 0.0
  %9290 = vadd.xlane.f32.xlu0 %v9289
  %v9291 = vpop.xlane.xlu0 %9290
  %v9292 = vsel %vm5434, %v9014, 0.0
  %9293 = vadd.xlane.f32.xlu0 %v9292
  %v9294 = vpop.xlane.xlu0 %9293
  %v9295 = vsel %vm5434, %v9015, 0.0
  %9296 = vadd.xlane.f32.xlu0 %v9295
  %v9297 = vpop.xlane.xlu0 %9296
  %v9298 = vsel %vm5434, %v9016, 0.0
  %9299 = vadd.xlane.f32.xlu0 %v9298
  %v9300 = vpop.xlane.xlu0 %9299
  %v9301 = vsel %vm5434, %v9017, 0.0
  %9302 = vadd.xlane.f32.xlu0 %v9301
  %v9303 = vpop.xlane.xlu0 %9302
  %v9304 = vsel %vm5434, %v9018, 0.0
  %9305 = vadd.xlane.f32.xlu0 %v9304
  %v9306 = vpop.xlane.xlu0 %9305
  %v9307 = vsel %vm5434, %v9019, 0.0
  %9308 = vadd.xlane.f32.xlu0 %v9307
  %v9309 = vpop.xlane.xlu0 %9308
  %v9310 = vsel %vm5434, %v9020, 0.0
  %9311 = vadd.xlane.f32.xlu0 %v9310
  %v9312 = vpop.xlane.xlu0 %9311
  %v9313 = vsel %vm5434, %v9021, 0.0
  %9314 = vadd.xlane.f32.xlu0 %v9313
  %v9315 = vpop.xlane.xlu0 %9314
  %v9316 = vsel %vm5434, %v9022, 0.0
  %9317 = vadd.xlane.f32.xlu0 %v9316
  %v9318 = vpop.xlane.xlu0 %9317
  %v9319 = vsel %vm5434, %v9023, 0.0
  %9320 = vadd.xlane.f32.xlu0 %v9319
  %v9321 = vpop.xlane.xlu0 %9320
  %v9322 = vsel %vm5434, %v9024, 0.0
  %9323 = vadd.xlane.f32.xlu0 %v9322
  %v9324 = vpop.xlane.xlu0 %9323
  %v9325 = vsel %vm5434, %v9025, 0.0
  %9326 = vadd.xlane.f32.xlu0 %v9325
  %v9327 = vpop.xlane.xlu0 %9326
  %v9328 = vsel %vm5434, %v9026, 0.0
  %9329 = vadd.xlane.f32.xlu0 %v9328
  %v9330 = vpop.xlane.xlu0 %9329
  %v9331 = vsel %vm5434, %v9027, 0.0
  %9332 = vadd.xlane.f32.xlu0 %v9331
  %v9333 = vpop.xlane.xlu0 %9332
  %v9334 = vsel %vm5434, %v9028, 0.0
  %9335 = vadd.xlane.f32.xlu0 %v9334
  %v9336 = vpop.xlane.xlu0 %9335
  %v9337 = vsel %vm5434, %v9029, 0.0
  %9338 = vadd.xlane.f32.xlu0 %v9337
  %v9339 = vpop.xlane.xlu0 %9338
  %v9340 = vsel %vm5434, %v9030, 0.0
  %9341 = vadd.xlane.f32.xlu0 %v9340
  %v9342 = vpop.xlane.xlu0 %9341
  %v9343 = vsel %vm5434, %v9031, 0.0
  %9344 = vadd.xlane.f32.xlu0 %v9343
  %v9345 = vpop.xlane.xlu0 %9344
  %v9346 = vsel %vm5434, %v9032, 0.0
  %9347 = vadd.xlane.f32.xlu0 %v9346
  %v9348 = vpop.xlane.xlu0 %9347
  %v9349 = vsel %vm5434, %v9033, 0.0
  %9350 = vadd.xlane.f32.xlu0 %v9349
  %v9351 = vpop.xlane.xlu0 %9350
  %v9352 = vsel %vm5434, %v9034, 0.0
  %9353 = vadd.xlane.f32.xlu0 %v9352
  %v9354 = vpop.xlane.xlu0 %9353
  %v9355 = vsel %vm5434, %v9035, 0.0
  %9356 = vadd.xlane.f32.xlu0 %v9355
  %v9357 = vpop.xlane.xlu0 %9356
  %v9358 = vsel %vm5434, %v9036, 0.0
  %9359 = vadd.xlane.f32.xlu0 %v9358
  %v9360 = vpop.xlane.xlu0 %9359
  %v9361 = vsel %vm5434, %v9037, 0.0
  %9362 = vadd.xlane.f32.xlu0 %v9361
  %v9363 = vpop.xlane.xlu0 %9362
  %v9364 = vsel %vm5434, %v9038, 0.0
  %9365 = vadd.xlane.f32.xlu0 %v9364
  %v9366 = vpop.xlane.xlu0 %9365
  %v9367 = vsel %vm5434, %v9039, 0.0
  %9368 = vadd.xlane.f32.xlu0 %v9367
  %v9369 = vpop.xlane.xlu0 %9368
  %v9370 = vsel %vm5434, %v9040, 0.0
  %9371 = vadd.xlane.f32.xlu0 %v9370
  %v9372 = vpop.xlane.xlu0 %9371
  %v9373 = vsel %vm5434, %v9041, 0.0
  %9374 = vadd.xlane.f32.xlu0 %v9373
  %v9375 = vpop.xlane.xlu0 %9374
  %v9376 = vsel %vm5434, %v9042, 0.0
  %9377 = vadd.xlane.f32.xlu0 %v9376
  %v9378 = vpop.xlane.xlu0 %9377
  %v9379 = vsel %vm5434, %v9043, 0.0
  %9380 = vadd.xlane.f32.xlu0 %v9379
  %v9381 = vpop.xlane.xlu0 %9380
  %v9382 = vsel %vm5434, %v9044, 0.0
  %9383 = vadd.xlane.f32.xlu0 %v9382
  %v9384 = vpop.xlane.xlu0 %9383
  %v9385 = vsel %vm5434, %v9045, 0.0
  %9386 = vadd.xlane.f32.xlu0 %v9385
  %v9387 = vpop.xlane.xlu0 %9386
  %v9388 = vsel %vm5434, %v9046, 0.0
  %9389 = vadd.xlane.f32.xlu0 %v9388
  %v9390 = vpop.xlane.xlu0 %9389
  %v9391 = vsel %vm5434, %v9047, 0.0
  %9392 = vadd.xlane.f32.xlu0 %v9391
  %v9393 = vpop.xlane.xlu0 %9392
  %v9394 = vsel %vm5434, %v9048, 0.0
  %9395 = vadd.xlane.f32.xlu0 %v9394
  %v9396 = vpop.xlane.xlu0 %9395
  %v9397 = vsel %vm5434, %v9049, 0.0
  %9398 = vadd.xlane.f32.xlu0 %v9397
  %v9399 = vpop.xlane.xlu0 %9398
  %v9400 = vsel %vm5434, %v9050, 0.0
  %9401 = vadd.xlane.f32.xlu0 %v9400
  %v9402 = vpop.xlane.xlu0 %9401
  %v9403 = vsel %vm5434, %v9051, 0.0
  %9404 = vadd.xlane.f32.xlu0 %v9403
  %v9405 = vpop.xlane.xlu0 %9404
  %v9406 = vsel %vm5434, %v9052, 0.0
  %9407 = vadd.xlane.f32.xlu0 %v9406
  %v9408 = vpop.xlane.xlu0 %9407
  %v9409 = vsel %vm5434, %v9053, 0.0
  %9410 = vadd.xlane.f32.xlu0 %v9409
  %v9411 = vpop.xlane.xlu0 %9410
  %v9412 = vsel %vm5434, %v9054, 0.0
  %9413 = vadd.xlane.f32.xlu0 %v9412
  %v9414 = vpop.xlane.xlu0 %9413
  %v9415 = vsel %vm5434, %v9055, 0.0
  %9416 = vadd.xlane.f32.xlu0 %v9415
  %v9417 = vpop.xlane.xlu0 %9416
  %v9418 = vsel %vm5434, %v9056, 0.0
  %9419 = vadd.xlane.f32.xlu0 %v9418
  %v9420 = vpop.xlane.xlu0 %9419
  %v9421 = vsel %vm5434, %v9057, 0.0
  %9422 = vadd.xlane.f32.xlu0 %v9421
  %v9423 = vpop.xlane.xlu0 %9422
  %v9424 = vsel %vm5434, %v9058, 0.0
  %9425 = vadd.xlane.f32.xlu0 %v9424
  %v9426 = vpop.xlane.xlu0 %9425
  %v9427 = vsel %vm5434, %v9059, 0.0
  %9428 = vadd.xlane.f32.xlu0 %v9427
  %v9429 = vpop.xlane.xlu0 %9428
  %v9430 = vsel %vm5434, %v9060, 0.0
  %9431 = vadd.xlane.f32.xlu0 %v9430
  %v9432 = vpop.xlane.xlu0 %9431
  %v9433 = vsel %vm5434, %v9061, 0.0
  %9434 = vadd.xlane.f32.xlu0 %v9433
  %v9435 = vpop.xlane.xlu0 %9434
  %v9436 = vsel %vm5434, %v9062, 0.0
  %9437 = vadd.xlane.f32.xlu0 %v9436
  %v9438 = vpop.xlane.xlu0 %9437
  %v9439 = vsel %vm5434, %v9063, 0.0
  %9440 = vadd.xlane.f32.xlu0 %v9439
  %v9441 = vpop.xlane.xlu0 %9440
  %v9442 = vsel %vm5434, %v9064, 0.0
  %9443 = vadd.xlane.f32.xlu0 %v9442
  %v9444 = vpop.xlane.xlu0 %9443
  %v9445 = vsel %vm5434, %v9065, 0.0
  %9446 = vadd.xlane.f32.xlu0 %v9445
  %v9447 = vpop.xlane.xlu0 %9446
  %v9448 = vsel %vm5434, %v9066, 0.0
  %9449 = vadd.xlane.f32.xlu0 %v9448
  %v9450 = vpop.xlane.xlu0 %9449
  %v9451 = vsel %vm5434, %v9067, 0.0
  %9452 = vadd.xlane.f32.xlu0 %v9451
  %v9453 = vpop.xlane.xlu0 %9452
  %v9454 = vsel %vm5434, %v9068, 0.0
  %9455 = vadd.xlane.f32.xlu0 %v9454
  %v9456 = vpop.xlane.xlu0 %9455
  %v9457 = vsel %vm5434, %v9069, 0.0
  %9458 = vadd.xlane.f32.xlu0 %v9457
  %v9459 = vpop.xlane.xlu0 %9458
  %v9460 = vsel %vm5434, %v9070, 0.0
  %9461 = vadd.xlane.f32.xlu0 %v9460
  %v9462 = vpop.xlane.xlu0 %9461
  %v9463 = vsel %vm5434, %v9071, 0.0
  %9464 = vadd.xlane.f32.xlu0 %v9463
  %v9465 = vpop.xlane.xlu0 %9464
  %v9466 = vsel %vm5434, %v9072, 0.0
  %9467 = vadd.xlane.f32.xlu0 %v9466
  %v9468 = vpop.xlane.xlu0 %9467
  %v9469 = vsel %vm5434, %v9073, 0.0
  %9470 = vadd.xlane.f32.xlu0 %v9469
  %v9471 = vpop.xlane.xlu0 %9470
  %v9472 = vsel %vm5434, %v9074, 0.0
  %9473 = vadd.xlane.f32.xlu0 %v9472
  %v9474 = vpop.xlane.xlu0 %9473
  %v9475 = vsel %vm5434, %v9075, 0.0
  %9476 = vadd.xlane.f32.xlu0 %v9475
  %v9477 = vpop.xlane.xlu0 %9476
  %v9478 = vsel %vm5434, %v9076, 0.0
  %9479 = vadd.xlane.f32.xlu0 %v9478
  %v9480 = vpop.xlane.xlu0 %9479
  %v9481 = vsel %vm5434, %v9077, 0.0
  %9482 = vadd.xlane.f32.xlu0 %v9481
  %v9483 = vpop.xlane.xlu0 %9482
  %v9484 = vsel %vm5434, %v9078, 0.0
  %9485 = vadd.xlane.f32.xlu0 %v9484
  %v9486 = vpop.xlane.xlu0 %9485
  %v9487 = vsel %vm5434, %v9079, 0.0
  %9488 = vadd.xlane.f32.xlu0 %v9487
  %v9489 = vpop.xlane.xlu0 %9488
  %v9490 = vsel %vm5434, %v9080, 0.0
  %9491 = vadd.xlane.f32.xlu0 %v9490
  %v9492 = vpop.xlane.xlu0 %9491
  %v9493 = vsel %vm5434, %v9081, 0.0
  %9494 = vadd.xlane.f32.xlu0 %v9493
  %v9495 = vpop.xlane.xlu0 %9494
  %v9496 = vsel %vm5434, %v9082, 0.0
  %9497 = vadd.xlane.f32.xlu0 %v9496
  %v9498 = vpop.xlane.xlu0 %9497
  %v9499 = vsel %vm5434, %v9083, 0.0
  %9500 = vadd.xlane.f32.xlu0 %v9499
  %v9501 = vpop.xlane.xlu0 %9500
  %v9502 = vsel %vm5434, %v9084, 0.0
  %9503 = vadd.xlane.f32.xlu0 %v9502
  %v9504 = vpop.xlane.xlu0 %9503
  %v9505 = vsel %vm5434, %v9085, 0.0
  %9506 = vadd.xlane.f32.xlu0 %v9505
  %v9507 = vpop.xlane.xlu0 %9506
  %v9508 = vsel %vm5434, %v9086, 0.0
  %9509 = vadd.xlane.f32.xlu0 %v9508
  %v9510 = vpop.xlane.xlu0 %9509
  %v9511 = vsel %vm5434, %v9087, 0.0
  %9512 = vadd.xlane.f32.xlu0 %v9511
  %v9513 = vpop.xlane.xlu0 %9512
  %v9514 = vsel %vm5434, %v9088, 0.0
  %9515 = vadd.xlane.f32.xlu0 %v9514
  %v9516 = vpop.xlane.xlu0 %9515
  %v9517 = vsel %vm5434, %v9089, 0.0
  %9518 = vadd.xlane.f32.xlu0 %v9517
  %v9519 = vpop.xlane.xlu0 %9518
  %v9520 = vsel %vm5434, %v9090, 0.0
  %9521 = vadd.xlane.f32.xlu0 %v9520
  %v9522 = vpop.xlane.xlu0 %9521
  %v9523 = vsel %vm5434, %v9091, 0.0
  %9524 = vadd.xlane.f32.xlu0 %v9523
  %v9525 = vpop.xlane.xlu0 %9524
  %v9526 = vsel %vm5434, %v9092, 0.0
  %9527 = vadd.xlane.f32.xlu0 %v9526
  %v9528 = vpop.xlane.xlu0 %9527
  %v9529 = vsel %vm5434, %v9093, 0.0
  %9530 = vadd.xlane.f32.xlu0 %v9529
  %v9531 = vpop.xlane.xlu0 %9530
  %v9532 = vsel %vm5434, %v9094, 0.0
  %9533 = vadd.xlane.f32.xlu0 %v9532
  %v9534 = vpop.xlane.xlu0 %9533
  %v9535 = vsel %vm5434, %v9095, 0.0
  %9536 = vadd.xlane.f32.xlu0 %v9535
  %v9537 = vpop.xlane.xlu0 %9536
  %v9538 = vsel %vm5434, %v9096, 0.0
  %9539 = vadd.xlane.f32.xlu0 %v9538
  %v9540 = vpop.xlane.xlu0 %9539
  %v9541 = vsel %vm5434, %v9097, 0.0
  %9542 = vadd.xlane.f32.xlu0 %v9541
  %v9543 = vpop.xlane.xlu0 %9542
  %v9544 = vsel %vm5434, %v9098, 0.0
  %9545 = vadd.xlane.f32.xlu0 %v9544
  %v9546 = vpop.xlane.xlu0 %9545
  %v9547 = vsel %vm5434, %v9099, 0.0
  %9548 = vadd.xlane.f32.xlu0 %v9547
  %v9549 = vpop.xlane.xlu0 %9548
  %v9550 = vsel %vm5434, %v9100, 0.0
  %9551 = vadd.xlane.f32.xlu0 %v9550
  %v9552 = vpop.xlane.xlu0 %9551
  %v9553 = vsel %vm5434, %v9101, 0.0
  %9554 = vadd.xlane.f32.xlu0 %v9553
  %v9555 = vpop.xlane.xlu0 %9554
  %v9556 = vsel %vm5434, %v9102, 0.0
  %9557 = vadd.xlane.f32.xlu0 %v9556
  %v9558 = vpop.xlane.xlu0 %9557
  %v9559 = vsel %vm5434, %v9103, 0.0
  %9560 = vadd.xlane.f32.xlu0 %v9559
  %v9561 = vpop.xlane.xlu0 %9560
  %v9562 = vsel %vm5434, %v9104, 0.0
  %9563 = vadd.xlane.f32.xlu0 %v9562
  %v9564 = vpop.xlane.xlu0 %9563
  %v9565 = vsel %vm5434, %v9105, 0.0
  %9566 = vadd.xlane.f32.xlu0 %v9565
  %v9567 = vpop.xlane.xlu0 %9566
  %v9568 = vsel %vm5434, %v9106, 0.0
  %9569 = vadd.xlane.f32.xlu0 %v9568
  %v9570 = vpop.xlane.xlu0 %9569
  %v9571 = vsel %vm5434, %v9107, 0.0
  %9572 = vadd.xlane.f32.xlu0 %v9571
  %v9573 = vpop.xlane.xlu0 %9572
  %v9574 = vsel %vm5434, %v9108, 0.0
  %9575 = vadd.xlane.f32.xlu0 %v9574
  %v9576 = vpop.xlane.xlu0 %9575
  %v9577 = vsel %vm5434, %v9109, 0.0
  %9578 = vadd.xlane.f32.xlu0 %v9577
  %v9579 = vpop.xlane.xlu0 %9578
  %v9580 = vsel %vm5434, %v9110, 0.0
  %9581 = vadd.xlane.f32.xlu0 %v9580
  %v9582 = vpop.xlane.xlu0 %9581
  %v9583 = vsel %vm5434, %v9111, 0.0
  %9584 = vadd.xlane.f32.xlu0 %v9583
  %v9585 = vpop.xlane.xlu0 %9584
  %v9586 = vsel %vm5434, %v9112, 0.0
  %9587 = vadd.xlane.f32.xlu0 %v9586
  %v9588 = vpop.xlane.xlu0 %9587
  %v9589 = vsel %vm5434, %v9113, 0.0
  %9590 = vadd.xlane.f32.xlu0 %v9589
  %v9591 = vpop.xlane.xlu0 %9590
  %v9592 = vsel %vm5434, %v9114, 0.0
  %9593 = vadd.xlane.f32.xlu0 %v9592
  %v9594 = vpop.xlane.xlu0 %9593
  %v9595 = vsel %vm5434, %v9115, 0.0
  %9596 = vadd.xlane.f32.xlu0 %v9595
  %v9597 = vpop.xlane.xlu0 %9596
  %v9598 = vsel %vm5434, %v9116, 0.0
  %9599 = vadd.xlane.f32.xlu0 %v9598
  %v9600 = vpop.xlane.xlu0 %9599
  %v9601 = vsel %vm5434, %v9117, 0.0
  %9602 = vadd.xlane.f32.xlu0 %v9601
  %v9603 = vpop.xlane.xlu0 %9602
  %v9604 = vsel %vm5434, %v9118, 0.0
  %9605 = vadd.xlane.f32.xlu0 %v9604
  %v9606 = vpop.xlane.xlu0 %9605
  %v9607 = vsel %vm5434, %v9119, 0.0
  %9608 = vadd.xlane.f32.xlu0 %v9607
  %v9609 = vpop.xlane.xlu0 %9608
  %v9610 = vsel %vm5434, %v9120, 0.0
  %9611 = vadd.xlane.f32.xlu0 %v9610
  %v9612 = vpop.xlane.xlu0 %9611
  %v9613 = vsel %vm5434, %v9121, 0.0
  %9614 = vadd.xlane.f32.xlu0 %v9613
  %v9615 = vpop.xlane.xlu0 %9614
  %v9616 = vsel %vm5434, %v9122, 0.0
  %9617 = vadd.xlane.f32.xlu0 %v9616
  %v9618 = vpop.xlane.xlu0 %9617
  %v9619 = vsel %vm5434, %v9123, 0.0
  %9620 = vadd.xlane.f32.xlu0 %v9619
  %v9621 = vpop.xlane.xlu0 %9620
  %v9622 = vsel %vm5434, %v9124, 0.0
  %9623 = vadd.xlane.f32.xlu0 %v9622
  %v9624 = vpop.xlane.xlu0 %9623
  %v9625 = vsel %vm5434, %v9125, 0.0
  %9626 = vadd.xlane.f32.xlu0 %v9625
  %v9627 = vpop.xlane.xlu0 %9626
  %v9628 = vsel %vm5434, %v9126, 0.0
  %9629 = vadd.xlane.f32.xlu0 %v9628
  %v9630 = vpop.xlane.xlu0 %9629
  %v9631 = vsel %vm5434, %v9127, 0.0
  %9632 = vadd.xlane.f32.xlu0 %v9631
  %v9633 = vpop.xlane.xlu0 %9632
  %v9634 = vsel %vm5434, %v9128, 0.0
  %9635 = vadd.xlane.f32.xlu0 %v9634
  %v9636 = vpop.xlane.xlu0 %9635
  %v9637 = vsel %vm5434, %v9129, 0.0
  %9638 = vadd.xlane.f32.xlu0 %v9637
  %v9639 = vpop.xlane.xlu0 %9638
  %v9640 = vsel %vm5434, %v9130, 0.0
  %9641 = vadd.xlane.f32.xlu0 %v9640
  %v9642 = vpop.xlane.xlu0 %9641
  %v9643 = vsel %vm5434, %v9131, 0.0
  %9644 = vadd.xlane.f32.xlu0 %v9643
  %v9645 = vpop.xlane.xlu0 %9644
  %v9646 = vsel %vm5434, %v9132, 0.0
  %9647 = vadd.xlane.f32.xlu0 %v9646
  %v9648 = vpop.xlane.xlu0 %9647
  %v9649 = vsel %vm5434, %v9133, 0.0
  %9650 = vadd.xlane.f32.xlu0 %v9649
  %v9651 = vpop.xlane.xlu0 %9650
  %v9652 = vsel %vm5434, %v9134, 0.0
  %9653 = vadd.xlane.f32.xlu0 %v9652
  %v9654 = vpop.xlane.xlu0 %9653
  %v9655 = vsel %vm5434, %v9135, 0.0
  %9656 = vadd.xlane.f32.xlu0 %v9655
  %v9657 = vpop.xlane.xlu0 %9656
  %v9658 = vsel %vm5434, %v9136, 0.0
  %9659 = vadd.xlane.f32.xlu0 %v9658
  %v9660 = vpop.xlane.xlu0 %9659
  %v9661 = vsel %vm5434, %v9137, 0.0
  %9662 = vadd.xlane.f32.xlu0 %v9661
  %v9663 = vpop.xlane.xlu0 %9662
  %v9664 = vsel %vm5434, %v9138, 0.0
  %9665 = vadd.xlane.f32.xlu0 %v9664
  %v9666 = vpop.xlane.xlu0 %9665
  %v9667 = vsel %vm5434, %v9139, 0.0
  %9668 = vadd.xlane.f32.xlu0 %v9667
  %v9669 = vpop.xlane.xlu0 %9668
  %v9670 = vsel %vm5434, %v9140, 0.0
  %9671 = vadd.xlane.f32.xlu0 %v9670
  %v9672 = vpop.xlane.xlu0 %9671
  %v9673 = vsel %vm5434, %v9141, 0.0
  %9674 = vadd.xlane.f32.xlu0 %v9673
  %v9675 = vpop.xlane.xlu0 %9674
  %v9676 = vsel %vm5434, %v9142, 0.0
  %9677 = vadd.xlane.f32.xlu0 %v9676
  %v9678 = vpop.xlane.xlu0 %9677
  %v9679 = vsel %vm5434, %v9143, 0.0
  %9680 = vadd.xlane.f32.xlu0 %v9679
  %v9681 = vpop.xlane.xlu0 %9680
  %v9682 = vsel %vm5434, %v9144, 0.0
  %9683 = vadd.xlane.f32.xlu0 %v9682
  %v9684 = vpop.xlane.xlu0 %9683
  %v9685 = vsel %vm5434, %v9145, 0.0
  %9686 = vadd.xlane.f32.xlu0 %v9685
  %v9687 = vpop.xlane.xlu0 %9686
  %v9688 = vsel %vm5434, %v9146, 0.0
  %9689 = vadd.xlane.f32.xlu0 %v9688
  %v9690 = vpop.xlane.xlu0 %9689
  %v9691 = vsel %vm5434, %v9147, 0.0
  %9692 = vadd.xlane.f32.xlu0 %v9691
  %v9693 = vpop.xlane.xlu0 %9692
  %v9694 = vsel %vm5434, %v9148, 0.0
  %9695 = vadd.xlane.f32.xlu0 %v9694
  %v9696 = vpop.xlane.xlu0 %9695
  %v9697 = vsel %vm5434, %v9149, 0.0
  %9698 = vadd.xlane.f32.xlu0 %v9697
  %v9699 = vpop.xlane.xlu0 %9698
  %v9700 = vsel %vm5434, %v9150, 0.0
  %9701 = vadd.xlane.f32.xlu0 %v9700
  %v9702 = vpop.xlane.xlu0 %9701
  %v9703 = vsel %vm5434, %v9151, 0.0
  %9704 = vadd.xlane.f32.xlu0 %v9703
  %v9705 = vpop.xlane.xlu0 %9704
  %v9706 = vsel %vm5434, %v9152, 0.0
  %9707 = vadd.xlane.f32.xlu0 %v9706
  %v9708 = vpop.xlane.xlu0 %9707
  %v9709 = vsel %vm5434, %v9153, 0.0
  %9710 = vadd.xlane.f32.xlu0 %v9709
  %v9711 = vpop.xlane.xlu0 %9710
  %v9712 = vsel %vm5434, %v9154, 0.0
  %9713 = vadd.xlane.f32.xlu0 %v9712
  %v9714 = vpop.xlane.xlu0 %9713
  %v9715 = vsel %vm5434, %v9155, 0.0
  %9716 = vadd.xlane.f32.xlu0 %v9715
  %v9717 = vpop.xlane.xlu0 %9716
  %v9718 = vsel %vm5434, %v9156, 0.0
  %9719 = vadd.xlane.f32.xlu0 %v9718
  %v9720 = vpop.xlane.xlu0 %9719
  %v9721 = vsel %vm5434, %v9157, 0.0
  %9722 = vadd.xlane.f32.xlu0 %v9721
  %v9723 = vpop.xlane.xlu0 %9722
  %v9724 = vsel %vm5434, %v9158, 0.0
  %9725 = vadd.xlane.f32.xlu0 %v9724
  %v9726 = vpop.xlane.xlu0 %9725
  %v9727 = vsel %vm5434, %v9159, 0.0
  %9728 = vadd.xlane.f32.xlu0 %v9727
  %v9729 = vpop.xlane.xlu0 %9728
  %v9730 = vsel %vm5434, %v9160, 0.0
  %9731 = vadd.xlane.f32.xlu0 %v9730
  %v9732 = vpop.xlane.xlu0 %9731
  %v9733 = vsel %vm5434, %v9161, 0.0
  %9734 = vadd.xlane.f32.xlu0 %v9733
  %v9735 = vpop.xlane.xlu0 %9734
  %v9736 = vsel %vm5434, %v9162, 0.0
  %9737 = vadd.xlane.f32.xlu0 %v9736
  %v9738 = vpop.xlane.xlu0 %9737
  %v9739 = vsel %vm5434, %v9163, 0.0
  %9740 = vadd.xlane.f32.xlu0 %v9739
  %v9741 = vpop.xlane.xlu0 %9740
  %v9742 = vsel %vm5434, %v9164, 0.0
  %9743 = vadd.xlane.f32.xlu0 %v9742
  %v9744 = vpop.xlane.xlu0 %9743
  %v9745 = vsel %vm5434, %v9165, 0.0
  %9746 = vadd.xlane.f32.xlu0 %v9745
  %v9747 = vpop.xlane.xlu0 %9746
  %v9748 = vsel %vm5434, %v9166, 0.0
  %9749 = vadd.xlane.f32.xlu0 %v9748
  %v9750 = vpop.xlane.xlu0 %9749
  %v9751 = vsel %vm5434, %v9167, 0.0
  %9752 = vadd.xlane.f32.xlu0 %v9751
  %v9753 = vpop.xlane.xlu0 %9752
  %v9754 = vsel %vm5434, %v9168, 0.0
  %9755 = vadd.xlane.f32.xlu0 %v9754
  %v9756 = vpop.xlane.xlu0 %9755
  %v9757 = vsel %vm5434, %v9169, 0.0
  %9758 = vadd.xlane.f32.xlu0 %v9757
  %v9759 = vpop.xlane.xlu0 %9758
  %v9760 = vsel %vm5434, %v9170, 0.0
  %9761 = vadd.xlane.f32.xlu0 %v9760
  %v9762 = vpop.xlane.xlu0 %9761
  %v9763 = vsel %vm5434, %v9171, 0.0
  %9764 = vadd.xlane.f32.xlu0 %v9763
  %v9765 = vpop.xlane.xlu0 %9764
  %v9766 = vsel %vm5434, %v9172, 0.0
  %9767 = vadd.xlane.f32.xlu0 %v9766
  %v9768 = vpop.xlane.xlu0 %9767
  %v9769 = vsel %vm5434, %v9173, 0.0
  %9770 = vadd.xlane.f32.xlu0 %v9769
  %v9771 = vpop.xlane.xlu0 %9770
  %v9772 = vsel %vm5434, %v9174, 0.0
  %9773 = vadd.xlane.f32.xlu0 %v9772
  %v9774 = vpop.xlane.xlu0 %9773
  %v9775 = vsel %vm5434, %v9175, 0.0
  %9776 = vadd.xlane.f32.xlu0 %v9775
  %v9777 = vpop.xlane.xlu0 %9776
  %v9778 = vsel %vm5434, %v9176, 0.0
  %9779 = vadd.xlane.f32.xlu0 %v9778
  %v9780 = vpop.xlane.xlu0 %9779
  %v9781 = vsel %vm5434, %v9177, 0.0
  %9782 = vadd.xlane.f32.xlu0 %v9781
  %v9783 = vpop.xlane.xlu0 %9782
  %v9784 = vsel %vm5434, %v9178, 0.0
  %9785 = vadd.xlane.f32.xlu0 %v9784
  %v9786 = vpop.xlane.xlu0 %9785
  %v9787 = vsel %vm5434, %v9179, 0.0
  %9788 = vadd.xlane.f32.xlu0 %v9787
  %v9789 = vpop.xlane.xlu0 %9788
  %v9790 = vsel %vm5434, %v9180, 0.0
  %9791 = vadd.xlane.f32.xlu0 %v9790
  %v9792 = vpop.xlane.xlu0 %9791
  %v9793 = vsel %vm5434, %v9181, 0.0
  %9794 = vadd.xlane.f32.xlu0 %v9793
  %v9795 = vpop.xlane.xlu0 %9794
  %v9796 = vsel %vm5434, %v9182, 0.0
  %9797 = vadd.xlane.f32.xlu0 %v9796
  %v9798 = vpop.xlane.xlu0 %9797
  %v9799 = vsel %vm5434, %v9183, 0.0
  %9800 = vadd.xlane.f32.xlu0 %v9799
  %v9801 = vpop.xlane.xlu0 %9800
  %v9802 = vsel %vm5434, %v9184, 0.0
  %9803 = vadd.xlane.f32.xlu0 %v9802
  %v9804 = vpop.xlane.xlu0 %9803
  %v9805 = vsel %vm5434, %v9185, 0.0
  %9806 = vadd.xlane.f32.xlu0 %v9805
  %v9807 = vpop.xlane.xlu0 %9806
  %v9808 = vsel %vm5434, %v9186, 0.0
  %9809 = vadd.xlane.f32.xlu0 %v9808
  %v9810 = vpop.xlane.xlu0 %9809
  %v9811 = vsel %vm5434, %v9187, 0.0
  %9812 = vadd.xlane.f32.xlu0 %v9811
  %v9813 = vpop.xlane.xlu0 %9812
  %v9814 = vsel %vm5434, %v9188, 0.0
  %9815 = vadd.xlane.f32.xlu0 %v9814
  %v9816 = vpop.xlane.xlu0 %9815
  %v9817 = vsel %vm5434, %v9189, 0.0
  %9818 = vadd.xlane.f32.xlu0 %v9817
  %v9819 = vpop.xlane.xlu0 %9818
  %v9820 = vsel %vm5434, %v9190, 0.0
  %9821 = vadd.xlane.f32.xlu0 %v9820
  %v9822 = vpop.xlane.xlu0 %9821
  %v9823 = vsel %vm5434, %v9191, 0.0
  %9824 = vadd.xlane.f32.xlu0 %v9823
  %v9825 = vpop.xlane.xlu0 %9824
  %v9826 = vsel %vm5434, %v9192, 0.0
  %9827 = vadd.xlane.f32.xlu0 %v9826
  %v9828 = vpop.xlane.xlu0 %9827
  %v9829 = vsel %vm5434, %v9193, 0.0
  %9830 = vadd.xlane.f32.xlu0 %v9829
  %v9831 = vpop.xlane.xlu0 %9830
  %v9832 = vsel %vm5434, %v9194, 0.0
  %9833 = vadd.xlane.f32.xlu0 %v9832
  %v9834 = vpop.xlane.xlu0 %9833
  %v9835 = vsel %vm5434, %v9195, 0.0
  %9836 = vadd.xlane.f32.xlu0 %v9835
  %v9837 = vpop.xlane.xlu0 %9836
  %v9838 = vsel %vm5434, %v9196, 0.0
  %9839 = vadd.xlane.f32.xlu0 %v9838
  %v9840 = vpop.xlane.xlu0 %9839
  %v9841 = vsel %vm5434, %v9197, 0.0
  %9842 = vadd.xlane.f32.xlu0 %v9841
  %v9843 = vpop.xlane.xlu0 %9842
  %v9844 = vsel %vm5434, %v9198, 0.0
  %9845 = vadd.xlane.f32.xlu0 %v9844
  %v9846 = vpop.xlane.xlu0 %9845
  %v9847 = vsel %vm5434, %v9199, 0.0
  %9848 = vadd.xlane.f32.xlu0 %v9847
  %v9849 = vpop.xlane.xlu0 %9848
  %v9850 = vsel %vm5434, %v9200, 0.0
  %9851 = vadd.xlane.f32.xlu0 %v9850
  %v9852 = vpop.xlane.xlu0 %9851
  %v9853 = vsel %vm5434, %v9201, 0.0
  %9854 = vadd.xlane.f32.xlu0 %v9853
  %v9855 = vpop.xlane.xlu0 %9854
  %v9856 = vsel %vm5434, %v9202, 0.0
  %9857 = vadd.xlane.f32.xlu0 %v9856
  %v9858 = vpop.xlane.xlu0 %9857
  %v9859 = vsel %vm5434, %v9203, 0.0
  %9860 = vadd.xlane.f32.xlu0 %v9859
  %v9861 = vpop.xlane.xlu0 %9860
  %v9862 = vsel %vm5434, %v9204, 0.0
  %9863 = vadd.xlane.f32.xlu0 %v9862
  %v9864 = vpop.xlane.xlu0 %9863
  %v9865 = vsel %vm5434, %v9205, 0.0
  %9866 = vadd.xlane.f32.xlu0 %v9865
  %v9867 = vpop.xlane.xlu0 %9866
  %v9868 = vsel %vm5434, %v9206, 0.0
  %9869 = vadd.xlane.f32.xlu0 %v9868
  %v9870 = vpop.xlane.xlu0 %9869
  %v9871 = vsel %vm5434, %v9207, 0.0
  %9872 = vadd.xlane.f32.xlu0 %v9871
  %v9873 = vpop.xlane.xlu0 %9872
  %v9874 = vsel %vm5434, %v9208, 0.0
  %9875 = vadd.xlane.f32.xlu0 %v9874
  %v9876 = vpop.xlane.xlu0 %9875
  %v9877 = vsel %vm5434, %v9209, 0.0
  %9878 = vadd.xlane.f32.xlu0 %v9877
  %v9879 = vpop.xlane.xlu0 %9878
  %v9880 = vsel %vm5434, %v9210, 0.0
  %9881 = vadd.xlane.f32.xlu0 %v9880
  %v9882 = vpop.xlane.xlu0 %9881
  %v9883 = vsel %vm5434, %v9211, 0.0
  %9884 = vadd.xlane.f32.xlu0 %v9883
  %v9885 = vpop.xlane.xlu0 %9884
  %v9886 = vsel %vm5434, %v9212, 0.0
  %9887 = vadd.xlane.f32.xlu0 %v9886
  %v9888 = vpop.xlane.xlu0 %9887
  %v9889 = vsel %vm5434, %v9213, 0.0
  %9890 = vadd.xlane.f32.xlu0 %v9889
  %v9891 = vpop.xlane.xlu0 %9890
  %v9892 = vsel %vm5434, %v9214, 0.0
  %9893 = vadd.xlane.f32.xlu0 %v9892
  %v9894 = vpop.xlane.xlu0 %9893
  %v9895 = vsel %vm5434, %v9215, 0.0
  %9896 = vadd.xlane.f32.xlu0 %v9895
  %v9897 = vpop.xlane.xlu0 %9896
  %v9898 = vsel %vm5434, %v9216, 0.0
  %9899 = vadd.xlane.f32.xlu0 %v9898
  %v9900 = vpop.xlane.xlu0 %9899
  %v9901 = vsel %vm5434, %v9217, 0.0
  %9902 = vadd.xlane.f32.xlu0 %v9901
  %v9903 = vpop.xlane.xlu0 %9902
  %v9904 = vsel %vm5434, %v9218, 0.0
  %9905 = vadd.xlane.f32.xlu0 %v9904
  %v9906 = vpop.xlane.xlu0 %9905
  %v9907 = vsel %vm5434, %v9219, 0.0
  %9908 = vadd.xlane.f32.xlu0 %v9907
  %v9909 = vpop.xlane.xlu0 %9908
  %v9910 = vsel %vm5434, %v9220, 0.0
  %9911 = vadd.xlane.f32.xlu0 %v9910
  %v9912 = vpop.xlane.xlu0 %9911
  %v9913 = vsel %vm5434, %v9221, 0.0
  %9914 = vadd.xlane.f32.xlu0 %v9913
  %v9915 = vpop.xlane.xlu0 %9914
  %v9916 = vsel %vm5434, %v9222, 0.0
  %9917 = vadd.xlane.f32.xlu0 %v9916
  %v9918 = vpop.xlane.xlu0 %9917
  %v9919 = vsel %vm5434, %v9223, 0.0
  %9920 = vadd.xlane.f32.xlu0 %v9919
  %v9921 = vpop.xlane.xlu0 %9920
  %v9922 = vsel %vm5434, %v9224, 0.0
  %9923 = vadd.xlane.f32.xlu0 %v9922
  %v9924 = vpop.xlane.xlu0 %9923
  %v9925 = vsel %vm5434, %v9225, 0.0
  %9926 = vadd.xlane.f32.xlu0 %v9925
  %v9927 = vpop.xlane.xlu0 %9926
  %v9928 = vsel %vm5434, %v9226, 0.0
  %9929 = vadd.xlane.f32.xlu0 %v9928
  %v9930 = vpop.xlane.xlu0 %9929
  %v9931 = vsel %vm5434, %v9227, 0.0
  %9932 = vadd.xlane.f32.xlu0 %v9931
  %v9933 = vpop.xlane.xlu0 %9932
  %v9934 = vsel %vm5434, %v9228, 0.0
  %9935 = vadd.xlane.f32.xlu0 %v9934
  %v9936 = vpop.xlane.xlu0 %9935
  %v9937 = vsel %vm5434, %v9229, 0.0
  %9938 = vadd.xlane.f32.xlu0 %v9937
  %v9939 = vpop.xlane.xlu0 %9938
  %v9940 = vsel %vm5434, %v9230, 0.0
  %9941 = vadd.xlane.f32.xlu0 %v9940
  %v9942 = vpop.xlane.xlu0 %9941
  %v9943 = vsel %vm5434, %v9231, 0.0
  %9944 = vadd.xlane.f32.xlu0 %v9943
  %v9945 = vpop.xlane.xlu0 %9944
  %v9946 = vsel %vm5434, %v9232, 0.0
  %9947 = vadd.xlane.f32.xlu0 %v9946
  %v9948 = vpop.xlane.xlu0 %9947
  %v9949 = vsel %vm5434, %v9233, 0.0
  %9950 = vadd.xlane.f32.xlu0 %v9949
  %v9951 = vpop.xlane.xlu0 %9950
  %v9952 = vsel %vm5434, %v9234, 0.0
  %9953 = vadd.xlane.f32.xlu0 %v9952
  %v9954 = vpop.xlane.xlu0 %9953
  %v9955 = vsel %vm5434, %v9235, 0.0
  %9956 = vadd.xlane.f32.xlu0 %v9955
  %v9957 = vpop.xlane.xlu0 %9956
  %v9958 = vsel %vm5434, %v9236, 0.0
  %9959 = vadd.xlane.f32.xlu0 %v9958
  %v9960 = vpop.xlane.xlu0 %9959
  %v9961 = vsel %vm5434, %v9237, 0.0
  %9962 = vadd.xlane.f32.xlu0 %v9961
  %v9963 = vpop.xlane.xlu0 %9962
  %v9964 = vsel %vm5434, %v9238, 0.0
  %9965 = vadd.xlane.f32.xlu0 %v9964
  %v9966 = vpop.xlane.xlu0 %9965
  %v9967 = vsel %vm5434, %v9239, 0.0
  %9968 = vadd.xlane.f32.xlu0 %v9967
  %v9969 = vpop.xlane.xlu0 %9968
  %v9970 = vsel %vm5434, %v9240, 0.0
  %9971 = vadd.xlane.f32.xlu0 %v9970
  %v9972 = vpop.xlane.xlu0 %9971
  %v9973 = vsel %vm5434, %v9241, 0.0
  %9974 = vadd.xlane.f32.xlu0 %v9973
  %v9975 = vpop.xlane.xlu0 %9974
  %v9976 = vsel %vm5434, %v9242, 0.0
  %9977 = vadd.xlane.f32.xlu0 %v9976
  %v9978 = vpop.xlane.xlu0 %9977
  %v9979 = vsel %vm5434, %v9243, 0.0
  %9980 = vadd.xlane.f32.xlu0 %v9979
  %v9981 = vpop.xlane.xlu0 %9980
  %v9982 = vsel %vm5434, %v9244, 0.0
  %9983 = vadd.xlane.f32.xlu0 %v9982
  %v9984 = vpop.xlane.xlu0 %9983
  %v9985 = vsel %vm5434, %v9245, 0.0
  %9986 = vadd.xlane.f32.xlu0 %v9985
  %v9987 = vpop.xlane.xlu0 %9986
  %v9988 = vsel %vm5434, %v9246, 0.0
  %9989 = vadd.xlane.f32.xlu0 %v9988
  %v9990 = vpop.xlane.xlu0 %9989
  %v9991 = vsel %vm5434, %v9247, 0.0
  %9992 = vadd.xlane.f32.xlu0 %v9991
  %v9993 = vpop.xlane.xlu0 %9992
  %v9994 = vsel %vm5434, %v9248, 0.0
  %9995 = vadd.xlane.f32.xlu0 %v9994
  %v9996 = vpop.xlane.xlu0 %9995
  %v9997 = vsel %vm5434, %v9249, 0.0
  %9998 = vadd.xlane.f32.xlu0 %v9997
  %v9999 = vpop.xlane.xlu0 %9998
  %v10000 = vsel %vm5434, %v9250, 0.0
  %10001 = vadd.xlane.f32.xlu0 %v10000
  %v10002 = vpop.xlane.xlu0 %10001
  %v10003 = vsel %vm5434, %v9251, 0.0
  %10004 = vadd.xlane.f32.xlu0 %v10003
  %v10005 = vpop.xlane.xlu0 %10004
  %v10006 = vsel %vm5434, %v9252, 0.0
  %10007 = vadd.xlane.f32.xlu0 %v10006
  %v10008 = vpop.xlane.xlu0 %10007
  %v10009 = vsel %vm5434, %v9253, 0.0
  %10010 = vadd.xlane.f32.xlu0 %v10009
  %v10011 = vpop.xlane.xlu0 %10010
  %v10012 = vsel %vm5434, %v9254, 0.0
  %10013 = vadd.xlane.f32.xlu0 %v10012
  %v10014 = vpop.xlane.xlu0 %10013
  %v10015 = vsel %vm5434, %v9255, 0.0
  %10016 = vadd.xlane.f32.xlu0 %v10015
  %v10017 = vpop.xlane.xlu0 %10016
  %v10018 = vsel %vm5434, %v9256, 0.0
  %10019 = vadd.xlane.f32.xlu0 %v10018
  %v10020 = vpop.xlane.xlu0 %10019
  %v10021 = vsel %vm5434, %v9257, 0.0
  %10022 = vadd.xlane.f32.xlu0 %v10021
  %v10023 = vpop.xlane.xlu0 %10022
  %v10024 = vsel %vm5434, %v9258, 0.0
  %10025 = vadd.xlane.f32.xlu0 %v10024
  %v10026 = vpop.xlane.xlu0 %10025
  %v10027 = vld [vmem:[#allocation2] sm:$0x1]
  %v10029 = vlaneseq
  %v10030 = vshrl.u32 %v10029, 7
  %v10031 = vsub.s32 0, %v10030
  %v10032 = vrot.slane %v10027, %v10031
  %v10034 = vadd.f32 %v9261, %v10032
  %v10035 = vadd.f32 %v9264, %v10032
  %v10036 = vadd.f32 %v9267, %v10032
  %v10037 = vadd.f32 %v9270, %v10032
  %v10038 = vadd.f32 %v9273, %v10032
  %v10039 = vadd.f32 %v9276, %v10032
  %v10040 = vadd.f32 %v9279, %v10032
  %v10041 = vadd.f32 %v9282, %v10032
  %v10042 = vadd.f32 %v9285, %v10032
  %v10043 = vadd.f32 %v9288, %v10032
  %v10044 = vadd.f32 %v9291, %v10032
  %v10045 = vadd.f32 %v9294, %v10032
  %v10046 = vadd.f32 %v9297, %v10032
  %v10047 = vadd.f32 %v9300, %v10032
  %v10048 = vadd.f32 %v9303, %v10032
  %v10049 = vadd.f32 %v9306, %v10032
  %v10050 = vadd.f32 %v9309, %v10032
  %v10051 = vadd.f32 %v9312, %v10032
  %v10052 = vadd.f32 %v9315, %v10032
  %v10053 = vadd.f32 %v9318, %v10032
  %v10054 = vadd.f32 %v9321, %v10032
  %v10055 = vadd.f32 %v9324, %v10032
  %v10056 = vadd.f32 %v9327, %v10032
  %v10057 = vadd.f32 %v9330, %v10032
  %v10058 = vadd.f32 %v9333, %v10032
  %v10059 = vadd.f32 %v9336, %v10032
  %v10060 = vadd.f32 %v9339, %v10032
  %v10061 = vadd.f32 %v9342, %v10032
  %v10062 = vadd.f32 %v9345, %v10032
  %v10063 = vadd.f32 %v9348, %v10032
  %v10064 = vadd.f32 %v9351, %v10032
  %v10065 = vadd.f32 %v9354, %v10032
  %v10066 = vadd.f32 %v9357, %v10032
  %v10067 = vadd.f32 %v9360, %v10032
  %v10068 = vadd.f32 %v9363, %v10032
  %v10069 = vadd.f32 %v9366, %v10032
  %v10070 = vadd.f32 %v9369, %v10032
  %v10071 = vadd.f32 %v9372, %v10032
  %v10072 = vadd.f32 %v9375, %v10032
  %v10073 = vadd.f32 %v9378, %v10032
  %v10074 = vadd.f32 %v9381, %v10032
  %v10075 = vadd.f32 %v9384, %v10032
  %v10076 = vadd.f32 %v9387, %v10032
  %v10077 = vadd.f32 %v9390, %v10032
  %v10078 = vadd.f32 %v9393, %v10032
  %v10079 = vadd.f32 %v9396, %v10032
  %v10080 = vadd.f32 %v9399, %v10032
  %v10081 = vadd.f32 %v9402, %v10032
  %v10082 = vadd.f32 %v9405, %v10032
  %v10083 = vadd.f32 %v9408, %v10032
  %v10084 = vadd.f32 %v9411, %v10032
  %v10085 = vadd.f32 %v9414, %v10032
  %v10086 = vadd.f32 %v9417, %v10032
  %v10087 = vadd.f32 %v9420, %v10032
  %v10088 = vadd.f32 %v9423, %v10032
  %v10089 = vadd.f32 %v9426, %v10032
  %v10090 = vadd.f32 %v9429, %v10032
  %v10091 = vadd.f32 %v9432, %v10032
  %v10092 = vadd.f32 %v9435, %v10032
  %v10093 = vadd.f32 %v9438, %v10032
  %v10094 = vadd.f32 %v9441, %v10032
  %v10095 = vadd.f32 %v9444, %v10032
  %v10096 = vadd.f32 %v9447, %v10032
  %v10097 = vadd.f32 %v9450, %v10032
  %v10098 = vadd.f32 %v9453, %v10032
  %v10099 = vadd.f32 %v9456, %v10032
  %v10100 = vadd.f32 %v9459, %v10032
  %v10101 = vadd.f32 %v9462, %v10032
  %v10102 = vadd.f32 %v9465, %v10032
  %v10103 = vadd.f32 %v9468, %v10032
  %v10104 = vadd.f32 %v9471, %v10032
  %v10105 = vadd.f32 %v9474, %v10032
  %v10106 = vadd.f32 %v9477, %v10032
  %v10107 = vadd.f32 %v9480, %v10032
  %v10108 = vadd.f32 %v9483, %v10032
  %v10109 = vadd.f32 %v9486, %v10032
  %v10110 = vadd.f32 %v9489, %v10032
  %v10111 = vadd.f32 %v9492, %v10032
  %v10112 = vadd.f32 %v9495, %v10032
  %v10113 = vadd.f32 %v9498, %v10032
  %v10114 = vadd.f32 %v9501, %v10032
  %v10115 = vadd.f32 %v9504, %v10032
  %v10116 = vadd.f32 %v9507, %v10032
  %v10117 = vadd.f32 %v9510, %v10032
  %v10118 = vadd.f32 %v9513, %v10032
  %v10119 = vadd.f32 %v9516, %v10032
  %v10120 = vadd.f32 %v9519, %v10032
  %v10121 = vadd.f32 %v9522, %v10032
  %v10122 = vadd.f32 %v9525, %v10032
  %v10123 = vadd.f32 %v9528, %v10032
  %v10124 = vadd.f32 %v9531, %v10032
  %v10125 = vadd.f32 %v9534, %v10032
  %v10126 = vadd.f32 %v9537, %v10032
  %v10127 = vadd.f32 %v9540, %v10032
  %v10128 = vadd.f32 %v9543, %v10032
  %v10129 = vadd.f32 %v9546, %v10032
  %v10130 = vadd.f32 %v9549, %v10032
  %v10131 = vadd.f32 %v9552, %v10032
  %v10132 = vadd.f32 %v9555, %v10032
  %v10133 = vadd.f32 %v9558, %v10032
  %v10134 = vadd.f32 %v9561, %v10032
  %v10135 = vadd.f32 %v9564, %v10032
  %v10136 = vadd.f32 %v9567, %v10032
  %v10137 = vadd.f32 %v9570, %v10032
  %v10138 = vadd.f32 %v9573, %v10032
  %v10139 = vadd.f32 %v9576, %v10032
  %v10140 = vadd.f32 %v9579, %v10032
  %v10141 = vadd.f32 %v9582, %v10032
  %v10142 = vadd.f32 %v9585, %v10032
  %v10143 = vadd.f32 %v9588, %v10032
  %v10144 = vadd.f32 %v9591, %v10032
  %v10145 = vadd.f32 %v9594, %v10032
  %v10146 = vadd.f32 %v9597, %v10032
  %v10147 = vadd.f32 %v9600, %v10032
  %v10148 = vadd.f32 %v9603, %v10032
  %v10149 = vadd.f32 %v9606, %v10032
  %v10150 = vadd.f32 %v9609, %v10032
  %v10151 = vadd.f32 %v9612, %v10032
  %v10152 = vadd.f32 %v9615, %v10032
  %v10153 = vadd.f32 %v9618, %v10032
  %v10154 = vadd.f32 %v9621, %v10032
  %v10155 = vadd.f32 %v9624, %v10032
  %v10156 = vadd.f32 %v9627, %v10032
  %v10157 = vadd.f32 %v9630, %v10032
  %v10158 = vadd.f32 %v9633, %v10032
  %v10159 = vadd.f32 %v9636, %v10032
  %v10160 = vadd.f32 %v9639, %v10032
  %v10161 = vadd.f32 %v9642, %v10032
  %v10162 = vadd.f32 %v9645, %v10032
  %v10163 = vadd.f32 %v9648, %v10032
  %v10164 = vadd.f32 %v9651, %v10032
  %v10165 = vadd.f32 %v9654, %v10032
  %v10166 = vadd.f32 %v9657, %v10032
  %v10167 = vadd.f32 %v9660, %v10032
  %v10168 = vadd.f32 %v9663, %v10032
  %v10169 = vadd.f32 %v9666, %v10032
  %v10170 = vadd.f32 %v9669, %v10032
  %v10171 = vadd.f32 %v9672, %v10032
  %v10172 = vadd.f32 %v9675, %v10032
  %v10173 = vadd.f32 %v9678, %v10032
  %v10174 = vadd.f32 %v9681, %v10032
  %v10175 = vadd.f32 %v9684, %v10032
  %v10176 = vadd.f32 %v9687, %v10032
  %v10177 = vadd.f32 %v9690, %v10032
  %v10178 = vadd.f32 %v9693, %v10032
  %v10179 = vadd.f32 %v9696, %v10032
  %v10180 = vadd.f32 %v9699, %v10032
  %v10181 = vadd.f32 %v9702, %v10032
  %v10182 = vadd.f32 %v9705, %v10032
  %v10183 = vadd.f32 %v9708, %v10032
  %v10184 = vadd.f32 %v9711, %v10032
  %v10185 = vadd.f32 %v9714, %v10032
  %v10186 = vadd.f32 %v9717, %v10032
  %v10187 = vadd.f32 %v9720, %v10032
  %v10188 = vadd.f32 %v9723, %v10032
  %v10189 = vadd.f32 %v9726, %v10032
  %v10190 = vadd.f32 %v9729, %v10032
  %v10191 = vadd.f32 %v9732, %v10032
  %v10192 = vadd.f32 %v9735, %v10032
  %v10193 = vadd.f32 %v9738, %v10032
  %v10194 = vadd.f32 %v9741, %v10032
  %v10195 = vadd.f32 %v9744, %v10032
  %v10196 = vadd.f32 %v9747, %v10032
  %v10197 = vadd.f32 %v9750, %v10032
  %v10198 = vadd.f32 %v9753, %v10032
  %v10199 = vadd.f32 %v9756, %v10032
  %v10200 = vadd.f32 %v9759, %v10032
  %v10201 = vadd.f32 %v9762, %v10032
  %v10202 = vadd.f32 %v9765, %v10032
  %v10203 = vadd.f32 %v9768, %v10032
  %v10204 = vadd.f32 %v9771, %v10032
  %v10205 = vadd.f32 %v9774, %v10032
  %v10206 = vadd.f32 %v9777, %v10032
  %v10207 = vadd.f32 %v9780, %v10032
  %v10208 = vadd.f32 %v9783, %v10032
  %v10209 = vadd.f32 %v9786, %v10032
  %v10210 = vadd.f32 %v9789, %v10032
  %v10211 = vadd.f32 %v9792, %v10032
  %v10212 = vadd.f32 %v9795, %v10032
  %v10213 = vadd.f32 %v9798, %v10032
  %v10214 = vadd.f32 %v9801, %v10032
  %v10215 = vadd.f32 %v9804, %v10032
  %v10216 = vadd.f32 %v9807, %v10032
  %v10217 = vadd.f32 %v9810, %v10032
  %v10218 = vadd.f32 %v9813, %v10032
  %v10219 = vadd.f32 %v9816, %v10032
  %v10220 = vadd.f32 %v9819, %v10032
  %v10221 = vadd.f32 %v9822, %v10032
  %v10222 = vadd.f32 %v9825, %v10032
  %v10223 = vadd.f32 %v9828, %v10032
  %v10224 = vadd.f32 %v9831, %v10032
  %v10225 = vadd.f32 %v9834, %v10032
  %v10226 = vadd.f32 %v9837, %v10032
  %v10227 = vadd.f32 %v9840, %v10032
  %v10228 = vadd.f32 %v9843, %v10032
  %v10229 = vadd.f32 %v9846, %v10032
  %v10230 = vadd.f32 %v9849, %v10032
  %v10231 = vadd.f32 %v9852, %v10032
  %v10232 = vadd.f32 %v9855, %v10032
  %v10233 = vadd.f32 %v9858, %v10032
  %v10234 = vadd.f32 %v9861, %v10032
  %v10235 = vadd.f32 %v9864, %v10032
  %v10236 = vadd.f32 %v9867, %v10032
  %v10237 = vadd.f32 %v9870, %v10032
  %v10238 = vadd.f32 %v9873, %v10032
  %v10239 = vadd.f32 %v9876, %v10032
  %v10240 = vadd.f32 %v9879, %v10032
  %v10241 = vadd.f32 %v9882, %v10032
  %v10242 = vadd.f32 %v9885, %v10032
  %v10243 = vadd.f32 %v9888, %v10032
  %v10244 = vadd.f32 %v9891, %v10032
  %v10245 = vadd.f32 %v9894, %v10032
  %v10246 = vadd.f32 %v9897, %v10032
  %v10247 = vadd.f32 %v9900, %v10032
  %v10248 = vadd.f32 %v9903, %v10032
  %v10249 = vadd.f32 %v9906, %v10032
  %v10250 = vadd.f32 %v9909, %v10032
  %v10251 = vadd.f32 %v9912, %v10032
  %v10252 = vadd.f32 %v9915, %v10032
  %v10253 = vadd.f32 %v9918, %v10032
  %v10254 = vadd.f32 %v9921, %v10032
  %v10255 = vadd.f32 %v9924, %v10032
  %v10256 = vadd.f32 %v9927, %v10032
  %v10257 = vadd.f32 %v9930, %v10032
  %v10258 = vadd.f32 %v9933, %v10032
  %v10259 = vadd.f32 %v9936, %v10032
  %v10260 = vadd.f32 %v9939, %v10032
  %v10261 = vadd.f32 %v9942, %v10032
  %v10262 = vadd.f32 %v9945, %v10032
  %v10263 = vadd.f32 %v9948, %v10032
  %v10264 = vadd.f32 %v9951, %v10032
  %v10265 = vadd.f32 %v9954, %v10032
  %v10266 = vadd.f32 %v9957, %v10032
  %v10267 = vadd.f32 %v9960, %v10032
  %v10268 = vadd.f32 %v9963, %v10032
  %v10269 = vadd.f32 %v9966, %v10032
  %v10270 = vadd.f32 %v9969, %v10032
  %v10271 = vadd.f32 %v9972, %v10032
  %v10272 = vadd.f32 %v9975, %v10032
  %v10273 = vadd.f32 %v9978, %v10032
  %v10274 = vadd.f32 %v9981, %v10032
  %v10275 = vadd.f32 %v9984, %v10032
  %v10276 = vadd.f32 %v9987, %v10032
  %v10277 = vadd.f32 %v9990, %v10032
  %v10278 = vadd.f32 %v9993, %v10032
  %v10279 = vadd.f32 %v9996, %v10032
  %v10280 = vadd.f32 %v9999, %v10032
  %v10281 = vadd.f32 %v10002, %v10032
  %v10282 = vadd.f32 %v10005, %v10032
  %v10283 = vadd.f32 %v10008, %v10032
  %v10284 = vadd.f32 %v10011, %v10032
  %v10285 = vadd.f32 %v10014, %v10032
  %v10286 = vadd.f32 %v10017, %v10032
  %v10287 = vadd.f32 %v10020, %v10032
  %v10288 = vadd.f32 %v10023, %v10032
  %v10289 = vadd.f32 %v10026, %v10032
  %v10290 = vxor.u32 %v10034, 2147483648
  %v10291 = vxor.u32 %v10035, 2147483648
  %v10292 = vxor.u32 %v10036, 2147483648
  %v10293 = vxor.u32 %v10037, 2147483648
  %v10294 = vxor.u32 %v10038, 2147483648
  %v10295 = vxor.u32 %v10039, 2147483648
  %v10296 = vxor.u32 %v10040, 2147483648
  %v10297 = vxor.u32 %v10041, 2147483648
  %v10298 = vxor.u32 %v10042, 2147483648
  %v10299 = vxor.u32 %v10043, 2147483648
  %v10300 = vxor.u32 %v10044, 2147483648
  %v10301 = vxor.u32 %v10045, 2147483648
  %v10302 = vxor.u32 %v10046, 2147483648
  %v10303 = vxor.u32 %v10047, 2147483648
  %v10304 = vxor.u32 %v10048, 2147483648
  %v10305 = vxor.u32 %v10049, 2147483648
  %v10306 = vxor.u32 %v10050, 2147483648
  %v10307 = vxor.u32 %v10051, 2147483648
  %v10308 = vxor.u32 %v10052, 2147483648
  %v10309 = vxor.u32 %v10053, 2147483648
  %v10310 = vxor.u32 %v10054, 2147483648
  %v10311 = vxor.u32 %v10055, 2147483648
  %v10312 = vxor.u32 %v10056, 2147483648
  %v10313 = vxor.u32 %v10057, 2147483648
  %v10314 = vxor.u32 %v10058, 2147483648
  %v10315 = vxor.u32 %v10059, 2147483648
  %v10316 = vxor.u32 %v10060, 2147483648
  %v10317 = vxor.u32 %v10061, 2147483648
  %v10318 = vxor.u32 %v10062, 2147483648
  %v10319 = vxor.u32 %v10063, 2147483648
  %v10320 = vxor.u32 %v10064, 2147483648
  %v10321 = vxor.u32 %v10065, 2147483648
  %v10322 = vxor.u32 %v10066, 2147483648
  %v10323 = vxor.u32 %v10067, 2147483648
  %v10324 = vxor.u32 %v10068, 2147483648
  %v10325 = vxor.u32 %v10069, 2147483648
  %v10326 = vxor.u32 %v10070, 2147483648
  %v10327 = vxor.u32 %v10071, 2147483648
  %v10328 = vxor.u32 %v10072, 2147483648
  %v10329 = vxor.u32 %v10073, 2147483648
  %v10330 = vxor.u32 %v10074, 2147483648
  %v10331 = vxor.u32 %v10075, 2147483648
  %v10332 = vxor.u32 %v10076, 2147483648
  %v10333 = vxor.u32 %v10077, 2147483648
  %v10334 = vxor.u32 %v10078, 2147483648
  %v10335 = vxor.u32 %v10079, 2147483648
  %v10336 = vxor.u32 %v10080, 2147483648
  %v10337 = vxor.u32 %v10081, 2147483648
  %v10338 = vxor.u32 %v10082, 2147483648
  %v10339 = vxor.u32 %v10083, 2147483648
  %v10340 = vxor.u32 %v10084, 2147483648
  %v10341 = vxor.u32 %v10085, 2147483648
  %v10342 = vxor.u32 %v10086, 2147483648
  %v10343 = vxor.u32 %v10087, 2147483648
  %v10344 = vxor.u32 %v10088, 2147483648
  %v10345 = vxor.u32 %v10089, 2147483648
  %v10346 = vxor.u32 %v10090, 2147483648
  %v10347 = vxor.u32 %v10091, 2147483648
  %v10348 = vxor.u32 %v10092, 2147483648
  %v10349 = vxor.u32 %v10093, 2147483648
  %v10350 = vxor.u32 %v10094, 2147483648
  %v10351 = vxor.u32 %v10095, 2147483648
  %v10352 = vxor.u32 %v10096, 2147483648
  %v10353 = vxor.u32 %v10097, 2147483648
  %v10354 = vxor.u32 %v10098, 2147483648
  %v10355 = vxor.u32 %v10099, 2147483648
  %v10356 = vxor.u32 %v10100, 2147483648
  %v10357 = vxor.u32 %v10101, 2147483648
  %v10358 = vxor.u32 %v10102, 2147483648
  %v10359 = vxor.u32 %v10103, 2147483648
  %v10360 = vxor.u32 %v10104, 2147483648
  %v10361 = vxor.u32 %v10105, 2147483648
  %v10362 = vxor.u32 %v10106, 2147483648
  %v10363 = vxor.u32 %v10107, 2147483648
  %v10364 = vxor.u32 %v10108, 2147483648
  %v10365 = vxor.u32 %v10109, 2147483648
  %v10366 = vxor.u32 %v10110, 2147483648
  %v10367 = vxor.u32 %v10111, 2147483648
  %v10368 = vxor.u32 %v10112, 2147483648
  %v10369 = vxor.u32 %v10113, 2147483648
  %v10370 = vxor.u32 %v10114, 2147483648
  %v10371 = vxor.u32 %v10115, 2147483648
  %v10372 = vxor.u32 %v10116, 2147483648
  %v10373 = vxor.u32 %v10117, 2147483648
  %v10374 = vxor.u32 %v10118, 2147483648
  %v10375 = vxor.u32 %v10119, 2147483648
  %v10376 = vxor.u32 %v10120, 2147483648
  %v10377 = vxor.u32 %v10121, 2147483648
  %v10378 = vxor.u32 %v10122, 2147483648
  %v10379 = vxor.u32 %v10123, 2147483648
  %v10380 = vxor.u32 %v10124, 2147483648
  %v10381 = vxor.u32 %v10125, 2147483648
  %v10382 = vxor.u32 %v10126, 2147483648
  %v10383 = vxor.u32 %v10127, 2147483648
  %v10384 = vxor.u32 %v10128, 2147483648
  %v10385 = vxor.u32 %v10129, 2147483648
  %v10386 = vxor.u32 %v10130, 2147483648
  %v10387 = vxor.u32 %v10131, 2147483648
  %v10388 = vxor.u32 %v10132, 2147483648
  %v10389 = vxor.u32 %v10133, 2147483648
  %v10390 = vxor.u32 %v10134, 2147483648
  %v10391 = vxor.u32 %v10135, 2147483648
  %v10392 = vxor.u32 %v10136, 2147483648
  %v10393 = vxor.u32 %v10137, 2147483648
  %v10394 = vxor.u32 %v10138, 2147483648
  %v10395 = vxor.u32 %v10139, 2147483648
  %v10396 = vxor.u32 %v10140, 2147483648
  %v10397 = vxor.u32 %v10141, 2147483648
  %v10398 = vxor.u32 %v10142, 2147483648
  %v10399 = vxor.u32 %v10143, 2147483648
  %v10400 = vxor.u32 %v10144, 2147483648
  %v10401 = vxor.u32 %v10145, 2147483648
  %v10402 = vxor.u32 %v10146, 2147483648
  %v10403 = vxor.u32 %v10147, 2147483648
  %v10404 = vxor.u32 %v10148, 2147483648
  %v10405 = vxor.u32 %v10149, 2147483648
  %v10406 = vxor.u32 %v10150, 2147483648
  %v10407 = vxor.u32 %v10151, 2147483648
  %v10408 = vxor.u32 %v10152, 2147483648
  %v10409 = vxor.u32 %v10153, 2147483648
  %v10410 = vxor.u32 %v10154, 2147483648
  %v10411 = vxor.u32 %v10155, 2147483648
  %v10412 = vxor.u32 %v10156, 2147483648
  %v10413 = vxor.u32 %v10157, 2147483648
  %v10414 = vxor.u32 %v10158, 2147483648
  %v10415 = vxor.u32 %v10159, 2147483648
  %v10416 = vxor.u32 %v10160, 2147483648
  %v10417 = vxor.u32 %v10161, 2147483648
  %v10418 = vxor.u32 %v10162, 2147483648
  %v10419 = vxor.u32 %v10163, 2147483648
  %v10420 = vxor.u32 %v10164, 2147483648
  %v10421 = vxor.u32 %v10165, 2147483648
  %v10422 = vxor.u32 %v10166, 2147483648
  %v10423 = vxor.u32 %v10167, 2147483648
  %v10424 = vxor.u32 %v10168, 2147483648
  %v10425 = vxor.u32 %v10169, 2147483648
  %v10426 = vxor.u32 %v10170, 2147483648
  %v10427 = vxor.u32 %v10171, 2147483648
  %v10428 = vxor.u32 %v10172, 2147483648
  %v10429 = vxor.u32 %v10173, 2147483648
  %v10430 = vxor.u32 %v10174, 2147483648
  %v10431 = vxor.u32 %v10175, 2147483648
  %v10432 = vxor.u32 %v10176, 2147483648
  %v10433 = vxor.u32 %v10177, 2147483648
  %v10434 = vxor.u32 %v10178, 2147483648
  %v10435 = vxor.u32 %v10179, 2147483648
  %v10436 = vxor.u32 %v10180, 2147483648
  %v10437 = vxor.u32 %v10181, 2147483648
  %v10438 = vxor.u32 %v10182, 2147483648
  %v10439 = vxor.u32 %v10183, 2147483648
  %v10440 = vxor.u32 %v10184, 2147483648
  %v10441 = vxor.u32 %v10185, 2147483648
  %v10442 = vxor.u32 %v10186, 2147483648
  %v10443 = vxor.u32 %v10187, 2147483648
  %v10444 = vxor.u32 %v10188, 2147483648
  %v10445 = vxor.u32 %v10189, 2147483648
  %v10446 = vxor.u32 %v10190, 2147483648
  %v10447 = vxor.u32 %v10191, 2147483648
  %v10448 = vxor.u32 %v10192, 2147483648
  %v10449 = vxor.u32 %v10193, 2147483648
  %v10450 = vxor.u32 %v10194, 2147483648
  %v10451 = vxor.u32 %v10195, 2147483648
  %v10452 = vxor.u32 %v10196, 2147483648
  %v10453 = vxor.u32 %v10197, 2147483648
  %v10454 = vxor.u32 %v10198, 2147483648
  %v10455 = vxor.u32 %v10199, 2147483648
  %v10456 = vxor.u32 %v10200, 2147483648
  %v10457 = vxor.u32 %v10201, 2147483648
  %v10458 = vxor.u32 %v10202, 2147483648
  %v10459 = vxor.u32 %v10203, 2147483648
  %v10460 = vxor.u32 %v10204, 2147483648
  %v10461 = vxor.u32 %v10205, 2147483648
  %v10462 = vxor.u32 %v10206, 2147483648
  %v10463 = vxor.u32 %v10207, 2147483648
  %v10464 = vxor.u32 %v10208, 2147483648
  %v10465 = vxor.u32 %v10209, 2147483648
  %v10466 = vxor.u32 %v10210, 2147483648
  %v10467 = vxor.u32 %v10211, 2147483648
  %v10468 = vxor.u32 %v10212, 2147483648
  %v10469 = vxor.u32 %v10213, 2147483648
  %v10470 = vxor.u32 %v10214, 2147483648
  %v10471 = vxor.u32 %v10215, 2147483648
  %v10472 = vxor.u32 %v10216, 2147483648
  %v10473 = vxor.u32 %v10217, 2147483648
  %v10474 = vxor.u32 %v10218, 2147483648
  %v10475 = vxor.u32 %v10219, 2147483648
  %v10476 = vxor.u32 %v10220, 2147483648
  %v10477 = vxor.u32 %v10221, 2147483648
  %v10478 = vxor.u32 %v10222, 2147483648
  %v10479 = vxor.u32 %v10223, 2147483648
  %v10480 = vxor.u32 %v10224, 2147483648
  %v10481 = vxor.u32 %v10225, 2147483648
  %v10482 = vxor.u32 %v10226, 2147483648
  %v10483 = vxor.u32 %v10227, 2147483648
  %v10484 = vxor.u32 %v10228, 2147483648
  %v10485 = vxor.u32 %v10229, 2147483648
  %v10486 = vxor.u32 %v10230, 2147483648
  %v10487 = vxor.u32 %v10231, 2147483648
  %v10488 = vxor.u32 %v10232, 2147483648
  %v10489 = vxor.u32 %v10233, 2147483648
  %v10490 = vxor.u32 %v10234, 2147483648
  %v10491 = vxor.u32 %v10235, 2147483648
  %v10492 = vxor.u32 %v10236, 2147483648
  %v10493 = vxor.u32 %v10237, 2147483648
  %v10494 = vxor.u32 %v10238, 2147483648
  %v10495 = vxor.u32 %v10239, 2147483648
  %v10496 = vxor.u32 %v10240, 2147483648
  %v10497 = vxor.u32 %v10241, 2147483648
  %v10498 = vxor.u32 %v10242, 2147483648
  %v10499 = vxor.u32 %v10243, 2147483648
  %v10500 = vxor.u32 %v10244, 2147483648
  %v10501 = vxor.u32 %v10245, 2147483648
  %v10502 = vxor.u32 %v10246, 2147483648
  %v10503 = vxor.u32 %v10247, 2147483648
  %v10504 = vxor.u32 %v10248, 2147483648
  %v10505 = vxor.u32 %v10249, 2147483648
  %v10506 = vxor.u32 %v10250, 2147483648
  %v10507 = vxor.u32 %v10251, 2147483648
  %v10508 = vxor.u32 %v10252, 2147483648
  %v10509 = vxor.u32 %v10253, 2147483648
  %v10510 = vxor.u32 %v10254, 2147483648
  %v10511 = vxor.u32 %v10255, 2147483648
  %v10512 = vxor.u32 %v10256, 2147483648
  %v10513 = vxor.u32 %v10257, 2147483648
  %v10514 = vxor.u32 %v10258, 2147483648
  %v10515 = vxor.u32 %v10259, 2147483648
  %v10516 = vxor.u32 %v10260, 2147483648
  %v10517 = vxor.u32 %v10261, 2147483648
  %v10518 = vxor.u32 %v10262, 2147483648
  %v10519 = vxor.u32 %v10263, 2147483648
  %v10520 = vxor.u32 %v10264, 2147483648
  %v10521 = vxor.u32 %v10265, 2147483648
  %v10522 = vxor.u32 %v10266, 2147483648
  %v10523 = vxor.u32 %v10267, 2147483648
  %v10524 = vxor.u32 %v10268, 2147483648
  %v10525 = vxor.u32 %v10269, 2147483648
  %v10526 = vxor.u32 %v10270, 2147483648
  %v10527 = vxor.u32 %v10271, 2147483648
  %v10528 = vxor.u32 %v10272, 2147483648
  %v10529 = vxor.u32 %v10273, 2147483648
  %v10530 = vxor.u32 %v10274, 2147483648
  %v10531 = vxor.u32 %v10275, 2147483648
  %v10532 = vxor.u32 %v10276, 2147483648
  %v10533 = vxor.u32 %v10277, 2147483648
  %v10534 = vxor.u32 %v10278, 2147483648
  %v10535 = vxor.u32 %v10279, 2147483648
  %v10536 = vxor.u32 %v10280, 2147483648
  %v10537 = vxor.u32 %v10281, 2147483648
  %v10538 = vxor.u32 %v10282, 2147483648
  %v10539 = vxor.u32 %v10283, 2147483648
  %v10540 = vxor.u32 %v10284, 2147483648
  %v10541 = vxor.u32 %v10285, 2147483648
  %v10542 = vxor.u32 %v10286, 2147483648
  %v10543 = vxor.u32 %v10287, 2147483648
  %v10544 = vxor.u32 %v10288, 2147483648
  %v10545 = vxor.u32 %v10289, 2147483648
  %v10546 = vmul.f32 %v10290, 1.442695
  %v10547 = vpow.pop %v10546
  %v10548 = vmul.f32 %v10291, 1.442695
  %v10549 = vpow.pop %v10548
  %v10550 = vmul.f32 %v10292, 1.442695
  %v10551 = vpow.pop %v10550
  %v10552 = vmul.f32 %v10293, 1.442695
  %v10553 = vpow.pop %v10552
  %v10554 = vmul.f32 %v10294, 1.442695
  %v10555 = vpow.pop %v10554
  %v10556 = vmul.f32 %v10295, 1.442695
  %v10557 = vpow.pop %v10556
  %v10558 = vmul.f32 %v10296, 1.442695
  %v10559 = vpow.pop %v10558
  %v10560 = vmul.f32 %v10297, 1.442695
  %v10561 = vpow.pop %v10560
  %v10562 = vmul.f32 %v10298, 1.442695
  %v10563 = vpow.pop %v10562
  %v10564 = vmul.f32 %v10299, 1.442695
  %v10565 = vpow.pop %v10564
  %v10566 = vmul.f32 %v10300, 1.442695
  %v10567 = vpow.pop %v10566
  %v10568 = vmul.f32 %v10301, 1.442695
  %v10569 = vpow.pop %v10568
  %v10570 = vmul.f32 %v10302, 1.442695
  %v10571 = vpow.pop %v10570
  %v10572 = vmul.f32 %v10303, 1.442695
  %v10573 = vpow.pop %v10572
  %v10574 = vmul.f32 %v10304, 1.442695
  %v10575 = vpow.pop %v10574
  %v10576 = vmul.f32 %v10305, 1.442695
  %v10577 = vpow.pop %v10576
  %v10578 = vmul.f32 %v10306, 1.442695
  %v10579 = vpow.pop %v10578
  %v10580 = vmul.f32 %v10307, 1.442695
  %v10581 = vpow.pop %v10580
  %v10582 = vmul.f32 %v10308, 1.442695
  %v10583 = vpow.pop %v10582
  %v10584 = vmul.f32 %v10309, 1.442695
  %v10585 = vpow.pop %v10584
  %v10586 = vmul.f32 %v10310, 1.442695
  %v10587 = vpow.pop %v10586
  %v10588 = vmul.f32 %v10311, 1.442695
  %v10589 = vpow.pop %v10588
  %v10590 = vmul.f32 %v10312, 1.442695
  %v10591 = vpow.pop %v10590
  %v10592 = vmul.f32 %v10313, 1.442695
  %v10593 = vpow.pop %v10592
  %v10594 = vmul.f32 %v10314, 1.442695
  %v10595 = vpow.pop %v10594
  %v10596 = vmul.f32 %v10315, 1.442695
  %v10597 = vpow.pop %v10596
  %v10598 = vmul.f32 %v10316, 1.442695
  %v10599 = vpow.pop %v10598
  %v10600 = vmul.f32 %v10317, 1.442695
  %v10601 = vpow.pop %v10600
  %v10602 = vmul.f32 %v10318, 1.442695
  %v10603 = vpow.pop %v10602
  %v10604 = vmul.f32 %v10319, 1.442695
  %v10605 = vpow.pop %v10604
  %v10606 = vmul.f32 %v10320, 1.442695
  %v10607 = vpow.pop %v10606
  %v10608 = vmul.f32 %v10321, 1.442695
  %v10609 = vpow.pop %v10608
  %v10610 = vmul.f32 %v10322, 1.442695
  %v10611 = vpow.pop %v10610
  %v10612 = vmul.f32 %v10323, 1.442695
  %v10613 = vpow.pop %v10612
  %v10614 = vmul.f32 %v10324, 1.442695
  %v10615 = vpow.pop %v10614
  %v10616 = vmul.f32 %v10325, 1.442695
  %v10617 = vpow.pop %v10616
  %v10618 = vmul.f32 %v10326, 1.442695
  %v10619 = vpow.pop %v10618
  %v10620 = vmul.f32 %v10327, 1.442695
  %v10621 = vpow.pop %v10620
  %v10622 = vmul.f32 %v10328, 1.442695
  %v10623 = vpow.pop %v10622
  %v10624 = vmul.f32 %v10329, 1.442695
  %v10625 = vpow.pop %v10624
  %v10626 = vmul.f32 %v10330, 1.442695
  %v10627 = vpow.pop %v10626
  %v10628 = vmul.f32 %v10331, 1.442695
  %v10629 = vpow.pop %v10628
  %v10630 = vmul.f32 %v10332, 1.442695
  %v10631 = vpow.pop %v10630
  %v10632 = vmul.f32 %v10333, 1.442695
  %v10633 = vpow.pop %v10632
  %v10634 = vmul.f32 %v10334, 1.442695
  %v10635 = vpow.pop %v10634
  %v10636 = vmul.f32 %v10335, 1.442695
  %v10637 = vpow.pop %v10636
  %v10638 = vmul.f32 %v10336, 1.442695
  %v10639 = vpow.pop %v10638
  %v10640 = vmul.f32 %v10337, 1.442695
  %v10641 = vpow.pop %v10640
  %v10642 = vmul.f32 %v10338, 1.442695
  %v10643 = vpow.pop %v10642
  %v10644 = vmul.f32 %v10339, 1.442695
  %v10645 = vpow.pop %v10644
  %v10646 = vmul.f32 %v10340, 1.442695
  %v10647 = vpow.pop %v10646
  %v10648 = vmul.f32 %v10341, 1.442695
  %v10649 = vpow.pop %v10648
  %v10650 = vmul.f32 %v10342, 1.442695
  %v10651 = vpow.pop %v10650
  %v10652 = vmul.f32 %v10343, 1.442695
  %v10653 = vpow.pop %v10652
  %v10654 = vmul.f32 %v10344, 1.442695
  %v10655 = vpow.pop %v10654
  %v10656 = vmul.f32 %v10345, 1.442695
  %v10657 = vpow.pop %v10656
  %v10658 = vmul.f32 %v10346, 1.442695
  %v10659 = vpow.pop %v10658
  %v10660 = vmul.f32 %v10347, 1.442695
  %v10661 = vpow.pop %v10660
  %v10662 = vmul.f32 %v10348, 1.442695
  %v10663 = vpow.pop %v10662
  %v10664 = vmul.f32 %v10349, 1.442695
  %v10665 = vpow.pop %v10664
  %v10666 = vmul.f32 %v10350, 1.442695
  %v10667 = vpow.pop %v10666
  %v10668 = vmul.f32 %v10351, 1.442695
  %v10669 = vpow.pop %v10668
  %v10670 = vmul.f32 %v10352, 1.442695
  %v10671 = vpow.pop %v10670
  %v10672 = vmul.f32 %v10353, 1.442695
  %v10673 = vpow.pop %v10672
  %v10674 = vmul.f32 %v10354, 1.442695
  %v10675 = vpow.pop %v10674
  %v10676 = vmul.f32 %v10355, 1.442695
  %v10677 = vpow.pop %v10676
  %v10678 = vmul.f32 %v10356, 1.442695
  %v10679 = vpow.pop %v10678
  %v10680 = vmul.f32 %v10357, 1.442695
  %v10681 = vpow.pop %v10680
  %v10682 = vmul.f32 %v10358, 1.442695
  %v10683 = vpow.pop %v10682
  %v10684 = vmul.f32 %v10359, 1.442695
  %v10685 = vpow.pop %v10684
  %v10686 = vmul.f32 %v10360, 1.442695
  %v10687 = vpow.pop %v10686
  %v10688 = vmul.f32 %v10361, 1.442695
  %v10689 = vpow.pop %v10688
  %v10690 = vmul.f32 %v10362, 1.442695
  %v10691 = vpow.pop %v10690
  %v10692 = vmul.f32 %v10363, 1.442695
  %v10693 = vpow.pop %v10692
  %v10694 = vmul.f32 %v10364, 1.442695
  %v10695 = vpow.pop %v10694
  %v10696 = vmul.f32 %v10365, 1.442695
  %v10697 = vpow.pop %v10696
  %v10698 = vmul.f32 %v10366, 1.442695
  %v10699 = vpow.pop %v10698
  %v10700 = vmul.f32 %v10367, 1.442695
  %v10701 = vpow.pop %v10700
  %v10702 = vmul.f32 %v10368, 1.442695
  %v10703 = vpow.pop %v10702
  %v10704 = vmul.f32 %v10369, 1.442695
  %v10705 = vpow.pop %v10704
  %v10706 = vmul.f32 %v10370, 1.442695
  %v10707 = vpow.pop %v10706
  %v10708 = vmul.f32 %v10371, 1.442695
  %v10709 = vpow.pop %v10708
  %v10710 = vmul.f32 %v10372, 1.442695
  %v10711 = vpow.pop %v10710
  %v10712 = vmul.f32 %v10373, 1.442695
  %v10713 = vpow.pop %v10712
  %v10714 = vmul.f32 %v10374, 1.442695
  %v10715 = vpow.pop %v10714
  %v10716 = vmul.f32 %v10375, 1.442695
  %v10717 = vpow.pop %v10716
  %v10718 = vmul.f32 %v10376, 1.442695
  %v10719 = vpow.pop %v10718
  %v10720 = vmul.f32 %v10377, 1.442695
  %v10721 = vpow.pop %v10720
  %v10722 = vmul.f32 %v10378, 1.442695
  %v10723 = vpow.pop %v10722
  %v10724 = vmul.f32 %v10379, 1.442695
  %v10725 = vpow.pop %v10724
  %v10726 = vmul.f32 %v10380, 1.442695
  %v10727 = vpow.pop %v10726
  %v10728 = vmul.f32 %v10381, 1.442695
  %v10729 = vpow.pop %v10728
  %v10730 = vmul.f32 %v10382, 1.442695
  %v10731 = vpow.pop %v10730
  %v10732 = vmul.f32 %v10383, 1.442695
  %v10733 = vpow.pop %v10732
  %v10734 = vmul.f32 %v10384, 1.442695
  %v10735 = vpow.pop %v10734
  %v10736 = vmul.f32 %v10385, 1.442695
  %v10737 = vpow.pop %v10736
  %v10738 = vmul.f32 %v10386, 1.442695
  %v10739 = vpow.pop %v10738
  %v10740 = vmul.f32 %v10387, 1.442695
  %v10741 = vpow.pop %v10740
  %v10742 = vmul.f32 %v10388, 1.442695
  %v10743 = vpow.pop %v10742
  %v10744 = vmul.f32 %v10389, 1.442695
  %v10745 = vpow.pop %v10744
  %v10746 = vmul.f32 %v10390, 1.442695
  %v10747 = vpow.pop %v10746
  %v10748 = vmul.f32 %v10391, 1.442695
  %v10749 = vpow.pop %v10748
  %v10750 = vmul.f32 %v10392, 1.442695
  %v10751 = vpow.pop %v10750
  %v10752 = vmul.f32 %v10393, 1.442695
  %v10753 = vpow.pop %v10752
  %v10754 = vmul.f32 %v10394, 1.442695
  %v10755 = vpow.pop %v10754
  %v10756 = vmul.f32 %v10395, 1.442695
  %v10757 = vpow.pop %v10756
  %v10758 = vmul.f32 %v10396, 1.442695
  %v10759 = vpow.pop %v10758
  %v10760 = vmul.f32 %v10397, 1.442695
  %v10761 = vpow.pop %v10760
  %v10762 = vmul.f32 %v10398, 1.442695
  %v10763 = vpow.pop %v10762
  %v10764 = vmul.f32 %v10399, 1.442695
  %v10765 = vpow.pop %v10764
  %v10766 = vmul.f32 %v10400, 1.442695
  %v10767 = vpow.pop %v10766
  %v10768 = vmul.f32 %v10401, 1.442695
  %v10769 = vpow.pop %v10768
  %v10770 = vmul.f32 %v10402, 1.442695
  %v10771 = vpow.pop %v10770
  %v10772 = vmul.f32 %v10403, 1.442695
  %v10773 = vpow.pop %v10772
  %v10774 = vmul.f32 %v10404, 1.442695
  %v10775 = vpow.pop %v10774
  %v10776 = vmul.f32 %v10405, 1.442695
  %v10777 = vpow.pop %v10776
  %v10778 = vmul.f32 %v10406, 1.442695
  %v10779 = vpow.pop %v10778
  %v10780 = vmul.f32 %v10407, 1.442695
  %v10781 = vpow.pop %v10780
  %v10782 = vmul.f32 %v10408, 1.442695
  %v10783 = vpow.pop %v10782
  %v10784 = vmul.f32 %v10409, 1.442695
  %v10785 = vpow.pop %v10784
  %v10786 = vmul.f32 %v10410, 1.442695
  %v10787 = vpow.pop %v10786
  %v10788 = vmul.f32 %v10411, 1.442695
  %v10789 = vpow.pop %v10788
  %v10790 = vmul.f32 %v10412, 1.442695
  %v10791 = vpow.pop %v10790
  %v10792 = vmul.f32 %v10413, 1.442695
  %v10793 = vpow.pop %v10792
  %v10794 = vmul.f32 %v10414, 1.442695
  %v10795 = vpow.pop %v10794
  %v10796 = vmul.f32 %v10415, 1.442695
  %v10797 = vpow.pop %v10796
  %v10798 = vmul.f32 %v10416, 1.442695
  %v10799 = vpow.pop %v10798
  %v10800 = vmul.f32 %v10417, 1.442695
  %v10801 = vpow.pop %v10800
  %v10802 = vmul.f32 %v10418, 1.442695
  %v10803 = vpow.pop %v10802
  %v10804 = vmul.f32 %v10419, 1.442695
  %v10805 = vpow.pop %v10804
  %v10806 = vmul.f32 %v10420, 1.442695
  %v10807 = vpow.pop %v10806
  %v10808 = vmul.f32 %v10421, 1.442695
  %v10809 = vpow.pop %v10808
  %v10810 = vmul.f32 %v10422, 1.442695
  %v10811 = vpow.pop %v10810
  %v10812 = vmul.f32 %v10423, 1.442695
  %v10813 = vpow.pop %v10812
  %v10814 = vmul.f32 %v10424, 1.442695
  %v10815 = vpow.pop %v10814
  %v10816 = vmul.f32 %v10425, 1.442695
  %v10817 = vpow.pop %v10816
  %v10818 = vmul.f32 %v10426, 1.442695
  %v10819 = vpow.pop %v10818
  %v10820 = vmul.f32 %v10427, 1.442695
  %v10821 = vpow.pop %v10820
  %v10822 = vmul.f32 %v10428, 1.442695
  %v10823 = vpow.pop %v10822
  %v10824 = vmul.f32 %v10429, 1.442695
  %v10825 = vpow.pop %v10824
  %v10826 = vmul.f32 %v10430, 1.442695
  %v10827 = vpow.pop %v10826
  %v10828 = vmul.f32 %v10431, 1.442695
  %v10829 = vpow.pop %v10828
  %v10830 = vmul.f32 %v10432, 1.442695
  %v10831 = vpow.pop %v10830
  %v10832 = vmul.f32 %v10433, 1.442695
  %v10833 = vpow.pop %v10832
  %v10834 = vmul.f32 %v10434, 1.442695
  %v10835 = vpow.pop %v10834
  %v10836 = vmul.f32 %v10435, 1.442695
  %v10837 = vpow.pop %v10836
  %v10838 = vmul.f32 %v10436, 1.442695
  %v10839 = vpow.pop %v10838
  %v10840 = vmul.f32 %v10437, 1.442695
  %v10841 = vpow.pop %v10840
  %v10842 = vmul.f32 %v10438, 1.442695
  %v10843 = vpow.pop %v10842
  %v10844 = vmul.f32 %v10439, 1.442695
  %v10845 = vpow.pop %v10844
  %v10846 = vmul.f32 %v10440, 1.442695
  %v10847 = vpow.pop %v10846
  %v10848 = vmul.f32 %v10441, 1.442695
  %v10849 = vpow.pop %v10848
  %v10850 = vmul.f32 %v10442, 1.442695
  %v10851 = vpow.pop %v10850
  %v10852 = vmul.f32 %v10443, 1.442695
  %v10853 = vpow.pop %v10852
  %v10854 = vmul.f32 %v10444, 1.442695
  %v10855 = vpow.pop %v10854
  %v10856 = vmul.f32 %v10445, 1.442695
  %v10857 = vpow.pop %v10856
  %v10858 = vmul.f32 %v10446, 1.442695
  %v10859 = vpow.pop %v10858
  %v10860 = vmul.f32 %v10447, 1.442695
  %v10861 = vpow.pop %v10860
  %v10862 = vmul.f32 %v10448, 1.442695
  %v10863 = vpow.pop %v10862
  %v10864 = vmul.f32 %v10449, 1.442695
  %v10865 = vpow.pop %v10864
  %v10866 = vmul.f32 %v10450, 1.442695
  %v10867 = vpow.pop %v10866
  %v10868 = vmul.f32 %v10451, 1.442695
  %v10869 = vpow.pop %v10868
  %v10870 = vmul.f32 %v10452, 1.442695
  %v10871 = vpow.pop %v10870
  %v10872 = vmul.f32 %v10453, 1.442695
  %v10873 = vpow.pop %v10872
  %v10874 = vmul.f32 %v10454, 1.442695
  %v10875 = vpow.pop %v10874
  %v10876 = vmul.f32 %v10455, 1.442695
  %v10877 = vpow.pop %v10876
  %v10878 = vmul.f32 %v10456, 1.442695
  %v10879 = vpow.pop %v10878
  %v10880 = vmul.f32 %v10457, 1.442695
  %v10881 = vpow.pop %v10880
  %v10882 = vmul.f32 %v10458, 1.442695
  %v10883 = vpow.pop %v10882
  %v10884 = vmul.f32 %v10459, 1.442695
  %v10885 = vpow.pop %v10884
  %v10886 = vmul.f32 %v10460, 1.442695
  %v10887 = vpow.pop %v10886
  %v10888 = vmul.f32 %v10461, 1.442695
  %v10889 = vpow.pop %v10888
  %v10890 = vmul.f32 %v10462, 1.442695
  %v10891 = vpow.pop %v10890
  %v10892 = vmul.f32 %v10463, 1.442695
  %v10893 = vpow.pop %v10892
  %v10894 = vmul.f32 %v10464, 1.442695
  %v10895 = vpow.pop %v10894
  %v10896 = vmul.f32 %v10465, 1.442695
  %v10897 = vpow.pop %v10896
  %v10898 = vmul.f32 %v10466, 1.442695
  %v10899 = vpow.pop %v10898
  %v10900 = vmul.f32 %v10467, 1.442695
  %v10901 = vpow.pop %v10900
  %v10902 = vmul.f32 %v10468, 1.442695
  %v10903 = vpow.pop %v10902
  %v10904 = vmul.f32 %v10469, 1.442695
  %v10905 = vpow.pop %v10904
  %v10906 = vmul.f32 %v10470, 1.442695
  %v10907 = vpow.pop %v10906
  %v10908 = vmul.f32 %v10471, 1.442695
  %v10909 = vpow.pop %v10908
  %v10910 = vmul.f32 %v10472, 1.442695
  %v10911 = vpow.pop %v10910
  %v10912 = vmul.f32 %v10473, 1.442695
  %v10913 = vpow.pop %v10912
  %v10914 = vmul.f32 %v10474, 1.442695
  %v10915 = vpow.pop %v10914
  %v10916 = vmul.f32 %v10475, 1.442695
  %v10917 = vpow.pop %v10916
  %v10918 = vmul.f32 %v10476, 1.442695
  %v10919 = vpow.pop %v10918
  %v10920 = vmul.f32 %v10477, 1.442695
  %v10921 = vpow.pop %v10920
  %v10922 = vmul.f32 %v10478, 1.442695
  %v10923 = vpow.pop %v10922
  %v10924 = vmul.f32 %v10479, 1.442695
  %v10925 = vpow.pop %v10924
  %v10926 = vmul.f32 %v10480, 1.442695
  %v10927 = vpow.pop %v10926
  %v10928 = vmul.f32 %v10481, 1.442695
  %v10929 = vpow.pop %v10928
  %v10930 = vmul.f32 %v10482, 1.442695
  %v10931 = vpow.pop %v10930
  %v10932 = vmul.f32 %v10483, 1.442695
  %v10933 = vpow.pop %v10932
  %v10934 = vmul.f32 %v10484, 1.442695
  %v10935 = vpow.pop %v10934
  %v10936 = vmul.f32 %v10485, 1.442695
  %v10937 = vpow.pop %v10936
  %v10938 = vmul.f32 %v10486, 1.442695
  %v10939 = vpow.pop %v10938
  %v10940 = vmul.f32 %v10487, 1.442695
  %v10941 = vpow.pop %v10940
  %v10942 = vmul.f32 %v10488, 1.442695
  %v10943 = vpow.pop %v10942
  %v10944 = vmul.f32 %v10489, 1.442695
  %v10945 = vpow.pop %v10944
  %v10946 = vmul.f32 %v10490, 1.442695
  %v10947 = vpow.pop %v10946
  %v10948 = vmul.f32 %v10491, 1.442695
  %v10949 = vpow.pop %v10948
  %v10950 = vmul.f32 %v10492, 1.442695
  %v10951 = vpow.pop %v10950
  %v10952 = vmul.f32 %v10493, 1.442695
  %v10953 = vpow.pop %v10952
  %v10954 = vmul.f32 %v10494, 1.442695
  %v10955 = vpow.pop %v10954
  %v10956 = vmul.f32 %v10495, 1.442695
  %v10957 = vpow.pop %v10956
  %v10958 = vmul.f32 %v10496, 1.442695
  %v10959 = vpow.pop %v10958
  %v10960 = vmul.f32 %v10497, 1.442695
  %v10961 = vpow.pop %v10960
  %v10962 = vmul.f32 %v10498, 1.442695
  %v10963 = vpow.pop %v10962
  %v10964 = vmul.f32 %v10499, 1.442695
  %v10965 = vpow.pop %v10964
  %v10966 = vmul.f32 %v10500, 1.442695
  %v10967 = vpow.pop %v10966
  %v10968 = vmul.f32 %v10501, 1.442695
  %v10969 = vpow.pop %v10968
  %v10970 = vmul.f32 %v10502, 1.442695
  %v10971 = vpow.pop %v10970
  %v10972 = vmul.f32 %v10503, 1.442695
  %v10973 = vpow.pop %v10972
  %v10974 = vmul.f32 %v10504, 1.442695
  %v10975 = vpow.pop %v10974
  %v10976 = vmul.f32 %v10505, 1.442695
  %v10977 = vpow.pop %v10976
  %v10978 = vmul.f32 %v10506, 1.442695
  %v10979 = vpow.pop %v10978
  %v10980 = vmul.f32 %v10507, 1.442695
  %v10981 = vpow.pop %v10980
  %v10982 = vmul.f32 %v10508, 1.442695
  %v10983 = vpow.pop %v10982
  %v10984 = vmul.f32 %v10509, 1.442695
  %v10985 = vpow.pop %v10984
  %v10986 = vmul.f32 %v10510, 1.442695
  %v10987 = vpow.pop %v10986
  %v10988 = vmul.f32 %v10511, 1.442695
  %v10989 = vpow.pop %v10988
  %v10990 = vmul.f32 %v10512, 1.442695
  %v10991 = vpow.pop %v10990
  %v10992 = vmul.f32 %v10513, 1.442695
  %v10993 = vpow.pop %v10992
  %v10994 = vmul.f32 %v10514, 1.442695
  %v10995 = vpow.pop %v10994
  %v10996 = vmul.f32 %v10515, 1.442695
  %v10997 = vpow.pop %v10996
  %v10998 = vmul.f32 %v10516, 1.442695
  %v10999 = vpow.pop %v10998
  %v11000 = vmul.f32 %v10517, 1.442695
  %v11001 = vpow.pop %v11000
  %v11002 = vmul.f32 %v10518, 1.442695
  %v11003 = vpow.pop %v11002
  %v11004 = vmul.f32 %v10519, 1.442695
  %v11005 = vpow.pop %v11004
  %v11006 = vmul.f32 %v10520, 1.442695
  %v11007 = vpow.pop %v11006
  %v11008 = vmul.f32 %v10521, 1.442695
  %v11009 = vpow.pop %v11008
  %v11010 = vmul.f32 %v10522, 1.442695
  %v11011 = vpow.pop %v11010
  %v11012 = vmul.f32 %v10523, 1.442695
  %v11013 = vpow.pop %v11012
  %v11014 = vmul.f32 %v10524, 1.442695
  %v11015 = vpow.pop %v11014
  %v11016 = vmul.f32 %v10525, 1.442695
  %v11017 = vpow.pop %v11016
  %v11018 = vmul.f32 %v10526, 1.442695
  %v11019 = vpow.pop %v11018
  %v11020 = vmul.f32 %v10527, 1.442695
  %v11021 = vpow.pop %v11020
  %v11022 = vmul.f32 %v10528, 1.442695
  %v11023 = vpow.pop %v11022
  %v11024 = vmul.f32 %v10529, 1.442695
  %v11025 = vpow.pop %v11024
  %v11026 = vmul.f32 %v10530, 1.442695
  %v11027 = vpow.pop %v11026
  %v11028 = vmul.f32 %v10531, 1.442695
  %v11029 = vpow.pop %v11028
  %v11030 = vmul.f32 %v10532, 1.442695
  %v11031 = vpow.pop %v11030
  %v11032 = vmul.f32 %v10533, 1.442695
  %v11033 = vpow.pop %v11032
  %v11034 = vmul.f32 %v10534, 1.442695
  %v11035 = vpow.pop %v11034
  %v11036 = vmul.f32 %v10535, 1.442695
  %v11037 = vpow.pop %v11036
  %v11038 = vmul.f32 %v10536, 1.442695
  %v11039 = vpow.pop %v11038
  %v11040 = vmul.f32 %v10537, 1.442695
  %v11041 = vpow.pop %v11040
  %v11042 = vmul.f32 %v10538, 1.442695
  %v11043 = vpow.pop %v11042
  %v11044 = vmul.f32 %v10539, 1.442695
  %v11045 = vpow.pop %v11044
  %v11046 = vmul.f32 %v10540, 1.442695
  %v11047 = vpow.pop %v11046
  %v11048 = vmul.f32 %v10541, 1.442695
  %v11049 = vpow.pop %v11048
  %v11050 = vmul.f32 %v10542, 1.442695
  %v11051 = vpow.pop %v11050
  %v11052 = vmul.f32 %v10543, 1.442695
  %v11053 = vpow.pop %v11052
  %v11054 = vmul.f32 %v10544, 1.442695
  %v11055 = vpow.pop %v11054
  %v11056 = vmul.f32 %v10545, 1.442695
  %v11057 = vpow.pop %v11056
  %v11058 = vadd.f32 %v10547, 1.0
  %v11059 = vadd.f32 %v10549, 1.0
  %v11060 = vadd.f32 %v10551, 1.0
  %v11061 = vadd.f32 %v10553, 1.0
  %v11062 = vadd.f32 %v10555, 1.0
  %v11063 = vadd.f32 %v10557, 1.0
  %v11064 = vadd.f32 %v10559, 1.0
  %v11065 = vadd.f32 %v10561, 1.0
  %v11066 = vadd.f32 %v10563, 1.0
  %v11067 = vadd.f32 %v10565, 1.0
  %v11068 = vadd.f32 %v10567, 1.0
  %v11069 = vadd.f32 %v10569, 1.0
  %v11070 = vadd.f32 %v10571, 1.0
  %v11071 = vadd.f32 %v10573, 1.0
  %v11072 = vadd.f32 %v10575, 1.0
  %v11073 = vadd.f32 %v10577, 1.0
  %v11074 = vadd.f32 %v10579, 1.0
  %v11075 = vadd.f32 %v10581, 1.0
  %v11076 = vadd.f32 %v10583, 1.0
  %v11077 = vadd.f32 %v10585, 1.0
  %v11078 = vadd.f32 %v10587, 1.0
  %v11079 = vadd.f32 %v10589, 1.0
  %v11080 = vadd.f32 %v10591, 1.0
  %v11081 = vadd.f32 %v10593, 1.0
  %v11082 = vadd.f32 %v10595, 1.0
  %v11083 = vadd.f32 %v10597, 1.0
  %v11084 = vadd.f32 %v10599, 1.0
  %v11085 = vadd.f32 %v10601, 1.0
  %v11086 = vadd.f32 %v10603, 1.0
  %v11087 = vadd.f32 %v10605, 1.0
  %v11088 = vadd.f32 %v10607, 1.0
  %v11089 = vadd.f32 %v10609, 1.0
  %v11090 = vadd.f32 %v10611, 1.0
  %v11091 = vadd.f32 %v10613, 1.0
  %v11092 = vadd.f32 %v10615, 1.0
  %v11093 = vadd.f32 %v10617, 1.0
  %v11094 = vadd.f32 %v10619, 1.0
  %v11095 = vadd.f32 %v10621, 1.0
  %v11096 = vadd.f32 %v10623, 1.0
  %v11097 = vadd.f32 %v10625, 1.0
  %v11098 = vadd.f32 %v10627, 1.0
  %v11099 = vadd.f32 %v10629, 1.0
  %v11100 = vadd.f32 %v10631, 1.0
  %v11101 = vadd.f32 %v10633, 1.0
  %v11102 = vadd.f32 %v10635, 1.0
  %v11103 = vadd.f32 %v10637, 1.0
  %v11104 = vadd.f32 %v10639, 1.0
  %v11105 = vadd.f32 %v10641, 1.0
  %v11106 = vadd.f32 %v10643, 1.0
  %v11107 = vadd.f32 %v10645, 1.0
  %v11108 = vadd.f32 %v10647, 1.0
  %v11109 = vadd.f32 %v10649, 1.0
  %v11110 = vadd.f32 %v10651, 1.0
  %v11111 = vadd.f32 %v10653, 1.0
  %v11112 = vadd.f32 %v10655, 1.0
  %v11113 = vadd.f32 %v10657, 1.0
  %v11114 = vadd.f32 %v10659, 1.0
  %v11115 = vadd.f32 %v10661, 1.0
  %v11116 = vadd.f32 %v10663, 1.0
  %v11117 = vadd.f32 %v10665, 1.0
  %v11118 = vadd.f32 %v10667, 1.0
  %v11119 = vadd.f32 %v10669, 1.0
  %v11120 = vadd.f32 %v10671, 1.0
  %v11121 = vadd.f32 %v10673, 1.0
  %v11122 = vadd.f32 %v10675, 1.0
  %v11123 = vadd.f32 %v10677, 1.0
  %v11124 = vadd.f32 %v10679, 1.0
  %v11125 = vadd.f32 %v10681, 1.0
  %v11126 = vadd.f32 %v10683, 1.0
  %v11127 = vadd.f32 %v10685, 1.0
  %v11128 = vadd.f32 %v10687, 1.0
  %v11129 = vadd.f32 %v10689, 1.0
  %v11130 = vadd.f32 %v10691, 1.0
  %v11131 = vadd.f32 %v10693, 1.0
  %v11132 = vadd.f32 %v10695, 1.0
  %v11133 = vadd.f32 %v10697, 1.0
  %v11134 = vadd.f32 %v10699, 1.0
  %v11135 = vadd.f32 %v10701, 1.0
  %v11136 = vadd.f32 %v10703, 1.0
  %v11137 = vadd.f32 %v10705, 1.0
  %v11138 = vadd.f32 %v10707, 1.0
  %v11139 = vadd.f32 %v10709, 1.0
  %v11140 = vadd.f32 %v10711, 1.0
  %v11141 = vadd.f32 %v10713, 1.0
  %v11142 = vadd.f32 %v10715, 1.0
  %v11143 = vadd.f32 %v10717, 1.0
  %v11144 = vadd.f32 %v10719, 1.0
  %v11145 = vadd.f32 %v10721, 1.0
  %v11146 = vadd.f32 %v10723, 1.0
  %v11147 = vadd.f32 %v10725, 1.0
  %v11148 = vadd.f32 %v10727, 1.0
  %v11149 = vadd.f32 %v10729, 1.0
  %v11150 = vadd.f32 %v10731, 1.0
  %v11151 = vadd.f32 %v10733, 1.0
  %v11152 = vadd.f32 %v10735, 1.0
  %v11153 = vadd.f32 %v10737, 1.0
  %v11154 = vadd.f32 %v10739, 1.0
  %v11155 = vadd.f32 %v10741, 1.0
  %v11156 = vadd.f32 %v10743, 1.0
  %v11157 = vadd.f32 %v10745, 1.0
  %v11158 = vadd.f32 %v10747, 1.0
  %v11159 = vadd.f32 %v10749, 1.0
  %v11160 = vadd.f32 %v10751, 1.0
  %v11161 = vadd.f32 %v10753, 1.0
  %v11162 = vadd.f32 %v10755, 1.0
  %v11163 = vadd.f32 %v10757, 1.0
  %v11164 = vadd.f32 %v10759, 1.0
  %v11165 = vadd.f32 %v10761, 1.0
  %v11166 = vadd.f32 %v10763, 1.0
  %v11167 = vadd.f32 %v10765, 1.0
  %v11168 = vadd.f32 %v10767, 1.0
  %v11169 = vadd.f32 %v10769, 1.0
  %v11170 = vadd.f32 %v10771, 1.0
  %v11171 = vadd.f32 %v10773, 1.0
  %v11172 = vadd.f32 %v10775, 1.0
  %v11173 = vadd.f32 %v10777, 1.0
  %v11174 = vadd.f32 %v10779, 1.0
  %v11175 = vadd.f32 %v10781, 1.0
  %v11176 = vadd.f32 %v10783, 1.0
  %v11177 = vadd.f32 %v10785, 1.0
  %v11178 = vadd.f32 %v10787, 1.0
  %v11179 = vadd.f32 %v10789, 1.0
  %v11180 = vadd.f32 %v10791, 1.0
  %v11181 = vadd.f32 %v10793, 1.0
  %v11182 = vadd.f32 %v10795, 1.0
  %v11183 = vadd.f32 %v10797, 1.0
  %v11184 = vadd.f32 %v10799, 1.0
  %v11185 = vadd.f32 %v10801, 1.0
  %v11186 = vadd.f32 %v10803, 1.0
  %v11187 = vadd.f32 %v10805, 1.0
  %v11188 = vadd.f32 %v10807, 1.0
  %v11189 = vadd.f32 %v10809, 1.0
  %v11190 = vadd.f32 %v10811, 1.0
  %v11191 = vadd.f32 %v10813, 1.0
  %v11192 = vadd.f32 %v10815, 1.0
  %v11193 = vadd.f32 %v10817, 1.0
  %v11194 = vadd.f32 %v10819, 1.0
  %v11195 = vadd.f32 %v10821, 1.0
  %v11196 = vadd.f32 %v10823, 1.0
  %v11197 = vadd.f32 %v10825, 1.0
  %v11198 = vadd.f32 %v10827, 1.0
  %v11199 = vadd.f32 %v10829, 1.0
  %v11200 = vadd.f32 %v10831, 1.0
  %v11201 = vadd.f32 %v10833, 1.0
  %v11202 = vadd.f32 %v10835, 1.0
  %v11203 = vadd.f32 %v10837, 1.0
  %v11204 = vadd.f32 %v10839, 1.0
  %v11205 = vadd.f32 %v10841, 1.0
  %v11206 = vadd.f32 %v10843, 1.0
  %v11207 = vadd.f32 %v10845, 1.0
  %v11208 = vadd.f32 %v10847, 1.0
  %v11209 = vadd.f32 %v10849, 1.0
  %v11210 = vadd.f32 %v10851, 1.0
  %v11211 = vadd.f32 %v10853, 1.0
  %v11212 = vadd.f32 %v10855, 1.0
  %v11213 = vadd.f32 %v10857, 1.0
  %v11214 = vadd.f32 %v10859, 1.0
  %v11215 = vadd.f32 %v10861, 1.0
  %v11216 = vadd.f32 %v10863, 1.0
  %v11217 = vadd.f32 %v10865, 1.0
  %v11218 = vadd.f32 %v10867, 1.0
  %v11219 = vadd.f32 %v10869, 1.0
  %v11220 = vadd.f32 %v10871, 1.0
  %v11221 = vadd.f32 %v10873, 1.0
  %v11222 = vadd.f32 %v10875, 1.0
  %v11223 = vadd.f32 %v10877, 1.0
  %v11224 = vadd.f32 %v10879, 1.0
  %v11225 = vadd.f32 %v10881, 1.0
  %v11226 = vadd.f32 %v10883, 1.0
  %v11227 = vadd.f32 %v10885, 1.0
  %v11228 = vadd.f32 %v10887, 1.0
  %v11229 = vadd.f32 %v10889, 1.0
  %v11230 = vadd.f32 %v10891, 1.0
  %v11231 = vadd.f32 %v10893, 1.0
  %v11232 = vadd.f32 %v10895, 1.0
  %v11233 = vadd.f32 %v10897, 1.0
  %v11234 = vadd.f32 %v10899, 1.0
  %v11235 = vadd.f32 %v10901, 1.0
  %v11236 = vadd.f32 %v10903, 1.0
  %v11237 = vadd.f32 %v10905, 1.0
  %v11238 = vadd.f32 %v10907, 1.0
  %v11239 = vadd.f32 %v10909, 1.0
  %v11240 = vadd.f32 %v10911, 1.0
  %v11241 = vadd.f32 %v10913, 1.0
  %v11242 = vadd.f32 %v10915, 1.0
  %v11243 = vadd.f32 %v10917, 1.0
  %v11244 = vadd.f32 %v10919, 1.0
  %v11245 = vadd.f32 %v10921, 1.0
  %v11246 = vadd.f32 %v10923, 1.0
  %v11247 = vadd.f32 %v10925, 1.0
  %v11248 = vadd.f32 %v10927, 1.0
  %v11249 = vadd.f32 %v10929, 1.0
  %v11250 = vadd.f32 %v10931, 1.0
  %v11251 = vadd.f32 %v10933, 1.0
  %v11252 = vadd.f32 %v10935, 1.0
  %v11253 = vadd.f32 %v10937, 1.0
  %v11254 = vadd.f32 %v10939, 1.0
  %v11255 = vadd.f32 %v10941, 1.0
  %v11256 = vadd.f32 %v10943, 1.0
  %v11257 = vadd.f32 %v10945, 1.0
  %v11258 = vadd.f32 %v10947, 1.0
  %v11259 = vadd.f32 %v10949, 1.0
  %v11260 = vadd.f32 %v10951, 1.0
  %v11261 = vadd.f32 %v10953, 1.0
  %v11262 = vadd.f32 %v10955, 1.0
  %v11263 = vadd.f32 %v10957, 1.0
  %v11264 = vadd.f32 %v10959, 1.0
  %v11265 = vadd.f32 %v10961, 1.0
  %v11266 = vadd.f32 %v10963, 1.0
  %v11267 = vadd.f32 %v10965, 1.0
  %v11268 = vadd.f32 %v10967, 1.0
  %v11269 = vadd.f32 %v10969, 1.0
  %v11270 = vadd.f32 %v10971, 1.0
  %v11271 = vadd.f32 %v10973, 1.0
  %v11272 = vadd.f32 %v10975, 1.0
  %v11273 = vadd.f32 %v10977, 1.0
  %v11274 = vadd.f32 %v10979, 1.0
  %v11275 = vadd.f32 %v10981, 1.0
  %v11276 = vadd.f32 %v10983, 1.0
  %v11277 = vadd.f32 %v10985, 1.0
  %v11278 = vadd.f32 %v10987, 1.0
  %v11279 = vadd.f32 %v10989, 1.0
  %v11280 = vadd.f32 %v10991, 1.0
  %v11281 = vadd.f32 %v10993, 1.0
  %v11282 = vadd.f32 %v10995, 1.0
  %v11283 = vadd.f32 %v10997, 1.0
  %v11284 = vadd.f32 %v10999, 1.0
  %v11285 = vadd.f32 %v11001, 1.0
  %v11286 = vadd.f32 %v11003, 1.0
  %v11287 = vadd.f32 %v11005, 1.0
  %v11288 = vadd.f32 %v11007, 1.0
  %v11289 = vadd.f32 %v11009, 1.0
  %v11290 = vadd.f32 %v11011, 1.0
  %v11291 = vadd.f32 %v11013, 1.0
  %v11292 = vadd.f32 %v11015, 1.0
  %v11293 = vadd.f32 %v11017, 1.0
  %v11294 = vadd.f32 %v11019, 1.0
  %v11295 = vadd.f32 %v11021, 1.0
  %v11296 = vadd.f32 %v11023, 1.0
  %v11297 = vadd.f32 %v11025, 1.0
  %v11298 = vadd.f32 %v11027, 1.0
  %v11299 = vadd.f32 %v11029, 1.0
  %v11300 = vadd.f32 %v11031, 1.0
  %v11301 = vadd.f32 %v11033, 1.0
  %v11302 = vadd.f32 %v11035, 1.0
  %v11303 = vadd.f32 %v11037, 1.0
  %v11304 = vadd.f32 %v11039, 1.0
  %v11305 = vadd.f32 %v11041, 1.0
  %v11306 = vadd.f32 %v11043, 1.0
  %v11307 = vadd.f32 %v11045, 1.0
  %v11308 = vadd.f32 %v11047, 1.0
  %v11309 = vadd.f32 %v11049, 1.0
  %v11310 = vadd.f32 %v11051, 1.0
  %v11311 = vadd.f32 %v11053, 1.0
  %v11312 = vadd.f32 %v11055, 1.0
  %v11313 = vadd.f32 %v11057, 1.0
  %v11314 = vrcp.pop %v11058
  %v11315 = vmul.f32 1.0, %v11314
  %v11316 = vrcp.pop %v11059
  %v11317 = vmul.f32 1.0, %v11316
  %v11318 = vrcp.pop %v11060
  %v11319 = vmul.f32 1.0, %v11318
  %v11320 = vrcp.pop %v11061
  %v11321 = vmul.f32 1.0, %v11320
  %v11322 = vrcp.pop %v11062
  %v11323 = vmul.f32 1.0, %v11322
  %v11324 = vrcp.pop %v11063
  %v11325 = vmul.f32 1.0, %v11324
  %v11326 = vrcp.pop %v11064
  %v11327 = vmul.f32 1.0, %v11326
  %v11328 = vrcp.pop %v11065
  %v11329 = vmul.f32 1.0, %v11328
  %v11330 = vrcp.pop %v11066
  %v11331 = vmul.f32 1.0, %v11330
  %v11332 = vrcp.pop %v11067
  %v11333 = vmul.f32 1.0, %v11332
  %v11334 = vrcp.pop %v11068
  %v11335 = vmul.f32 1.0, %v11334
  %v11336 = vrcp.pop %v11069
  %v11337 = vmul.f32 1.0, %v11336
  %v11338 = vrcp.pop %v11070
  %v11339 = vmul.f32 1.0, %v11338
  %v11340 = vrcp.pop %v11071
  %v11341 = vmul.f32 1.0, %v11340
  %v11342 = vrcp.pop %v11072
  %v11343 = vmul.f32 1.0, %v11342
  %v11344 = vrcp.pop %v11073
  %v11345 = vmul.f32 1.0, %v11344
  %v11346 = vrcp.pop %v11074
  %v11347 = vmul.f32 1.0, %v11346
  %v11348 = vrcp.pop %v11075
  %v11349 = vmul.f32 1.0, %v11348
  %v11350 = vrcp.pop %v11076
  %v11351 = vmul.f32 1.0, %v11350
  %v11352 = vrcp.pop %v11077
  %v11353 = vmul.f32 1.0, %v11352
  %v11354 = vrcp.pop %v11078
  %v11355 = vmul.f32 1.0, %v11354
  %v11356 = vrcp.pop %v11079
  %v11357 = vmul.f32 1.0, %v11356
  %v11358 = vrcp.pop %v11080
  %v11359 = vmul.f32 1.0, %v11358
  %v11360 = vrcp.pop %v11081
  %v11361 = vmul.f32 1.0, %v11360
  %v11362 = vrcp.pop %v11082
  %v11363 = vmul.f32 1.0, %v11362
  %v11364 = vrcp.pop %v11083
  %v11365 = vmul.f32 1.0, %v11364
  %v11366 = vrcp.pop %v11084
  %v11367 = vmul.f32 1.0, %v11366
  %v11368 = vrcp.pop %v11085
  %v11369 = vmul.f32 1.0, %v11368
  %v11370 = vrcp.pop %v11086
  %v11371 = vmul.f32 1.0, %v11370
  %v11372 = vrcp.pop %v11087
  %v11373 = vmul.f32 1.0, %v11372
  %v11374 = vrcp.pop %v11088
  %v11375 = vmul.f32 1.0, %v11374
  %v11376 = vrcp.pop %v11089
  %v11377 = vmul.f32 1.0, %v11376
  %v11378 = vrcp.pop %v11090
  %v11379 = vmul.f32 1.0, %v11378
  %v11380 = vrcp.pop %v11091
  %v11381 = vmul.f32 1.0, %v11380
  %v11382 = vrcp.pop %v11092
  %v11383 = vmul.f32 1.0, %v11382
  %v11384 = vrcp.pop %v11093
  %v11385 = vmul.f32 1.0, %v11384
  %v11386 = vrcp.pop %v11094
  %v11387 = vmul.f32 1.0, %v11386
  %v11388 = vrcp.pop %v11095
  %v11389 = vmul.f32 1.0, %v11388
  %v11390 = vrcp.pop %v11096
  %v11391 = vmul.f32 1.0, %v11390
  %v11392 = vrcp.pop %v11097
  %v11393 = vmul.f32 1.0, %v11392
  %v11394 = vrcp.pop %v11098
  %v11395 = vmul.f32 1.0, %v11394
  %v11396 = vrcp.pop %v11099
  %v11397 = vmul.f32 1.0, %v11396
  %v11398 = vrcp.pop %v11100
  %v11399 = vmul.f32 1.0, %v11398
  %v11400 = vrcp.pop %v11101
  %v11401 = vmul.f32 1.0, %v11400
  %v11402 = vrcp.pop %v11102
  %v11403 = vmul.f32 1.0, %v11402
  %v11404 = vrcp.pop %v11103
  %v11405 = vmul.f32 1.0, %v11404
  %v11406 = vrcp.pop %v11104
  %v11407 = vmul.f32 1.0, %v11406
  %v11408 = vrcp.pop %v11105
  %v11409 = vmul.f32 1.0, %v11408
  %v11410 = vrcp.pop %v11106
  %v11411 = vmul.f32 1.0, %v11410
  %v11412 = vrcp.pop %v11107
  %v11413 = vmul.f32 1.0, %v11412
  %v11414 = vrcp.pop %v11108
  %v11415 = vmul.f32 1.0, %v11414
  %v11416 = vrcp.pop %v11109
  %v11417 = vmul.f32 1.0, %v11416
  %v11418 = vrcp.pop %v11110
  %v11419 = vmul.f32 1.0, %v11418
  %v11420 = vrcp.pop %v11111
  %v11421 = vmul.f32 1.0, %v11420
  %v11422 = vrcp.pop %v11112
  %v11423 = vmul.f32 1.0, %v11422
  %v11424 = vrcp.pop %v11113
  %v11425 = vmul.f32 1.0, %v11424
  %v11426 = vrcp.pop %v11114
  %v11427 = vmul.f32 1.0, %v11426
  %v11428 = vrcp.pop %v11115
  %v11429 = vmul.f32 1.0, %v11428
  %v11430 = vrcp.pop %v11116
  %v11431 = vmul.f32 1.0, %v11430
  %v11432 = vrcp.pop %v11117
  %v11433 = vmul.f32 1.0, %v11432
  %v11434 = vrcp.pop %v11118
  %v11435 = vmul.f32 1.0, %v11434
  %v11436 = vrcp.pop %v11119
  %v11437 = vmul.f32 1.0, %v11436
  %v11438 = vrcp.pop %v11120
  %v11439 = vmul.f32 1.0, %v11438
  %v11440 = vrcp.pop %v11121
  %v11441 = vmul.f32 1.0, %v11440
  %v11442 = vrcp.pop %v11122
  %v11443 = vmul.f32 1.0, %v11442
  %v11444 = vrcp.pop %v11123
  %v11445 = vmul.f32 1.0, %v11444
  %v11446 = vrcp.pop %v11124
  %v11447 = vmul.f32 1.0, %v11446
  %v11448 = vrcp.pop %v11125
  %v11449 = vmul.f32 1.0, %v11448
  %v11450 = vrcp.pop %v11126
  %v11451 = vmul.f32 1.0, %v11450
  %v11452 = vrcp.pop %v11127
  %v11453 = vmul.f32 1.0, %v11452
  %v11454 = vrcp.pop %v11128
  %v11455 = vmul.f32 1.0, %v11454
  %v11456 = vrcp.pop %v11129
  %v11457 = vmul.f32 1.0, %v11456
  %v11458 = vrcp.pop %v11130
  %v11459 = vmul.f32 1.0, %v11458
  %v11460 = vrcp.pop %v11131
  %v11461 = vmul.f32 1.0, %v11460
  %v11462 = vrcp.pop %v11132
  %v11463 = vmul.f32 1.0, %v11462
  %v11464 = vrcp.pop %v11133
  %v11465 = vmul.f32 1.0, %v11464
  %v11466 = vrcp.pop %v11134
  %v11467 = vmul.f32 1.0, %v11466
  %v11468 = vrcp.pop %v11135
  %v11469 = vmul.f32 1.0, %v11468
  %v11470 = vrcp.pop %v11136
  %v11471 = vmul.f32 1.0, %v11470
  %v11472 = vrcp.pop %v11137
  %v11473 = vmul.f32 1.0, %v11472
  %v11474 = vrcp.pop %v11138
  %v11475 = vmul.f32 1.0, %v11474
  %v11476 = vrcp.pop %v11139
  %v11477 = vmul.f32 1.0, %v11476
  %v11478 = vrcp.pop %v11140
  %v11479 = vmul.f32 1.0, %v11478
  %v11480 = vrcp.pop %v11141
  %v11481 = vmul.f32 1.0, %v11480
  %v11482 = vrcp.pop %v11142
  %v11483 = vmul.f32 1.0, %v11482
  %v11484 = vrcp.pop %v11143
  %v11485 = vmul.f32 1.0, %v11484
  %v11486 = vrcp.pop %v11144
  %v11487 = vmul.f32 1.0, %v11486
  %v11488 = vrcp.pop %v11145
  %v11489 = vmul.f32 1.0, %v11488
  %v11490 = vrcp.pop %v11146
  %v11491 = vmul.f32 1.0, %v11490
  %v11492 = vrcp.pop %v11147
  %v11493 = vmul.f32 1.0, %v11492
  %v11494 = vrcp.pop %v11148
  %v11495 = vmul.f32 1.0, %v11494
  %v11496 = vrcp.pop %v11149
  %v11497 = vmul.f32 1.0, %v11496
  %v11498 = vrcp.pop %v11150
  %v11499 = vmul.f32 1.0, %v11498
  %v11500 = vrcp.pop %v11151
  %v11501 = vmul.f32 1.0, %v11500
  %v11502 = vrcp.pop %v11152
  %v11503 = vmul.f32 1.0, %v11502
  %v11504 = vrcp.pop %v11153
  %v11505 = vmul.f32 1.0, %v11504
  %v11506 = vrcp.pop %v11154
  %v11507 = vmul.f32 1.0, %v11506
  %v11508 = vrcp.pop %v11155
  %v11509 = vmul.f32 1.0, %v11508
  %v11510 = vrcp.pop %v11156
  %v11511 = vmul.f32 1.0, %v11510
  %v11512 = vrcp.pop %v11157
  %v11513 = vmul.f32 1.0, %v11512
  %v11514 = vrcp.pop %v11158
  %v11515 = vmul.f32 1.0, %v11514
  %v11516 = vrcp.pop %v11159
  %v11517 = vmul.f32 1.0, %v11516
  %v11518 = vrcp.pop %v11160
  %v11519 = vmul.f32 1.0, %v11518
  %v11520 = vrcp.pop %v11161
  %v11521 = vmul.f32 1.0, %v11520
  %v11522 = vrcp.pop %v11162
  %v11523 = vmul.f32 1.0, %v11522
  %v11524 = vrcp.pop %v11163
  %v11525 = vmul.f32 1.0, %v11524
  %v11526 = vrcp.pop %v11164
  %v11527 = vmul.f32 1.0, %v11526
  %v11528 = vrcp.pop %v11165
  %v11529 = vmul.f32 1.0, %v11528
  %v11530 = vrcp.pop %v11166
  %v11531 = vmul.f32 1.0, %v11530
  %v11532 = vrcp.pop %v11167
  %v11533 = vmul.f32 1.0, %v11532
  %v11534 = vrcp.pop %v11168
  %v11535 = vmul.f32 1.0, %v11534
  %v11536 = vrcp.pop %v11169
  %v11537 = vmul.f32 1.0, %v11536
  %v11538 = vrcp.pop %v11170
  %v11539 = vmul.f32 1.0, %v11538
  %v11540 = vrcp.pop %v11171
  %v11541 = vmul.f32 1.0, %v11540
  %v11542 = vrcp.pop %v11172
  %v11543 = vmul.f32 1.0, %v11542
  %v11544 = vrcp.pop %v11173
  %v11545 = vmul.f32 1.0, %v11544
  %v11546 = vrcp.pop %v11174
  %v11547 = vmul.f32 1.0, %v11546
  %v11548 = vrcp.pop %v11175
  %v11549 = vmul.f32 1.0, %v11548
  %v11550 = vrcp.pop %v11176
  %v11551 = vmul.f32 1.0, %v11550
  %v11552 = vrcp.pop %v11177
  %v11553 = vmul.f32 1.0, %v11552
  %v11554 = vrcp.pop %v11178
  %v11555 = vmul.f32 1.0, %v11554
  %v11556 = vrcp.pop %v11179
  %v11557 = vmul.f32 1.0, %v11556
  %v11558 = vrcp.pop %v11180
  %v11559 = vmul.f32 1.0, %v11558
  %v11560 = vrcp.pop %v11181
  %v11561 = vmul.f32 1.0, %v11560
  %v11562 = vrcp.pop %v11182
  %v11563 = vmul.f32 1.0, %v11562
  %v11564 = vrcp.pop %v11183
  %v11565 = vmul.f32 1.0, %v11564
  %v11566 = vrcp.pop %v11184
  %v11567 = vmul.f32 1.0, %v11566
  %v11568 = vrcp.pop %v11185
  %v11569 = vmul.f32 1.0, %v11568
  %v11570 = vrcp.pop %v11186
  %v11571 = vmul.f32 1.0, %v11570
  %v11572 = vrcp.pop %v11187
  %v11573 = vmul.f32 1.0, %v11572
  %v11574 = vrcp.pop %v11188
  %v11575 = vmul.f32 1.0, %v11574
  %v11576 = vrcp.pop %v11189
  %v11577 = vmul.f32 1.0, %v11576
  %v11578 = vrcp.pop %v11190
  %v11579 = vmul.f32 1.0, %v11578
  %v11580 = vrcp.pop %v11191
  %v11581 = vmul.f32 1.0, %v11580
  %v11582 = vrcp.pop %v11192
  %v11583 = vmul.f32 1.0, %v11582
  %v11584 = vrcp.pop %v11193
  %v11585 = vmul.f32 1.0, %v11584
  %v11586 = vrcp.pop %v11194
  %v11587 = vmul.f32 1.0, %v11586
  %v11588 = vrcp.pop %v11195
  %v11589 = vmul.f32 1.0, %v11588
  %v11590 = vrcp.pop %v11196
  %v11591 = vmul.f32 1.0, %v11590
  %v11592 = vrcp.pop %v11197
  %v11593 = vmul.f32 1.0, %v11592
  %v11594 = vrcp.pop %v11198
  %v11595 = vmul.f32 1.0, %v11594
  %v11596 = vrcp.pop %v11199
  %v11597 = vmul.f32 1.0, %v11596
  %v11598 = vrcp.pop %v11200
  %v11599 = vmul.f32 1.0, %v11598
  %v11600 = vrcp.pop %v11201
  %v11601 = vmul.f32 1.0, %v11600
  %v11602 = vrcp.pop %v11202
  %v11603 = vmul.f32 1.0, %v11602
  %v11604 = vrcp.pop %v11203
  %v11605 = vmul.f32 1.0, %v11604
  %v11606 = vrcp.pop %v11204
  %v11607 = vmul.f32 1.0, %v11606
  %v11608 = vrcp.pop %v11205
  %v11609 = vmul.f32 1.0, %v11608
  %v11610 = vrcp.pop %v11206
  %v11611 = vmul.f32 1.0, %v11610
  %v11612 = vrcp.pop %v11207
  %v11613 = vmul.f32 1.0, %v11612
  %v11614 = vrcp.pop %v11208
  %v11615 = vmul.f32 1.0, %v11614
  %v11616 = vrcp.pop %v11209
  %v11617 = vmul.f32 1.0, %v11616
  %v11618 = vrcp.pop %v11210
  %v11619 = vmul.f32 1.0, %v11618
  %v11620 = vrcp.pop %v11211
  %v11621 = vmul.f32 1.0, %v11620
  %v11622 = vrcp.pop %v11212
  %v11623 = vmul.f32 1.0, %v11622
  %v11624 = vrcp.pop %v11213
  %v11625 = vmul.f32 1.0, %v11624
  %v11626 = vrcp.pop %v11214
  %v11627 = vmul.f32 1.0, %v11626
  %v11628 = vrcp.pop %v11215
  %v11629 = vmul.f32 1.0, %v11628
  %v11630 = vrcp.pop %v11216
  %v11631 = vmul.f32 1.0, %v11630
  %v11632 = vrcp.pop %v11217
  %v11633 = vmul.f32 1.0, %v11632
  %v11634 = vrcp.pop %v11218
  %v11635 = vmul.f32 1.0, %v11634
  %v11636 = vrcp.pop %v11219
  %v11637 = vmul.f32 1.0, %v11636
  %v11638 = vrcp.pop %v11220
  %v11639 = vmul.f32 1.0, %v11638
  %v11640 = vrcp.pop %v11221
  %v11641 = vmul.f32 1.0, %v11640
  %v11642 = vrcp.pop %v11222
  %v11643 = vmul.f32 1.0, %v11642
  %v11644 = vrcp.pop %v11223
  %v11645 = vmul.f32 1.0, %v11644
  %v11646 = vrcp.pop %v11224
  %v11647 = vmul.f32 1.0, %v11646
  %v11648 = vrcp.pop %v11225
  %v11649 = vmul.f32 1.0, %v11648
  %v11650 = vrcp.pop %v11226
  %v11651 = vmul.f32 1.0, %v11650
  %v11652 = vrcp.pop %v11227
  %v11653 = vmul.f32 1.0, %v11652
  %v11654 = vrcp.pop %v11228
  %v11655 = vmul.f32 1.0, %v11654
  %v11656 = vrcp.pop %v11229
  %v11657 = vmul.f32 1.0, %v11656
  %v11658 = vrcp.pop %v11230
  %v11659 = vmul.f32 1.0, %v11658
  %v11660 = vrcp.pop %v11231
  %v11661 = vmul.f32 1.0, %v11660
  %v11662 = vrcp.pop %v11232
  %v11663 = vmul.f32 1.0, %v11662
  %v11664 = vrcp.pop %v11233
  %v11665 = vmul.f32 1.0, %v11664
  %v11666 = vrcp.pop %v11234
  %v11667 = vmul.f32 1.0, %v11666
  %v11668 = vrcp.pop %v11235
  %v11669 = vmul.f32 1.0, %v11668
  %v11670 = vrcp.pop %v11236
  %v11671 = vmul.f32 1.0, %v11670
  %v11672 = vrcp.pop %v11237
  %v11673 = vmul.f32 1.0, %v11672
  %v11674 = vrcp.pop %v11238
  %v11675 = vmul.f32 1.0, %v11674
  %v11676 = vrcp.pop %v11239
  %v11677 = vmul.f32 1.0, %v11676
  %v11678 = vrcp.pop %v11240
  %v11679 = vmul.f32 1.0, %v11678
  %v11680 = vrcp.pop %v11241
  %v11681 = vmul.f32 1.0, %v11680
  %v11682 = vrcp.pop %v11242
  %v11683 = vmul.f32 1.0, %v11682
  %v11684 = vrcp.pop %v11243
  %v11685 = vmul.f32 1.0, %v11684
  %v11686 = vrcp.pop %v11244
  %v11687 = vmul.f32 1.0, %v11686
  %v11688 = vrcp.pop %v11245
  %v11689 = vmul.f32 1.0, %v11688
  %v11690 = vrcp.pop %v11246
  %v11691 = vmul.f32 1.0, %v11690
  %v11692 = vrcp.pop %v11247
  %v11693 = vmul.f32 1.0, %v11692
  %v11694 = vrcp.pop %v11248
  %v11695 = vmul.f32 1.0, %v11694
  %v11696 = vrcp.pop %v11249
  %v11697 = vmul.f32 1.0, %v11696
  %v11698 = vrcp.pop %v11250
  %v11699 = vmul.f32 1.0, %v11698
  %v11700 = vrcp.pop %v11251
  %v11701 = vmul.f32 1.0, %v11700
  %v11702 = vrcp.pop %v11252
  %v11703 = vmul.f32 1.0, %v11702
  %v11704 = vrcp.pop %v11253
  %v11705 = vmul.f32 1.0, %v11704
  %v11706 = vrcp.pop %v11254
  %v11707 = vmul.f32 1.0, %v11706
  %v11708 = vrcp.pop %v11255
  %v11709 = vmul.f32 1.0, %v11708
  %v11710 = vrcp.pop %v11256
  %v11711 = vmul.f32 1.0, %v11710
  %v11712 = vrcp.pop %v11257
  %v11713 = vmul.f32 1.0, %v11712
  %v11714 = vrcp.pop %v11258
  %v11715 = vmul.f32 1.0, %v11714
  %v11716 = vrcp.pop %v11259
  %v11717 = vmul.f32 1.0, %v11716
  %v11718 = vrcp.pop %v11260
  %v11719 = vmul.f32 1.0, %v11718
  %v11720 = vrcp.pop %v11261
  %v11721 = vmul.f32 1.0, %v11720
  %v11722 = vrcp.pop %v11262
  %v11723 = vmul.f32 1.0, %v11722
  %v11724 = vrcp.pop %v11263
  %v11725 = vmul.f32 1.0, %v11724
  %v11726 = vrcp.pop %v11264
  %v11727 = vmul.f32 1.0, %v11726
  %v11728 = vrcp.pop %v11265
  %v11729 = vmul.f32 1.0, %v11728
  %v11730 = vrcp.pop %v11266
  %v11731 = vmul.f32 1.0, %v11730
  %v11732 = vrcp.pop %v11267
  %v11733 = vmul.f32 1.0, %v11732
  %v11734 = vrcp.pop %v11268
  %v11735 = vmul.f32 1.0, %v11734
  %v11736 = vrcp.pop %v11269
  %v11737 = vmul.f32 1.0, %v11736
  %v11738 = vrcp.pop %v11270
  %v11739 = vmul.f32 1.0, %v11738
  %v11740 = vrcp.pop %v11271
  %v11741 = vmul.f32 1.0, %v11740
  %v11742 = vrcp.pop %v11272
  %v11743 = vmul.f32 1.0, %v11742
  %v11744 = vrcp.pop %v11273
  %v11745 = vmul.f32 1.0, %v11744
  %v11746 = vrcp.pop %v11274
  %v11747 = vmul.f32 1.0, %v11746
  %v11748 = vrcp.pop %v11275
  %v11749 = vmul.f32 1.0, %v11748
  %v11750 = vrcp.pop %v11276
  %v11751 = vmul.f32 1.0, %v11750
  %v11752 = vrcp.pop %v11277
  %v11753 = vmul.f32 1.0, %v11752
  %v11754 = vrcp.pop %v11278
  %v11755 = vmul.f32 1.0, %v11754
  %v11756 = vrcp.pop %v11279
  %v11757 = vmul.f32 1.0, %v11756
  %v11758 = vrcp.pop %v11280
  %v11759 = vmul.f32 1.0, %v11758
  %v11760 = vrcp.pop %v11281
  %v11761 = vmul.f32 1.0, %v11760
  %v11762 = vrcp.pop %v11282
  %v11763 = vmul.f32 1.0, %v11762
  %v11764 = vrcp.pop %v11283
  %v11765 = vmul.f32 1.0, %v11764
  %v11766 = vrcp.pop %v11284
  %v11767 = vmul.f32 1.0, %v11766
  %v11768 = vrcp.pop %v11285
  %v11769 = vmul.f32 1.0, %v11768
  %v11770 = vrcp.pop %v11286
  %v11771 = vmul.f32 1.0, %v11770
  %v11772 = vrcp.pop %v11287
  %v11773 = vmul.f32 1.0, %v11772
  %v11774 = vrcp.pop %v11288
  %v11775 = vmul.f32 1.0, %v11774
  %v11776 = vrcp.pop %v11289
  %v11777 = vmul.f32 1.0, %v11776
  %v11778 = vrcp.pop %v11290
  %v11779 = vmul.f32 1.0, %v11778
  %v11780 = vrcp.pop %v11291
  %v11781 = vmul.f32 1.0, %v11780
  %v11782 = vrcp.pop %v11292
  %v11783 = vmul.f32 1.0, %v11782
  %v11784 = vrcp.pop %v11293
  %v11785 = vmul.f32 1.0, %v11784
  %v11786 = vrcp.pop %v11294
  %v11787 = vmul.f32 1.0, %v11786
  %v11788 = vrcp.pop %v11295
  %v11789 = vmul.f32 1.0, %v11788
  %v11790 = vrcp.pop %v11296
  %v11791 = vmul.f32 1.0, %v11790
  %v11792 = vrcp.pop %v11297
  %v11793 = vmul.f32 1.0, %v11792
  %v11794 = vrcp.pop %v11298
  %v11795 = vmul.f32 1.0, %v11794
  %v11796 = vrcp.pop %v11299
  %v11797 = vmul.f32 1.0, %v11796
  %v11798 = vrcp.pop %v11300
  %v11799 = vmul.f32 1.0, %v11798
  %v11800 = vrcp.pop %v11301
  %v11801 = vmul.f32 1.0, %v11800
  %v11802 = vrcp.pop %v11302
  %v11803 = vmul.f32 1.0, %v11802
  %v11804 = vrcp.pop %v11303
  %v11805 = vmul.f32 1.0, %v11804
  %v11806 = vrcp.pop %v11304
  %v11807 = vmul.f32 1.0, %v11806
  %v11808 = vrcp.pop %v11305
  %v11809 = vmul.f32 1.0, %v11808
  %v11810 = vrcp.pop %v11306
  %v11811 = vmul.f32 1.0, %v11810
  %v11812 = vrcp.pop %v11307
  %v11813 = vmul.f32 1.0, %v11812
  %v11814 = vrcp.pop %v11308
  %v11815 = vmul.f32 1.0, %v11814
  %v11816 = vrcp.pop %v11309
  %v11817 = vmul.f32 1.0, %v11816
  %v11818 = vrcp.pop %v11310
  %v11819 = vmul.f32 1.0, %v11818
  %v11820 = vrcp.pop %v11311
  %v11821 = vmul.f32 1.0, %v11820
  %v11822 = vrcp.pop %v11312
  %v11823 = vmul.f32 1.0, %v11822
  %v11824 = vrcp.pop %v11313
  %v11825 = vmul.f32 1.0, %v11824
  %vm11826 = vcmask 7168
  %11827 = vst.msk [vmem:[%s11] sm:$0xff] %vm11826, %v11315
  %11828 = vst.msk [vmem:[%s11 + $0x8] sm:$0xff] %vm11826, %v11317
  %11829 = vst.msk [vmem:[%s11 + $0x10] sm:$0xff] %vm11826, %v11319
  %11830 = vst.msk [vmem:[%s11 + $0x18] sm:$0xff] %vm11826, %v11321
  %11831 = vst.msk [vmem:[%s11 + $0x20] sm:$0xff] %vm11826, %v11323
  %11832 = vst.msk [vmem:[%s11 + $0x28] sm:$0xff] %vm11826, %v11325
  %11833 = vst.msk [vmem:[%s11 + $0x30] sm:$0xff] %vm11826, %v11327
  %11834 = vst.msk [vmem:[%s11 + $0x38] sm:$0xff] %vm11826, %v11329
  %11835 = vst.msk [vmem:[%s11 + $0x40] sm:$0xff] %vm11826, %v11331
  %11836 = vst.msk [vmem:[%s11 + $0x48] sm:$0xff] %vm11826, %v11333
  %11837 = vst.msk [vmem:[%s11 + $0x50] sm:$0xff] %vm11826, %v11335
  %11838 = vst.msk [vmem:[%s11 + $0x58] sm:$0xff] %vm11826, %v11337
  %11839 = vst.msk [vmem:[%s11 + $0x60] sm:$0xff] %vm11826, %v11339
  %11840 = vst.msk [vmem:[%s11 + $0x68] sm:$0xff] %vm11826, %v11341
  %11841 = vst.msk [vmem:[%s11 + $0x70] sm:$0xff] %vm11826, %v11343
  %11842 = vst.msk [vmem:[%s11 + $0x78] sm:$0xff] %vm11826, %v11345
  %11843 = vst.msk [vmem:[%s11 + $0x80] sm:$0xff] %vm11826, %v11347
  %11844 = vst.msk [vmem:[%s11 + $0x88] sm:$0xff] %vm11826, %v11349
  %11845 = vst.msk [vmem:[%s11 + $0x90] sm:$0xff] %vm11826, %v11351
  %11846 = vst.msk [vmem:[%s11 + $0x98] sm:$0xff] %vm11826, %v11353
  %11847 = vst.msk [vmem:[%s11 + $0xa0] sm:$0xff] %vm11826, %v11355
  %11848 = vst.msk [vmem:[%s11 + $0xa8] sm:$0xff] %vm11826, %v11357
  %11849 = vst.msk [vmem:[%s11 + $0xb0] sm:$0xff] %vm11826, %v11359
  %11850 = vst.msk [vmem:[%s11 + $0xb8] sm:$0xff] %vm11826, %v11361
  %11851 = vst.msk [vmem:[%s11 + $0xc0] sm:$0xff] %vm11826, %v11363
  %11852 = vst.msk [vmem:[%s11 + $0xc8] sm:$0xff] %vm11826, %v11365
  %11853 = vst.msk [vmem:[%s11 + $0xd0] sm:$0xff] %vm11826, %v11367
  %11854 = vst.msk [vmem:[%s11 + $0xd8] sm:$0xff] %vm11826, %v11369
  %11855 = vst.msk [vmem:[%s11 + $0xe0] sm:$0xff] %vm11826, %v11371
  %11856 = vst.msk [vmem:[%s11 + $0xe8] sm:$0xff] %vm11826, %v11373
  %11857 = vst.msk [vmem:[%s11 + $0xf0] sm:$0xff] %vm11826, %v11375
  %11858 = vst.msk [vmem:[%s11 + $0xf8] sm:$0xff] %vm11826, %v11377
  %11859 = vst.msk [vmem:[%s11 + $0x100] sm:$0xff] %vm11826, %v11379
  %11860 = vst.msk [vmem:[%s11 + $0x108] sm:$0xff] %vm11826, %v11381
  %11861 = vst.msk [vmem:[%s11 + $0x110] sm:$0xff] %vm11826, %v11383
  %11862 = vst.msk [vmem:[%s11 + $0x118] sm:$0xff] %vm11826, %v11385
  %11863 = vst.msk [vmem:[%s11 + $0x120] sm:$0xff] %vm11826, %v11387
  %11864 = vst.msk [vmem:[%s11 + $0x128] sm:$0xff] %vm11826, %v11389
  %11865 = vst.msk [vmem:[%s11 + $0x130] sm:$0xff] %vm11826, %v11391
  %11866 = vst.msk [vmem:[%s11 + $0x138] sm:$0xff] %vm11826, %v11393
  %11867 = vst.msk [vmem:[%s11 + $0x140] sm:$0xff] %vm11826, %v11395
  %11868 = vst.msk [vmem:[%s11 + $0x148] sm:$0xff] %vm11826, %v11397
  %11869 = vst.msk [vmem:[%s11 + $0x150] sm:$0xff] %vm11826, %v11399
  %11870 = vst.msk [vmem:[%s11 + $0x158] sm:$0xff] %vm11826, %v11401
  %11871 = vst.msk [vmem:[%s11 + $0x160] sm:$0xff] %vm11826, %v11403
  %11872 = vst.msk [vmem:[%s11 + $0x168] sm:$0xff] %vm11826, %v11405
  %11873 = vst.msk [vmem:[%s11 + $0x170] sm:$0xff] %vm11826, %v11407
  %11874 = vst.msk [vmem:[%s11 + $0x178] sm:$0xff] %vm11826, %v11409
  %11875 = vst.msk [vmem:[%s11 + $0x180] sm:$0xff] %vm11826, %v11411
  %11876 = vst.msk [vmem:[%s11 + $0x188] sm:$0xff] %vm11826, %v11413
  %11877 = vst.msk [vmem:[%s11 + $0x190] sm:$0xff] %vm11826, %v11415
  %11878 = vst.msk [vmem:[%s11 + $0x198] sm:$0xff] %vm11826, %v11417
  %11879 = vst.msk [vmem:[%s11 + $0x1a0] sm:$0xff] %vm11826, %v11419
  %11880 = vst.msk [vmem:[%s11 + $0x1a8] sm:$0xff] %vm11826, %v11421
  %11881 = vst.msk [vmem:[%s11 + $0x1b0] sm:$0xff] %vm11826, %v11423
  %11882 = vst.msk [vmem:[%s11 + $0x1b8] sm:$0xff] %vm11826, %v11425
  %11883 = vst.msk [vmem:[%s11 + $0x1c0] sm:$0xff] %vm11826, %v11427
  %11884 = vst.msk [vmem:[%s11 + $0x1c8] sm:$0xff] %vm11826, %v11429
  %11885 = vst.msk [vmem:[%s11 + $0x1d0] sm:$0xff] %vm11826, %v11431
  %11886 = vst.msk [vmem:[%s11 + $0x1d8] sm:$0xff] %vm11826, %v11433
  %11887 = vst.msk [vmem:[%s11 + $0x1e0] sm:$0xff] %vm11826, %v11435
  %11888 = vst.msk [vmem:[%s11 + $0x1e8] sm:$0xff] %vm11826, %v11437
  %11889 = vst.msk [vmem:[%s11 + $0x1f0] sm:$0xff] %vm11826, %v11439
  %11890 = vst.msk [vmem:[%s11 + $0x1f8] sm:$0xff] %vm11826, %v11441
  %11891 = vst.msk [vmem:[%s11 + $0x200] sm:$0xff] %vm11826, %v11443
  %11892 = vst.msk [vmem:[%s11 + $0x208] sm:$0xff] %vm11826, %v11445
  %11893 = vst.msk [vmem:[%s11 + $0x210] sm:$0xff] %vm11826, %v11447
  %11894 = vst.msk [vmem:[%s11 + $0x218] sm:$0xff] %vm11826, %v11449
  %11895 = vst.msk [vmem:[%s11 + $0x220] sm:$0xff] %vm11826, %v11451
  %11896 = vst.msk [vmem:[%s11 + $0x228] sm:$0xff] %vm11826, %v11453
  %11897 = vst.msk [vmem:[%s11 + $0x230] sm:$0xff] %vm11826, %v11455
  %11898 = vst.msk [vmem:[%s11 + $0x238] sm:$0xff] %vm11826, %v11457
  %11899 = vst.msk [vmem:[%s11 + $0x240] sm:$0xff] %vm11826, %v11459
  %11900 = vst.msk [vmem:[%s11 + $0x248] sm:$0xff] %vm11826, %v11461
  %11901 = vst.msk [vmem:[%s11 + $0x250] sm:$0xff] %vm11826, %v11463
  %11902 = vst.msk [vmem:[%s11 + $0x258] sm:$0xff] %vm11826, %v11465
  %11903 = vst.msk [vmem:[%s11 + $0x260] sm:$0xff] %vm11826, %v11467
  %11904 = vst.msk [vmem:[%s11 + $0x268] sm:$0xff] %vm11826, %v11469
  %11905 = vst.msk [vmem:[%s11 + $0x270] sm:$0xff] %vm11826, %v11471
  %11906 = vst.msk [vmem:[%s11 + $0x278] sm:$0xff] %vm11826, %v11473
  %11907 = vst.msk [vmem:[%s11 + $0x280] sm:$0xff] %vm11826, %v11475
  %11908 = vst.msk [vmem:[%s11 + $0x288] sm:$0xff] %vm11826, %v11477
  %11909 = vst.msk [vmem:[%s11 + $0x290] sm:$0xff] %vm11826, %v11479
  %11910 = vst.msk [vmem:[%s11 + $0x298] sm:$0xff] %vm11826, %v11481
  %11911 = vst.msk [vmem:[%s11 + $0x2a0] sm:$0xff] %vm11826, %v11483
  %11912 = vst.msk [vmem:[%s11 + $0x2a8] sm:$0xff] %vm11826, %v11485
  %11913 = vst.msk [vmem:[%s11 + $0x2b0] sm:$0xff] %vm11826, %v11487
  %11914 = vst.msk [vmem:[%s11 + $0x2b8] sm:$0xff] %vm11826, %v11489
  %11915 = vst.msk [vmem:[%s11 + $0x2c0] sm:$0xff] %vm11826, %v11491
  %11916 = vst.msk [vmem:[%s11 + $0x2c8] sm:$0xff] %vm11826, %v11493
  %11917 = vst.msk [vmem:[%s11 + $0x2d0] sm:$0xff] %vm11826, %v11495
  %11918 = vst.msk [vmem:[%s11 + $0x2d8] sm:$0xff] %vm11826, %v11497
  %11919 = vst.msk [vmem:[%s11 + $0x2e0] sm:$0xff] %vm11826, %v11499
  %11920 = vst.msk [vmem:[%s11 + $0x2e8] sm:$0xff] %vm11826, %v11501
  %11921 = vst.msk [vmem:[%s11 + $0x2f0] sm:$0xff] %vm11826, %v11503
  %11922 = vst.msk [vmem:[%s11 + $0x2f8] sm:$0xff] %vm11826, %v11505
  %11923 = vst.msk [vmem:[%s11 + $0x300] sm:$0xff] %vm11826, %v11507
  %11924 = vst.msk [vmem:[%s11 + $0x308] sm:$0xff] %vm11826, %v11509
  %11925 = vst.msk [vmem:[%s11 + $0x310] sm:$0xff] %vm11826, %v11511
  %11926 = vst.msk [vmem:[%s11 + $0x318] sm:$0xff] %vm11826, %v11513
  %11927 = vst.msk [vmem:[%s11 + $0x320] sm:$0xff] %vm11826, %v11515
  %11928 = vst.msk [vmem:[%s11 + $0x328] sm:$0xff] %vm11826, %v11517
  %11929 = vst.msk [vmem:[%s11 + $0x330] sm:$0xff] %vm11826, %v11519
  %11930 = vst.msk [vmem:[%s11 + $0x338] sm:$0xff] %vm11826, %v11521
  %11931 = vst.msk [vmem:[%s11 + $0x340] sm:$0xff] %vm11826, %v11523
  %11932 = vst.msk [vmem:[%s11 + $0x348] sm:$0xff] %vm11826, %v11525
  %11933 = vst.msk [vmem:[%s11 + $0x350] sm:$0xff] %vm11826, %v11527
  %11934 = vst.msk [vmem:[%s11 + $0x358] sm:$0xff] %vm11826, %v11529
  %11935 = vst.msk [vmem:[%s11 + $0x360] sm:$0xff] %vm11826, %v11531
  %11936 = vst.msk [vmem:[%s11 + $0x368] sm:$0xff] %vm11826, %v11533
  %11937 = vst.msk [vmem:[%s11 + $0x370] sm:$0xff] %vm11826, %v11535
  %11938 = vst.msk [vmem:[%s11 + $0x378] sm:$0xff] %vm11826, %v11537
  %11939 = vst.msk [vmem:[%s11 + $0x380] sm:$0xff] %vm11826, %v11539
  %11940 = vst.msk [vmem:[%s11 + $0x388] sm:$0xff] %vm11826, %v11541
  %11941 = vst.msk [vmem:[%s11 + $0x390] sm:$0xff] %vm11826, %v11543
  %11942 = vst.msk [vmem:[%s11 + $0x398] sm:$0xff] %vm11826, %v11545
  %11943 = vst.msk [vmem:[%s11 + $0x3a0] sm:$0xff] %vm11826, %v11547
  %11944 = vst.msk [vmem:[%s11 + $0x3a8] sm:$0xff] %vm11826, %v11549
  %11945 = vst.msk [vmem:[%s11 + $0x3b0] sm:$0xff] %vm11826, %v11551
  %11946 = vst.msk [vmem:[%s11 + $0x3b8] sm:$0xff] %vm11826, %v11553
  %11947 = vst.msk [vmem:[%s11 + $0x3c0] sm:$0xff] %vm11826, %v11555
  %11948 = vst.msk [vmem:[%s11 + $0x3c8] sm:$0xff] %vm11826, %v11557
  %11949 = vst.msk [vmem:[%s11 + $0x3d0] sm:$0xff] %vm11826, %v11559
  %11950 = vst.msk [vmem:[%s11 + $0x3d8] sm:$0xff] %vm11826, %v11561
  %11951 = vst.msk [vmem:[%s11 + $0x3e0] sm:$0xff] %vm11826, %v11563
  %11952 = vst.msk [vmem:[%s11 + $0x3e8] sm:$0xff] %vm11826, %v11565
  %11953 = vst.msk [vmem:[%s11 + $0x3f0] sm:$0xff] %vm11826, %v11567
  %11954 = vst.msk [vmem:[%s11 + $0x3f8] sm:$0xff] %vm11826, %v11569
  %11955 = vst.msk [vmem:[%s11 + $0x400] sm:$0xff] %vm11826, %v11571
  %11956 = vst.msk [vmem:[%s11 + $0x408] sm:$0xff] %vm11826, %v11573
  %11957 = vst.msk [vmem:[%s11 + $0x410] sm:$0xff] %vm11826, %v11575
  %11958 = vst.msk [vmem:[%s11 + $0x418] sm:$0xff] %vm11826, %v11577
  %11959 = vst.msk [vmem:[%s11 + $0x420] sm:$0xff] %vm11826, %v11579
  %11960 = vst.msk [vmem:[%s11 + $0x428] sm:$0xff] %vm11826, %v11581
  %11961 = vst.msk [vmem:[%s11 + $0x430] sm:$0xff] %vm11826, %v11583
  %11962 = vst.msk [vmem:[%s11 + $0x438] sm:$0xff] %vm11826, %v11585
  %11963 = vst.msk [vmem:[%s11 + $0x440] sm:$0xff] %vm11826, %v11587
  %11964 = vst.msk [vmem:[%s11 + $0x448] sm:$0xff] %vm11826, %v11589
  %11965 = vst.msk [vmem:[%s11 + $0x450] sm:$0xff] %vm11826, %v11591
  %11966 = vst.msk [vmem:[%s11 + $0x458] sm:$0xff] %vm11826, %v11593
  %11967 = vst.msk [vmem:[%s11 + $0x460] sm:$0xff] %vm11826, %v11595
  %11968 = vst.msk [vmem:[%s11 + $0x468] sm:$0xff] %vm11826, %v11597
  %11969 = vst.msk [vmem:[%s11 + $0x470] sm:$0xff] %vm11826, %v11599
  %11970 = vst.msk [vmem:[%s11 + $0x478] sm:$0xff] %vm11826, %v11601
  %11971 = vst.msk [vmem:[%s11 + $0x480] sm:$0xff] %vm11826, %v11603
  %11972 = vst.msk [vmem:[%s11 + $0x488] sm:$0xff] %vm11826, %v11605
  %11973 = vst.msk [vmem:[%s11 + $0x490] sm:$0xff] %vm11826, %v11607
  %11974 = vst.msk [vmem:[%s11 + $0x498] sm:$0xff] %vm11826, %v11609
  %11975 = vst.msk [vmem:[%s11 + $0x4a0] sm:$0xff] %vm11826, %v11611
  %11976 = vst.msk [vmem:[%s11 + $0x4a8] sm:$0xff] %vm11826, %v11613
  %11977 = vst.msk [vmem:[%s11 + $0x4b0] sm:$0xff] %vm11826, %v11615
  %11978 = vst.msk [vmem:[%s11 + $0x4b8] sm:$0xff] %vm11826, %v11617
  %11979 = vst.msk [vmem:[%s11 + $0x4c0] sm:$0xff] %vm11826, %v11619
  %11980 = vst.msk [vmem:[%s11 + $0x4c8] sm:$0xff] %vm11826, %v11621
  %11981 = vst.msk [vmem:[%s11 + $0x4d0] sm:$0xff] %vm11826, %v11623
  %11982 = vst.msk [vmem:[%s11 + $0x4d8] sm:$0xff] %vm11826, %v11625
  %11983 = vst.msk [vmem:[%s11 + $0x4e0] sm:$0xff] %vm11826, %v11627
  %11984 = vst.msk [vmem:[%s11 + $0x4e8] sm:$0xff] %vm11826, %v11629
  %11985 = vst.msk [vmem:[%s11 + $0x4f0] sm:$0xff] %vm11826, %v11631
  %11986 = vst.msk [vmem:[%s11 + $0x4f8] sm:$0xff] %vm11826, %v11633
  %11987 = vst.msk [vmem:[%s11 + $0x500] sm:$0xff] %vm11826, %v11635
  %11988 = vst.msk [vmem:[%s11 + $0x508] sm:$0xff] %vm11826, %v11637
  %11989 = vst.msk [vmem:[%s11 + $0x510] sm:$0xff] %vm11826, %v11639
  %11990 = vst.msk [vmem:[%s11 + $0x518] sm:$0xff] %vm11826, %v11641
  %11991 = vst.msk [vmem:[%s11 + $0x520] sm:$0xff] %vm11826, %v11643
  %11992 = vst.msk [vmem:[%s11 + $0x528] sm:$0xff] %vm11826, %v11645
  %11993 = vst.msk [vmem:[%s11 + $0x530] sm:$0xff] %vm11826, %v11647
  %11994 = vst.msk [vmem:[%s11 + $0x538] sm:$0xff] %vm11826, %v11649
  %11995 = vst.msk [vmem:[%s11 + $0x540] sm:$0xff] %vm11826, %v11651
  %11996 = vst.msk [vmem:[%s11 + $0x548] sm:$0xff] %vm11826, %v11653
  %11997 = vst.msk [vmem:[%s11 + $0x550] sm:$0xff] %vm11826, %v11655
  %11998 = vst.msk [vmem:[%s11 + $0x558] sm:$0xff] %vm11826, %v11657
  %11999 = vst.msk [vmem:[%s11 + $0x560] sm:$0xff] %vm11826, %v11659
  %12000 = vst.msk [vmem:[%s11 + $0x568] sm:$0xff] %vm11826, %v11661
  %12001 = vst.msk [vmem:[%s11 + $0x570] sm:$0xff] %vm11826, %v11663
  %12002 = vst.msk [vmem:[%s11 + $0x578] sm:$0xff] %vm11826, %v11665
  %12003 = vst.msk [vmem:[%s11 + $0x580] sm:$0xff] %vm11826, %v11667
  %12004 = vst.msk [vmem:[%s11 + $0x588] sm:$0xff] %vm11826, %v11669
  %12005 = vst.msk [vmem:[%s11 + $0x590] sm:$0xff] %vm11826, %v11671
  %12006 = vst.msk [vmem:[%s11 + $0x598] sm:$0xff] %vm11826, %v11673
  %12007 = vst.msk [vmem:[%s11 + $0x5a0] sm:$0xff] %vm11826, %v11675
  %12008 = vst.msk [vmem:[%s11 + $0x5a8] sm:$0xff] %vm11826, %v11677
  %12009 = vst.msk [vmem:[%s11 + $0x5b0] sm:$0xff] %vm11826, %v11679
  %12010 = vst.msk [vmem:[%s11 + $0x5b8] sm:$0xff] %vm11826, %v11681
  %12011 = vst.msk [vmem:[%s11 + $0x5c0] sm:$0xff] %vm11826, %v11683
  %12012 = vst.msk [vmem:[%s11 + $0x5c8] sm:$0xff] %vm11826, %v11685
  %12013 = vst.msk [vmem:[%s11 + $0x5d0] sm:$0xff] %vm11826, %v11687
  %12014 = vst.msk [vmem:[%s11 + $0x5d8] sm:$0xff] %vm11826, %v11689
  %12015 = vst.msk [vmem:[%s11 + $0x5e0] sm:$0xff] %vm11826, %v11691
  %12016 = vst.msk [vmem:[%s11 + $0x5e8] sm:$0xff] %vm11826, %v11693
  %12017 = vst.msk [vmem:[%s11 + $0x5f0] sm:$0xff] %vm11826, %v11695
  %12018 = vst.msk [vmem:[%s11 + $0x5f8] sm:$0xff] %vm11826, %v11697
  %12019 = vst.msk [vmem:[%s11 + $0x600] sm:$0xff] %vm11826, %v11699
  %12020 = vst.msk [vmem:[%s11 + $0x608] sm:$0xff] %vm11826, %v11701
  %12021 = vst.msk [vmem:[%s11 + $0x610] sm:$0xff] %vm11826, %v11703
  %12022 = vst.msk [vmem:[%s11 + $0x618] sm:$0xff] %vm11826, %v11705
  %12023 = vst.msk [vmem:[%s11 + $0x620] sm:$0xff] %vm11826, %v11707
  %12024 = vst.msk [vmem:[%s11 + $0x628] sm:$0xff] %vm11826, %v11709
  %12025 = vst.msk [vmem:[%s11 + $0x630] sm:$0xff] %vm11826, %v11711
  %12026 = vst.msk [vmem:[%s11 + $0x638] sm:$0xff] %vm11826, %v11713
  %12027 = vst.msk [vmem:[%s11 + $0x640] sm:$0xff] %vm11826, %v11715
  %12028 = vst.msk [vmem:[%s11 + $0x648] sm:$0xff] %vm11826, %v11717
  %12029 = vst.msk [vmem:[%s11 + $0x650] sm:$0xff] %vm11826, %v11719
  %12030 = vst.msk [vmem:[%s11 + $0x658] sm:$0xff] %vm11826, %v11721
  %12031 = vst.msk [vmem:[%s11 + $0x660] sm:$0xff] %vm11826, %v11723
  %12032 = vst.msk [vmem:[%s11 + $0x668] sm:$0xff] %vm11826, %v11725
  %12033 = vst.msk [vmem:[%s11 + $0x670] sm:$0xff] %vm11826, %v11727
  %12034 = vst.msk [vmem:[%s11 + $0x678] sm:$0xff] %vm11826, %v11729
  %12035 = vst.msk [vmem:[%s11 + $0x680] sm:$0xff] %vm11826, %v11731
  %12036 = vst.msk [vmem:[%s11 + $0x688] sm:$0xff] %vm11826, %v11733
  %12037 = vst.msk [vmem:[%s11 + $0x690] sm:$0xff] %vm11826, %v11735
  %12038 = vst.msk [vmem:[%s11 + $0x698] sm:$0xff] %vm11826, %v11737
  %12039 = vst.msk [vmem:[%s11 + $0x6a0] sm:$0xff] %vm11826, %v11739
  %12040 = vst.msk [vmem:[%s11 + $0x6a8] sm:$0xff] %vm11826, %v11741
  %12041 = vst.msk [vmem:[%s11 + $0x6b0] sm:$0xff] %vm11826, %v11743
  %12042 = vst.msk [vmem:[%s11 + $0x6b8] sm:$0xff] %vm11826, %v11745
  %12043 = vst.msk [vmem:[%s11 + $0x6c0] sm:$0xff] %vm11826, %v11747
  %12044 = vst.msk [vmem:[%s11 + $0x6c8] sm:$0xff] %vm11826, %v11749
  %12045 = vst.msk [vmem:[%s11 + $0x6d0] sm:$0xff] %vm11826, %v11751
  %12046 = vst.msk [vmem:[%s11 + $0x6d8] sm:$0xff] %vm11826, %v11753
  %12047 = vst.msk [vmem:[%s11 + $0x6e0] sm:$0xff] %vm11826, %v11755
  %12048 = vst.msk [vmem:[%s11 + $0x6e8] sm:$0xff] %vm11826, %v11757
  %12049 = vst.msk [vmem:[%s11 + $0x6f0] sm:$0xff] %vm11826, %v11759
  %12050 = vst.msk [vmem:[%s11 + $0x6f8] sm:$0xff] %vm11826, %v11761
  %12051 = vst.msk [vmem:[%s11 + $0x700] sm:$0xff] %vm11826, %v11763
  %12052 = vst.msk [vmem:[%s11 + $0x708] sm:$0xff] %vm11826, %v11765
  %12053 = vst.msk [vmem:[%s11 + $0x710] sm:$0xff] %vm11826, %v11767
  %12054 = vst.msk [vmem:[%s11 + $0x718] sm:$0xff] %vm11826, %v11769
  %12055 = vst.msk [vmem:[%s11 + $0x720] sm:$0xff] %vm11826, %v11771
  %12056 = vst.msk [vmem:[%s11 + $0x728] sm:$0xff] %vm11826, %v11773
  %12057 = vst.msk [vmem:[%s11 + $0x730] sm:$0xff] %vm11826, %v11775
  %12058 = vst.msk [vmem:[%s11 + $0x738] sm:$0xff] %vm11826, %v11777
  %12059 = vst.msk [vmem:[%s11 + $0x740] sm:$0xff] %vm11826, %v11779
  %12060 = vst.msk [vmem:[%s11 + $0x748] sm:$0xff] %vm11826, %v11781
  %12061 = vst.msk [vmem:[%s11 + $0x750] sm:$0xff] %vm11826, %v11783
  %12062 = vst.msk [vmem:[%s11 + $0x758] sm:$0xff] %vm11826, %v11785
  %12063 = vst.msk [vmem:[%s11 + $0x760] sm:$0xff] %vm11826, %v11787
  %12064 = vst.msk [vmem:[%s11 + $0x768] sm:$0xff] %vm11826, %v11789
  %12065 = vst.msk [vmem:[%s11 + $0x770] sm:$0xff] %vm11826, %v11791
  %12066 = vst.msk [vmem:[%s11 + $0x778] sm:$0xff] %vm11826, %v11793
  %12067 = vst.msk [vmem:[%s11 + $0x780] sm:$0xff] %vm11826, %v11795
  %12068 = vst.msk [vmem:[%s11 + $0x788] sm:$0xff] %vm11826, %v11797
  %12069 = vst.msk [vmem:[%s11 + $0x790] sm:$0xff] %vm11826, %v11799
  %12070 = vst.msk [vmem:[%s11 + $0x798] sm:$0xff] %vm11826, %v11801
  %12071 = vst.msk [vmem:[%s11 + $0x7a0] sm:$0xff] %vm11826, %v11803
  %12072 = vst.msk [vmem:[%s11 + $0x7a8] sm:$0xff] %vm11826, %v11805
  %12073 = vst.msk [vmem:[%s11 + $0x7b0] sm:$0xff] %vm11826, %v11807
  %12074 = vst.msk [vmem:[%s11 + $0x7b8] sm:$0xff] %vm11826, %v11809
  %12075 = vst.msk [vmem:[%s11 + $0x7c0] sm:$0xff] %vm11826, %v11811
  %12076 = vst.msk [vmem:[%s11 + $0x7c8] sm:$0xff] %vm11826, %v11813
  %12077 = vst.msk [vmem:[%s11 + $0x7d0] sm:$0xff] %vm11826, %v11815
  %12078 = vst.msk [vmem:[%s11 + $0x7d8] sm:$0xff] %vm11826, %v11817
  %12079 = vst.msk [vmem:[%s11 + $0x7e0] sm:$0xff] %vm11826, %v11819
  %12080 = vst.msk [vmem:[%s11 + $0x7e8] sm:$0xff] %vm11826, %v11821
  %12081 = vst.msk [vmem:[%s11 + $0x7f0] sm:$0xff] %vm11826, %v11823
  %12082 = vst.msk [vmem:[%s11 + $0x7f8] sm:$0xff] %vm11826, %v11825
  // Predicated region
  $region46: #{tpu_custom_call.1} parent=0 // pred_check
    _
  $region47: #{tpu_custom_call.1} parent=0 // pred_check_branch
    %12084 = sbr.rel (0) target = $region49
  $region48: #{tpu_custom_call.1} parent=0 // pred_region
    _
  $region49: #{tpu_custom_call.1} parent=0 // pred_fallthru
    _
  // Predicated region
  $region50: #{tpu_custom_call.1} parent=0 // pred_check
    _
  $region51: #{tpu_custom_call.1} parent=0 // pred_check_branch
    %12086 = sbr.rel (0) target = $region53
  $region52: #{tpu_custom_call.1} parent=0 // pred_region
    _
  $region53: #{tpu_custom_call.1} parent=0 // pred_fallthru
    _

</llo_original>
